<compile_context>
chip_gen: v7x
topology: tpu7x:2x2x1
jax: 0.10.0
libtpu: 0.0.40
codegen_flags: <defaults>
</compile_context>

<pallas_src>
import functools
import math

import jax
import jax.numpy as jnp
from jax import lax
from jax.experimental import pallas as pl
from jax.experimental.pallas import tpu as pltpu

CPAD = 128   # channels padded to one full lane tile
PADL = 8     # sublane-aligned column offset of the image interior inside the halo scratch


def double_conv_kernel(x_ref, w1_ref, s1_ref, b1_ref, w2_ref, s2_ref, b2_ref,
                       o_ref, xpad_ref, y1pad_ref, acc_ref, slab_ref):
    """Fused (conv3x3 + BN + ReLU) x 2 for one batch element.

    x_ref:     (1, H, W, Cin)        input tile (NHWC)
    w1_ref:    (3, 3, Cin, CPAD)     stage-1 weights, bf16, Cout padded to CPAD
    s1/b1_ref: (1, CPAD)             stage-1 folded BN scale / (conv-bias+BN) bias
    w2_ref:    (CPAD, 9*CPAD)        stage-2 weights, bf16, row=out-ch, col=(kh,kw,cin)
    s2/b2_ref: (CPAD, 1)             stage-2 folded scale / bias (channel-major)
    o_ref:     (1, Cout, H*W)        lane-dense, channel-major output
    scratch:   xpad  (H+2, WS, Cin)  f32 zero-halo input
               y1pad (H+2, WS, CPAD) f32 zero-halo stage-1 activation
               acc   (H*W, CPAD)     f32 stage-1 accumulator
               slab  (H*W, 9*CPAD)   bf16 stage-2 im2col slab
    """
    H, W, CIN = x_ref.shape[1], x_ref.shape[2], x_ref.shape[3]
    CP = w1_ref.shape[3]
    COUT, HW = o_ref.shape[1], o_ref.shape[2]

    # Fresh zero halos every grid step (scratch persists across steps / cores).
    xpad_ref[...] = jnp.zeros_like(xpad_ref)
    y1pad_ref[...] = jnp.zeros_like(y1pad_ref)
    acc_ref[...] = jnp.zeros_like(acc_ref)

    # Image interior lives at rows [1, H+1) and cols [PADL, PADL+W): stores stay
    # sublane-aligned and the 1-px zero halo sits at row 0 / H+1 and col PADL-1 / PADL+W.
    xpad_ref[1:H + 1, PADL:PADL + W, :] = x_ref[0]

    # ---- stage 1: conv3x3 (Cin -> CPAD) + folded BN + ReLU -----------------------
    # Cin is tiny (3-8): im2col K-folding buys nothing, so keep 9 accumulating MXU
    # dots; each already has a full N=CPAD=128 lane dimension and an aligned layout.
    for kh in range(3):
        for kw in range(3):
            win = xpad_ref[kh:kh + H, PADL - 1 + kw:PADL - 1 + kw + W, :]
            win = win.reshape(HW, CIN).astype(jnp.bfloat16)
            acc_ref[...] += jnp.dot(win, w1_ref[kh, kw],
                                    preferred_element_type=jnp.float32)

    y1 = jnp.maximum(acc_ref[...] * s1_ref[...] + b1_ref[...], 0.0)   # (HW, CPAD) f32
    # Stash stage-1 activations (padded channels are exactly 0) into the second halo
    # scratch so stage 2 never touches HBM.
    y1pad_ref[1:H + 1, PADL:PADL + W, :] = y1.reshape(H, W, CP)

    # ---- stage 2: conv3x3 (CPAD -> CPAD) + folded BN + ReLU ----------------------
    # im2col: build one (HW, 9*CPAD) bf16 slab with 128-lane-aligned stores, then a
    # single well-shaped MXU matmul instead of 9 skinny ones.
    for kh in range(3):
        for kw in range(3):
            win = y1pad_ref[kh:kh + H, PADL - 1 + kw:PADL - 1 + kw + W, :]
            k0 = (kh * 3 + kw) * CP
            slab_ref[:, k0:k0 + CP] = win.reshape(HW, CP).astype(jnp.bfloat16)

    # w2 is (CPAD, 9*CPAD); contracting both K dims lands the result directly in
    # (channel, pixel) orientation -> the store is lane-dense (HW lanes) and the
    # wrapper only needs a free reshape back to NCHW (no transpose anywhere).
    y2 = lax.dot_general(w2_ref[...], slab_ref[...],
                         dimension_numbers=(((1,), (1,)), ((), ())),
                         preferred_element_type=jnp.float32)          # (CPAD, HW) f32
    y2 = jnp.maximum(y2 * s2_ref[...] + b2_ref[...], 0.0)
    o_ref[0] = y2[:COUT, :].astype(o_ref.dtype)


def _double_conv_pallas(x_nhwc, w1, s1, b1, w2, s2, b2, out_ch):
    N, H, W, CIN = x_nhwc.shape
    HW = H * W
    WS = PADL + W + 8   # halo-scratch width, rounded so all interior stores are aligned

    return pl.pallas_call(
        double_conv_kernel,
        out_shape=jax.ShapeDtypeStruct((N, out_ch, HW), jnp.float32),
        grid=(N,),
        in_specs=[
            pl.BlockSpec((1, H, W, CIN), lambda n: (n, 0, 0, 0)),
            pl.BlockSpec((3, 3, CIN, CPAD), lambda n: (0, 0, 0, 0)),
            pl.BlockSpec((1, CPAD), lambda n: (0, 0)),
            pl.BlockSpec((1, CPAD), lambda n: (0, 0)),
            pl.BlockSpec((CPAD, 9 * CPAD), lambda n: (0, 0)),
            pl.BlockSpec((CPAD, 1), lambda n: (0, 0)),
            pl.BlockSpec((CPAD, 1), lambda n: (0, 0)),
        ],
        out_specs=pl.BlockSpec((1, out_ch, HW), lambda n: (n, 0, 0)),
        scratch_shapes=[
            pltpu.VMEM((H + 2, WS, CIN), jnp.float32),
            pltpu.VMEM((H + 2, WS, CPAD), jnp.float32),
            pltpu.VMEM((HW, CPAD), jnp.float32),
            pltpu.VMEM((HW, 9 * CPAD), jnp.bfloat16),
        ],
        compiler_params=pltpu.CompilerParams(
            dimension_semantics=("parallel",)),
    )(x_nhwc, w1, s1, b1, w2, s2, b2)


@functools.partial(jax.jit, static_argnames=("out_ch",))
def in_forward(x_nchw, w1, s1, b1, w2, s2, b2, *, out_ch):
    """Forward of `In` (== DoubleConv).  Input NCHW, output NCHW (PyTorch layout)."""
    N, _, H, W = x_nchw.shape
    # Boundary layout change for the (tiny) input only.
    # TODO(synk): keep the whole network NHWC so this transpose disappears.
    x_nhwc = jnp.transpose(x_nchw, (0, 2, 3, 1))
    y = _double_conv_pallas(x_nhwc, w1, s1, b1, w2, s2, b2, out_ch)
    # Kernel already emits channel-major (N, Cout, H*W): reshape is free, no transpose.
    return y.reshape(N, out_ch, H, W)


# ------------------------- parameter construction / folding -------------------------

def init_torch_conv_bn_params(key, in_ch, out_ch):
    """PyTorch-layout Conv2d(3x3) + BatchNorm2d(eval, default-init) parameters."""
    kw_key, kb_key = jax.random.split(key)
    fan_in = in_ch * 9
    bound = 1.0 / math.sqrt(fan_in)
    weight = jax.random.uniform(kw_key, (out_ch, in_ch, 3, 3), jnp.float32, -bound, bound)
    bias = jax.random.uniform(kb_key, (out_ch,), jnp.float32, -bound, bound)
    return dict(weight=weight, bias=bias,
                gamma=jnp.ones((out_ch,), jnp.float32),
                beta=jnp.zeros((out_ch,), jnp.float32),
                running_mean=jnp.zeros((out_ch,), jnp.float32),
                running_var=jnp.ones((out_ch,), jnp.float32))


def _fold_bn(p, eps=1e-5):
    scale = p["gamma"] / jnp.sqrt(p["running_var"] + eps)
    bias = (p["bias"] - p["running_mean"]) * scale + p["beta"]
    return scale, bias


def prepare_params(p1, p2, out_ch):
    """Fold eval-mode BN, transpose PyTorch (O,I,3,3) weights to kernel layout, pad to CPAD."""
    # Stage 1: (O,I,3,3) -> (3,3,I,CPAD) bf16.
    w1 = jnp.transpose(p1["weight"], (2, 3, 1, 0))
    w1 = jnp.pad(w1, ((0, 0), (0, 0), (0, 0), (0, CPAD - out_ch))).astype(jnp.bfloat16)
    s1, b1 = _fold_bn(p1)
    s1 = jnp.pad(s1, (0, CPAD - out_ch)).reshape(1, CPAD)
    b1 = jnp.pad(b1, (0, CPAD - out_ch)).reshape(1, CPAD)

    # Stage 2: (O,I,3,3) -> (CPAD, 9*CPAD) bf16 with column order (kh, kw, cin),
    # matching the kernel's im2col slab layout.
    in2 = p2["weight"].shape[1]
    w2 = jnp.transpose(p2["weight"], (2, 3, 1, 0))                       # (3,3,in2,out)
    w2 = jnp.pad(w2, ((0, 0), (0, 0), (0, CPAD - in2), (0, CPAD - out_ch)))
    w2 = jnp.transpose(w2, (3, 0, 1, 2)).reshape(CPAD, 9 * CPAD).astype(jnp.bfloat16)
    s2, b2 = _fold_bn(p2)
    s2 = jnp.pad(s2, (0, CPAD - out_ch)).reshape(CPAD, 1)
    b2 = jnp.pad(b2, (0, CPAD - out_ch)).reshape(CPAD, 1)
    return w1, s1, b1, w2, s2, b2


if __name__ == "__main__":
    N, in_ch, out_ch, H, W = 2, 4, 8, 16, 16

    key = jax.random.PRNGKey(0)
    kx, k1, k2 = jax.random.split(key, 3)

    x = jax.random.normal(kx, (N, in_ch, H, W), jnp.float32)   # PyTorch NCHW input
    p1 = init_torch_conv_bn_params(k1, in_ch, out_ch)
    p2 = init_torch_conv_bn_params(k2, out_ch, out_ch)
    w1, s1, b1, w2, s2, b2 = prepare_params(p1, p2, out_ch)

    y = in_forward(x, w1, s1, b1, w2, s2, b2, out_ch=out_ch)
    jax.block_until_ready(y)
    assert y.shape == (N, out_ch, H, W)
    print("KERNEL_OK")
</pallas_src>

<mosaic_0001>
module attributes {stable_mosaic.version = 11 : i64} {
  func.func @double_conv_kernel(%arg0: i32, %arg1: memref<1x16x16x4xf32, #tpu.memory_space<vmem>>, %arg2: memref<3x3x4x128xbf16, #tpu.memory_space<vmem>>, %arg3: memref<1x128xf32, #tpu.memory_space<vmem>>, %arg4: memref<1x128xf32, #tpu.memory_space<vmem>>, %arg5: memref<128x1152xbf16, #tpu.memory_space<vmem>>, %arg6: memref<128x1xf32, #tpu.memory_space<vmem>>, %arg7: memref<128x1xf32, #tpu.memory_space<vmem>>, %arg8: memref<1x8x256xf32, #tpu.memory_space<vmem>>, %arg9: memref<18x32x4xf32, #tpu.memory_space<vmem>>, %arg10: memref<18x32x128xf32, #tpu.memory_space<vmem>>, %arg11: memref<256x128xf32, #tpu.memory_space<vmem>>, %arg12: memref<256x1152xbf16, #tpu.memory_space<vmem>>) attributes {dimension_semantics = [#tpu.dimension_semantics<parallel>], iteration_bounds = array<i64: 2>, scalar_prefetch = 0 : i64, scratch_operands = 4 : i64, tpu.core_type = #tpu.core_type<tc>, window_params = [{transform_indices = @transform_0, window_bounds = array<i64: 1, 16, 16, 4>}, {pipeline_mode = #tpu.pipeline_mode<synchronous>, transform_indices = @transform_1, window_bounds = array<i64: 3, 3, 4, 128>}, {pipeline_mode = #tpu.pipeline_mode<synchronous>, transform_indices = @transform_2, window_bounds = array<i64: 1, 128>}, {pipeline_mode = #tpu.pipeline_mode<synchronous>, transform_indices = @transform_3, window_bounds = array<i64: 1, 128>}, {pipeline_mode = #tpu.pipeline_mode<synchronous>, transform_indices = @transform_4, window_bounds = array<i64: 128, 1152>}, {pipeline_mode = #tpu.pipeline_mode<synchronous>, transform_indices = @transform_5, window_bounds = array<i64: 128, 1>}, {pipeline_mode = #tpu.pipeline_mode<synchronous>, transform_indices = @transform_6, window_bounds = array<i64: 128, 1>}, {transform_indices = @transform_7, window_bounds = array<i64: 1, 8, 256>}]} {
    %cst = arith.constant 0.000000e+00 : f32
    %0 = vector.broadcast %cst : f32 to vector<18x32x4xf32>
    %c0 = arith.constant 0 : index
    %c0_0 = arith.constant 0 : index
    %c0_1 = arith.constant 0 : index
    %1 = vector.load %arg9[%c0, %c0_0, %c0_1] : memref<18x32x4xf32, #tpu.memory_space<vmem>>, vector<18x32x4xf32>
    tpu.vector_store %arg9[%c0, %c0_0, %c0_1], %0 {strides = array<i32>} : memref<18x32x4xf32, #tpu.memory_space<vmem>>, vector<18x32x4xf32>,
    %cst_2 = arith.constant 0.000000e+00 : f32
    %2 = vector.broadcast %cst_2 : f32 to vector<18x32x128xf32>
    %c0_3 = arith.constant 0 : index
    %c0_4 = arith.constant 0 : index
    %c0_5 = arith.constant 0 : index
    %3 = vector.load %arg10[%c0_3, %c0_4, %c0_5] : memref<18x32x128xf32, #tpu.memory_space<vmem>>, vector<18x32x128xf32>
    tpu.vector_store %arg10[%c0_3, %c0_4, %c0_5], %2 {strides = array<i32>} : memref<18x32x128xf32, #tpu.memory_space<vmem>>, vector<18x32x128xf32>,
    %cst_6 = arith.constant 0.000000e+00 : f32
    %4 = vector.broadcast %cst_6 : f32 to vector<256x128xf32>
    %c0_7 = arith.constant 0 : index
    %c0_8 = arith.constant 0 : index
    %5 = vector.load %arg11[%c0_7, %c0_8] : memref<256x128xf32, #tpu.memory_space<vmem>>, vector<256x128xf32>
    tpu.vector_store %arg11[%c0_7, %c0_8], %4 {strides = array<i32>} : memref<256x128xf32, #tpu.memory_space<vmem>>, vector<256x128xf32>,
    %c0_9 = arith.constant 0 : index
    %c0_10 = arith.constant 0 : index
    %c0_11 = arith.constant 0 : index
    %c0_12 = arith.constant 0 : index
    %6 = vector.load %arg1[%c0_9, %c0_10, %c0_11, %c0_12] : memref<1x16x16x4xf32, #tpu.memory_space<vmem>>, vector<1x16x16x4xf32>
    %7 = vector.shape_cast %6 : vector<1x16x16x4xf32> to vector<16x16x4xf32>
    %c1 = arith.constant 1 : index
    %c8 = arith.constant 8 : index
    %c0_13 = arith.constant 0 : index
    %8 = vector.load %arg9[%c1, %c8, %c0_13] : memref<18x32x4xf32, #tpu.memory_space<vmem>>, vector<16x16x4xf32>
    tpu.vector_store %arg9[%c1, %c8, %c0_13], %7 {strides = array<i32>} : memref<18x32x4xf32, #tpu.memory_space<vmem>>, vector<16x16x4xf32>,
    %c0_14 = arith.constant 0 : index
    %c7 = arith.constant 7 : index
    %c0_15 = arith.constant 0 : index
    %9 = vector.load %arg9[%c0_14, %c7, %c0_15] : memref<18x32x4xf32, #tpu.memory_space<vmem>>, vector<16x16x4xf32>
    %10 = vector.shape_cast %9 : vector<16x16x4xf32> to vector<256x4xf32>
    %11 = arith.truncf %10 : vector<256x4xf32> to vector<256x4xbf16>
    %c0_16 = arith.constant 0 : index
    %c0_17 = arith.constant 0 : index
    %12 = vector.load %arg11[%c0_16, %c0_17] : memref<256x128xf32, #tpu.memory_space<vmem>>, vector<256x128xf32>
    %c0_18 = arith.constant 0 : index
    %c0_19 = arith.constant 0 : index
    %c0_20 = arith.constant 0 : index
    %c0_21 = arith.constant 0 : index
    %13 = vector.load %arg2[%c0_18, %c0_19, %c0_20, %c0_21] : memref<3x3x4x128xbf16, #tpu.memory_space<vmem>>, vector<1x1x4x128xbf16>
    %14 = vector.shape_cast %13 : vector<1x1x4x128xbf16> to vector<4x128xbf16>
    %cst_22 = arith.constant dense<0.000000e+00> : vector<256x128xf32>
    %15 = tpu.matmul %11, %14, %cst_22 {dimension_numbers = #tpu.dot_dimension_numbers<[1], [0], [0], [1], [0, 0, 1, 1], [], []>} : vector<256x4xbf16>, vector<4x128xbf16>, vector<256x128xf32> -> vector<256x128xf32>
    %16 = arith.addf %12, %15 : vector<256x128xf32>
    %c0_23 = arith.constant 0 : index
    %c0_24 = arith.constant 0 : index
    %17 = vector.load %arg11[%c0_23, %c0_24] : memref<256x128xf32, #tpu.memory_space<vmem>>, vector<256x128xf32>
    tpu.vector_store %arg11[%c0_23, %c0_24], %16 {strides = array<i32>} : memref<256x128xf32, #tpu.memory_space<vmem>>, vector<256x128xf32>,
    %c0_25 = arith.constant 0 : index
    %c8_26 = arith.constant 8 : index
    %c0_27 = arith.constant 0 : index
    %18 = vector.load %arg9[%c0_25, %c8_26, %c0_27] : memref<18x32x4xf32, #tpu.memory_space<vmem>>, vector<16x16x4xf32>
    %19 = vector.shape_cast %18 : vector<16x16x4xf32> to vector<256x4xf32>
    %20 = arith.truncf %19 : vector<256x4xf32> to vector<256x4xbf16>
    %c0_28 = arith.constant 0 : index
    %c0_29 = arith.constant 0 : index
    %21 = vector.load %arg11[%c0_28, %c0_29] : memref<256x128xf32, #tpu.memory_space<vmem>>, vector<256x128xf32>
    %c0_30 = arith.constant 0 : index
    %c1_31 = arith.constant 1 : index
    %c0_32 = arith.constant 0 : index
    %c0_33 = arith.constant 0 : index
    %22 = vector.load %arg2[%c0_30, %c1_31, %c0_32, %c0_33] : memref<3x3x4x128xbf16, #tpu.memory_space<vmem>>, vector<1x1x4x128xbf16>
    %23 = vector.shape_cast %22 : vector<1x1x4x128xbf16> to vector<4x128xbf16>
    %cst_34 = arith.constant dense<0.000000e+00> : vector<256x128xf32>
    %24 = tpu.matmul %20, %23, %cst_34 {dimension_numbers = #tpu.dot_dimension_numbers<[1], [0], [0], [1], [0, 0, 1, 1], [], []>} : vector<256x4xbf16>, vector<4x128xbf16>, vector<256x128xf32> -> vector<256x128xf32>
    %25 = arith.addf %21, %24 : vector<256x128xf32>
    %c0_35 = arith.constant 0 : index
    %c0_36 = arith.constant 0 : index
    %26 = vector.load %arg11[%c0_35, %c0_36] : memref<256x128xf32, #tpu.memory_space<vmem>>, vector<256x128xf32>
    tpu.vector_store %arg11[%c0_35, %c0_36], %25 {strides = array<i32>} : memref<256x128xf32, #tpu.memory_space<vmem>>, vector<256x128xf32>,
    %c0_37 = arith.constant 0 : index
    %c9 = arith.constant 9 : index
    %c0_38 = arith.constant 0 : index
    %27 = vector.load %arg9[%c0_37, %c9, %c0_38] : memref<18x32x4xf32, #tpu.memory_space<vmem>>, vector<16x16x4xf32>
    %28 = vector.shape_cast %27 : vector<16x16x4xf32> to vector<256x4xf32>
    %29 = arith.truncf %28 : vector<256x4xf32> to vector<256x4xbf16>
    %c0_39 = arith.constant 0 : index
    %c0_40 = arith.constant 0 : index
    %30 = vector.load %arg11[%c0_39, %c0_40] : memref<256x128xf32, #tpu.memory_space<vmem>>, vector<256x128xf32>
    %c0_41 = arith.constant 0 : index
    %c2 = arith.constant 2 : index
    %c0_42 = arith.constant 0 : index
    %c0_43 = arith.constant 0 : index
    %31 = vector.load %arg2[%c0_41, %c2, %c0_42, %c0_43] : memref<3x3x4x128xbf16, #tpu.memory_space<vmem>>, vector<1x1x4x128xbf16>
    %32 = vector.shape_cast %31 : vector<1x1x4x128xbf16> to vector<4x128xbf16>
    %cst_44 = arith.constant dense<0.000000e+00> : vector<256x128xf32>
    %33 = tpu.matmul %29, %32, %cst_44 {dimension_numbers = #tpu.dot_dimension_numbers<[1], [0], [0], [1], [0, 0, 1, 1], [], []>} : vector<256x4xbf16>, vector<4x128xbf16>, vector<256x128xf32> -> vector<256x128xf32>
    %34 = arith.addf %30, %33 : vector<256x128xf32>
    %c0_45 = arith.constant 0 : index
    %c0_46 = arith.constant 0 : index
    %35 = vector.load %arg11[%c0_45, %c0_46] : memref<256x128xf32, #tpu.memory_space<vmem>>, vector<256x128xf32>
    tpu.vector_store %arg11[%c0_45, %c0_46], %34 {strides = array<i32>} : memref<256x128xf32, #tpu.memory_space<vmem>>, vector<256x128xf32>,
    %c1_47 = arith.constant 1 : index
    %c7_48 = arith.constant 7 : index
    %c0_49 = arith.constant 0 : index
    %36 = vector.load %arg9[%c1_47, %c7_48, %c0_49] : memref<18x32x4xf32, #tpu.memory_space<vmem>>, vector<16x16x4xf32>
    %37 = vector.shape_cast %36 : vector<16x16x4xf32> to vector<256x4xf32>
    %38 = arith.truncf %37 : vector<256x4xf32> to vector<256x4xbf16>
    %c0_50 = arith.constant 0 : index
    %c0_51 = arith.constant 0 : index
    %39 = vector.load %arg11[%c0_50, %c0_51] : memref<256x128xf32, #tpu.memory_space<vmem>>, vector<256x128xf32>
    %c1_52 = arith.constant 1 : index
    %c0_53 = arith.constant 0 : index
    %c0_54 = arith.constant 0 : index
    %c0_55 = arith.constant 0 : index
    %40 = vector.load %arg2[%c1_52, %c0_53, %c0_54, %c0_55] : memref<3x3x4x128xbf16, #tpu.memory_space<vmem>>, vector<1x1x4x128xbf16>
    %41 = vector.shape_cast %40 : vector<1x1x4x128xbf16> to vector<4x128xbf16>
    %cst_56 = arith.constant dense<0.000000e+00> : vector<256x128xf32>
    %42 = tpu.matmul %38, %41, %cst_56 {dimension_numbers = #tpu.dot_dimension_numbers<[1], [0], [0], [1], [0, 0, 1, 1], [], []>} : vector<256x4xbf16>, vector<4x128xbf16>, vector<256x128xf32> -> vector<256x128xf32>
    %43 = arith.addf %39, %42 : vector<256x128xf32>
    %c0_57 = arith.constant 0 : index
    %c0_58 = arith.constant 0 : index
    %44 = vector.load %arg11[%c0_57, %c0_58] : memref<256x128xf32, #tpu.memory_space<vmem>>, vector<256x128xf32>
    tpu.vector_store %arg11[%c0_57, %c0_58], %43 {strides = array<i32>} : memref<256x128xf32, #tpu.memory_space<vmem>>, vector<256x128xf32>,
    %c1_59 = arith.constant 1 : index
    %c8_60 = arith.constant 8 : index
    %c0_61 = arith.constant 0 : index
    %45 = vector.load %arg9[%c1_59, %c8_60, %c0_61] : memref<18x32x4xf32, #tpu.memory_space<vmem>>, vector<16x16x4xf32>
    %46 = vector.shape_cast %45 : vector<16x16x4xf32> to vector<256x4xf32>
    %47 = arith.truncf %46 : vector<256x4xf32> to vector<256x4xbf16>
    %c0_62 = arith.constant 0 : index
    %c0_63 = arith.constant 0 : index
    %48 = vector.load %arg11[%c0_62, %c0_63] : memref<256x128xf32, #tpu.memory_space<vmem>>, vector<256x128xf32>
    %c1_64 = arith.constant 1 : index
    %c1_65 = arith.constant 1 : index
    %c0_66 = arith.constant 0 : index
    %c0_67 = arith.constant 0 : index
    %49 = vector.load %arg2[%c1_64, %c1_65, %c0_66, %c0_67] : memref<3x3x4x128xbf16, #tpu.memory_space<vmem>>, vector<1x1x4x128xbf16>
    %50 = vector.shape_cast %49 : vector<1x1x4x128xbf16> to vector<4x128xbf16>
    %cst_68 = arith.constant dense<0.000000e+00> : vector<256x128xf32>
    %51 = tpu.matmul %47, %50, %cst_68 {dimension_numbers = #tpu.dot_dimension_numbers<[1], [0], [0], [1], [0, 0, 1, 1], [], []>} : vector<256x4xbf16>, vector<4x128xbf16>, vector<256x128xf32> -> vector<256x128xf32>
    %52 = arith.addf %48, %51 : vector<256x128xf32>
    %c0_69 = arith.constant 0 : index
    %c0_70 = arith.constant 0 : index
    %53 = vector.load %arg11[%c0_69, %c0_70] : memref<256x128xf32, #tpu.memory_space<vmem>>, vector<256x128xf32>
    tpu.vector_store %arg11[%c0_69, %c0_70], %52 {strides = array<i32>} : memref<256x128xf32, #tpu.memory_space<vmem>>, vector<256x128xf32>,
    %c1_71 = arith.constant 1 : index
    %c9_72 = arith.constant 9 : index
    %c0_73 = arith.constant 0 : index
    %54 = vector.load %arg9[%c1_71, %c9_72, %c0_73] : memref<18x32x4xf32, #tpu.memory_space<vmem>>, vector<16x16x4xf32>
    %55 = vector.shape_cast %54 : vector<16x16x4xf32> to vector<256x4xf32>
    %56 = arith.truncf %55 : vector<256x4xf32> to vector<256x4xbf16>
    %c0_74 = arith.constant 0 : index
    %c0_75 = arith.constant 0 : index
    %57 = vector.load %arg11[%c0_74, %c0_75] : memref<256x128xf32, #tpu.memory_space<vmem>>, vector<256x128xf32>
    %c1_76 = arith.constant 1 : index
    %c2_77 = arith.constant 2 : index
    %c0_78 = arith.constant 0 : index
    %c0_79 = arith.constant 0 : index
    %58 = vector.load %arg2[%c1_76, %c2_77, %c0_78, %c0_79] : memref<3x3x4x128xbf16, #tpu.memory_space<vmem>>, vector<1x1x4x128xbf16>
    %59 = vector.shape_cast %58 : vector<1x1x4x128xbf16> to vector<4x128xbf16>
    %cst_80 = arith.constant dense<0.000000e+00> : vector<256x128xf32>
    %60 = tpu.matmul %56, %59, %cst_80 {dimension_numbers = #tpu.dot_dimension_numbers<[1], [0], [0], [1], [0, 0, 1, 1], [], []>} : vector<256x4xbf16>, vector<4x128xbf16>, vector<256x128xf32> -> vector<256x128xf32>
    %61 = arith.addf %57, %60 : vector<256x128xf32>
    %c0_81 = arith.constant 0 : index
    %c0_82 = arith.constant 0 : index
    %62 = vector.load %arg11[%c0_81, %c0_82] : memref<256x128xf32, #tpu.memory_space<vmem>>, vector<256x128xf32>
    tpu.vector_store %arg11[%c0_81, %c0_82], %61 {strides = array<i32>} : memref<256x128xf32, #tpu.memory_space<vmem>>, vector<256x128xf32>,
    %c2_83 = arith.constant 2 : index
    %c7_84 = arith.constant 7 : index
    %c0_85 = arith.constant 0 : index
    %63 = vector.load %arg9[%c2_83, %c7_84, %c0_85] : memref<18x32x4xf32, #tpu.memory_space<vmem>>, vector<16x16x4xf32>
    %64 = vector.shape_cast %63 : vector<16x16x4xf32> to vector<256x4xf32>
    %65 = arith.truncf %64 : vector<256x4xf32> to vector<256x4xbf16>
    %c0_86 = arith.constant 0 : index
    %c0_87 = arith.constant 0 : index
    %66 = vector.load %arg11[%c0_86, %c0_87] : memref<256x128xf32, #tpu.memory_space<vmem>>, vector<256x128xf32>
    %c2_88 = arith.constant 2 : index
    %c0_89 = arith.constant 0 : index
    %c0_90 = arith.constant 0 : index
    %c0_91 = arith.constant 0 : index
    %67 = vector.load %arg2[%c2_88, %c0_89, %c0_90, %c0_91] : memref<3x3x4x128xbf16, #tpu.memory_space<vmem>>, vector<1x1x4x128xbf16>
    %68 = vector.shape_cast %67 : vector<1x1x4x128xbf16> to vector<4x128xbf16>
    %cst_92 = arith.constant dense<0.000000e+00> : vector<256x128xf32>
    %69 = tpu.matmul %65, %68, %cst_92 {dimension_numbers = #tpu.dot_dimension_numbers<[1], [0], [0], [1], [0, 0, 1, 1], [], []>} : vector<256x4xbf16>, vector<4x128xbf16>, vector<256x128xf32> -> vector<256x128xf32>
    %70 = arith.addf %66, %69 : vector<256x128xf32>
    %c0_93 = arith.constant 0 : index
    %c0_94 = arith.constant 0 : index
    %71 = vector.load %arg11[%c0_93, %c0_94] : memref<256x128xf32, #tpu.memory_space<vmem>>, vector<256x128xf32>
    tpu.vector_store %arg11[%c0_93, %c0_94], %70 {strides = array<i32>} : memref<256x128xf32, #tpu.memory_space<vmem>>, vector<256x128xf32>,
    %c2_95 = arith.constant 2 : index
    %c8_96 = arith.constant 8 : index
    %c0_97 = arith.constant 0 : index
    %72 = vector.load %arg9[%c2_95, %c8_96, %c0_97] : memref<18x32x4xf32, #tpu.memory_space<vmem>>, vector<16x16x4xf32>
    %73 = vector.shape_cast %72 : vector<16x16x4xf32> to vector<256x4xf32>
    %74 = arith.truncf %73 : vector<256x4xf32> to vector<256x4xbf16>
    %c0_98 = arith.constant 0 : index
    %c0_99 = arith.constant 0 : index
    %75 = vector.load %arg11[%c0_98, %c0_99] : memref<256x128xf32, #tpu.memory_space<vmem>>, vector<256x128xf32>
    %c2_100 = arith.constant 2 : index
    %c1_101 = arith.constant 1 : index
    %c0_102 = arith.constant 0 : index
    %c0_103 = arith.constant 0 : index
    %76 = vector.load %arg2[%c2_100, %c1_101, %c0_102, %c0_103] : memref<3x3x4x128xbf16, #tpu.memory_space<vmem>>, vector<1x1x4x128xbf16>
    %77 = vector.shape_cast %76 : vector<1x1x4x128xbf16> to vector<4x128xbf16>
    %cst_104 = arith.constant dense<0.000000e+00> : vector<256x128xf32>
    %78 = tpu.matmul %74, %77, %cst_104 {dimension_numbers = #tpu.dot_dimension_numbers<[1], [0], [0], [1], [0, 0, 1, 1], [], []>} : vector<256x4xbf16>, vector<4x128xbf16>, vector<256x128xf32> -> vector<256x128xf32>
    %79 = arith.addf %75, %78 : vector<256x128xf32>
    %c0_105 = arith.constant 0 : index
    %c0_106 = arith.constant 0 : index
    %80 = vector.load %arg11[%c0_105, %c0_106] : memref<256x128xf32, #tpu.memory_space<vmem>>, vector<256x128xf32>
    tpu.vector_store %arg11[%c0_105, %c0_106], %79 {strides = array<i32>} : memref<256x128xf32, #tpu.memory_space<vmem>>, vector<256x128xf32>,
    %c2_107 = arith.constant 2 : index
    %c9_108 = arith.constant 9 : index
    %c0_109 = arith.constant 0 : index
    %81 = vector.load %arg9[%c2_107, %c9_108, %c0_109] : memref<18x32x4xf32, #tpu.memory_space<vmem>>, vector<16x16x4xf32>
    %82 = vector.shape_cast %81 : vector<16x16x4xf32> to vector<256x4xf32>
    %83 = arith.truncf %82 : vector<256x4xf32> to vector<256x4xbf16>
    %c0_110 = arith.constant 0 : index
    %c0_111 = arith.constant 0 : index
    %84 = vector.load %arg11[%c0_110, %c0_111] : memref<256x128xf32, #tpu.memory_space<vmem>>, vector<256x128xf32>
    %c2_112 = arith.constant 2 : index
    %c2_113 = arith.constant 2 : index
    %c0_114 = arith.constant 0 : index
    %c0_115 = arith.constant 0 : index
    %85 = vector.load %arg2[%c2_112, %c2_113, %c0_114, %c0_115] : memref<3x3x4x128xbf16, #tpu.memory_space<vmem>>, vector<1x1x4x128xbf16>
    %86 = vector.shape_cast %85 : vector<1x1x4x128xbf16> to vector<4x128xbf16>
    %cst_116 = arith.constant dense<0.000000e+00> : vector<256x128xf32>
    %87 = tpu.matmul %83, %86, %cst_116 {dimension_numbers = #tpu.dot_dimension_numbers<[1], [0], [0], [1], [0, 0, 1, 1], [], []>} : vector<256x4xbf16>, vector<4x128xbf16>, vector<256x128xf32> -> vector<256x128xf32>
    %88 = arith.addf %84, %87 : vector<256x128xf32>
    %c0_117 = arith.constant 0 : index
    %c0_118 = arith.constant 0 : index
    %89 = vector.load %arg11[%c0_117, %c0_118] : memref<256x128xf32, #tpu.memory_space<vmem>>, vector<256x128xf32>
    tpu.vector_store %arg11[%c0_117, %c0_118], %88 {strides = array<i32>} : memref<256x128xf32, #tpu.memory_space<vmem>>, vector<256x128xf32>,
    %c0_119 = arith.constant 0 : index
    %c0_120 = arith.constant 0 : index
    %90 = vector.load %arg11[%c0_119, %c0_120] : memref<256x128xf32, #tpu.memory_space<vmem>>, vector<256x128xf32>
    %c0_121 = arith.constant 0 : index
    %c0_122 = arith.constant 0 : index
    %91 = vector.load %arg3[%c0_121, %c0_122] : memref<1x128xf32, #tpu.memory_space<vmem>>, vector<1x128xf32>
    %92 = vector.broadcast %91 : vector<1x128xf32> to vector<256x128xf32>
    %93 = arith.mulf %90, %92 : vector<256x128xf32>
    %c0_123 = arith.constant 0 : index
    %c0_124 = arith.constant 0 : index
    %94 = vector.load %arg4[%c0_123, %c0_124] : memref<1x128xf32, #tpu.memory_space<vmem>>, vector<1x128xf32>
    %95 = vector.broadcast %94 : vector<1x128xf32> to vector<256x128xf32>
    %96 = arith.addf %93, %95 : vector<256x128xf32>
    %cst_125 = arith.constant 0.000000e+00 : f32
    %97 = vector.broadcast %cst_125 : f32 to vector<256x128xf32>
    %98 = arith.maximumf %96, %97 : vector<256x128xf32>
    %99 = vector.shape_cast %98 : vector<256x128xf32> to vector<16x16x128xf32>
    %c1_126 = arith.constant 1 : index
    %c8_127 = arith.constant 8 : index
    %c0_128 = arith.constant 0 : index
    %100 = vector.load %arg10[%c1_126, %c8_127, %c0_128] : memref<18x32x128xf32, #tpu.memory_space<vmem>>, vector<16x16x128xf32>
    tpu.vector_store %arg10[%c1_126, %c8_127, %c0_128], %99 {strides = array<i32>} : memref<18x32x128xf32, #tpu.memory_space<vmem>>, vector<16x16x128xf32>,
    %c0_129 = arith.constant 0 : index
    %c7_130 = arith.constant 7 : index
    %c0_131 = arith.constant 0 : index
    %101 = vector.load %arg10[%c0_129, %c7_130, %c0_131] : memref<18x32x128xf32, #tpu.memory_space<vmem>>, vector<16x16x128xf32>
    %102 = vector.shape_cast %101 : vector<16x16x128xf32> to vector<256x128xf32>
    %103 = arith.truncf %102 : vector<256x128xf32> to vector<256x128xbf16>
    %c0_132 = arith.constant 0 : index
    %c0_133 = arith.constant 0 : index
    %104 = vector.load %arg12[%c0_132, %c0_133] : memref<256x1152xbf16, #tpu.memory_space<vmem>>, vector<256x128xbf16>
    tpu.vector_store %arg12[%c0_132, %c0_133], %103 {strides = array<i32>} : memref<256x1152xbf16, #tpu.memory_space<vmem>>, vector<256x128xbf16>,
    %c0_134 = arith.constant 0 : index
    %c8_135 = arith.constant 8 : index
    %c0_136 = arith.constant 0 : index
    %105 = vector.load %arg10[%c0_134, %c8_135, %c0_136] : memref<18x32x128xf32, #tpu.memory_space<vmem>>, vector<16x16x128xf32>
    %106 = vector.shape_cast %105 : vector<16x16x128xf32> to vector<256x128xf32>
    %107 = arith.truncf %106 : vector<256x128xf32> to vector<256x128xbf16>
    %c0_137 = arith.constant 0 : index
    %c128 = arith.constant 128 : index
    %108 = vector.load %arg12[%c0_137, %c128] : memref<256x1152xbf16, #tpu.memory_space<vmem>>, vector<256x128xbf16>
    tpu.vector_store %arg12[%c0_137, %c128], %107 {strides = array<i32>} : memref<256x1152xbf16, #tpu.memory_space<vmem>>, vector<256x128xbf16>,
    %c0_138 = arith.constant 0 : index
    %c9_139 = arith.constant 9 : index
    %c0_140 = arith.constant 0 : index
    %109 = vector.load %arg10[%c0_138, %c9_139, %c0_140] : memref<18x32x128xf32, #tpu.memory_space<vmem>>, vector<16x16x128xf32>
    %110 = vector.shape_cast %109 : vector<16x16x128xf32> to vector<256x128xf32>
    %111 = arith.truncf %110 : vector<256x128xf32> to vector<256x128xbf16>
    %c0_141 = arith.constant 0 : index
    %c256 = arith.constant 256 : index
    %112 = vector.load %arg12[%c0_141, %c256] : memref<256x1152xbf16, #tpu.memory_space<vmem>>, vector<256x128xbf16>
    tpu.vector_store %arg12[%c0_141, %c256], %111 {strides = array<i32>} : memref<256x1152xbf16, #tpu.memory_space<vmem>>, vector<256x128xbf16>,
    %c1_142 = arith.constant 1 : index
    %c7_143 = arith.constant 7 : index
    %c0_144 = arith.constant 0 : index
    %113 = vector.load %arg10[%c1_142, %c7_143, %c0_144] : memref<18x32x128xf32, #tpu.memory_space<vmem>>, vector<16x16x128xf32>
    %114 = vector.shape_cast %113 : vector<16x16x128xf32> to vector<256x128xf32>
    %115 = arith.truncf %114 : vector<256x128xf32> to vector<256x128xbf16>
    %c0_145 = arith.constant 0 : index
    %c384 = arith.constant 384 : index
    %116 = vector.load %arg12[%c0_145, %c384] : memref<256x1152xbf16, #tpu.memory_space<vmem>>, vector<256x128xbf16>
    tpu.vector_store %arg12[%c0_145, %c384], %115 {strides = array<i32>} : memref<256x1152xbf16, #tpu.memory_space<vmem>>, vector<256x128xbf16>,
    %c1_146 = arith.constant 1 : index
    %c8_147 = arith.constant 8 : index
    %c0_148 = arith.constant 0 : index
    %117 = vector.load %arg10[%c1_146, %c8_147, %c0_148] : memref<18x32x128xf32, #tpu.memory_space<vmem>>, vector<16x16x128xf32>
    %118 = vector.shape_cast %117 : vector<16x16x128xf32> to vector<256x128xf32>
    %119 = arith.truncf %118 : vector<256x128xf32> to vector<256x128xbf16>
    %c0_149 = arith.constant 0 : index
    %c512 = arith.constant 512 : index
    %120 = vector.load %arg12[%c0_149, %c512] : memref<256x1152xbf16, #tpu.memory_space<vmem>>, vector<256x128xbf16>
    tpu.vector_store %arg12[%c0_149, %c512], %119 {strides = array<i32>} : memref<256x1152xbf16, #tpu.memory_space<vmem>>, vector<256x128xbf16>,
    %c1_150 = arith.constant 1 : index
    %c9_151 = arith.constant 9 : index
    %c0_152 = arith.constant 0 : index
    %121 = vector.load %arg10[%c1_150, %c9_151, %c0_152] : memref<18x32x128xf32, #tpu.memory_space<vmem>>, vector<16x16x128xf32>
    %122 = vector.shape_cast %121 : vector<16x16x128xf32> to vector<256x128xf32>
    %123 = arith.truncf %122 : vector<256x128xf32> to vector<256x128xbf16>
    %c0_153 = arith.constant 0 : index
    %c640 = arith.constant 640 : index
    %124 = vector.load %arg12[%c0_153, %c640] : memref<256x1152xbf16, #tpu.memory_space<vmem>>, vector<256x128xbf16>
    tpu.vector_store %arg12[%c0_153, %c640], %123 {strides = array<i32>} : memref<256x1152xbf16, #tpu.memory_space<vmem>>, vector<256x128xbf16>,
    %c2_154 = arith.constant 2 : index
    %c7_155 = arith.constant 7 : index
    %c0_156 = arith.constant 0 : index
    %125 = vector.load %arg10[%c2_154, %c7_155, %c0_156] : memref<18x32x128xf32, #tpu.memory_space<vmem>>, vector<16x16x128xf32>
    %126 = vector.shape_cast %125 : vector<16x16x128xf32> to vector<256x128xf32>
    %127 = arith.truncf %126 : vector<256x128xf32> to vector<256x128xbf16>
    %c0_157 = arith.constant 0 : index
    %c768 = arith.constant 768 : index
    %128 = vector.load %arg12[%c0_157, %c768] : memref<256x1152xbf16, #tpu.memory_space<vmem>>, vector<256x128xbf16>
    tpu.vector_store %arg12[%c0_157, %c768], %127 {strides = array<i32>} : memref<256x1152xbf16, #tpu.memory_space<vmem>>, vector<256x128xbf16>,
    %c2_158 = arith.constant 2 : index
    %c8_159 = arith.constant 8 : index
    %c0_160 = arith.constant 0 : index
    %129 = vector.load %arg10[%c2_158, %c8_159, %c0_160] : memref<18x32x128xf32, #tpu.memory_space<vmem>>, vector<16x16x128xf32>
    %130 = vector.shape_cast %129 : vector<16x16x128xf32> to vector<256x128xf32>
    %131 = arith.truncf %130 : vector<256x128xf32> to vector<256x128xbf16>
    %c0_161 = arith.constant 0 : index
    %c896 = arith.constant 896 : index
    %132 = vector.load %arg12[%c0_161, %c896] : memref<256x1152xbf16, #tpu.memory_space<vmem>>, vector<256x128xbf16>
    tpu.vector_store %arg12[%c0_161, %c896], %131 {strides = array<i32>} : memref<256x1152xbf16, #tpu.memory_space<vmem>>, vector<256x128xbf16>,
    %c2_162 = arith.constant 2 : index
    %c9_163 = arith.constant 9 : index
    %c0_164 = arith.constant 0 : index
    %133 = vector.load %arg10[%c2_162, %c9_163, %c0_164] : memref<18x32x128xf32, #tpu.memory_space<vmem>>, vector<16x16x128xf32>
    %134 = vector.shape_cast %133 : vector<16x16x128xf32> to vector<256x128xf32>
    %135 = arith.truncf %134 : vector<256x128xf32> to vector<256x128xbf16>
    %c0_165 = arith.constant 0 : index
    %c1024 = arith.constant 1024 : index
    %136 = vector.load %arg12[%c0_165, %c1024] : memref<256x1152xbf16, #tpu.memory_space<vmem>>, vector<256x128xbf16>
    tpu.vector_store %arg12[%c0_165, %c1024], %135 {strides = array<i32>} : memref<256x1152xbf16, #tpu.memory_space<vmem>>, vector<256x128xbf16>,
    %c0_166 = arith.constant 0 : index
    %c0_167 = arith.constant 0 : index
    %137 = vector.load %arg5[%c0_166, %c0_167] : memref<128x1152xbf16, #tpu.memory_space<vmem>>, vector<128x1152xbf16>
    %c0_168 = arith.constant 0 : index
    %c0_169 = arith.constant 0 : index
    %138 = vector.load %arg12[%c0_168, %c0_169] : memref<256x1152xbf16, #tpu.memory_space<vmem>>, vector<256x1152xbf16>
    %cst_170 = arith.constant dense<0.000000e+00> : vector<128x256xf32>
    %139 = tpu.matmul %137, %138, %cst_170 {dimension_numbers = #tpu.dot_dimension_numbers<[1], [1], [0], [0], [0, 0, 1, 0], [], []>} : vector<128x1152xbf16>, vector<256x1152xbf16>, vector<128x256xf32> -> vector<128x256xf32>
    %c0_171 = arith.constant 0 : index
    %c0_172 = arith.constant 0 : index
    %140 = vector.load %arg6[%c0_171, %c0_172] : memref<128x1xf32, #tpu.memory_space<vmem>>, vector<128x1xf32>
    %141 = vector.broadcast %140 : vector<128x1xf32> to vector<128x256xf32>
    %142 = arith.mulf %139, %141 : vector<128x256xf32>
    %c0_173 = arith.constant 0 : index
    %c0_174 = arith.constant 0 : index
    %143 = vector.load %arg7[%c0_173, %c0_174] : memref<128x1xf32, #tpu.memory_space<vmem>>, vector<128x1xf32>
    %144 = vector.broadcast %143 : vector<128x1xf32> to vector<128x256xf32>
    %145 = arith.addf %142, %144 : vector<128x256xf32>
    %cst_175 = arith.constant 0.000000e+00 : f32
    %146 = vector.broadcast %cst_175 : f32 to vector<128x256xf32>
    %147 = arith.maximumf %145, %146 : vector<128x256xf32>
    %148 = vector.extract_strided_slice %147 {offsets = [0, 0], sizes = [8, 256], strides = [1, 1]} : vector<128x256xf32> to vector<8x256xf32>
    %c0_176 = arith.constant 0 : index
    %c0_177 = arith.constant 0 : index
    %c0_178 = arith.constant 0 : index
    %149 = vector.load %arg8[%c0_176, %c0_177, %c0_178] : memref<1x8x256xf32, #tpu.memory_space<vmem>>, vector<1x8x256xf32>
    %150 = vector.shape_cast %149 : vector<1x8x256xf32> to vector<8x256xf32>
    %151 = vector.shape_cast %148 : vector<8x256xf32> to vector<1x8x256xf32>
    tpu.vector_store %arg8[%c0_176, %c0_177, %c0_178], %151 {strides = array<i32>} : memref<1x8x256xf32, #tpu.memory_space<vmem>>, vector<1x8x256xf32>,
    return
  }
  func.func @transform_0(%arg0: i32) -> (i32, i32, i32, i32) {
    %c0_i32 = arith.constant 0 : i32
    %c0_i32_0 = arith.constant 0 : i32
    %c0_i32_1 = arith.constant 0 : i32
    %c0_i32_2 = arith.constant 0 : i32
    return %arg0, %c0_i32, %c0_i32_0, %c0_i32_1 : i32, i32, i32, i32
  }
  func.func @transform_1(%arg0: i32) -> (i32, i32, i32, i32) {
    %c0_i32 = arith.constant 0 : i32
    %c0_i32_0 = arith.constant 0 : i32
    %c0_i32_1 = arith.constant 0 : i32
    %c0_i32_2 = arith.constant 0 : i32
    %c0_i32_3 = arith.constant 0 : i32
    return %c0_i32, %c0_i32_0, %c0_i32_1, %c0_i32_2 : i32, i32, i32, i32
  }
  func.func @transform_2(%arg0: i32) -> (i32, i32) {
    %c0_i32 = arith.constant 0 : i32
    %c0_i32_0 = arith.constant 0 : i32
    %c0_i32_1 = arith.constant 0 : i32
    return %c0_i32, %c0_i32_0 : i32, i32
  }
  func.func @transform_3(%arg0: i32) -> (i32, i32) {
    %c0_i32 = arith.constant 0 : i32
    %c0_i32_0 = arith.constant 0 : i32
    %c0_i32_1 = arith.constant 0 : i32
    return %c0_i32, %c0_i32_0 : i32, i32
  }
  func.func @transform_4(%arg0: i32) -> (i32, i32) {
    %c0_i32 = arith.constant 0 : i32
    %c0_i32_0 = arith.constant 0 : i32
    %c0_i32_1 = arith.constant 0 : i32
    return %c0_i32, %c0_i32_0 : i32, i32
  }
  func.func @transform_5(%arg0: i32) -> (i32, i32) {
    %c0_i32 = arith.constant 0 : i32
    %c0_i32_0 = arith.constant 0 : i32
    %c0_i32_1 = arith.constant 0 : i32
    return %c0_i32, %c0_i32_0 : i32, i32
  }
  func.func @transform_6(%arg0: i32) -> (i32, i32) {
    %c0_i32 = arith.constant 0 : i32
    %c0_i32_0 = arith.constant 0 : i32
    %c0_i32_1 = arith.constant 0 : i32
    return %c0_i32, %c0_i32_0 : i32, i32
  }
  func.func @transform_7(%arg0: i32) -> (i32, i32, i32) {
    %c0_i32 = arith.constant 0 : i32
    %c0_i32_0 = arith.constant 0 : i32
    %c0_i32_1 = arith.constant 0 : i32
    return %arg0, %c0_i32, %c0_i32_0 : i32, i32, i32
  }
}

</mosaic_0001>

<llo_original>
// kernel: in_forward.1
$region0: #{in_forward.1}
  #allocation0 [shape = 'u32[]', space=smem, size = 0x4, offset = 0x4, fixed_abs, tag = 'smem constant byte address 0x4 - core index']
  #allocation1 [shape = 'u32[144,128]{1,0:T(1,128)}', space=vmem, size = 0x12000, scoped, tag = 'internal scratch']
  #allocation2 [shape = 'f32[18,32,4]{2,1,0:T(8,128)}', space=vmem, size = 0x48000, scoped, tag = 'scratch operand']
  #allocation3 [shape = 'f32[18,32,128]{2,1,0:T(8,128)}', space=vmem, size = 0x48000, scoped, tag = 'scratch operand']
  #allocation4 [shape = 'f32[256,128]{1,0:T(8,128)}', space=vmem, size = 0x20000, scoped, tag = 'scratch operand']
  #allocation5 [shape = 'bf16[256,1152]{1,0:T(16,128)(2,1)}', space=vmem, size = 0x90000, scoped, tag = 'scratch operand']
  %s0 = inlined_call_operand.vmem [shape: f32[2,16,16,4], index: 0, kind: input, shape index: {}]
  %s1 = inlined_call_operand.vmem [shape: bf16[3,3,4,128], index: 1, kind: input, shape index: {}]
  %s2 = inlined_call_operand.vmem [shape: f32[1,128], index: 2, kind: input, shape index: {}]
  %s3 = inlined_call_operand.vmem [shape: f32[1,128], index: 3, kind: input, shape index: {}]
  %s4 = inlined_call_operand.vmem [shape: bf16[128,1152], index: 4, kind: input, shape index: {}]
  %s5 = inlined_call_operand.vmem [shape: f32[128,1], index: 5, kind: input, shape index: {}]
  %s6 = inlined_call_operand.vmem [shape: f32[128,1], index: 6, kind: input, shape index: {}]
  %s7 = inlined_call_operand.vmem [shape: f32[2,8,256], index: 7, kind: output, shape index: {}]
  %s8 = sld [smem:[#allocation0]]
  $region61: #{in_forward.1} parent=0
    _
  %s10 = ssub.s32 1, %s8
  %s11 = scalar_select 0, %s10, %s8
  loop: start=0, step=1, limit=4
  $region2: #{in_forward.1} parent=0 // loop_pre_header
    _
  $region3: #{in_forward.1} parent=0 // loop_header
    %s13 = sphi 0, %s17
    %p14 = scmp.ge.s32.totalorder %s13, 4
    %s23 = sphi 0, %s25
    %s26 = sphi 0, %s23
    %s27 = sphi 0, %s26
    %s43 = sphi 0, %s27
    %s47 = sphi 0, %s47
    %s49 = sphi 0, %s47
    %s50 = sphi 0, %s49
    %s64 = sphi 0, %s50
    %s68 = sphi 0, %s68
    %s70 = sphi 0, %s68
    %s71 = sphi 0, %s70
    %s85 = sphi 0, %s71
    %s89 = sphi 0, %s89
    %s91 = sphi 0, %s89
    %s92 = sphi 0, %s91
    %s106 = sphi 0, %s92
    %s110 = sphi 0, %s110
    %s112 = sphi 0, %s110
    %s113 = sphi 0, %s112
    %s127 = sphi 0, %s113
    %s131 = sphi 0, %s131
    %s133 = sphi 0, %s131
    %s134 = sphi 0, %s133
    %s148 = sphi 0, %s134
    %s152 = sphi 0, %s152
    %s154 = sphi 0, %s152
    %s155 = sphi 0, %s154
    %s169 = sphi 0, %s155
    %s175 = sphi 0, %s177
    %s178 = sphi 0, %s175
    %s179 = sphi 0, %s178
    %s195 = sphi 0, %s179
  $region4: #{in_forward.1} parent=0 // loop_header_branch
    %16 = sbr.rel (%p14) target = $region8
  $region5: #{in_forward.1} parent=0 // loop_body
    %s18 = ssub.s32 %s13, 1
    %s19 = ssub.s32 %s13, 2
    %s20 = sadd.s32 %s13, 1
    %s21 = ssub.s32 %s13, %s20
    %p22 = scmp.eq.s32.totalorder %s21, 0
    %s24 = sadd.s32 %s23, 1
    %s25 = scalar_select %p22, %s23, %s24
    %p28 = pneg %p22
    %p29 = scmp.eq.s32.totalorder %s13, 1
    %p30 = por %p28, %p29
    %p31 = scmp.ne.s32.totalorder %s23, %s26
    %p32 = scmp.eq.s32.totalorder %s13, 0
    %p33 = por %p31, %p32
    %p34 = scmp.ne.s32.totalorder %s23, %s26
    %p35 = scmp.eq.s32.totalorder %s18, 1
    %p36 = por %p34, %p35
    %p37 = scmp.ne.s32.totalorder %s26, %s27
    %p38 = scmp.eq.s32.totalorder %s18, 0
    %p39 = por %p37, %p38
    %p40 = scmp.ne.s32.totalorder %s26, %s27
    %p41 = scmp.eq.s32.totalorder %s19, 1
    %p42 = por %p40, %p41
    %p44 = scmp.ne.s32.totalorder %s27, %s43
    %p45 = scmp.eq.s32.totalorder %s19, 0
    %p46 = por %p44, %p45
    %s48 = sadd.s32 %s47, 1
    %p51 = scmp.eq.s32.totalorder %s13, 1
    %p52 = scmp.ne.s32.totalorder %s47, %s49
    %p53 = scmp.eq.s32.totalorder %s13, 0
    %p54 = por %p52, %p53
    %p55 = scmp.ne.s32.totalorder %s47, %s49
    %p56 = scmp.eq.s32.totalorder %s18, 1
    %p57 = por %p55, %p56
    %p58 = scmp.ne.s32.totalorder %s49, %s50
    %p59 = scmp.eq.s32.totalorder %s18, 0
    %p60 = por %p58, %p59
    %p61 = scmp.ne.s32.totalorder %s49, %s50
    %p62 = scmp.eq.s32.totalorder %s19, 1
    %p63 = por %p61, %p62
    %p65 = scmp.ne.s32.totalorder %s50, %s64
    %p66 = scmp.eq.s32.totalorder %s19, 0
    %p67 = por %p65, %p66
    %s69 = sadd.s32 %s68, 1
    %p72 = scmp.eq.s32.totalorder %s13, 1
    %p73 = scmp.ne.s32.totalorder %s68, %s70
    %p74 = scmp.eq.s32.totalorder %s13, 0
    %p75 = por %p73, %p74
    %p76 = scmp.ne.s32.totalorder %s68, %s70
    %p77 = scmp.eq.s32.totalorder %s18, 1
    %p78 = por %p76, %p77
    %p79 = scmp.ne.s32.totalorder %s70, %s71
    %p80 = scmp.eq.s32.totalorder %s18, 0
    %p81 = por %p79, %p80
    %p82 = scmp.ne.s32.totalorder %s70, %s71
    %p83 = scmp.eq.s32.totalorder %s19, 1
    %p84 = por %p82, %p83
    %p86 = scmp.ne.s32.totalorder %s71, %s85
    %p87 = scmp.eq.s32.totalorder %s19, 0
    %p88 = por %p86, %p87
    %s90 = sadd.s32 %s89, 1
    %p93 = scmp.eq.s32.totalorder %s13, 1
    %p94 = scmp.ne.s32.totalorder %s89, %s91
    %p95 = scmp.eq.s32.totalorder %s13, 0
    %p96 = por %p94, %p95
    %p97 = scmp.ne.s32.totalorder %s89, %s91
    %p98 = scmp.eq.s32.totalorder %s18, 1
    %p99 = por %p97, %p98
    %p100 = scmp.ne.s32.totalorder %s91, %s92
    %p101 = scmp.eq.s32.totalorder %s18, 0
    %p102 = por %p100, %p101
    %p103 = scmp.ne.s32.totalorder %s91, %s92
    %p104 = scmp.eq.s32.totalorder %s19, 1
    %p105 = por %p103, %p104
    %p107 = scmp.ne.s32.totalorder %s92, %s106
    %p108 = scmp.eq.s32.totalorder %s19, 0
    %p109 = por %p107, %p108
    %s111 = sadd.s32 %s110, 1
    %p114 = scmp.eq.s32.totalorder %s13, 1
    %p115 = scmp.ne.s32.totalorder %s110, %s112
    %p116 = scmp.eq.s32.totalorder %s13, 0
    %p117 = por %p115, %p116
    %p118 = scmp.ne.s32.totalorder %s110, %s112
    %p119 = scmp.eq.s32.totalorder %s18, 1
    %p120 = por %p118, %p119
    %p121 = scmp.ne.s32.totalorder %s112, %s113
    %p122 = scmp.eq.s32.totalorder %s18, 0
    %p123 = por %p121, %p122
    %p124 = scmp.ne.s32.totalorder %s112, %s113
    %p125 = scmp.eq.s32.totalorder %s19, 1
    %p126 = por %p124, %p125
    %p128 = scmp.ne.s32.totalorder %s113, %s127
    %p129 = scmp.eq.s32.totalorder %s19, 0
    %p130 = por %p128, %p129
    %s132 = sadd.s32 %s131, 1
    %p135 = scmp.eq.s32.totalorder %s13, 1
    %p136 = scmp.ne.s32.totalorder %s131, %s133
    %p137 = scmp.eq.s32.totalorder %s13, 0
    %p138 = por %p136, %p137
    %p139 = scmp.ne.s32.totalorder %s131, %s133
    %p140 = scmp.eq.s32.totalorder %s18, 1
    %p141 = por %p139, %p140
    %p142 = scmp.ne.s32.totalorder %s133, %s134
    %p143 = scmp.eq.s32.totalorder %s18, 0
    %p144 = por %p142, %p143
    %p145 = scmp.ne.s32.totalorder %s133, %s134
    %p146 = scmp.eq.s32.totalorder %s19, 1
    %p147 = por %p145, %p146
    %p149 = scmp.ne.s32.totalorder %s134, %s148
    %p150 = scmp.eq.s32.totalorder %s19, 0
    %p151 = por %p149, %p150
    %s153 = sadd.s32 %s152, 1
    %p156 = scmp.eq.s32.totalorder %s13, 1
    %p157 = scmp.ne.s32.totalorder %s152, %s154
    %p158 = scmp.eq.s32.totalorder %s13, 0
    %p159 = por %p157, %p158
    %p160 = scmp.ne.s32.totalorder %s152, %s154
    %p161 = scmp.eq.s32.totalorder %s18, 1
    %p162 = por %p160, %p161
    %p163 = scmp.ne.s32.totalorder %s154, %s155
    %p164 = scmp.eq.s32.totalorder %s18, 0
    %p165 = por %p163, %p164
    %p166 = scmp.ne.s32.totalorder %s154, %s155
    %p167 = scmp.eq.s32.totalorder %s19, 1
    %p168 = por %p166, %p167
    %p170 = scmp.ne.s32.totalorder %s155, %s169
    %p171 = scmp.eq.s32.totalorder %s19, 0
    %p172 = por %p170, %p171
    %s173 = ssub.s32 %s13, %s20
    %p174 = scmp.eq.s32.totalorder %s173, 0
    %s176 = sadd.s32 %s175, 1
    %s177 = scalar_select %p174, %s175, %s176
    %p180 = pneg %p174
    %p181 = scmp.eq.s32.totalorder %s13, 1
    %p182 = por %p180, %p181
    %p183 = scmp.ne.s32.totalorder %s175, %s178
    %p184 = scmp.eq.s32.totalorder %s13, 0
    %p185 = por %p183, %p184
    %p186 = scmp.ne.s32.totalorder %s175, %s178
    %p187 = scmp.eq.s32.totalorder %s18, 1
    %p188 = por %p186, %p187
    %p189 = scmp.ne.s32.totalorder %s178, %s179
    %p190 = scmp.eq.s32.totalorder %s18, 0
    %p191 = por %p189, %p190
    %p192 = scmp.ne.s32.totalorder %s178, %s179
    %p193 = scmp.eq.s32.totalorder %s19, 1
    %p194 = por %p192, %p193
    %p196 = scmp.ne.s32.totalorder %s179, %s195
    %p197 = scmp.eq.s32.totalorder %s19, 0
    %p198 = por %p196, %p197
    %p199 = scmp.le.s32.totalorder 1, %s13
    %p200 = scmp.lt.s32.totalorder %s13, 3
    %p201 = pnand %p199, %p200
    %p202 = pneg %p201
    // Predicated region
    $region9: #{in_forward.1} parent=5 // pred_check
      _
    $region10: #{in_forward.1} parent=5 // pred_check_branch
      %204 = sbr.rel (%p201) target = $region12
    $region11: #{in_forward.1} parent=5 // pred_region
      %s205 = ssub.s32 %s13, 1
      // Predicated region
      $region13: #{in_forward.1} parent=11 // pred_check
        %p206 = pneg %p60
      $region14: #{in_forward.1} parent=11 // pred_check_branch
        %208 = sbr.rel (%p206) target = $region16
      $region15: #{in_forward.1} parent=11 // pred_region
        _
      $region16: #{in_forward.1} parent=11 // pred_fallthru
        _
      // Predicated region
      $region17: #{in_forward.1} parent=11 // pred_check
        %p209 = pneg %p81
      $region18: #{in_forward.1} parent=11 // pred_check_branch
        %211 = sbr.rel (%p209) target = $region20
      $region19: #{in_forward.1} parent=11 // pred_region
        _
      $region20: #{in_forward.1} parent=11 // pred_fallthru
        _
      // Predicated region
      $region21: #{in_forward.1} parent=11 // pred_check
        %p212 = pneg %p102
      $region22: #{in_forward.1} parent=11 // pred_check_branch
        %214 = sbr.rel (%p212) target = $region24
      $region23: #{in_forward.1} parent=11 // pred_region
        _
      $region24: #{in_forward.1} parent=11 // pred_fallthru
        _
      // Predicated region
      $region25: #{in_forward.1} parent=11 // pred_check
        %p215 = pneg %p123
      $region26: #{in_forward.1} parent=11 // pred_check_branch
        %217 = sbr.rel (%p215) target = $region28
      $region27: #{in_forward.1} parent=11 // pred_region
        _
      $region28: #{in_forward.1} parent=11 // pred_fallthru
        _
      // Predicated region
      $region29: #{in_forward.1} parent=11 // pred_check
        %p218 = pneg %p144
      $region30: #{in_forward.1} parent=11 // pred_check_branch
        %220 = sbr.rel (%p218) target = $region32
      $region31: #{in_forward.1} parent=11 // pred_region
        _
      $region32: #{in_forward.1} parent=11 // pred_fallthru
        _
      // Predicated region
      $region33: #{in_forward.1} parent=11 // pred_check
        %p221 = pneg %p165
      $region34: #{in_forward.1} parent=11 // pred_check_branch
        %223 = sbr.rel (%p221) target = $region36
      $region35: #{in_forward.1} parent=11 // pred_region
        _
      $region36: #{in_forward.1} parent=11 // pred_fallthru
        _
    $region12: #{in_forward.1} parent=5 // pred_fallthru
      _
    %p224 = scmp.lt.s32.totalorder %s13, 2
    // Predicated region
    $region37: #{in_forward.1} parent=5 // pred_check
      %p225 = pneg %p224
    $region38: #{in_forward.1} parent=5 // pred_check_branch
      %227 = sbr.rel (%p225) target = $region40
    $region39: #{in_forward.1} parent=5 // pred_region
      // Predicated region
      $region41: #{in_forward.1} parent=39 // pred_check
        %p228 = pneg %p33
      $region42: #{in_forward.1} parent=39 // pred_check_branch
        %230 = sbr.rel (%p228) target = $region44
      $region43: #{in_forward.1} parent=39 // pred_region
        %p231 = scmp.lt.s32.totalorder %s13, 1
        %s232 = scalar_select %p231, %s13, 1
        %s233 = smul.addr %s232, 32
        %s234 = smul.addr %s233, 8
        %s235 = scalar_lea.vmem %s0, %s234
      $region44: #{in_forward.1} parent=39 // pred_fallthru
        _
    $region40: #{in_forward.1} parent=5 // pred_fallthru
      _
    %p236 = scmp.le.s32.totalorder 1, %s13
    %p237 = scmp.lt.s32.totalorder %s13, 3
    %p238 = pnand %p236, %p237
    %p239 = pneg %p238
    // Predicated region
    $region45: #{in_forward.1} parent=5 // pred_check
      _
    $region46: #{in_forward.1} parent=5 // pred_check_branch
      %241 = sbr.rel (%p238) target = $region48
    $region47: #{in_forward.1} parent=5 // pred_region
      %s242 = ssub.s32 %s13, 1
      %p243 = scmp.lt.s32.totalorder %s18, 1
      %s244 = scalar_select %p243, %s18, 1
      %s245 = smul.addr %s244, 32
      %s246 = smul.addr %s245, 8
      %s247 = scalar_lea.vmem %s0, %s246
      %p248 = pneg %p39
      %p249 = pneg %p36
      %p250 = pneg %p60
      %p251 = pneg %p57
      %p252 = pneg %p81
      %p253 = pneg %p78
      %p254 = pneg %p102
      %p255 = pneg %p99
      %p256 = pneg %p123
      %p257 = pneg %p120
      %p258 = pneg %p144
      %p259 = pneg %p141
      %p260 = pneg %p165
      %p261 = pneg %p162
      %p262 = pneg %p191
      %p263 = pneg %p188
      %p264 = scmp.lt.s32.totalorder %s18, 1
      %s265 = scalar_select %p264, %s18, 1
      %s266 = smul.addr %s265, 2
      %s267 = smul.addr %s266, 8
      %s268 = scalar_lea.vmem %s7, %s267
      %p269 = scmp.lt.s32.totalorder %s18, 1
      %s270 = scalar_select %p269, %s18, 1
      %s271 = smul.addr %s270, 32
      %s272 = smul.addr %s271, 8
      %s273 = scalar_lea.vmem %s0, %s272
      %p274 = scmp.lt.s32.totalorder %s18, 1
      %s275 = scalar_select %p274, %s18, 1
      %s276 = smul.addr %s275, 2
      %s277 = smul.addr %s276, 8
      %s278 = scalar_lea.vmem %s7, %s277
      %vm280 = vcmask 31744
      %281 = vst.msk [vmem:[#allocation2] sm:$0xff] %vm280, 0.0
      %282 = vst.msk [vmem:[#allocation2 + $0x8] sm:$0xff] %vm280, 0.0
      %283 = vst.msk [vmem:[#allocation2 + $0x10] sm:$0xff] %vm280, 0.0
      %284 = vst.msk [vmem:[#allocation2 + $0x18] sm:$0xff] %vm280, 0.0
      %285 = vst.msk [vmem:[#allocation2 + $0x20] sm:$0xff] %vm280, 0.0
      %286 = vst.msk [vmem:[#allocation2 + $0x28] sm:$0xff] %vm280, 0.0
      %287 = vst.msk [vmem:[#allocation2 + $0x30] sm:$0xff] %vm280, 0.0
      %288 = vst.msk [vmem:[#allocation2 + $0x38] sm:$0xff] %vm280, 0.0
      %289 = vst.msk [vmem:[#allocation2 + $0x40] sm:$0xff] %vm280, 0.0
      %290 = vst.msk [vmem:[#allocation2 + $0x48] sm:$0xff] %vm280, 0.0
      %291 = vst.msk [vmem:[#allocation2 + $0x50] sm:$0xff] %vm280, 0.0
      %292 = vst.msk [vmem:[#allocation2 + $0x58] sm:$0xff] %vm280, 0.0
      %293 = vst.msk [vmem:[#allocation2 + $0x60] sm:$0xff] %vm280, 0.0
      %294 = vst.msk [vmem:[#allocation2 + $0x68] sm:$0xff] %vm280, 0.0
      %295 = vst.msk [vmem:[#allocation2 + $0x70] sm:$0xff] %vm280, 0.0
      %296 = vst.msk [vmem:[#allocation2 + $0x78] sm:$0xff] %vm280, 0.0
      %297 = vst.msk [vmem:[#allocation2 + $0x80] sm:$0xff] %vm280, 0.0
      %298 = vst.msk [vmem:[#allocation2 + $0x88] sm:$0xff] %vm280, 0.0
      %299 = vst.msk [vmem:[#allocation2 + $0x90] sm:$0xff] %vm280, 0.0
      %300 = vst.msk [vmem:[#allocation2 + $0x98] sm:$0xff] %vm280, 0.0
      %301 = vst.msk [vmem:[#allocation2 + $0xa0] sm:$0xff] %vm280, 0.0
      %302 = vst.msk [vmem:[#allocation2 + $0xa8] sm:$0xff] %vm280, 0.0
      %303 = vst.msk [vmem:[#allocation2 + $0xb0] sm:$0xff] %vm280, 0.0
      %304 = vst.msk [vmem:[#allocation2 + $0xb8] sm:$0xff] %vm280, 0.0
      %305 = vst.msk [vmem:[#allocation2 + $0xc0] sm:$0xff] %vm280, 0.0
      %306 = vst.msk [vmem:[#allocation2 + $0xc8] sm:$0xff] %vm280, 0.0
      %307 = vst.msk [vmem:[#allocation2 + $0xd0] sm:$0xff] %vm280, 0.0
      %308 = vst.msk [vmem:[#allocation2 + $0xd8] sm:$0xff] %vm280, 0.0
      %309 = vst.msk [vmem:[#allocation2 + $0xe0] sm:$0xff] %vm280, 0.0
      %310 = vst.msk [vmem:[#allocation2 + $0xe8] sm:$0xff] %vm280, 0.0
      %311 = vst.msk [vmem:[#allocation2 + $0xf0] sm:$0xff] %vm280, 0.0
      %312 = vst.msk [vmem:[#allocation2 + $0xf8] sm:$0xff] %vm280, 0.0
      %313 = vst.msk [vmem:[#allocation2 + $0x100] sm:$0xff] %vm280, 0.0
      %314 = vst.msk [vmem:[#allocation2 + $0x108] sm:$0xff] %vm280, 0.0
      %315 = vst.msk [vmem:[#allocation2 + $0x110] sm:$0xff] %vm280, 0.0
      %316 = vst.msk [vmem:[#allocation2 + $0x118] sm:$0xff] %vm280, 0.0
      %317 = vst.msk [vmem:[#allocation2 + $0x120] sm:$0xff] %vm280, 0.0
      %318 = vst.msk [vmem:[#allocation2 + $0x128] sm:$0xff] %vm280, 0.0
      %319 = vst.msk [vmem:[#allocation2 + $0x130] sm:$0xff] %vm280, 0.0
      %320 = vst.msk [vmem:[#allocation2 + $0x138] sm:$0xff] %vm280, 0.0
      %321 = vst.msk [vmem:[#allocation2 + $0x140] sm:$0xff] %vm280, 0.0
      %322 = vst.msk [vmem:[#allocation2 + $0x148] sm:$0xff] %vm280, 0.0
      %323 = vst.msk [vmem:[#allocation2 + $0x150] sm:$0xff] %vm280, 0.0
      %324 = vst.msk [vmem:[#allocation2 + $0x158] sm:$0xff] %vm280, 0.0
      %325 = vst.msk [vmem:[#allocation2 + $0x160] sm:$0xff] %vm280, 0.0
      %326 = vst.msk [vmem:[#allocation2 + $0x168] sm:$0xff] %vm280, 0.0
      %327 = vst.msk [vmem:[#allocation2 + $0x170] sm:$0xff] %vm280, 0.0
      %328 = vst.msk [vmem:[#allocation2 + $0x178] sm:$0xff] %vm280, 0.0
      %329 = vst.msk [vmem:[#allocation2 + $0x180] sm:$0xff] %vm280, 0.0
      %330 = vst.msk [vmem:[#allocation2 + $0x188] sm:$0xff] %vm280, 0.0
      %331 = vst.msk [vmem:[#allocation2 + $0x190] sm:$0xff] %vm280, 0.0
      %332 = vst.msk [vmem:[#allocation2 + $0x198] sm:$0xff] %vm280, 0.0
      %333 = vst.msk [vmem:[#allocation2 + $0x1a0] sm:$0xff] %vm280, 0.0
      %334 = vst.msk [vmem:[#allocation2 + $0x1a8] sm:$0xff] %vm280, 0.0
      %335 = vst.msk [vmem:[#allocation2 + $0x1b0] sm:$0xff] %vm280, 0.0
      %336 = vst.msk [vmem:[#allocation2 + $0x1b8] sm:$0xff] %vm280, 0.0
      %337 = vst.msk [vmem:[#allocation2 + $0x1c0] sm:$0xff] %vm280, 0.0
      %338 = vst.msk [vmem:[#allocation2 + $0x1c8] sm:$0xff] %vm280, 0.0
      %339 = vst.msk [vmem:[#allocation2 + $0x1d0] sm:$0xff] %vm280, 0.0
      %340 = vst.msk [vmem:[#allocation2 + $0x1d8] sm:$0xff] %vm280, 0.0
      %341 = vst.msk [vmem:[#allocation2 + $0x1e0] sm:$0xff] %vm280, 0.0
      %342 = vst.msk [vmem:[#allocation2 + $0x1e8] sm:$0xff] %vm280, 0.0
      %343 = vst.msk [vmem:[#allocation2 + $0x1f0] sm:$0xff] %vm280, 0.0
      %344 = vst.msk [vmem:[#allocation2 + $0x1f8] sm:$0xff] %vm280, 0.0
      %345 = vst.msk [vmem:[#allocation2 + $0x200] sm:$0xff] %vm280, 0.0
      %346 = vst.msk [vmem:[#allocation2 + $0x208] sm:$0xff] %vm280, 0.0
      %347 = vst.msk [vmem:[#allocation2 + $0x210] sm:$0xff] %vm280, 0.0
      %348 = vst.msk [vmem:[#allocation2 + $0x218] sm:$0xff] %vm280, 0.0
      %349 = vst.msk [vmem:[#allocation2 + $0x220] sm:$0xff] %vm280, 0.0
      %350 = vst.msk [vmem:[#allocation2 + $0x228] sm:$0xff] %vm280, 0.0
      %351 = vst.msk [vmem:[#allocation2 + $0x230] sm:$0xff] %vm280, 0.0
      %352 = vst.msk [vmem:[#allocation2 + $0x238] sm:$0xff] %vm280, 0.0
      %353 = vst [vmem:[#allocation3] sm:$0xff] 0.0
      %354 = vst [vmem:[#allocation3 + $0x8] sm:$0xff] 0.0
      %355 = vst [vmem:[#allocation3 + $0x10] sm:$0xff] 0.0
      %356 = vst [vmem:[#allocation3 + $0x18] sm:$0xff] 0.0
      %357 = vst [vmem:[#allocation3 + $0x20] sm:$0xff] 0.0
      %358 = vst [vmem:[#allocation3 + $0x28] sm:$0xff] 0.0
      %359 = vst [vmem:[#allocation3 + $0x30] sm:$0xff] 0.0
      %360 = vst [vmem:[#allocation3 + $0x38] sm:$0xff] 0.0
      %361 = vst [vmem:[#allocation3 + $0x40] sm:$0xff] 0.0
      %362 = vst [vmem:[#allocation3 + $0x48] sm:$0xff] 0.0
      %363 = vst [vmem:[#allocation3 + $0x50] sm:$0xff] 0.0
      %364 = vst [vmem:[#allocation3 + $0x58] sm:$0xff] 0.0
      %365 = vst [vmem:[#allocation3 + $0x60] sm:$0xff] 0.0
      %366 = vst [vmem:[#allocation3 + $0x68] sm:$0xff] 0.0
      %367 = vst [vmem:[#allocation3 + $0x70] sm:$0xff] 0.0
      %368 = vst [vmem:[#allocation3 + $0x78] sm:$0xff] 0.0
      %369 = vst [vmem:[#allocation3 + $0x80] sm:$0xff] 0.0
      %370 = vst [vmem:[#allocation3 + $0x88] sm:$0xff] 0.0
      %371 = vst [vmem:[#allocation3 + $0x90] sm:$0xff] 0.0
      %372 = vst [vmem:[#allocation3 + $0x98] sm:$0xff] 0.0
      %373 = vst [vmem:[#allocation3 + $0xa0] sm:$0xff] 0.0
      %374 = vst [vmem:[#allocation3 + $0xa8] sm:$0xff] 0.0
      %375 = vst [vmem:[#allocation3 + $0xb0] sm:$0xff] 0.0
      %376 = vst [vmem:[#allocation3 + $0xb8] sm:$0xff] 0.0
      %377 = vst [vmem:[#allocation3 + $0xc0] sm:$0xff] 0.0
      %378 = vst [vmem:[#allocation3 + $0xc8] sm:$0xff] 0.0
      %379 = vst [vmem:[#allocation3 + $0xd0] sm:$0xff] 0.0
      %380 = vst [vmem:[#allocation3 + $0xd8] sm:$0xff] 0.0
      %381 = vst [vmem:[#allocation3 + $0xe0] sm:$0xff] 0.0
      %382 = vst [vmem:[#allocation3 + $0xe8] sm:$0xff] 0.0
      %383 = vst [vmem:[#allocation3 + $0xf0] sm:$0xff] 0.0
      %384 = vst [vmem:[#allocation3 + $0xf8] sm:$0xff] 0.0
      %385 = vst [vmem:[#allocation3 + $0x100] sm:$0xff] 0.0
      %386 = vst [vmem:[#allocation3 + $0x108] sm:$0xff] 0.0
      %387 = vst [vmem:[#allocation3 + $0x110] sm:$0xff] 0.0
      %388 = vst [vmem:[#allocation3 + $0x118] sm:$0xff] 0.0
      %389 = vst [vmem:[#allocation3 + $0x120] sm:$0xff] 0.0
      %390 = vst [vmem:[#allocation3 + $0x128] sm:$0xff] 0.0
      %391 = vst [vmem:[#allocation3 + $0x130] sm:$0xff] 0.0
      %392 = vst [vmem:[#allocation3 + $0x138] sm:$0xff] 0.0
      %393 = vst [vmem:[#allocation3 + $0x140] sm:$0xff] 0.0
      %394 = vst [vmem:[#allocation3 + $0x148] sm:$0xff] 0.0
      %395 = vst [vmem:[#allocation3 + $0x150] sm:$0xff] 0.0
      %396 = vst [vmem:[#allocation3 + $0x158] sm:$0xff] 0.0
      %397 = vst [vmem:[#allocation3 + $0x160] sm:$0xff] 0.0
      %398 = vst [vmem:[#allocation3 + $0x168] sm:$0xff] 0.0
      %399 = vst [vmem:[#allocation3 + $0x170] sm:$0xff] 0.0
      %400 = vst [vmem:[#allocation3 + $0x178] sm:$0xff] 0.0
      %401 = vst [vmem:[#allocation3 + $0x180] sm:$0xff] 0.0
      %402 = vst [vmem:[#allocation3 + $0x188] sm:$0xff] 0.0
      %403 = vst [vmem:[#allocation3 + $0x190] sm:$0xff] 0.0
      %404 = vst [vmem:[#allocation3 + $0x198] sm:$0xff] 0.0
      %405 = vst [vmem:[#allocation3 + $0x1a0] sm:$0xff] 0.0
      %406 = vst [vmem:[#allocation3 + $0x1a8] sm:$0xff] 0.0
      %407 = vst [vmem:[#allocation3 + $0x1b0] sm:$0xff] 0.0
      %408 = vst [vmem:[#allocation3 + $0x1b8] sm:$0xff] 0.0
      %409 = vst [vmem:[#allocation3 + $0x1c0] sm:$0xff] 0.0
      %410 = vst [vmem:[#allocation3 + $0x1c8] sm:$0xff] 0.0
      %411 = vst [vmem:[#allocation3 + $0x1d0] sm:$0xff] 0.0
      %412 = vst [vmem:[#allocation3 + $0x1d8] sm:$0xff] 0.0
      %413 = vst [vmem:[#allocation3 + $0x1e0] sm:$0xff] 0.0
      %414 = vst [vmem:[#allocation3 + $0x1e8] sm:$0xff] 0.0
      %415 = vst [vmem:[#allocation3 + $0x1f0] sm:$0xff] 0.0
      %416 = vst [vmem:[#allocation3 + $0x1f8] sm:$0xff] 0.0
      %417 = vst [vmem:[#allocation3 + $0x200] sm:$0xff] 0.0
      %418 = vst [vmem:[#allocation3 + $0x208] sm:$0xff] 0.0
      %419 = vst [vmem:[#allocation3 + $0x210] sm:$0xff] 0.0
      %420 = vst [vmem:[#allocation3 + $0x218] sm:$0xff] 0.0
      %421 = vst [vmem:[#allocation3 + $0x220] sm:$0xff] 0.0
      %422 = vst [vmem:[#allocation3 + $0x228] sm:$0xff] 0.0
      %423 = vst [vmem:[#allocation3 + $0x230] sm:$0xff] 0.0
      %424 = vst [vmem:[#allocation3 + $0x238] sm:$0xff] 0.0
      %425 = vst [vmem:[#allocation4] sm:$0xff] 0.0
      %426 = vst [vmem:[#allocation4 + $0x8] sm:$0xff] 0.0
      %427 = vst [vmem:[#allocation4 + $0x10] sm:$0xff] 0.0
      %428 = vst [vmem:[#allocation4 + $0x18] sm:$0xff] 0.0
      %429 = vst [vmem:[#allocation4 + $0x20] sm:$0xff] 0.0
      %430 = vst [vmem:[#allocation4 + $0x28] sm:$0xff] 0.0
      %431 = vst [vmem:[#allocation4 + $0x30] sm:$0xff] 0.0
      %432 = vst [vmem:[#allocation4 + $0x38] sm:$0xff] 0.0
      %433 = vst [vmem:[#allocation4 + $0x40] sm:$0xff] 0.0
      %434 = vst [vmem:[#allocation4 + $0x48] sm:$0xff] 0.0
      %435 = vst [vmem:[#allocation4 + $0x50] sm:$0xff] 0.0
      %436 = vst [vmem:[#allocation4 + $0x58] sm:$0xff] 0.0
      %437 = vst [vmem:[#allocation4 + $0x60] sm:$0xff] 0.0
      %438 = vst [vmem:[#allocation4 + $0x68] sm:$0xff] 0.0
      %439 = vst [vmem:[#allocation4 + $0x70] sm:$0xff] 0.0
      %440 = vst [vmem:[#allocation4 + $0x78] sm:$0xff] 0.0
      %441 = vst [vmem:[#allocation4 + $0x80] sm:$0xff] 0.0
      %442 = vst [vmem:[#allocation4 + $0x88] sm:$0xff] 0.0
      %443 = vst [vmem:[#allocation4 + $0x90] sm:$0xff] 0.0
      %444 = vst [vmem:[#allocation4 + $0x98] sm:$0xff] 0.0
      %445 = vst [vmem:[#allocation4 + $0xa0] sm:$0xff] 0.0
      %446 = vst [vmem:[#allocation4 + $0xa8] sm:$0xff] 0.0
      %447 = vst [vmem:[#allocation4 + $0xb0] sm:$0xff] 0.0
      %448 = vst [vmem:[#allocation4 + $0xb8] sm:$0xff] 0.0
      %449 = vst [vmem:[#allocation4 + $0xc0] sm:$0xff] 0.0
      %450 = vst [vmem:[#allocation4 + $0xc8] sm:$0xff] 0.0
      %451 = vst [vmem:[#allocation4 + $0xd0] sm:$0xff] 0.0
      %452 = vst [vmem:[#allocation4 + $0xd8] sm:$0xff] 0.0
      %453 = vst [vmem:[#allocation4 + $0xe0] sm:$0xff] 0.0
      %454 = vst [vmem:[#allocation4 + $0xe8] sm:$0xff] 0.0
      %455 = vst [vmem:[#allocation4 + $0xf0] sm:$0xff] 0.0
      %456 = vst [vmem:[#allocation4 + $0xf8] sm:$0xff] 0.0
      %v457 = vld [vmem:[%s273] sm:$0xff]
      %v458 = vld [vmem:[%s273 + $0x8] sm:$0xff]
      %v459 = vld [vmem:[%s273 + $0x10] sm:$0xff]
      %v460 = vld [vmem:[%s273 + $0x18] sm:$0xff]
      %v461 = vld [vmem:[%s273 + $0x20] sm:$0xff]
      %v462 = vld [vmem:[%s273 + $0x28] sm:$0xff]
      %v463 = vld [vmem:[%s273 + $0x30] sm:$0xff]
      %v464 = vld [vmem:[%s273 + $0x38] sm:$0xff]
      %v465 = vld [vmem:[%s273 + $0x40] sm:$0xff]
      %v466 = vld [vmem:[%s273 + $0x48] sm:$0xff]
      %v467 = vld [vmem:[%s273 + $0x50] sm:$0xff]
      %v468 = vld [vmem:[%s273 + $0x58] sm:$0xff]
      %v469 = vld [vmem:[%s273 + $0x60] sm:$0xff]
      %v470 = vld [vmem:[%s273 + $0x68] sm:$0xff]
      %v471 = vld [vmem:[%s273 + $0x70] sm:$0xff]
      %v472 = vld [vmem:[%s273 + $0x78] sm:$0xff]
      %v473 = vld [vmem:[%s273 + $0x80] sm:$0xff]
      %v474 = vld [vmem:[%s273 + $0x88] sm:$0xff]
      %v475 = vld [vmem:[%s273 + $0x90] sm:$0xff]
      %v476 = vld [vmem:[%s273 + $0x98] sm:$0xff]
      %v477 = vld [vmem:[%s273 + $0xa0] sm:$0xff]
      %v478 = vld [vmem:[%s273 + $0xa8] sm:$0xff]
      %v479 = vld [vmem:[%s273 + $0xb0] sm:$0xff]
      %v480 = vld [vmem:[%s273 + $0xb8] sm:$0xff]
      %v481 = vld [vmem:[%s273 + $0xc0] sm:$0xff]
      %v482 = vld [vmem:[%s273 + $0xc8] sm:$0xff]
      %v483 = vld [vmem:[%s273 + $0xd0] sm:$0xff]
      %v484 = vld [vmem:[%s273 + $0xd8] sm:$0xff]
      %v485 = vld [vmem:[%s273 + $0xe0] sm:$0xff]
      %v486 = vld [vmem:[%s273 + $0xe8] sm:$0xff]
      %v487 = vld [vmem:[%s273 + $0xf0] sm:$0xff]
      %v488 = vld [vmem:[%s273 + $0xf8] sm:$0xff]
      %s489 = scalar_lea.vmem [#allocation2], 32
      %490 = vst.msk [vmem:[%s489 + $0x8] sm:$0xff] %vm280, %v457
      %491 = vst.msk [vmem:[%s489 + $0x10] sm:$0xff] %vm280, %v458
      %492 = vst.msk [vmem:[%s489 + $0x28] sm:$0xff] %vm280, %v459
      %493 = vst.msk [vmem:[%s489 + $0x30] sm:$0xff] %vm280, %v460
      %494 = vst.msk [vmem:[%s489 + $0x48] sm:$0xff] %vm280, %v461
      %495 = vst.msk [vmem:[%s489 + $0x50] sm:$0xff] %vm280, %v462
      %496 = vst.msk [vmem:[%s489 + $0x68] sm:$0xff] %vm280, %v463
      %497 = vst.msk [vmem:[%s489 + $0x70] sm:$0xff] %vm280, %v464
      %498 = vst.msk [vmem:[%s489 + $0x88] sm:$0xff] %vm280, %v465
      %499 = vst.msk [vmem:[%s489 + $0x90] sm:$0xff] %vm280, %v466
      %500 = vst.msk [vmem:[%s489 + $0xa8] sm:$0xff] %vm280, %v467
      %501 = vst.msk [vmem:[%s489 + $0xb0] sm:$0xff] %vm280, %v468
      %502 = vst.msk [vmem:[%s489 + $0xc8] sm:$0xff] %vm280, %v469
      %503 = vst.msk [vmem:[%s489 + $0xd0] sm:$0xff] %vm280, %v470
      %504 = vst.msk [vmem:[%s489 + $0xe8] sm:$0xff] %vm280, %v471
      %505 = vst.msk [vmem:[%s489 + $0xf0] sm:$0xff] %vm280, %v472
      %506 = vst.msk [vmem:[%s489 + $0x108] sm:$0xff] %vm280, %v473
      %507 = vst.msk [vmem:[%s489 + $0x110] sm:$0xff] %vm280, %v474
      %508 = vst.msk [vmem:[%s489 + $0x128] sm:$0xff] %vm280, %v475
      %509 = vst.msk [vmem:[%s489 + $0x130] sm:$0xff] %vm280, %v476
      %510 = vst.msk [vmem:[%s489 + $0x148] sm:$0xff] %vm280, %v477
      %511 = vst.msk [vmem:[%s489 + $0x150] sm:$0xff] %vm280, %v478
      %512 = vst.msk [vmem:[%s489 + $0x168] sm:$0xff] %vm280, %v479
      %513 = vst.msk [vmem:[%s489 + $0x170] sm:$0xff] %vm280, %v480
      %514 = vst.msk [vmem:[%s489 + $0x188] sm:$0xff] %vm280, %v481
      %515 = vst.msk [vmem:[%s489 + $0x190] sm:$0xff] %vm280, %v482
      %516 = vst.msk [vmem:[%s489 + $0x1a8] sm:$0xff] %vm280, %v483
      %517 = vst.msk [vmem:[%s489 + $0x1b0] sm:$0xff] %vm280, %v484
      %518 = vst.msk [vmem:[%s489 + $0x1c8] sm:$0xff] %vm280, %v485
      %519 = vst.msk [vmem:[%s489 + $0x1d0] sm:$0xff] %vm280, %v486
      %520 = vst.msk [vmem:[%s489 + $0x1e8] sm:$0xff] %vm280, %v487
      %521 = vst.msk [vmem:[%s489 + $0x1f0] sm:$0xff] %vm280, %v488
      %v522 = vld [vmem:[#allocation2 + $0x7] sm:$0xff]
      %v523 = vld [vmem:[#allocation2 + $0xf] sm:$0xff]
      %v524 = vld [vmem:[#allocation2 + $0x27] sm:$0xff]
      %v525 = vld [vmem:[#allocation2 + $0x2f] sm:$0xff]
      %v526 = vld [vmem:[#allocation2 + $0x47] sm:$0xff]
      %v527 = vld [vmem:[#allocation2 + $0x4f] sm:$0xff]
      %v528 = vld [vmem:[#allocation2 + $0x67] sm:$0xff]
      %v529 = vld [vmem:[#allocation2 + $0x6f] sm:$0xff]
      %v530 = vld [vmem:[#allocation2 + $0x87] sm:$0xff]
      %v531 = vld [vmem:[#allocation2 + $0x8f] sm:$0xff]
      %v532 = vld [vmem:[#allocation2 + $0xa7] sm:$0xff]
      %v533 = vld [vmem:[#allocation2 + $0xaf] sm:$0xff]
      %v534 = vld [vmem:[#allocation2 + $0xc7] sm:$0xff]
      %v535 = vld [vmem:[#allocation2 + $0xcf] sm:$0xff]
      %v536 = vld [vmem:[#allocation2 + $0xe7] sm:$0xff]
      %v537 = vld [vmem:[#allocation2 + $0xef] sm:$0xff]
      %v538 = vld [vmem:[#allocation2 + $0x107] sm:$0xff]
      %v539 = vld [vmem:[#allocation2 + $0x10f] sm:$0xff]
      %v540 = vld [vmem:[#allocation2 + $0x127] sm:$0xff]
      %v541 = vld [vmem:[#allocation2 + $0x12f] sm:$0xff]
      %v542 = vld [vmem:[#allocation2 + $0x147] sm:$0xff]
      %v543 = vld [vmem:[#allocation2 + $0x14f] sm:$0xff]
      %v544 = vld [vmem:[#allocation2 + $0x167] sm:$0xff]
      %v545 = vld [vmem:[#allocation2 + $0x16f] sm:$0xff]
      %v546 = vld [vmem:[#allocation2 + $0x187] sm:$0xff]
      %v547 = vld [vmem:[#allocation2 + $0x18f] sm:$0xff]
      %v548 = vld [vmem:[#allocation2 + $0x1a7] sm:$0xff]
      %v549 = vld [vmem:[#allocation2 + $0x1af] sm:$0xff]
      %v550 = vld [vmem:[#allocation2 + $0x1c7] sm:$0xff]
      %v551 = vld [vmem:[#allocation2 + $0x1cf] sm:$0xff]
      %v552 = vld [vmem:[#allocation2 + $0x1e7] sm:$0xff]
      %v553 = vld [vmem:[#allocation2 + $0x1ef] sm:$0xff]
      %v554 = vpack.c.bf16 %v523, %v522
      %v555 = vpack.c.bf16 %v525, %v524
      %v556 = vpack.c.bf16 %v527, %v526
      %v557 = vpack.c.bf16 %v529, %v528
      %v558 = vpack.c.bf16 %v531, %v530
      %v559 = vpack.c.bf16 %v533, %v532
      %v560 = vpack.c.bf16 %v535, %v534
      %v561 = vpack.c.bf16 %v537, %v536
      %v562 = vpack.c.bf16 %v539, %v538
      %v563 = vpack.c.bf16 %v541, %v540
      %v564 = vpack.c.bf16 %v543, %v542
      %v565 = vpack.c.bf16 %v545, %v544
      %v566 = vpack.c.bf16 %v547, %v546
      %v567 = vpack.c.bf16 %v549, %v548
      %v568 = vpack.c.bf16 %v551, %v550
      %v569 = vpack.c.bf16 %v553, %v552
      %v570 = vld [vmem:[#allocation4] sm:$0xff]
      %v571 = vld [vmem:[#allocation4 + $0x8] sm:$0xff]
      %v572 = vld [vmem:[#allocation4 + $0x10] sm:$0xff]
      %v573 = vld [vmem:[#allocation4 + $0x18] sm:$0xff]
      %v574 = vld [vmem:[#allocation4 + $0x20] sm:$0xff]
      %v575 = vld [vmem:[#allocation4 + $0x28] sm:$0xff]
      %v576 = vld [vmem:[#allocation4 + $0x30] sm:$0xff]
      %v577 = vld [vmem:[#allocation4 + $0x38] sm:$0xff]
      %v578 = vld [vmem:[#allocation4 + $0x40] sm:$0xff]
      %v579 = vld [vmem:[#allocation4 + $0x48] sm:$0xff]
      %v580 = vld [vmem:[#allocation4 + $0x50] sm:$0xff]
      %v581 = vld [vmem:[#allocation4 + $0x58] sm:$0xff]
      %v582 = vld [vmem:[#allocation4 + $0x60] sm:$0xff]
      %v583 = vld [vmem:[#allocation4 + $0x68] sm:$0xff]
      %v584 = vld [vmem:[#allocation4 + $0x70] sm:$0xff]
      %v585 = vld [vmem:[#allocation4 + $0x78] sm:$0xff]
      %v586 = vld [vmem:[#allocation4 + $0x80] sm:$0xff]
      %v587 = vld [vmem:[#allocation4 + $0x88] sm:$0xff]
      %v588 = vld [vmem:[#allocation4 + $0x90] sm:$0xff]
      %v589 = vld [vmem:[#allocation4 + $0x98] sm:$0xff]
      %v590 = vld [vmem:[#allocation4 + $0xa0] sm:$0xff]
      %v591 = vld [vmem:[#allocation4 + $0xa8] sm:$0xff]
      %v592 = vld [vmem:[#allocation4 + $0xb0] sm:$0xff]
      %v593 = vld [vmem:[#allocation4 + $0xb8] sm:$0xff]
      %v594 = vld [vmem:[#allocation4 + $0xc0] sm:$0xff]
      %v595 = vld [vmem:[#allocation4 + $0xc8] sm:$0xff]
      %v596 = vld [vmem:[#allocation4 + $0xd0] sm:$0xff]
      %v597 = vld [vmem:[#allocation4 + $0xd8] sm:$0xff]
      %v598 = vld [vmem:[#allocation4 + $0xe0] sm:$0xff]
      %v599 = vld [vmem:[#allocation4 + $0xe8] sm:$0xff]
      %v600 = vld [vmem:[#allocation4 + $0xf0] sm:$0xff]
      %v601 = vld [vmem:[#allocation4 + $0xf8] sm:$0xff]
      %v602 = vld [vmem:[%s1] sm:$0x3]
      %v604 = vsel %vm280, %v554, 0
      %v607 = vsel %vm280, %v555, 0
      %v610 = vsel %vm280, %v556, 0
      %v613 = vsel %vm280, %v557, 0
      %v616 = vsel %vm280, %v558, 0
      %v619 = vsel %vm280, %v559, 0
      %v622 = vsel %vm280, %v560, 0
      %v625 = vsel %vm280, %v561, 0
      %v628 = vsel %vm280, %v562, 0
      %v631 = vsel %vm280, %v563, 0
      %v634 = vsel %vm280, %v564, 0
      %v637 = vsel %vm280, %v565, 0
      %v640 = vsel %vm280, %v566, 0
      %v643 = vsel %vm280, %v567, 0
      %v646 = vsel %vm280, %v568, 0
      %v649 = vsel %vm280, %v569, 0
      %vm651 = vcmask 1041408
      %v653 = vsel %vm651, %v602, 0
      %655 = vmatprep.subr.bf16.mxu0 0
      %656 = vmatpush1.bf16.msra.mxu0 %v653
      %657 = vmatprep.subr.bf16.mxu0 0
      %658 = vmatpush1.bf16.msra.mxu0 0
      %659 = vmatprep.subr.bf16.mxu0 0
      %660 = vmatpush1.bf16.msra.mxu0 0
      %661 = vmatprep.subr.bf16.mxu0 0
      %662 = vmatpush1.bf16.msra.mxu0 0
      %663 = vmatprep.subr.bf16.mxu0 0
      %664 = vmatpush1.bf16.msra.mxu0 0
      %665 = vmatprep.subr.bf16.mxu0 0
      %666 = vmatpush1.bf16.msra.mxu0 0
      %667 = vmatprep.subr.bf16.mxu0 0
      %668 = vmatpush1.bf16.msra.mxu0 0
      %669 = vmatprep.subr.bf16.mxu0 0
      %670 = vmatpush1.bf16.msra.mxu0 0
      %671 = vmatprep.subr.bf16.mxu0 0
      %672 = vmatpush1.bf16.msra.mxu0 0
      %673 = vmatprep.subr.bf16.mxu0 0
      %674 = vmatpush1.bf16.msra.mxu0 0
      %675 = vmatprep.subr.bf16.mxu0 0
      %676 = vmatpush1.bf16.msra.mxu0 0
      %677 = vmatprep.subr.bf16.mxu0 0
      %678 = vmatpush1.bf16.msra.mxu0 0
      %679 = vmatprep.subr.bf16.mxu0 0
      %680 = vmatpush1.bf16.msra.mxu0 0
      %681 = vmatprep.subr.bf16.mxu0 0
      %682 = vmatpush1.bf16.msra.mxu0 0
      %683 = vmatprep.subr.bf16.mxu0 0
      %684 = vmatpush1.bf16.msra.mxu0 0
      %685 = vmatprep.subr.bf16.mxu0 0
      %686 = vmatpush1.bf16.msra.mxu0 0
      %687 = vmatprep.mubr.bf16.mxu0 0
      %688 = vmatmul.mubr.bf16.gmra.mrb[0].mxu0 %v604
      %v689 = vpop.f32.mrb[0].mxu0
      %v690 = vadd.f32 0.0, %v689
      %v691 = vpop.f32.mrb[0].mxu0
      %v692 = vpop.f32.mrb[0].mxu0
      %v693 = vadd.f32 0.0, %v692
      %v694 = vpop.f32.mrb[0].mxu0
      %695 = vmatprep.mubr.bf16.mxu0 0
      %696 = vmatmul.mubr.bf16.gmra.mrb[0].mxu0 %v607
      %v697 = vpop.f32.mrb[0].mxu0
      %v698 = vadd.f32 0.0, %v697
      %v699 = vpop.f32.mrb[0].mxu0
      %v700 = vpop.f32.mrb[0].mxu0
      %v701 = vadd.f32 0.0, %v700
      %v702 = vpop.f32.mrb[0].mxu0
      %703 = vmatprep.mubr.bf16.mxu0 0
      %704 = vmatmul.mubr.bf16.gmra.mrb[0].mxu0 %v610
      %v705 = vpop.f32.mrb[0].mxu0
      %v706 = vadd.f32 0.0, %v705
      %v707 = vpop.f32.mrb[0].mxu0
      %v708 = vpop.f32.mrb[0].mxu0
      %v709 = vadd.f32 0.0, %v708
      %v710 = vpop.f32.mrb[0].mxu0
      %711 = vmatprep.mubr.bf16.mxu0 0
      %712 = vmatmul.mubr.bf16.gmra.mrb[0].mxu0 %v613
      %v713 = vpop.f32.mrb[0].mxu0
      %v714 = vadd.f32 0.0, %v713
      %v715 = vpop.f32.mrb[0].mxu0
      %v716 = vpop.f32.mrb[0].mxu0
      %v717 = vadd.f32 0.0, %v716
      %v718 = vpop.f32.mrb[0].mxu0
      %719 = vmatprep.mubr.bf16.mxu0 0
      %720 = vmatmul.mubr.bf16.gmra.mrb[0].mxu0 %v616
      %v721 = vpop.f32.mrb[0].mxu0
      %v722 = vadd.f32 0.0, %v721
      %v723 = vpop.f32.mrb[0].mxu0
      %v724 = vpop.f32.mrb[0].mxu0
      %v725 = vadd.f32 0.0, %v724
      %v726 = vpop.f32.mrb[0].mxu0
      %727 = vmatprep.mubr.bf16.mxu0 0
      %728 = vmatmul.mubr.bf16.gmra.mrb[0].mxu0 %v619
      %v729 = vpop.f32.mrb[0].mxu0
      %v730 = vadd.f32 0.0, %v729
      %v731 = vpop.f32.mrb[0].mxu0
      %v732 = vpop.f32.mrb[0].mxu0
      %v733 = vadd.f32 0.0, %v732
      %v734 = vpop.f32.mrb[0].mxu0
      %735 = vmatprep.mubr.bf16.mxu0 0
      %736 = vmatmul.mubr.bf16.gmra.mrb[0].mxu0 %v622
      %v737 = vpop.f32.mrb[0].mxu0
      %v738 = vadd.f32 0.0, %v737
      %v739 = vpop.f32.mrb[0].mxu0
      %v740 = vpop.f32.mrb[0].mxu0
      %v741 = vadd.f32 0.0, %v740
      %v742 = vpop.f32.mrb[0].mxu0
      %743 = vmatprep.mubr.bf16.mxu0 0
      %744 = vmatmul.mubr.bf16.gmra.mrb[0].mxu0 %v625
      %v745 = vpop.f32.mrb[0].mxu0
      %v746 = vadd.f32 0.0, %v745
      %v747 = vpop.f32.mrb[0].mxu0
      %v748 = vpop.f32.mrb[0].mxu0
      %v749 = vadd.f32 0.0, %v748
      %v750 = vpop.f32.mrb[0].mxu0
      %751 = vmatprep.mubr.bf16.mxu0 0
      %752 = vmatmul.mubr.bf16.gmra.mrb[0].mxu0 %v628
      %v753 = vpop.f32.mrb[0].mxu0
      %v754 = vadd.f32 0.0, %v753
      %v755 = vpop.f32.mrb[0].mxu0
      %v756 = vpop.f32.mrb[0].mxu0
      %v757 = vadd.f32 0.0, %v756
      %v758 = vpop.f32.mrb[0].mxu0
      %759 = vmatprep.mubr.bf16.mxu0 0
      %760 = vmatmul.mubr.bf16.gmra.mrb[0].mxu0 %v631
      %v761 = vpop.f32.mrb[0].mxu0
      %v762 = vadd.f32 0.0, %v761
      %v763 = vpop.f32.mrb[0].mxu0
      %v764 = vpop.f32.mrb[0].mxu0
      %v765 = vadd.f32 0.0, %v764
      %v766 = vpop.f32.mrb[0].mxu0
      %767 = vmatprep.mubr.bf16.mxu0 0
      %768 = vmatmul.mubr.bf16.gmra.mrb[0].mxu0 %v634
      %v769 = vpop.f32.mrb[0].mxu0
      %v770 = vadd.f32 0.0, %v769
      %v771 = vpop.f32.mrb[0].mxu0
      %v772 = vpop.f32.mrb[0].mxu0
      %v773 = vadd.f32 0.0, %v772
      %v774 = vpop.f32.mrb[0].mxu0
      %775 = vmatprep.mubr.bf16.mxu0 0
      %776 = vmatmul.mubr.bf16.gmra.mrb[0].mxu0 %v637
      %v777 = vpop.f32.mrb[0].mxu0
      %v778 = vadd.f32 0.0, %v777
      %v779 = vpop.f32.mrb[0].mxu0
      %v780 = vpop.f32.mrb[0].mxu0
      %v781 = vadd.f32 0.0, %v780
      %v782 = vpop.f32.mrb[0].mxu0
      %783 = vmatprep.mubr.bf16.mxu0 0
      %784 = vmatmul.mubr.bf16.gmra.mrb[0].mxu0 %v640
      %v785 = vpop.f32.mrb[0].mxu0
      %v786 = vadd.f32 0.0, %v785
      %v787 = vpop.f32.mrb[0].mxu0
      %v788 = vpop.f32.mrb[0].mxu0
      %v789 = vadd.f32 0.0, %v788
      %v790 = vpop.f32.mrb[0].mxu0
      %791 = vmatprep.mubr.bf16.mxu0 0
      %792 = vmatmul.mubr.bf16.gmra.mrb[0].mxu0 %v643
      %v793 = vpop.f32.mrb[0].mxu0
      %v794 = vadd.f32 0.0, %v793
      %v795 = vpop.f32.mrb[0].mxu0
      %v796 = vpop.f32.mrb[0].mxu0
      %v797 = vadd.f32 0.0, %v796
      %v798 = vpop.f32.mrb[0].mxu0
      %799 = vmatprep.mubr.bf16.mxu0 0
      %800 = vmatmul.mubr.bf16.gmra.mrb[0].mxu0 %v646
      %v801 = vpop.f32.mrb[0].mxu0
      %v802 = vadd.f32 0.0, %v801
      %v803 = vpop.f32.mrb[0].mxu0
      %v804 = vpop.f32.mrb[0].mxu0
      %v805 = vadd.f32 0.0, %v804
      %v806 = vpop.f32.mrb[0].mxu0
      %807 = vmatprep.mubr.bf16.mxu0 0
      %808 = vmatmul.mubr.bf16.gmra.mrb[0].mxu0 %v649
      %v809 = vpop.f32.mrb[0].mxu0
      %v810 = vadd.f32 0.0, %v809
      %v811 = vpop.f32.mrb[0].mxu0
      %v812 = vpop.f32.mrb[0].mxu0
      %v813 = vadd.f32 0.0, %v812
      %v814 = vpop.f32.mrb[0].mxu0
      %815 = vdwg.mxu0
      %v816 = vadd.f32 %v570, %v690
      %v817 = vadd.f32 %v571, %v693
      %v818 = vadd.f32 %v572, %v698
      %v819 = vadd.f32 %v573, %v701
      %v820 = vadd.f32 %v574, %v706
      %v821 = vadd.f32 %v575, %v709
      %v822 = vadd.f32 %v576, %v714
      %v823 = vadd.f32 %v577, %v717
      %v824 = vadd.f32 %v578, %v722
      %v825 = vadd.f32 %v579, %v725
      %v826 = vadd.f32 %v580, %v730
      %v827 = vadd.f32 %v581, %v733
      %v828 = vadd.f32 %v582, %v738
      %v829 = vadd.f32 %v583, %v741
      %v830 = vadd.f32 %v584, %v746
      %v831 = vadd.f32 %v585, %v749
      %v832 = vadd.f32 %v586, %v754
      %v833 = vadd.f32 %v587, %v757
      %v834 = vadd.f32 %v588, %v762
      %v835 = vadd.f32 %v589, %v765
      %v836 = vadd.f32 %v590, %v770
      %v837 = vadd.f32 %v591, %v773
      %v838 = vadd.f32 %v592, %v778
      %v839 = vadd.f32 %v593, %v781
      %v840 = vadd.f32 %v594, %v786
      %v841 = vadd.f32 %v595, %v789
      %v842 = vadd.f32 %v596, %v794
      %v843 = vadd.f32 %v597, %v797
      %v844 = vadd.f32 %v598, %v802
      %v845 = vadd.f32 %v599, %v805
      %v846 = vadd.f32 %v600, %v810
      %v847 = vadd.f32 %v601, %v813
      %848 = vst [vmem:[#allocation4] sm:$0xff] %v816
      %849 = vst [vmem:[#allocation4 + $0x8] sm:$0xff] %v817
      %850 = vst [vmem:[#allocation4 + $0x10] sm:$0xff] %v818
      %851 = vst [vmem:[#allocation4 + $0x18] sm:$0xff] %v819
      %852 = vst [vmem:[#allocation4 + $0x20] sm:$0xff] %v820
      %853 = vst [vmem:[#allocation4 + $0x28] sm:$0xff] %v821
      %854 = vst [vmem:[#allocation4 + $0x30] sm:$0xff] %v822
      %855 = vst [vmem:[#allocation4 + $0x38] sm:$0xff] %v823
      %856 = vst [vmem:[#allocation4 + $0x40] sm:$0xff] %v824
      %857 = vst [vmem:[#allocation4 + $0x48] sm:$0xff] %v825
      %858 = vst [vmem:[#allocation4 + $0x50] sm:$0xff] %v826
      %859 = vst [vmem:[#allocation4 + $0x58] sm:$0xff] %v827
      %860 = vst [vmem:[#allocation4 + $0x60] sm:$0xff] %v828
      %861 = vst [vmem:[#allocation4 + $0x68] sm:$0xff] %v829
      %862 = vst [vmem:[#allocation4 + $0x70] sm:$0xff] %v830
      %863 = vst [vmem:[#allocation4 + $0x78] sm:$0xff] %v831
      %864 = vst [vmem:[#allocation4 + $0x80] sm:$0xff] %v832
      %865 = vst [vmem:[#allocation4 + $0x88] sm:$0xff] %v833
      %866 = vst [vmem:[#allocation4 + $0x90] sm:$0xff] %v834
      %867 = vst [vmem:[#allocation4 + $0x98] sm:$0xff] %v835
      %868 = vst [vmem:[#allocation4 + $0xa0] sm:$0xff] %v836
      %869 = vst [vmem:[#allocation4 + $0xa8] sm:$0xff] %v837
      %870 = vst [vmem:[#allocation4 + $0xb0] sm:$0xff] %v838
      %871 = vst [vmem:[#allocation4 + $0xb8] sm:$0xff] %v839
      %872 = vst [vmem:[#allocation4 + $0xc0] sm:$0xff] %v840
      %873 = vst [vmem:[#allocation4 + $0xc8] sm:$0xff] %v841
      %874 = vst [vmem:[#allocation4 + $0xd0] sm:$0xff] %v842
      %875 = vst [vmem:[#allocation4 + $0xd8] sm:$0xff] %v843
      %876 = vst [vmem:[#allocation4 + $0xe0] sm:$0xff] %v844
      %877 = vst [vmem:[#allocation4 + $0xe8] sm:$0xff] %v845
      %878 = vst [vmem:[#allocation4 + $0xf0] sm:$0xff] %v846
      %879 = vst [vmem:[#allocation4 + $0xf8] sm:$0xff] %v847
      %v880 = vld [vmem:[#allocation2 + $0x8] sm:$0xff]
      %v881 = vld [vmem:[#allocation2 + $0x10] sm:$0xff]
      %v882 = vld [vmem:[#allocation2 + $0x28] sm:$0xff]
      %v883 = vld [vmem:[#allocation2 + $0x30] sm:$0xff]
      %v884 = vld [vmem:[#allocation2 + $0x48] sm:$0xff]
      %v885 = vld [vmem:[#allocation2 + $0x50] sm:$0xff]
      %v886 = vld [vmem:[#allocation2 + $0x68] sm:$0xff]
      %v887 = vld [vmem:[#allocation2 + $0x70] sm:$0xff]
      %v888 = vld [vmem:[#allocation2 + $0x88] sm:$0xff]
      %v889 = vld [vmem:[#allocation2 + $0x90] sm:$0xff]
      %v890 = vld [vmem:[#allocation2 + $0xa8] sm:$0xff]
      %v891 = vld [vmem:[#allocation2 + $0xb0] sm:$0xff]
      %v892 = vld [vmem:[#allocation2 + $0xc8] sm:$0xff]
      %v893 = vld [vmem:[#allocation2 + $0xd0] sm:$0xff]
      %v894 = vld [vmem:[#allocation2 + $0xe8] sm:$0xff]
      %v895 = vld [vmem:[#allocation2 + $0xf0] sm:$0xff]
      %v896 = vld [vmem:[#allocation2 + $0x108] sm:$0xff]
      %v897 = vld [vmem:[#allocation2 + $0x110] sm:$0xff]
      %v898 = vld [vmem:[#allocation2 + $0x128] sm:$0xff]
      %v899 = vld [vmem:[#allocation2 + $0x130] sm:$0xff]
      %v900 = vld [vmem:[#allocation2 + $0x148] sm:$0xff]
      %v901 = vld [vmem:[#allocation2 + $0x150] sm:$0xff]
      %v902 = vld [vmem:[#allocation2 + $0x168] sm:$0xff]
      %v903 = vld [vmem:[#allocation2 + $0x170] sm:$0xff]
      %v904 = vld [vmem:[#allocation2 + $0x188] sm:$0xff]
      %v905 = vld [vmem:[#allocation2 + $0x190] sm:$0xff]
      %v906 = vld [vmem:[#allocation2 + $0x1a8] sm:$0xff]
      %v907 = vld [vmem:[#allocation2 + $0x1b0] sm:$0xff]
      %v908 = vld [vmem:[#allocation2 + $0x1c8] sm:$0xff]
      %v909 = vld [vmem:[#allocation2 + $0x1d0] sm:$0xff]
      %v910 = vld [vmem:[#allocation2 + $0x1e8] sm:$0xff]
      %v911 = vld [vmem:[#allocation2 + $0x1f0] sm:$0xff]
      %v912 = vpack.c.bf16 %v881, %v880
      %v913 = vpack.c.bf16 %v883, %v882
      %v914 = vpack.c.bf16 %v885, %v884
      %v915 = vpack.c.bf16 %v887, %v886
      %v916 = vpack.c.bf16 %v889, %v888
      %v917 = vpack.c.bf16 %v891, %v890
      %v918 = vpack.c.bf16 %v893, %v892
      %v919 = vpack.c.bf16 %v895, %v894
      %v920 = vpack.c.bf16 %v897, %v896
      %v921 = vpack.c.bf16 %v899, %v898
      %v922 = vpack.c.bf16 %v901, %v900
      %v923 = vpack.c.bf16 %v903, %v902
      %v924 = vpack.c.bf16 %v905, %v904
      %v925 = vpack.c.bf16 %v907, %v906
      %v926 = vpack.c.bf16 %v909, %v908
      %v927 = vpack.c.bf16 %v911, %v910
      %v928 = vld [vmem:[#allocation4] sm:$0xff]
      %v929 = vld [vmem:[#allocation4 + $0x8] sm:$0xff]
      %v930 = vld [vmem:[#allocation4 + $0x10] sm:$0xff]
      %v931 = vld [vmem:[#allocation4 + $0x18] sm:$0xff]
      %v932 = vld [vmem:[#allocation4 + $0x20] sm:$0xff]
      %v933 = vld [vmem:[#allocation4 + $0x28] sm:$0xff]
      %v934 = vld [vmem:[#allocation4 + $0x30] sm:$0xff]
      %v935 = vld [vmem:[#allocation4 + $0x38] sm:$0xff]
      %v936 = vld [vmem:[#allocation4 + $0x40] sm:$0xff]
      %v937 = vld [vmem:[#allocation4 + $0x48] sm:$0xff]
      %v938 = vld [vmem:[#allocation4 + $0x50] sm:$0xff]
      %v939 = vld [vmem:[#allocation4 + $0x58] sm:$0xff]
      %v940 = vld [vmem:[#allocation4 + $0x60] sm:$0xff]
      %v941 = vld [vmem:[#allocation4 + $0x68] sm:$0xff]
      %v942 = vld [vmem:[#allocation4 + $0x70] sm:$0xff]
      %v943 = vld [vmem:[#allocation4 + $0x78] sm:$0xff]
      %v944 = vld [vmem:[#allocation4 + $0x80] sm:$0xff]
      %v945 = vld [vmem:[#allocation4 + $0x88] sm:$0xff]
      %v946 = vld [vmem:[#allocation4 + $0x90] sm:$0xff]
      %v947 = vld [vmem:[#allocation4 + $0x98] sm:$0xff]
      %v948 = vld [vmem:[#allocation4 + $0xa0] sm:$0xff]
      %v949 = vld [vmem:[#allocation4 + $0xa8] sm:$0xff]
      %v950 = vld [vmem:[#allocation4 + $0xb0] sm:$0xff]
      %v951 = vld [vmem:[#allocation4 + $0xb8] sm:$0xff]
      %v952 = vld [vmem:[#allocation4 + $0xc0] sm:$0xff]
      %v953 = vld [vmem:[#allocation4 + $0xc8] sm:$0xff]
      %v954 = vld [vmem:[#allocation4 + $0xd0] sm:$0xff]
      %v955 = vld [vmem:[#allocation4 + $0xd8] sm:$0xff]
      %v956 = vld [vmem:[#allocation4 + $0xe0] sm:$0xff]
      %v957 = vld [vmem:[#allocation4 + $0xe8] sm:$0xff]
      %v958 = vld [vmem:[#allocation4 + $0xf0] sm:$0xff]
      %v959 = vld [vmem:[#allocation4 + $0xf8] sm:$0xff]
      %s960 = scalar_lea.vmem %s1, 2
      %v961 = vld [vmem:[%s960] sm:$0x3]
      %v963 = vsel %vm280, %v912, 0
      %v966 = vsel %vm280, %v913, 0
      %v969 = vsel %vm280, %v914, 0
      %v972 = vsel %vm280, %v915, 0
      %v975 = vsel %vm280, %v916, 0
      %v978 = vsel %vm280, %v917, 0
      %v981 = vsel %vm280, %v918, 0
      %v984 = vsel %vm280, %v919, 0
      %v987 = vsel %vm280, %v920, 0
      %v990 = vsel %vm280, %v921, 0
      %v993 = vsel %vm280, %v922, 0
      %v996 = vsel %vm280, %v923, 0
      %v999 = vsel %vm280, %v924, 0
      %v1002 = vsel %vm280, %v925, 0
      %v1005 = vsel %vm280, %v926, 0
      %v1008 = vsel %vm280, %v927, 0
      %v1011 = vsel %vm651, %v961, 0
      %1013 = vmatprep.subr.bf16.mxu0 0
      %1014 = vmatpush1.bf16.msra.mxu0 %v1011
      %1015 = vmatprep.subr.bf16.mxu0 0
      %1016 = vmatpush1.bf16.msra.mxu0 0
      %1017 = vmatprep.subr.bf16.mxu0 0
      %1018 = vmatpush1.bf16.msra.mxu0 0
      %1019 = vmatprep.subr.bf16.mxu0 0
      %1020 = vmatpush1.bf16.msra.mxu0 0
      %1021 = vmatprep.subr.bf16.mxu0 0
      %1022 = vmatpush1.bf16.msra.mxu0 0
      %1023 = vmatprep.subr.bf16.mxu0 0
      %1024 = vmatpush1.bf16.msra.mxu0 0
      %1025 = vmatprep.subr.bf16.mxu0 0
      %1026 = vmatpush1.bf16.msra.mxu0 0
      %1027 = vmatprep.subr.bf16.mxu0 0
      %1028 = vmatpush1.bf16.msra.mxu0 0
      %1029 = vmatprep.subr.bf16.mxu0 0
      %1030 = vmatpush1.bf16.msra.mxu0 0
      %1031 = vmatprep.subr.bf16.mxu0 0
      %1032 = vmatpush1.bf16.msra.mxu0 0
      %1033 = vmatprep.subr.bf16.mxu0 0
      %1034 = vmatpush1.bf16.msra.mxu0 0
      %1035 = vmatprep.subr.bf16.mxu0 0
      %1036 = vmatpush1.bf16.msra.mxu0 0
      %1037 = vmatprep.subr.bf16.mxu0 0
      %1038 = vmatpush1.bf16.msra.mxu0 0
      %1039 = vmatprep.subr.bf16.mxu0 0
      %1040 = vmatpush1.bf16.msra.mxu0 0
      %1041 = vmatprep.subr.bf16.mxu0 0
      %1042 = vmatpush1.bf16.msra.mxu0 0
      %1043 = vmatprep.subr.bf16.mxu0 0
      %1044 = vmatpush1.bf16.msra.mxu0 0
      %1045 = vmatprep.mubr.bf16.mxu0 0
      %1046 = vmatmul.mubr.bf16.gmra.mrb[0].mxu0 %v963
      %v1047 = vpop.f32.mrb[0].mxu0
      %v1048 = vadd.f32 0.0, %v1047
      %v1049 = vpop.f32.mrb[0].mxu0
      %v1050 = vpop.f32.mrb[0].mxu0
      %v1051 = vadd.f32 0.0, %v1050
      %v1052 = vpop.f32.mrb[0].mxu0
      %1053 = vmatprep.mubr.bf16.mxu0 0
      %1054 = vmatmul.mubr.bf16.gmra.mrb[0].mxu0 %v966
      %v1055 = vpop.f32.mrb[0].mxu0
      %v1056 = vadd.f32 0.0, %v1055
      %v1057 = vpop.f32.mrb[0].mxu0
      %v1058 = vpop.f32.mrb[0].mxu0
      %v1059 = vadd.f32 0.0, %v1058
      %v1060 = vpop.f32.mrb[0].mxu0
      %1061 = vmatprep.mubr.bf16.mxu0 0
      %1062 = vmatmul.mubr.bf16.gmra.mrb[0].mxu0 %v969
      %v1063 = vpop.f32.mrb[0].mxu0
      %v1064 = vadd.f32 0.0, %v1063
      %v1065 = vpop.f32.mrb[0].mxu0
      %v1066 = vpop.f32.mrb[0].mxu0
      %v1067 = vadd.f32 0.0, %v1066
      %v1068 = vpop.f32.mrb[0].mxu0
      %1069 = vmatprep.mubr.bf16.mxu0 0
      %1070 = vmatmul.mubr.bf16.gmra.mrb[0].mxu0 %v972
      %v1071 = vpop.f32.mrb[0].mxu0
      %v1072 = vadd.f32 0.0, %v1071
      %v1073 = vpop.f32.mrb[0].mxu0
      %v1074 = vpop.f32.mrb[0].mxu0
      %v1075 = vadd.f32 0.0, %v1074
      %v1076 = vpop.f32.mrb[0].mxu0
      %1077 = vmatprep.mubr.bf16.mxu0 0
      %1078 = vmatmul.mubr.bf16.gmra.mrb[0].mxu0 %v975
      %v1079 = vpop.f32.mrb[0].mxu0
      %v1080 = vadd.f32 0.0, %v1079
      %v1081 = vpop.f32.mrb[0].mxu0
      %v1082 = vpop.f32.mrb[0].mxu0
      %v1083 = vadd.f32 0.0, %v1082
      %v1084 = vpop.f32.mrb[0].mxu0
      %1085 = vmatprep.mubr.bf16.mxu0 0
      %1086 = vmatmul.mubr.bf16.gmra.mrb[0].mxu0 %v978
      %v1087 = vpop.f32.mrb[0].mxu0
      %v1088 = vadd.f32 0.0, %v1087
      %v1089 = vpop.f32.mrb[0].mxu0
      %v1090 = vpop.f32.mrb[0].mxu0
      %v1091 = vadd.f32 0.0, %v1090
      %v1092 = vpop.f32.mrb[0].mxu0
      %1093 = vmatprep.mubr.bf16.mxu0 0
      %1094 = vmatmul.mubr.bf16.gmra.mrb[0].mxu0 %v981
      %v1095 = vpop.f32.mrb[0].mxu0
      %v1096 = vadd.f32 0.0, %v1095
      %v1097 = vpop.f32.mrb[0].mxu0
      %v1098 = vpop.f32.mrb[0].mxu0
      %v1099 = vadd.f32 0.0, %v1098
      %v1100 = vpop.f32.mrb[0].mxu0
      %1101 = vmatprep.mubr.bf16.mxu0 0
      %1102 = vmatmul.mubr.bf16.gmra.mrb[0].mxu0 %v984
      %v1103 = vpop.f32.mrb[0].mxu0
      %v1104 = vadd.f32 0.0, %v1103
      %v1105 = vpop.f32.mrb[0].mxu0
      %v1106 = vpop.f32.mrb[0].mxu0
      %v1107 = vadd.f32 0.0, %v1106
      %v1108 = vpop.f32.mrb[0].mxu0
      %1109 = vmatprep.mubr.bf16.mxu0 0
      %1110 = vmatmul.mubr.bf16.gmra.mrb[0].mxu0 %v987
      %v1111 = vpop.f32.mrb[0].mxu0
      %v1112 = vadd.f32 0.0, %v1111
      %v1113 = vpop.f32.mrb[0].mxu0
      %v1114 = vpop.f32.mrb[0].mxu0
      %v1115 = vadd.f32 0.0, %v1114
      %v1116 = vpop.f32.mrb[0].mxu0
      %1117 = vmatprep.mubr.bf16.mxu0 0
      %1118 = vmatmul.mubr.bf16.gmra.mrb[0].mxu0 %v990
      %v1119 = vpop.f32.mrb[0].mxu0
      %v1120 = vadd.f32 0.0, %v1119
      %v1121 = vpop.f32.mrb[0].mxu0
      %v1122 = vpop.f32.mrb[0].mxu0
      %v1123 = vadd.f32 0.0, %v1122
      %v1124 = vpop.f32.mrb[0].mxu0
      %1125 = vmatprep.mubr.bf16.mxu0 0
      %1126 = vmatmul.mubr.bf16.gmra.mrb[0].mxu0 %v993
      %v1127 = vpop.f32.mrb[0].mxu0
      %v1128 = vadd.f32 0.0, %v1127
      %v1129 = vpop.f32.mrb[0].mxu0
      %v1130 = vpop.f32.mrb[0].mxu0
      %v1131 = vadd.f32 0.0, %v1130
      %v1132 = vpop.f32.mrb[0].mxu0
      %1133 = vmatprep.mubr.bf16.mxu0 0
      %1134 = vmatmul.mubr.bf16.gmra.mrb[0].mxu0 %v996
      %v1135 = vpop.f32.mrb[0].mxu0
      %v1136 = vadd.f32 0.0, %v1135
      %v1137 = vpop.f32.mrb[0].mxu0
      %v1138 = vpop.f32.mrb[0].mxu0
      %v1139 = vadd.f32 0.0, %v1138
      %v1140 = vpop.f32.mrb[0].mxu0
      %1141 = vmatprep.mubr.bf16.mxu0 0
      %1142 = vmatmul.mubr.bf16.gmra.mrb[0].mxu0 %v999
      %v1143 = vpop.f32.mrb[0].mxu0
      %v1144 = vadd.f32 0.0, %v1143
      %v1145 = vpop.f32.mrb[0].mxu0
      %v1146 = vpop.f32.mrb[0].mxu0
      %v1147 = vadd.f32 0.0, %v1146
      %v1148 = vpop.f32.mrb[0].mxu0
      %1149 = vmatprep.mubr.bf16.mxu0 0
      %1150 = vmatmul.mubr.bf16.gmra.mrb[0].mxu0 %v1002
      %v1151 = vpop.f32.mrb[0].mxu0
      %v1152 = vadd.f32 0.0, %v1151
      %v1153 = vpop.f32.mrb[0].mxu0
      %v1154 = vpop.f32.mrb[0].mxu0
      %v1155 = vadd.f32 0.0, %v1154
      %v1156 = vpop.f32.mrb[0].mxu0
      %1157 = vmatprep.mubr.bf16.mxu0 0
      %1158 = vmatmul.mubr.bf16.gmra.mrb[0].mxu0 %v1005
      %v1159 = vpop.f32.mrb[0].mxu0
      %v1160 = vadd.f32 0.0, %v1159
      %v1161 = vpop.f32.mrb[0].mxu0
      %v1162 = vpop.f32.mrb[0].mxu0
      %v1163 = vadd.f32 0.0, %v1162
      %v1164 = vpop.f32.mrb[0].mxu0
      %1165 = vmatprep.mubr.bf16.mxu0 0
      %1166 = vmatmul.mubr.bf16.gmra.mrb[0].mxu0 %v1008
      %v1167 = vpop.f32.mrb[0].mxu0
      %v1168 = vadd.f32 0.0, %v1167
      %v1169 = vpop.f32.mrb[0].mxu0
      %v1170 = vpop.f32.mrb[0].mxu0
      %v1171 = vadd.f32 0.0, %v1170
      %v1172 = vpop.f32.mrb[0].mxu0
      %1173 = vdwg.mxu0
      %v1174 = vadd.f32 %v928, %v1048
      %v1175 = vadd.f32 %v929, %v1051
      %v1176 = vadd.f32 %v930, %v1056
      %v1177 = vadd.f32 %v931, %v1059
      %v1178 = vadd.f32 %v932, %v1064
      %v1179 = vadd.f32 %v933, %v1067
      %v1180 = vadd.f32 %v934, %v1072
      %v1181 = vadd.f32 %v935, %v1075
      %v1182 = vadd.f32 %v936, %v1080
      %v1183 = vadd.f32 %v937, %v1083
      %v1184 = vadd.f32 %v938, %v1088
      %v1185 = vadd.f32 %v939, %v1091
      %v1186 = vadd.f32 %v940, %v1096
      %v1187 = vadd.f32 %v941, %v1099
      %v1188 = vadd.f32 %v942, %v1104
      %v1189 = vadd.f32 %v943, %v1107
      %v1190 = vadd.f32 %v944, %v1112
      %v1191 = vadd.f32 %v945, %v1115
      %v1192 = vadd.f32 %v946, %v1120
      %v1193 = vadd.f32 %v947, %v1123
      %v1194 = vadd.f32 %v948, %v1128
      %v1195 = vadd.f32 %v949, %v1131
      %v1196 = vadd.f32 %v950, %v1136
      %v1197 = vadd.f32 %v951, %v1139
      %v1198 = vadd.f32 %v952, %v1144
      %v1199 = vadd.f32 %v953, %v1147
      %v1200 = vadd.f32 %v954, %v1152
      %v1201 = vadd.f32 %v955, %v1155
      %v1202 = vadd.f32 %v956, %v1160
      %v1203 = vadd.f32 %v957, %v1163
      %v1204 = vadd.f32 %v958, %v1168
      %v1205 = vadd.f32 %v959, %v1171
      %1206 = vst [vmem:[#allocation4] sm:$0xff] %v1174
      %1207 = vst [vmem:[#allocation4 + $0x8] sm:$0xff] %v1175
      %1208 = vst [vmem:[#allocation4 + $0x10] sm:$0xff] %v1176
      %1209 = vst [vmem:[#allocation4 + $0x18] sm:$0xff] %v1177
      %1210 = vst [vmem:[#allocation4 + $0x20] sm:$0xff] %v1178
      %1211 = vst [vmem:[#allocation4 + $0x28] sm:$0xff] %v1179
      %1212 = vst [vmem:[#allocation4 + $0x30] sm:$0xff] %v1180
      %1213 = vst [vmem:[#allocation4 + $0x38] sm:$0xff] %v1181
      %1214 = vst [vmem:[#allocation4 + $0x40] sm:$0xff] %v1182
      %1215 = vst [vmem:[#allocation4 + $0x48] sm:$0xff] %v1183
      %1216 = vst [vmem:[#allocation4 + $0x50] sm:$0xff] %v1184
      %1217 = vst [vmem:[#allocation4 + $0x58] sm:$0xff] %v1185
      %1218 = vst [vmem:[#allocation4 + $0x60] sm:$0xff] %v1186
      %1219 = vst [vmem:[#allocation4 + $0x68] sm:$0xff] %v1187
      %1220 = vst [vmem:[#allocation4 + $0x70] sm:$0xff] %v1188
      %1221 = vst [vmem:[#allocation4 + $0x78] sm:$0xff] %v1189
      %1222 = vst [vmem:[#allocation4 + $0x80] sm:$0xff] %v1190
      %1223 = vst [vmem:[#allocation4 + $0x88] sm:$0xff] %v1191
      %1224 = vst [vmem:[#allocation4 + $0x90] sm:$0xff] %v1192
      %1225 = vst [vmem:[#allocation4 + $0x98] sm:$0xff] %v1193
      %1226 = vst [vmem:[#allocation4 + $0xa0] sm:$0xff] %v1194
      %1227 = vst [vmem:[#allocation4 + $0xa8] sm:$0xff] %v1195
      %1228 = vst [vmem:[#allocation4 + $0xb0] sm:$0xff] %v1196
      %1229 = vst [vmem:[#allocation4 + $0xb8] sm:$0xff] %v1197
      %1230 = vst [vmem:[#allocation4 + $0xc0] sm:$0xff] %v1198
      %1231 = vst [vmem:[#allocation4 + $0xc8] sm:$0xff] %v1199
      %1232 = vst [vmem:[#allocation4 + $0xd0] sm:$0xff] %v1200
      %1233 = vst [vmem:[#allocation4 + $0xd8] sm:$0xff] %v1201
      %1234 = vst [vmem:[#allocation4 + $0xe0] sm:$0xff] %v1202
      %1235 = vst [vmem:[#allocation4 + $0xe8] sm:$0xff] %v1203
      %1236 = vst [vmem:[#allocation4 + $0xf0] sm:$0xff] %v1204
      %1237 = vst [vmem:[#allocation4 + $0xf8] sm:$0xff] %v1205
      %v1238 = vld [vmem:[#allocation2 + $0x9] sm:$0xff]
      %v1239 = vld [vmem:[#allocation2 + $0x11] sm:$0xff]
      %v1240 = vld [vmem:[#allocation2 + $0x29] sm:$0xff]
      %v1241 = vld [vmem:[#allocation2 + $0x31] sm:$0xff]
      %v1242 = vld [vmem:[#allocation2 + $0x49] sm:$0xff]
      %v1243 = vld [vmem:[#allocation2 + $0x51] sm:$0xff]
      %v1244 = vld [vmem:[#allocation2 + $0x69] sm:$0xff]
      %v1245 = vld [vmem:[#allocation2 + $0x71] sm:$0xff]
      %v1246 = vld [vmem:[#allocation2 + $0x89] sm:$0xff]
      %v1247 = vld [vmem:[#allocation2 + $0x91] sm:$0xff]
      %v1248 = vld [vmem:[#allocation2 + $0xa9] sm:$0xff]
      %v1249 = vld [vmem:[#allocation2 + $0xb1] sm:$0xff]
      %v1250 = vld [vmem:[#allocation2 + $0xc9] sm:$0xff]
      %v1251 = vld [vmem:[#allocation2 + $0xd1] sm:$0xff]
      %v1252 = vld [vmem:[#allocation2 + $0xe9] sm:$0xff]
      %v1253 = vld [vmem:[#allocation2 + $0xf1] sm:$0xff]
      %v1254 = vld [vmem:[#allocation2 + $0x109] sm:$0xff]
      %v1255 = vld [vmem:[#allocation2 + $0x111] sm:$0xff]
      %v1256 = vld [vmem:[#allocation2 + $0x129] sm:$0xff]
      %v1257 = vld [vmem:[#allocation2 + $0x131] sm:$0xff]
      %v1258 = vld [vmem:[#allocation2 + $0x149] sm:$0xff]
      %v1259 = vld [vmem:[#allocation2 + $0x151] sm:$0xff]
      %v1260 = vld [vmem:[#allocation2 + $0x169] sm:$0xff]
      %v1261 = vld [vmem:[#allocation2 + $0x171] sm:$0xff]
      %v1262 = vld [vmem:[#allocation2 + $0x189] sm:$0xff]
      %v1263 = vld [vmem:[#allocation2 + $0x191] sm:$0xff]
      %v1264 = vld [vmem:[#allocation2 + $0x1a9] sm:$0xff]
      %v1265 = vld [vmem:[#allocation2 + $0x1b1] sm:$0xff]
      %v1266 = vld [vmem:[#allocation2 + $0x1c9] sm:$0xff]
      %v1267 = vld [vmem:[#allocation2 + $0x1d1] sm:$0xff]
      %v1268 = vld [vmem:[#allocation2 + $0x1e9] sm:$0xff]
      %v1269 = vld [vmem:[#allocation2 + $0x1f1] sm:$0xff]
      %v1270 = vpack.c.bf16 %v1239, %v1238
      %v1271 = vpack.c.bf16 %v1241, %v1240
      %v1272 = vpack.c.bf16 %v1243, %v1242
      %v1273 = vpack.c.bf16 %v1245, %v1244
      %v1274 = vpack.c.bf16 %v1247, %v1246
      %v1275 = vpack.c.bf16 %v1249, %v1248
      %v1276 = vpack.c.bf16 %v1251, %v1250
      %v1277 = vpack.c.bf16 %v1253, %v1252
      %v1278 = vpack.c.bf16 %v1255, %v1254
      %v1279 = vpack.c.bf16 %v1257, %v1256
      %v1280 = vpack.c.bf16 %v1259, %v1258
      %v1281 = vpack.c.bf16 %v1261, %v1260
      %v1282 = vpack.c.bf16 %v1263, %v1262
      %v1283 = vpack.c.bf16 %v1265, %v1264
      %v1284 = vpack.c.bf16 %v1267, %v1266
      %v1285 = vpack.c.bf16 %v1269, %v1268
      %v1286 = vld [vmem:[#allocation4] sm:$0xff]
      %v1287 = vld [vmem:[#allocation4 + $0x8] sm:$0xff]
      %v1288 = vld [vmem:[#allocation4 + $0x10] sm:$0xff]
      %v1289 = vld [vmem:[#allocation4 + $0x18] sm:$0xff]
      %v1290 = vld [vmem:[#allocation4 + $0x20] sm:$0xff]
      %v1291 = vld [vmem:[#allocation4 + $0x28] sm:$0xff]
      %v1292 = vld [vmem:[#allocation4 + $0x30] sm:$0xff]
      %v1293 = vld [vmem:[#allocation4 + $0x38] sm:$0xff]
      %v1294 = vld [vmem:[#allocation4 + $0x40] sm:$0xff]
      %v1295 = vld [vmem:[#allocation4 + $0x48] sm:$0xff]
      %v1296 = vld [vmem:[#allocation4 + $0x50] sm:$0xff]
      %v1297 = vld [vmem:[#allocation4 + $0x58] sm:$0xff]
      %v1298 = vld [vmem:[#allocation4 + $0x60] sm:$0xff]
      %v1299 = vld [vmem:[#allocation4 + $0x68] sm:$0xff]
      %v1300 = vld [vmem:[#allocation4 + $0x70] sm:$0xff]
      %v1301 = vld [vmem:[#allocation4 + $0x78] sm:$0xff]
      %v1302 = vld [vmem:[#allocation4 + $0x80] sm:$0xff]
      %v1303 = vld [vmem:[#allocation4 + $0x88] sm:$0xff]
      %v1304 = vld [vmem:[#allocation4 + $0x90] sm:$0xff]
      %v1305 = vld [vmem:[#allocation4 + $0x98] sm:$0xff]
      %v1306 = vld [vmem:[#allocation4 + $0xa0] sm:$0xff]
      %v1307 = vld [vmem:[#allocation4 + $0xa8] sm:$0xff]
      %v1308 = vld [vmem:[#allocation4 + $0xb0] sm:$0xff]
      %v1309 = vld [vmem:[#allocation4 + $0xb8] sm:$0xff]
      %v1310 = vld [vmem:[#allocation4 + $0xc0] sm:$0xff]
      %v1311 = vld [vmem:[#allocation4 + $0xc8] sm:$0xff]
      %v1312 = vld [vmem:[#allocation4 + $0xd0] sm:$0xff]
      %v1313 = vld [vmem:[#allocation4 + $0xd8] sm:$0xff]
      %v1314 = vld [vmem:[#allocation4 + $0xe0] sm:$0xff]
      %v1315 = vld [vmem:[#allocation4 + $0xe8] sm:$0xff]
      %v1316 = vld [vmem:[#allocation4 + $0xf0] sm:$0xff]
      %v1317 = vld [vmem:[#allocation4 + $0xf8] sm:$0xff]
      %s1318 = scalar_lea.vmem %s1, 4
      %v1319 = vld [vmem:[%s1318] sm:$0x3]
      %v1321 = vsel %vm280, %v1270, 0
      %v1324 = vsel %vm280, %v1271, 0
      %v1327 = vsel %vm280, %v1272, 0
      %v1330 = vsel %vm280, %v1273, 0
      %v1333 = vsel %vm280, %v1274, 0
      %v1336 = vsel %vm280, %v1275, 0
      %v1339 = vsel %vm280, %v1276, 0
      %v1342 = vsel %vm280, %v1277, 0
      %v1345 = vsel %vm280, %v1278, 0
      %v1348 = vsel %vm280, %v1279, 0
      %v1351 = vsel %vm280, %v1280, 0
      %v1354 = vsel %vm280, %v1281, 0
      %v1357 = vsel %vm280, %v1282, 0
      %v1360 = vsel %vm280, %v1283, 0
      %v1363 = vsel %vm280, %v1284, 0
      %v1366 = vsel %vm280, %v1285, 0
      %v1369 = vsel %vm651, %v1319, 0
      %1371 = vmatprep.subr.bf16.mxu0 0
      %1372 = vmatpush1.bf16.msra.mxu0 %v1369
      %1373 = vmatprep.subr.bf16.mxu0 0
      %1374 = vmatpush1.bf16.msra.mxu0 0
      %1375 = vmatprep.subr.bf16.mxu0 0
      %1376 = vmatpush1.bf16.msra.mxu0 0
      %1377 = vmatprep.subr.bf16.mxu0 0
      %1378 = vmatpush1.bf16.msra.mxu0 0
      %1379 = vmatprep.subr.bf16.mxu0 0
      %1380 = vmatpush1.bf16.msra.mxu0 0
      %1381 = vmatprep.subr.bf16.mxu0 0
      %1382 = vmatpush1.bf16.msra.mxu0 0
      %1383 = vmatprep.subr.bf16.mxu0 0
      %1384 = vmatpush1.bf16.msra.mxu0 0
      %1385 = vmatprep.subr.bf16.mxu0 0
      %1386 = vmatpush1.bf16.msra.mxu0 0
      %1387 = vmatprep.subr.bf16.mxu0 0
      %1388 = vmatpush1.bf16.msra.mxu0 0
      %1389 = vmatprep.subr.bf16.mxu0 0
      %1390 = vmatpush1.bf16.msra.mxu0 0
      %1391 = vmatprep.subr.bf16.mxu0 0
      %1392 = vmatpush1.bf16.msra.mxu0 0
      %1393 = vmatprep.subr.bf16.mxu0 0
      %1394 = vmatpush1.bf16.msra.mxu0 0
      %1395 = vmatprep.subr.bf16.mxu0 0
      %1396 = vmatpush1.bf16.msra.mxu0 0
      %1397 = vmatprep.subr.bf16.mxu0 0
      %1398 = vmatpush1.bf16.msra.mxu0 0
      %1399 = vmatprep.subr.bf16.mxu0 0
      %1400 = vmatpush1.bf16.msra.mxu0 0
      %1401 = vmatprep.subr.bf16.mxu0 0
      %1402 = vmatpush1.bf16.msra.mxu0 0
      %1403 = vmatprep.mubr.bf16.mxu0 0
      %1404 = vmatmul.mubr.bf16.gmra.mrb[0].mxu0 %v1321
      %v1405 = vpop.f32.mrb[0].mxu0
      %v1406 = vadd.f32 0.0, %v1405
      %v1407 = vpop.f32.mrb[0].mxu0
      %v1408 = vpop.f32.mrb[0].mxu0
      %v1409 = vadd.f32 0.0, %v1408
      %v1410 = vpop.f32.mrb[0].mxu0
      %1411 = vmatprep.mubr.bf16.mxu0 0
      %1412 = vmatmul.mubr.bf16.gmra.mrb[0].mxu0 %v1324
      %v1413 = vpop.f32.mrb[0].mxu0
      %v1414 = vadd.f32 0.0, %v1413
      %v1415 = vpop.f32.mrb[0].mxu0
      %v1416 = vpop.f32.mrb[0].mxu0
      %v1417 = vadd.f32 0.0, %v1416
      %v1418 = vpop.f32.mrb[0].mxu0
      %1419 = vmatprep.mubr.bf16.mxu0 0
      %1420 = vmatmul.mubr.bf16.gmra.mrb[0].mxu0 %v1327
      %v1421 = vpop.f32.mrb[0].mxu0
      %v1422 = vadd.f32 0.0, %v1421
      %v1423 = vpop.f32.mrb[0].mxu0
      %v1424 = vpop.f32.mrb[0].mxu0
      %v1425 = vadd.f32 0.0, %v1424
      %v1426 = vpop.f32.mrb[0].mxu0
      %1427 = vmatprep.mubr.bf16.mxu0 0
      %1428 = vmatmul.mubr.bf16.gmra.mrb[0].mxu0 %v1330
      %v1429 = vpop.f32.mrb[0].mxu0
      %v1430 = vadd.f32 0.0, %v1429
      %v1431 = vpop.f32.mrb[0].mxu0
      %v1432 = vpop.f32.mrb[0].mxu0
      %v1433 = vadd.f32 0.0, %v1432
      %v1434 = vpop.f32.mrb[0].mxu0
      %1435 = vmatprep.mubr.bf16.mxu0 0
      %1436 = vmatmul.mubr.bf16.gmra.mrb[0].mxu0 %v1333
      %v1437 = vpop.f32.mrb[0].mxu0
      %v1438 = vadd.f32 0.0, %v1437
      %v1439 = vpop.f32.mrb[0].mxu0
      %v1440 = vpop.f32.mrb[0].mxu0
      %v1441 = vadd.f32 0.0, %v1440
      %v1442 = vpop.f32.mrb[0].mxu0
      %1443 = vmatprep.mubr.bf16.mxu0 0
      %1444 = vmatmul.mubr.bf16.gmra.mrb[0].mxu0 %v1336
      %v1445 = vpop.f32.mrb[0].mxu0
      %v1446 = vadd.f32 0.0, %v1445
      %v1447 = vpop.f32.mrb[0].mxu0
      %v1448 = vpop.f32.mrb[0].mxu0
      %v1449 = vadd.f32 0.0, %v1448
      %v1450 = vpop.f32.mrb[0].mxu0
      %1451 = vmatprep.mubr.bf16.mxu0 0
      %1452 = vmatmul.mubr.bf16.gmra.mrb[0].mxu0 %v1339
      %v1453 = vpop.f32.mrb[0].mxu0
      %v1454 = vadd.f32 0.0, %v1453
      %v1455 = vpop.f32.mrb[0].mxu0
      %v1456 = vpop.f32.mrb[0].mxu0
      %v1457 = vadd.f32 0.0, %v1456
      %v1458 = vpop.f32.mrb[0].mxu0
      %1459 = vmatprep.mubr.bf16.mxu0 0
      %1460 = vmatmul.mubr.bf16.gmra.mrb[0].mxu0 %v1342
      %v1461 = vpop.f32.mrb[0].mxu0
      %v1462 = vadd.f32 0.0, %v1461
      %v1463 = vpop.f32.mrb[0].mxu0
      %v1464 = vpop.f32.mrb[0].mxu0
      %v1465 = vadd.f32 0.0, %v1464
      %v1466 = vpop.f32.mrb[0].mxu0
      %1467 = vmatprep.mubr.bf16.mxu0 0
      %1468 = vmatmul.mubr.bf16.gmra.mrb[0].mxu0 %v1345
      %v1469 = vpop.f32.mrb[0].mxu0
      %v1470 = vadd.f32 0.0, %v1469
      %v1471 = vpop.f32.mrb[0].mxu0
      %v1472 = vpop.f32.mrb[0].mxu0
      %v1473 = vadd.f32 0.0, %v1472
      %v1474 = vpop.f32.mrb[0].mxu0
      %1475 = vmatprep.mubr.bf16.mxu0 0
      %1476 = vmatmul.mubr.bf16.gmra.mrb[0].mxu0 %v1348
      %v1477 = vpop.f32.mrb[0].mxu0
      %v1478 = vadd.f32 0.0, %v1477
      %v1479 = vpop.f32.mrb[0].mxu0
      %v1480 = vpop.f32.mrb[0].mxu0
      %v1481 = vadd.f32 0.0, %v1480
      %v1482 = vpop.f32.mrb[0].mxu0
      %1483 = vmatprep.mubr.bf16.mxu0 0
      %1484 = vmatmul.mubr.bf16.gmra.mrb[0].mxu0 %v1351
      %v1485 = vpop.f32.mrb[0].mxu0
      %v1486 = vadd.f32 0.0, %v1485
      %v1487 = vpop.f32.mrb[0].mxu0
      %v1488 = vpop.f32.mrb[0].mxu0
      %v1489 = vadd.f32 0.0, %v1488
      %v1490 = vpop.f32.mrb[0].mxu0
      %1491 = vmatprep.mubr.bf16.mxu0 0
      %1492 = vmatmul.mubr.bf16.gmra.mrb[0].mxu0 %v1354
      %v1493 = vpop.f32.mrb[0].mxu0
      %v1494 = vadd.f32 0.0, %v1493
      %v1495 = vpop.f32.mrb[0].mxu0
      %v1496 = vpop.f32.mrb[0].mxu0
      %v1497 = vadd.f32 0.0, %v1496
      %v1498 = vpop.f32.mrb[0].mxu0
      %1499 = vmatprep.mubr.bf16.mxu0 0
      %1500 = vmatmul.mubr.bf16.gmra.mrb[0].mxu0 %v1357
      %v1501 = vpop.f32.mrb[0].mxu0
      %v1502 = vadd.f32 0.0, %v1501
      %v1503 = vpop.f32.mrb[0].mxu0
      %v1504 = vpop.f32.mrb[0].mxu0
      %v1505 = vadd.f32 0.0, %v1504
      %v1506 = vpop.f32.mrb[0].mxu0
      %1507 = vmatprep.mubr.bf16.mxu0 0
      %1508 = vmatmul.mubr.bf16.gmra.mrb[0].mxu0 %v1360
      %v1509 = vpop.f32.mrb[0].mxu0
      %v1510 = vadd.f32 0.0, %v1509
      %v1511 = vpop.f32.mrb[0].mxu0
      %v1512 = vpop.f32.mrb[0].mxu0
      %v1513 = vadd.f32 0.0, %v1512
      %v1514 = vpop.f32.mrb[0].mxu0
      %1515 = vmatprep.mubr.bf16.mxu0 0
      %1516 = vmatmul.mubr.bf16.gmra.mrb[0].mxu0 %v1363
      %v1517 = vpop.f32.mrb[0].mxu0
      %v1518 = vadd.f32 0.0, %v1517
      %v1519 = vpop.f32.mrb[0].mxu0
      %v1520 = vpop.f32.mrb[0].mxu0
      %v1521 = vadd.f32 0.0, %v1520
      %v1522 = vpop.f32.mrb[0].mxu0
      %1523 = vmatprep.mubr.bf16.mxu0 0
      %1524 = vmatmul.mubr.bf16.gmra.mrb[0].mxu0 %v1366
      %v1525 = vpop.f32.mrb[0].mxu0
      %v1526 = vadd.f32 0.0, %v1525
      %v1527 = vpop.f32.mrb[0].mxu0
      %v1528 = vpop.f32.mrb[0].mxu0
      %v1529 = vadd.f32 0.0, %v1528
      %v1530 = vpop.f32.mrb[0].mxu0
      %1531 = vdwg.mxu0
      %v1532 = vadd.f32 %v1286, %v1406
      %v1533 = vadd.f32 %v1287, %v1409
      %v1534 = vadd.f32 %v1288, %v1414
      %v1535 = vadd.f32 %v1289, %v1417
      %v1536 = vadd.f32 %v1290, %v1422
      %v1537 = vadd.f32 %v1291, %v1425
      %v1538 = vadd.f32 %v1292, %v1430
      %v1539 = vadd.f32 %v1293, %v1433
      %v1540 = vadd.f32 %v1294, %v1438
      %v1541 = vadd.f32 %v1295, %v1441
      %v1542 = vadd.f32 %v1296, %v1446
      %v1543 = vadd.f32 %v1297, %v1449
      %v1544 = vadd.f32 %v1298, %v1454
      %v1545 = vadd.f32 %v1299, %v1457
      %v1546 = vadd.f32 %v1300, %v1462
      %v1547 = vadd.f32 %v1301, %v1465
      %v1548 = vadd.f32 %v1302, %v1470
      %v1549 = vadd.f32 %v1303, %v1473
      %v1550 = vadd.f32 %v1304, %v1478
      %v1551 = vadd.f32 %v1305, %v1481
      %v1552 = vadd.f32 %v1306, %v1486
      %v1553 = vadd.f32 %v1307, %v1489
      %v1554 = vadd.f32 %v1308, %v1494
      %v1555 = vadd.f32 %v1309, %v1497
      %v1556 = vadd.f32 %v1310, %v1502
      %v1557 = vadd.f32 %v1311, %v1505
      %v1558 = vadd.f32 %v1312, %v1510
      %v1559 = vadd.f32 %v1313, %v1513
      %v1560 = vadd.f32 %v1314, %v1518
      %v1561 = vadd.f32 %v1315, %v1521
      %v1562 = vadd.f32 %v1316, %v1526
      %v1563 = vadd.f32 %v1317, %v1529
      %1564 = vst [vmem:[#allocation4] sm:$0xff] %v1532
      %1565 = vst [vmem:[#allocation4 + $0x8] sm:$0xff] %v1533
      %1566 = vst [vmem:[#allocation4 + $0x10] sm:$0xff] %v1534
      %1567 = vst [vmem:[#allocation4 + $0x18] sm:$0xff] %v1535
      %1568 = vst [vmem:[#allocation4 + $0x20] sm:$0xff] %v1536
      %1569 = vst [vmem:[#allocation4 + $0x28] sm:$0xff] %v1537
      %1570 = vst [vmem:[#allocation4 + $0x30] sm:$0xff] %v1538
      %1571 = vst [vmem:[#allocation4 + $0x38] sm:$0xff] %v1539
      %1572 = vst [vmem:[#allocation4 + $0x40] sm:$0xff] %v1540
      %1573 = vst [vmem:[#allocation4 + $0x48] sm:$0xff] %v1541
      %1574 = vst [vmem:[#allocation4 + $0x50] sm:$0xff] %v1542
      %1575 = vst [vmem:[#allocation4 + $0x58] sm:$0xff] %v1543
      %1576 = vst [vmem:[#allocation4 + $0x60] sm:$0xff] %v1544
      %1577 = vst [vmem:[#allocation4 + $0x68] sm:$0xff] %v1545
      %1578 = vst [vmem:[#allocation4 + $0x70] sm:$0xff] %v1546
      %1579 = vst [vmem:[#allocation4 + $0x78] sm:$0xff] %v1547
      %1580 = vst [vmem:[#allocation4 + $0x80] sm:$0xff] %v1548
      %1581 = vst [vmem:[#allocation4 + $0x88] sm:$0xff] %v1549
      %1582 = vst [vmem:[#allocation4 + $0x90] sm:$0xff] %v1550
      %1583 = vst [vmem:[#allocation4 + $0x98] sm:$0xff] %v1551
      %1584 = vst [vmem:[#allocation4 + $0xa0] sm:$0xff] %v1552
      %1585 = vst [vmem:[#allocation4 + $0xa8] sm:$0xff] %v1553
      %1586 = vst [vmem:[#allocation4 + $0xb0] sm:$0xff] %v1554
      %1587 = vst [vmem:[#allocation4 + $0xb8] sm:$0xff] %v1555
      %1588 = vst [vmem:[#allocation4 + $0xc0] sm:$0xff] %v1556
      %1589 = vst [vmem:[#allocation4 + $0xc8] sm:$0xff] %v1557
      %1590 = vst [vmem:[#allocation4 + $0xd0] sm:$0xff] %v1558
      %1591 = vst [vmem:[#allocation4 + $0xd8] sm:$0xff] %v1559
      %1592 = vst [vmem:[#allocation4 + $0xe0] sm:$0xff] %v1560
      %1593 = vst [vmem:[#allocation4 + $0xe8] sm:$0xff] %v1561
      %1594 = vst [vmem:[#allocation4 + $0xf0] sm:$0xff] %v1562
      %1595 = vst [vmem:[#allocation4 + $0xf8] sm:$0xff] %v1563
      %v1596 = vld [vmem:[%s489 + $0x7] sm:$0xff]
      %v1597 = vld [vmem:[%s489 + $0xf] sm:$0xff]
      %v1598 = vld [vmem:[%s489 + $0x27] sm:$0xff]
      %v1599 = vld [vmem:[%s489 + $0x2f] sm:$0xff]
      %v1600 = vld [vmem:[%s489 + $0x47] sm:$0xff]
      %v1601 = vld [vmem:[%s489 + $0x4f] sm:$0xff]
      %v1602 = vld [vmem:[%s489 + $0x67] sm:$0xff]
      %v1603 = vld [vmem:[%s489 + $0x6f] sm:$0xff]
      %v1604 = vld [vmem:[%s489 + $0x87] sm:$0xff]
      %v1605 = vld [vmem:[%s489 + $0x8f] sm:$0xff]
      %v1606 = vld [vmem:[%s489 + $0xa7] sm:$0xff]
      %v1607 = vld [vmem:[%s489 + $0xaf] sm:$0xff]
      %v1608 = vld [vmem:[%s489 + $0xc7] sm:$0xff]
      %v1609 = vld [vmem:[%s489 + $0xcf] sm:$0xff]
      %v1610 = vld [vmem:[%s489 + $0xe7] sm:$0xff]
      %v1611 = vld [vmem:[%s489 + $0xef] sm:$0xff]
      %v1612 = vld [vmem:[%s489 + $0x107] sm:$0xff]
      %v1613 = vld [vmem:[%s489 + $0x10f] sm:$0xff]
      %v1614 = vld [vmem:[%s489 + $0x127] sm:$0xff]
      %v1615 = vld [vmem:[%s489 + $0x12f] sm:$0xff]
      %v1616 = vld [vmem:[%s489 + $0x147] sm:$0xff]
      %v1617 = vld [vmem:[%s489 + $0x14f] sm:$0xff]
      %v1618 = vld [vmem:[%s489 + $0x167] sm:$0xff]
      %v1619 = vld [vmem:[%s489 + $0x16f] sm:$0xff]
      %v1620 = vld [vmem:[%s489 + $0x187] sm:$0xff]
      %v1621 = vld [vmem:[%s489 + $0x18f] sm:$0xff]
      %v1622 = vld [vmem:[%s489 + $0x1a7] sm:$0xff]
      %v1623 = vld [vmem:[%s489 + $0x1af] sm:$0xff]
      %v1624 = vld [vmem:[%s489 + $0x1c7] sm:$0xff]
      %v1625 = vld [vmem:[%s489 + $0x1cf] sm:$0xff]
      %v1626 = vld [vmem:[%s489 + $0x1e7] sm:$0xff]
      %v1627 = vld [vmem:[%s489 + $0x1ef] sm:$0xff]
      %v1628 = vpack.c.bf16 %v1597, %v1596
      %v1629 = vpack.c.bf16 %v1599, %v1598
      %v1630 = vpack.c.bf16 %v1601, %v1600
      %v1631 = vpack.c.bf16 %v1603, %v1602
      %v1632 = vpack.c.bf16 %v1605, %v1604
      %v1633 = vpack.c.bf16 %v1607, %v1606
      %v1634 = vpack.c.bf16 %v1609, %v1608
      %v1635 = vpack.c.bf16 %v1611, %v1610
      %v1636 = vpack.c.bf16 %v1613, %v1612
      %v1637 = vpack.c.bf16 %v1615, %v1614
      %v1638 = vpack.c.bf16 %v1617, %v1616
      %v1639 = vpack.c.bf16 %v1619, %v1618
      %v1640 = vpack.c.bf16 %v1621, %v1620
      %v1641 = vpack.c.bf16 %v1623, %v1622
      %v1642 = vpack.c.bf16 %v1625, %v1624
      %v1643 = vpack.c.bf16 %v1627, %v1626
      %v1644 = vld [vmem:[#allocation4] sm:$0xff]
      %v1645 = vld [vmem:[#allocation4 + $0x8] sm:$0xff]
      %v1646 = vld [vmem:[#allocation4 + $0x10] sm:$0xff]
      %v1647 = vld [vmem:[#allocation4 + $0x18] sm:$0xff]
      %v1648 = vld [vmem:[#allocation4 + $0x20] sm:$0xff]
      %v1649 = vld [vmem:[#allocation4 + $0x28] sm:$0xff]
      %v1650 = vld [vmem:[#allocation4 + $0x30] sm:$0xff]
      %v1651 = vld [vmem:[#allocation4 + $0x38] sm:$0xff]
      %v1652 = vld [vmem:[#allocation4 + $0x40] sm:$0xff]
      %v1653 = vld [vmem:[#allocation4 + $0x48] sm:$0xff]
      %v1654 = vld [vmem:[#allocation4 + $0x50] sm:$0xff]
      %v1655 = vld [vmem:[#allocation4 + $0x58] sm:$0xff]
      %v1656 = vld [vmem:[#allocation4 + $0x60] sm:$0xff]
      %v1657 = vld [vmem:[#allocation4 + $0x68] sm:$0xff]
      %v1658 = vld [vmem:[#allocation4 + $0x70] sm:$0xff]
      %v1659 = vld [vmem:[#allocation4 + $0x78] sm:$0xff]
      %v1660 = vld [vmem:[#allocation4 + $0x80] sm:$0xff]
      %v1661 = vld [vmem:[#allocation4 + $0x88] sm:$0xff]
      %v1662 = vld [vmem:[#allocation4 + $0x90] sm:$0xff]
      %v1663 = vld [vmem:[#allocation4 + $0x98] sm:$0xff]
      %v1664 = vld [vmem:[#allocation4 + $0xa0] sm:$0xff]
      %v1665 = vld [vmem:[#allocation4 + $0xa8] sm:$0xff]
      %v1666 = vld [vmem:[#allocation4 + $0xb0] sm:$0xff]
      %v1667 = vld [vmem:[#allocation4 + $0xb8] sm:$0xff]
      %v1668 = vld [vmem:[#allocation4 + $0xc0] sm:$0xff]
      %v1669 = vld [vmem:[#allocation4 + $0xc8] sm:$0xff]
      %v1670 = vld [vmem:[#allocation4 + $0xd0] sm:$0xff]
      %v1671 = vld [vmem:[#allocation4 + $0xd8] sm:$0xff]
      %v1672 = vld [vmem:[#allocation4 + $0xe0] sm:$0xff]
      %v1673 = vld [vmem:[#allocation4 + $0xe8] sm:$0xff]
      %v1674 = vld [vmem:[#allocation4 + $0xf0] sm:$0xff]
      %v1675 = vld [vmem:[#allocation4 + $0xf8] sm:$0xff]
      %s1676 = scalar_lea.vmem %s1, 6
      %v1677 = vld [vmem:[%s1676] sm:$0x3]
      %v1679 = vsel %vm280, %v1628, 0
      %v1682 = vsel %vm280, %v1629, 0
      %v1685 = vsel %vm280, %v1630, 0
      %v1688 = vsel %vm280, %v1631, 0
      %v1691 = vsel %vm280, %v1632, 0
      %v1694 = vsel %vm280, %v1633, 0
      %v1697 = vsel %vm280, %v1634, 0
      %v1700 = vsel %vm280, %v1635, 0
      %v1703 = vsel %vm280, %v1636, 0
      %v1706 = vsel %vm280, %v1637, 0
      %v1709 = vsel %vm280, %v1638, 0
      %v1712 = vsel %vm280, %v1639, 0
      %v1715 = vsel %vm280, %v1640, 0
      %v1718 = vsel %vm280, %v1641, 0
      %v1721 = vsel %vm280, %v1642, 0
      %v1724 = vsel %vm280, %v1643, 0
      %v1727 = vsel %vm651, %v1677, 0
      %1729 = vmatprep.subr.bf16.mxu0 0
      %1730 = vmatpush1.bf16.msra.mxu0 %v1727
      %1731 = vmatprep.subr.bf16.mxu0 0
      %1732 = vmatpush1.bf16.msra.mxu0 0
      %1733 = vmatprep.subr.bf16.mxu0 0
      %1734 = vmatpush1.bf16.msra.mxu0 0
      %1735 = vmatprep.subr.bf16.mxu0 0
      %1736 = vmatpush1.bf16.msra.mxu0 0
      %1737 = vmatprep.subr.bf16.mxu0 0
      %1738 = vmatpush1.bf16.msra.mxu0 0
      %1739 = vmatprep.subr.bf16.mxu0 0
      %1740 = vmatpush1.bf16.msra.mxu0 0
      %1741 = vmatprep.subr.bf16.mxu0 0
      %1742 = vmatpush1.bf16.msra.mxu0 0
      %1743 = vmatprep.subr.bf16.mxu0 0
      %1744 = vmatpush1.bf16.msra.mxu0 0
      %1745 = vmatprep.subr.bf16.mxu0 0
      %1746 = vmatpush1.bf16.msra.mxu0 0
      %1747 = vmatprep.subr.bf16.mxu0 0
      %1748 = vmatpush1.bf16.msra.mxu0 0
      %1749 = vmatprep.subr.bf16.mxu0 0
      %1750 = vmatpush1.bf16.msra.mxu0 0
      %1751 = vmatprep.subr.bf16.mxu0 0
      %1752 = vmatpush1.bf16.msra.mxu0 0
      %1753 = vmatprep.subr.bf16.mxu0 0
      %1754 = vmatpush1.bf16.msra.mxu0 0
      %1755 = vmatprep.subr.bf16.mxu0 0
      %1756 = vmatpush1.bf16.msra.mxu0 0
      %1757 = vmatprep.subr.bf16.mxu0 0
      %1758 = vmatpush1.bf16.msra.mxu0 0
      %1759 = vmatprep.subr.bf16.mxu0 0
      %1760 = vmatpush1.bf16.msra.mxu0 0
      %1761 = vmatprep.mubr.bf16.mxu0 0
      %1762 = vmatmul.mubr.bf16.gmra.mrb[0].mxu0 %v1679
      %v1763 = vpop.f32.mrb[0].mxu0
      %v1764 = vadd.f32 0.0, %v1763
      %v1765 = vpop.f32.mrb[0].mxu0
      %v1766 = vpop.f32.mrb[0].mxu0
      %v1767 = vadd.f32 0.0, %v1766
      %v1768 = vpop.f32.mrb[0].mxu0
      %1769 = vmatprep.mubr.bf16.mxu0 0
      %1770 = vmatmul.mubr.bf16.gmra.mrb[0].mxu0 %v1682
      %v1771 = vpop.f32.mrb[0].mxu0
      %v1772 = vadd.f32 0.0, %v1771
      %v1773 = vpop.f32.mrb[0].mxu0
      %v1774 = vpop.f32.mrb[0].mxu0
      %v1775 = vadd.f32 0.0, %v1774
      %v1776 = vpop.f32.mrb[0].mxu0
      %1777 = vmatprep.mubr.bf16.mxu0 0
      %1778 = vmatmul.mubr.bf16.gmra.mrb[0].mxu0 %v1685
      %v1779 = vpop.f32.mrb[0].mxu0
      %v1780 = vadd.f32 0.0, %v1779
      %v1781 = vpop.f32.mrb[0].mxu0
      %v1782 = vpop.f32.mrb[0].mxu0
      %v1783 = vadd.f32 0.0, %v1782
      %v1784 = vpop.f32.mrb[0].mxu0
      %1785 = vmatprep.mubr.bf16.mxu0 0
      %1786 = vmatmul.mubr.bf16.gmra.mrb[0].mxu0 %v1688
      %v1787 = vpop.f32.mrb[0].mxu0
      %v1788 = vadd.f32 0.0, %v1787
      %v1789 = vpop.f32.mrb[0].mxu0
      %v1790 = vpop.f32.mrb[0].mxu0
      %v1791 = vadd.f32 0.0, %v1790
      %v1792 = vpop.f32.mrb[0].mxu0
      %1793 = vmatprep.mubr.bf16.mxu0 0
      %1794 = vmatmul.mubr.bf16.gmra.mrb[0].mxu0 %v1691
      %v1795 = vpop.f32.mrb[0].mxu0
      %v1796 = vadd.f32 0.0, %v1795
      %v1797 = vpop.f32.mrb[0].mxu0
      %v1798 = vpop.f32.mrb[0].mxu0
      %v1799 = vadd.f32 0.0, %v1798
      %v1800 = vpop.f32.mrb[0].mxu0
      %1801 = vmatprep.mubr.bf16.mxu0 0
      %1802 = vmatmul.mubr.bf16.gmra.mrb[0].mxu0 %v1694
      %v1803 = vpop.f32.mrb[0].mxu0
      %v1804 = vadd.f32 0.0, %v1803
      %v1805 = vpop.f32.mrb[0].mxu0
      %v1806 = vpop.f32.mrb[0].mxu0
      %v1807 = vadd.f32 0.0, %v1806
      %v1808 = vpop.f32.mrb[0].mxu0
      %1809 = vmatprep.mubr.bf16.mxu0 0
      %1810 = vmatmul.mubr.bf16.gmra.mrb[0].mxu0 %v1697
      %v1811 = vpop.f32.mrb[0].mxu0
      %v1812 = vadd.f32 0.0, %v1811
      %v1813 = vpop.f32.mrb[0].mxu0
      %v1814 = vpop.f32.mrb[0].mxu0
      %v1815 = vadd.f32 0.0, %v1814
      %v1816 = vpop.f32.mrb[0].mxu0
      %1817 = vmatprep.mubr.bf16.mxu0 0
      %1818 = vmatmul.mubr.bf16.gmra.mrb[0].mxu0 %v1700
      %v1819 = vpop.f32.mrb[0].mxu0
      %v1820 = vadd.f32 0.0, %v1819
      %v1821 = vpop.f32.mrb[0].mxu0
      %v1822 = vpop.f32.mrb[0].mxu0
      %v1823 = vadd.f32 0.0, %v1822
      %v1824 = vpop.f32.mrb[0].mxu0
      %1825 = vmatprep.mubr.bf16.mxu0 0
      %1826 = vmatmul.mubr.bf16.gmra.mrb[0].mxu0 %v1703
      %v1827 = vpop.f32.mrb[0].mxu0
      %v1828 = vadd.f32 0.0, %v1827
      %v1829 = vpop.f32.mrb[0].mxu0
      %v1830 = vpop.f32.mrb[0].mxu0
      %v1831 = vadd.f32 0.0, %v1830
      %v1832 = vpop.f32.mrb[0].mxu0
      %1833 = vmatprep.mubr.bf16.mxu0 0
      %1834 = vmatmul.mubr.bf16.gmra.mrb[0].mxu0 %v1706
      %v1835 = vpop.f32.mrb[0].mxu0
      %v1836 = vadd.f32 0.0, %v1835
      %v1837 = vpop.f32.mrb[0].mxu0
      %v1838 = vpop.f32.mrb[0].mxu0
      %v1839 = vadd.f32 0.0, %v1838
      %v1840 = vpop.f32.mrb[0].mxu0
      %1841 = vmatprep.mubr.bf16.mxu0 0
      %1842 = vmatmul.mubr.bf16.gmra.mrb[0].mxu0 %v1709
      %v1843 = vpop.f32.mrb[0].mxu0
      %v1844 = vadd.f32 0.0, %v1843
      %v1845 = vpop.f32.mrb[0].mxu0
      %v1846 = vpop.f32.mrb[0].mxu0
      %v1847 = vadd.f32 0.0, %v1846
      %v1848 = vpop.f32.mrb[0].mxu0
      %1849 = vmatprep.mubr.bf16.mxu0 0
      %1850 = vmatmul.mubr.bf16.gmra.mrb[0].mxu0 %v1712
      %v1851 = vpop.f32.mrb[0].mxu0
      %v1852 = vadd.f32 0.0, %v1851
      %v1853 = vpop.f32.mrb[0].mxu0
      %v1854 = vpop.f32.mrb[0].mxu0
      %v1855 = vadd.f32 0.0, %v1854
      %v1856 = vpop.f32.mrb[0].mxu0
      %1857 = vmatprep.mubr.bf16.mxu0 0
      %1858 = vmatmul.mubr.bf16.gmra.mrb[0].mxu0 %v1715
      %v1859 = vpop.f32.mrb[0].mxu0
      %v1860 = vadd.f32 0.0, %v1859
      %v1861 = vpop.f32.mrb[0].mxu0
      %v1862 = vpop.f32.mrb[0].mxu0
      %v1863 = vadd.f32 0.0, %v1862
      %v1864 = vpop.f32.mrb[0].mxu0
      %1865 = vmatprep.mubr.bf16.mxu0 0
      %1866 = vmatmul.mubr.bf16.gmra.mrb[0].mxu0 %v1718
      %v1867 = vpop.f32.mrb[0].mxu0
      %v1868 = vadd.f32 0.0, %v1867
      %v1869 = vpop.f32.mrb[0].mxu0
      %v1870 = vpop.f32.mrb[0].mxu0
      %v1871 = vadd.f32 0.0, %v1870
      %v1872 = vpop.f32.mrb[0].mxu0
      %1873 = vmatprep.mubr.bf16.mxu0 0
      %1874 = vmatmul.mubr.bf16.gmra.mrb[0].mxu0 %v1721
      %v1875 = vpop.f32.mrb[0].mxu0
      %v1876 = vadd.f32 0.0, %v1875
      %v1877 = vpop.f32.mrb[0].mxu0
      %v1878 = vpop.f32.mrb[0].mxu0
      %v1879 = vadd.f32 0.0, %v1878
      %v1880 = vpop.f32.mrb[0].mxu0
      %1881 = vmatprep.mubr.bf16.mxu0 0
      %1882 = vmatmul.mubr.bf16.gmra.mrb[0].mxu0 %v1724
      %v1883 = vpop.f32.mrb[0].mxu0
      %v1884 = vadd.f32 0.0, %v1883
      %v1885 = vpop.f32.mrb[0].mxu0
      %v1886 = vpop.f32.mrb[0].mxu0
      %v1887 = vadd.f32 0.0, %v1886
      %v1888 = vpop.f32.mrb[0].mxu0
      %1889 = vdwg.mxu0
      %v1890 = vadd.f32 %v1644, %v1764
      %v1891 = vadd.f32 %v1645, %v1767
      %v1892 = vadd.f32 %v1646, %v1772
      %v1893 = vadd.f32 %v1647, %v1775
      %v1894 = vadd.f32 %v1648, %v1780
      %v1895 = vadd.f32 %v1649, %v1783
      %v1896 = vadd.f32 %v1650, %v1788
      %v1897 = vadd.f32 %v1651, %v1791
      %v1898 = vadd.f32 %v1652, %v1796
      %v1899 = vadd.f32 %v1653, %v1799
      %v1900 = vadd.f32 %v1654, %v1804
      %v1901 = vadd.f32 %v1655, %v1807
      %v1902 = vadd.f32 %v1656, %v1812
      %v1903 = vadd.f32 %v1657, %v1815
      %v1904 = vadd.f32 %v1658, %v1820
      %v1905 = vadd.f32 %v1659, %v1823
      %v1906 = vadd.f32 %v1660, %v1828
      %v1907 = vadd.f32 %v1661, %v1831
      %v1908 = vadd.f32 %v1662, %v1836
      %v1909 = vadd.f32 %v1663, %v1839
      %v1910 = vadd.f32 %v1664, %v1844
      %v1911 = vadd.f32 %v1665, %v1847
      %v1912 = vadd.f32 %v1666, %v1852
      %v1913 = vadd.f32 %v1667, %v1855
      %v1914 = vadd.f32 %v1668, %v1860
      %v1915 = vadd.f32 %v1669, %v1863
      %v1916 = vadd.f32 %v1670, %v1868
      %v1917 = vadd.f32 %v1671, %v1871
      %v1918 = vadd.f32 %v1672, %v1876
      %v1919 = vadd.f32 %v1673, %v1879
      %v1920 = vadd.f32 %v1674, %v1884
      %v1921 = vadd.f32 %v1675, %v1887
      %1922 = vst [vmem:[#allocation4] sm:$0xff] %v1890
      %1923 = vst [vmem:[#allocation4 + $0x8] sm:$0xff] %v1891
      %1924 = vst [vmem:[#allocation4 + $0x10] sm:$0xff] %v1892
      %1925 = vst [vmem:[#allocation4 + $0x18] sm:$0xff] %v1893
      %1926 = vst [vmem:[#allocation4 + $0x20] sm:$0xff] %v1894
      %1927 = vst [vmem:[#allocation4 + $0x28] sm:$0xff] %v1895
      %1928 = vst [vmem:[#allocation4 + $0x30] sm:$0xff] %v1896
      %1929 = vst [vmem:[#allocation4 + $0x38] sm:$0xff] %v1897
      %1930 = vst [vmem:[#allocation4 + $0x40] sm:$0xff] %v1898
      %1931 = vst [vmem:[#allocation4 + $0x48] sm:$0xff] %v1899
      %1932 = vst [vmem:[#allocation4 + $0x50] sm:$0xff] %v1900
      %1933 = vst [vmem:[#allocation4 + $0x58] sm:$0xff] %v1901
      %1934 = vst [vmem:[#allocation4 + $0x60] sm:$0xff] %v1902
      %1935 = vst [vmem:[#allocation4 + $0x68] sm:$0xff] %v1903
      %1936 = vst [vmem:[#allocation4 + $0x70] sm:$0xff] %v1904
      %1937 = vst [vmem:[#allocation4 + $0x78] sm:$0xff] %v1905
      %1938 = vst [vmem:[#allocation4 + $0x80] sm:$0xff] %v1906
      %1939 = vst [vmem:[#allocation4 + $0x88] sm:$0xff] %v1907
      %1940 = vst [vmem:[#allocation4 + $0x90] sm:$0xff] %v1908
      %1941 = vst [vmem:[#allocation4 + $0x98] sm:$0xff] %v1909
      %1942 = vst [vmem:[#allocation4 + $0xa0] sm:$0xff] %v1910
      %1943 = vst [vmem:[#allocation4 + $0xa8] sm:$0xff] %v1911
      %1944 = vst [vmem:[#allocation4 + $0xb0] sm:$0xff] %v1912
      %1945 = vst [vmem:[#allocation4 + $0xb8] sm:$0xff] %v1913
      %1946 = vst [vmem:[#allocation4 + $0xc0] sm:$0xff] %v1914
      %1947 = vst [vmem:[#allocation4 + $0xc8] sm:$0xff] %v1915
      %1948 = vst [vmem:[#allocation4 + $0xd0] sm:$0xff] %v1916
      %1949 = vst [vmem:[#allocation4 + $0xd8] sm:$0xff] %v1917
      %1950 = vst [vmem:[#allocation4 + $0xe0] sm:$0xff] %v1918
      %1951 = vst [vmem:[#allocation4 + $0xe8] sm:$0xff] %v1919
      %1952 = vst [vmem:[#allocation4 + $0xf0] sm:$0xff] %v1920
      %1953 = vst [vmem:[#allocation4 + $0xf8] sm:$0xff] %v1921
      %v1954 = vld [vmem:[%s489 + $0x8] sm:$0xff]
      %v1955 = vld [vmem:[%s489 + $0x10] sm:$0xff]
      %v1956 = vld [vmem:[%s489 + $0x28] sm:$0xff]
      %v1957 = vld [vmem:[%s489 + $0x30] sm:$0xff]
      %v1958 = vld [vmem:[%s489 + $0x48] sm:$0xff]
      %v1959 = vld [vmem:[%s489 + $0x50] sm:$0xff]
      %v1960 = vld [vmem:[%s489 + $0x68] sm:$0xff]
      %v1961 = vld [vmem:[%s489 + $0x70] sm:$0xff]
      %v1962 = vld [vmem:[%s489 + $0x88] sm:$0xff]
      %v1963 = vld [vmem:[%s489 + $0x90] sm:$0xff]
      %v1964 = vld [vmem:[%s489 + $0xa8] sm:$0xff]
      %v1965 = vld [vmem:[%s489 + $0xb0] sm:$0xff]
      %v1966 = vld [vmem:[%s489 + $0xc8] sm:$0xff]
      %v1967 = vld [vmem:[%s489 + $0xd0] sm:$0xff]
      %v1968 = vld [vmem:[%s489 + $0xe8] sm:$0xff]
      %v1969 = vld [vmem:[%s489 + $0xf0] sm:$0xff]
      %v1970 = vld [vmem:[%s489 + $0x108] sm:$0xff]
      %v1971 = vld [vmem:[%s489 + $0x110] sm:$0xff]
      %v1972 = vld [vmem:[%s489 + $0x128] sm:$0xff]
      %v1973 = vld [vmem:[%s489 + $0x130] sm:$0xff]
      %v1974 = vld [vmem:[%s489 + $0x148] sm:$0xff]
      %v1975 = vld [vmem:[%s489 + $0x150] sm:$0xff]
      %v1976 = vld [vmem:[%s489 + $0x168] sm:$0xff]
      %v1977 = vld [vmem:[%s489 + $0x170] sm:$0xff]
      %v1978 = vld [vmem:[%s489 + $0x188] sm:$0xff]
      %v1979 = vld [vmem:[%s489 + $0x190] sm:$0xff]
      %v1980 = vld [vmem:[%s489 + $0x1a8] sm:$0xff]
      %v1981 = vld [vmem:[%s489 + $0x1b0] sm:$0xff]
      %v1982 = vld [vmem:[%s489 + $0x1c8] sm:$0xff]
      %v1983 = vld [vmem:[%s489 + $0x1d0] sm:$0xff]
      %v1984 = vld [vmem:[%s489 + $0x1e8] sm:$0xff]
      %v1985 = vld [vmem:[%s489 + $0x1f0] sm:$0xff]
      %v1986 = vpack.c.bf16 %v1955, %v1954
      %v1987 = vpack.c.bf16 %v1957, %v1956
      %v1988 = vpack.c.bf16 %v1959, %v1958
      %v1989 = vpack.c.bf16 %v1961, %v1960
      %v1990 = vpack.c.bf16 %v1963, %v1962
      %v1991 = vpack.c.bf16 %v1965, %v1964
      %v1992 = vpack.c.bf16 %v1967, %v1966
      %v1993 = vpack.c.bf16 %v1969, %v1968
      %v1994 = vpack.c.bf16 %v1971, %v1970
      %v1995 = vpack.c.bf16 %v1973, %v1972
      %v1996 = vpack.c.bf16 %v1975, %v1974
      %v1997 = vpack.c.bf16 %v1977, %v1976
      %v1998 = vpack.c.bf16 %v1979, %v1978
      %v1999 = vpack.c.bf16 %v1981, %v1980
      %v2000 = vpack.c.bf16 %v1983, %v1982
      %v2001 = vpack.c.bf16 %v1985, %v1984
      %v2002 = vld [vmem:[#allocation4] sm:$0xff]
      %v2003 = vld [vmem:[#allocation4 + $0x8] sm:$0xff]
      %v2004 = vld [vmem:[#allocation4 + $0x10] sm:$0xff]
      %v2005 = vld [vmem:[#allocation4 + $0x18] sm:$0xff]
      %v2006 = vld [vmem:[#allocation4 + $0x20] sm:$0xff]
      %v2007 = vld [vmem:[#allocation4 + $0x28] sm:$0xff]
      %v2008 = vld [vmem:[#allocation4 + $0x30] sm:$0xff]
      %v2009 = vld [vmem:[#allocation4 + $0x38] sm:$0xff]
      %v2010 = vld [vmem:[#allocation4 + $0x40] sm:$0xff]
      %v2011 = vld [vmem:[#allocation4 + $0x48] sm:$0xff]
      %v2012 = vld [vmem:[#allocation4 + $0x50] sm:$0xff]
      %v2013 = vld [vmem:[#allocation4 + $0x58] sm:$0xff]
      %v2014 = vld [vmem:[#allocation4 + $0x60] sm:$0xff]
      %v2015 = vld [vmem:[#allocation4 + $0x68] sm:$0xff]
      %v2016 = vld [vmem:[#allocation4 + $0x70] sm:$0xff]
      %v2017 = vld [vmem:[#allocation4 + $0x78] sm:$0xff]
      %v2018 = vld [vmem:[#allocation4 + $0x80] sm:$0xff]
      %v2019 = vld [vmem:[#allocation4 + $0x88] sm:$0xff]
      %v2020 = vld [vmem:[#allocation4 + $0x90] sm:$0xff]
      %v2021 = vld [vmem:[#allocation4 + $0x98] sm:$0xff]
      %v2022 = vld [vmem:[#allocation4 + $0xa0] sm:$0xff]
      %v2023 = vld [vmem:[#allocation4 + $0xa8] sm:$0xff]
      %v2024 = vld [vmem:[#allocation4 + $0xb0] sm:$0xff]
      %v2025 = vld [vmem:[#allocation4 + $0xb8] sm:$0xff]
      %v2026 = vld [vmem:[#allocation4 + $0xc0] sm:$0xff]
      %v2027 = vld [vmem:[#allocation4 + $0xc8] sm:$0xff]
      %v2028 = vld [vmem:[#allocation4 + $0xd0] sm:$0xff]
      %v2029 = vld [vmem:[#allocation4 + $0xd8] sm:$0xff]
      %v2030 = vld [vmem:[#allocation4 + $0xe0] sm:$0xff]
      %v2031 = vld [vmem:[#allocation4 + $0xe8] sm:$0xff]
      %v2032 = vld [vmem:[#allocation4 + $0xf0] sm:$0xff]
      %v2033 = vld [vmem:[#allocation4 + $0xf8] sm:$0xff]
      %s2034 = scalar_lea.vmem %s1, 8
      %v2035 = vld [vmem:[%s2034] sm:$0x3]
      %v2037 = vsel %vm280, %v1986, 0
      %v2040 = vsel %vm280, %v1987, 0
      %v2043 = vsel %vm280, %v1988, 0
      %v2046 = vsel %vm280, %v1989, 0
      %v2049 = vsel %vm280, %v1990, 0
      %v2052 = vsel %vm280, %v1991, 0
      %v2055 = vsel %vm280, %v1992, 0
      %v2058 = vsel %vm280, %v1993, 0
      %v2061 = vsel %vm280, %v1994, 0
      %v2064 = vsel %vm280, %v1995, 0
      %v2067 = vsel %vm280, %v1996, 0
      %v2070 = vsel %vm280, %v1997, 0
      %v2073 = vsel %vm280, %v1998, 0
      %v2076 = vsel %vm280, %v1999, 0
      %v2079 = vsel %vm280, %v2000, 0
      %v2082 = vsel %vm280, %v2001, 0
      %v2085 = vsel %vm651, %v2035, 0
      %2087 = vmatprep.subr.bf16.mxu0 0
      %2088 = vmatpush1.bf16.msra.mxu0 %v2085
      %2089 = vmatprep.subr.bf16.mxu0 0
      %2090 = vmatpush1.bf16.msra.mxu0 0
      %2091 = vmatprep.subr.bf16.mxu0 0
      %2092 = vmatpush1.bf16.msra.mxu0 0
      %2093 = vmatprep.subr.bf16.mxu0 0
      %2094 = vmatpush1.bf16.msra.mxu0 0
      %2095 = vmatprep.subr.bf16.mxu0 0
      %2096 = vmatpush1.bf16.msra.mxu0 0
      %2097 = vmatprep.subr.bf16.mxu0 0
      %2098 = vmatpush1.bf16.msra.mxu0 0
      %2099 = vmatprep.subr.bf16.mxu0 0
      %2100 = vmatpush1.bf16.msra.mxu0 0
      %2101 = vmatprep.subr.bf16.mxu0 0
      %2102 = vmatpush1.bf16.msra.mxu0 0
      %2103 = vmatprep.subr.bf16.mxu0 0
      %2104 = vmatpush1.bf16.msra.mxu0 0
      %2105 = vmatprep.subr.bf16.mxu0 0
      %2106 = vmatpush1.bf16.msra.mxu0 0
      %2107 = vmatprep.subr.bf16.mxu0 0
      %2108 = vmatpush1.bf16.msra.mxu0 0
      %2109 = vmatprep.subr.bf16.mxu0 0
      %2110 = vmatpush1.bf16.msra.mxu0 0
      %2111 = vmatprep.subr.bf16.mxu0 0
      %2112 = vmatpush1.bf16.msra.mxu0 0
      %2113 = vmatprep.subr.bf16.mxu0 0
      %2114 = vmatpush1.bf16.msra.mxu0 0
      %2115 = vmatprep.subr.bf16.mxu0 0
      %2116 = vmatpush1.bf16.msra.mxu0 0
      %2117 = vmatprep.subr.bf16.mxu0 0
      %2118 = vmatpush1.bf16.msra.mxu0 0
      %2119 = vmatprep.mubr.bf16.mxu0 0
      %2120 = vmatmul.mubr.bf16.gmra.mrb[0].mxu0 %v2037
      %v2121 = vpop.f32.mrb[0].mxu0
      %v2122 = vadd.f32 0.0, %v2121
      %v2123 = vpop.f32.mrb[0].mxu0
      %v2124 = vpop.f32.mrb[0].mxu0
      %v2125 = vadd.f32 0.0, %v2124
      %v2126 = vpop.f32.mrb[0].mxu0
      %2127 = vmatprep.mubr.bf16.mxu0 0
      %2128 = vmatmul.mubr.bf16.gmra.mrb[0].mxu0 %v2040
      %v2129 = vpop.f32.mrb[0].mxu0
      %v2130 = vadd.f32 0.0, %v2129
      %v2131 = vpop.f32.mrb[0].mxu0
      %v2132 = vpop.f32.mrb[0].mxu0
      %v2133 = vadd.f32 0.0, %v2132
      %v2134 = vpop.f32.mrb[0].mxu0
      %2135 = vmatprep.mubr.bf16.mxu0 0
      %2136 = vmatmul.mubr.bf16.gmra.mrb[0].mxu0 %v2043
      %v2137 = vpop.f32.mrb[0].mxu0
      %v2138 = vadd.f32 0.0, %v2137
      %v2139 = vpop.f32.mrb[0].mxu0
      %v2140 = vpop.f32.mrb[0].mxu0
      %v2141 = vadd.f32 0.0, %v2140
      %v2142 = vpop.f32.mrb[0].mxu0
      %2143 = vmatprep.mubr.bf16.mxu0 0
      %2144 = vmatmul.mubr.bf16.gmra.mrb[0].mxu0 %v2046
      %v2145 = vpop.f32.mrb[0].mxu0
      %v2146 = vadd.f32 0.0, %v2145
      %v2147 = vpop.f32.mrb[0].mxu0
      %v2148 = vpop.f32.mrb[0].mxu0
      %v2149 = vadd.f32 0.0, %v2148
      %v2150 = vpop.f32.mrb[0].mxu0
      %2151 = vmatprep.mubr.bf16.mxu0 0
      %2152 = vmatmul.mubr.bf16.gmra.mrb[0].mxu0 %v2049
      %v2153 = vpop.f32.mrb[0].mxu0
      %v2154 = vadd.f32 0.0, %v2153
      %v2155 = vpop.f32.mrb[0].mxu0
      %v2156 = vpop.f32.mrb[0].mxu0
      %v2157 = vadd.f32 0.0, %v2156
      %v2158 = vpop.f32.mrb[0].mxu0
      %2159 = vmatprep.mubr.bf16.mxu0 0
      %2160 = vmatmul.mubr.bf16.gmra.mrb[0].mxu0 %v2052
      %v2161 = vpop.f32.mrb[0].mxu0
      %v2162 = vadd.f32 0.0, %v2161
      %v2163 = vpop.f32.mrb[0].mxu0
      %v2164 = vpop.f32.mrb[0].mxu0
      %v2165 = vadd.f32 0.0, %v2164
      %v2166 = vpop.f32.mrb[0].mxu0
      %2167 = vmatprep.mubr.bf16.mxu0 0
      %2168 = vmatmul.mubr.bf16.gmra.mrb[0].mxu0 %v2055
      %v2169 = vpop.f32.mrb[0].mxu0
      %v2170 = vadd.f32 0.0, %v2169
      %v2171 = vpop.f32.mrb[0].mxu0
      %v2172 = vpop.f32.mrb[0].mxu0
      %v2173 = vadd.f32 0.0, %v2172
      %v2174 = vpop.f32.mrb[0].mxu0
      %2175 = vmatprep.mubr.bf16.mxu0 0
      %2176 = vmatmul.mubr.bf16.gmra.mrb[0].mxu0 %v2058
      %v2177 = vpop.f32.mrb[0].mxu0
      %v2178 = vadd.f32 0.0, %v2177
      %v2179 = vpop.f32.mrb[0].mxu0
      %v2180 = vpop.f32.mrb[0].mxu0
      %v2181 = vadd.f32 0.0, %v2180
      %v2182 = vpop.f32.mrb[0].mxu0
      %2183 = vmatprep.mubr.bf16.mxu0 0
      %2184 = vmatmul.mubr.bf16.gmra.mrb[0].mxu0 %v2061
      %v2185 = vpop.f32.mrb[0].mxu0
      %v2186 = vadd.f32 0.0, %v2185
      %v2187 = vpop.f32.mrb[0].mxu0
      %v2188 = vpop.f32.mrb[0].mxu0
      %v2189 = vadd.f32 0.0, %v2188
      %v2190 = vpop.f32.mrb[0].mxu0
      %2191 = vmatprep.mubr.bf16.mxu0 0
      %2192 = vmatmul.mubr.bf16.gmra.mrb[0].mxu0 %v2064
      %v2193 = vpop.f32.mrb[0].mxu0
      %v2194 = vadd.f32 0.0, %v2193
      %v2195 = vpop.f32.mrb[0].mxu0
      %v2196 = vpop.f32.mrb[0].mxu0
      %v2197 = vadd.f32 0.0, %v2196
      %v2198 = vpop.f32.mrb[0].mxu0
      %2199 = vmatprep.mubr.bf16.mxu0 0
      %2200 = vmatmul.mubr.bf16.gmra.mrb[0].mxu0 %v2067
      %v2201 = vpop.f32.mrb[0].mxu0
      %v2202 = vadd.f32 0.0, %v2201
      %v2203 = vpop.f32.mrb[0].mxu0
      %v2204 = vpop.f32.mrb[0].mxu0
      %v2205 = vadd.f32 0.0, %v2204
      %v2206 = vpop.f32.mrb[0].mxu0
      %2207 = vmatprep.mubr.bf16.mxu0 0
      %2208 = vmatmul.mubr.bf16.gmra.mrb[0].mxu0 %v2070
      %v2209 = vpop.f32.mrb[0].mxu0
      %v2210 = vadd.f32 0.0, %v2209
      %v2211 = vpop.f32.mrb[0].mxu0
      %v2212 = vpop.f32.mrb[0].mxu0
      %v2213 = vadd.f32 0.0, %v2212
      %v2214 = vpop.f32.mrb[0].mxu0
      %2215 = vmatprep.mubr.bf16.mxu0 0
      %2216 = vmatmul.mubr.bf16.gmra.mrb[0].mxu0 %v2073
      %v2217 = vpop.f32.mrb[0].mxu0
      %v2218 = vadd.f32 0.0, %v2217
      %v2219 = vpop.f32.mrb[0].mxu0
      %v2220 = vpop.f32.mrb[0].mxu0
      %v2221 = vadd.f32 0.0, %v2220
      %v2222 = vpop.f32.mrb[0].mxu0
      %2223 = vmatprep.mubr.bf16.mxu0 0
      %2224 = vmatmul.mubr.bf16.gmra.mrb[0].mxu0 %v2076
      %v2225 = vpop.f32.mrb[0].mxu0
      %v2226 = vadd.f32 0.0, %v2225
      %v2227 = vpop.f32.mrb[0].mxu0
      %v2228 = vpop.f32.mrb[0].mxu0
      %v2229 = vadd.f32 0.0, %v2228
      %v2230 = vpop.f32.mrb[0].mxu0
      %2231 = vmatprep.mubr.bf16.mxu0 0
      %2232 = vmatmul.mubr.bf16.gmra.mrb[0].mxu0 %v2079
      %v2233 = vpop.f32.mrb[0].mxu0
      %v2234 = vadd.f32 0.0, %v2233
      %v2235 = vpop.f32.mrb[0].mxu0
      %v2236 = vpop.f32.mrb[0].mxu0
      %v2237 = vadd.f32 0.0, %v2236
      %v2238 = vpop.f32.mrb[0].mxu0
      %2239 = vmatprep.mubr.bf16.mxu0 0
      %2240 = vmatmul.mubr.bf16.gmra.mrb[0].mxu0 %v2082
      %v2241 = vpop.f32.mrb[0].mxu0
      %v2242 = vadd.f32 0.0, %v2241
      %v2243 = vpop.f32.mrb[0].mxu0
      %v2244 = vpop.f32.mrb[0].mxu0
      %v2245 = vadd.f32 0.0, %v2244
      %v2246 = vpop.f32.mrb[0].mxu0
      %2247 = vdwg.mxu0
      %v2248 = vadd.f32 %v2002, %v2122
      %v2249 = vadd.f32 %v2003, %v2125
      %v2250 = vadd.f32 %v2004, %v2130
      %v2251 = vadd.f32 %v2005, %v2133
      %v2252 = vadd.f32 %v2006, %v2138
      %v2253 = vadd.f32 %v2007, %v2141
      %v2254 = vadd.f32 %v2008, %v2146
      %v2255 = vadd.f32 %v2009, %v2149
      %v2256 = vadd.f32 %v2010, %v2154
      %v2257 = vadd.f32 %v2011, %v2157
      %v2258 = vadd.f32 %v2012, %v2162
      %v2259 = vadd.f32 %v2013, %v2165
      %v2260 = vadd.f32 %v2014, %v2170
      %v2261 = vadd.f32 %v2015, %v2173
      %v2262 = vadd.f32 %v2016, %v2178
      %v2263 = vadd.f32 %v2017, %v2181
      %v2264 = vadd.f32 %v2018, %v2186
      %v2265 = vadd.f32 %v2019, %v2189
      %v2266 = vadd.f32 %v2020, %v2194
      %v2267 = vadd.f32 %v2021, %v2197
      %v2268 = vadd.f32 %v2022, %v2202
      %v2269 = vadd.f32 %v2023, %v2205
      %v2270 = vadd.f32 %v2024, %v2210
      %v2271 = vadd.f32 %v2025, %v2213
      %v2272 = vadd.f32 %v2026, %v2218
      %v2273 = vadd.f32 %v2027, %v2221
      %v2274 = vadd.f32 %v2028, %v2226
      %v2275 = vadd.f32 %v2029, %v2229
      %v2276 = vadd.f32 %v2030, %v2234
      %v2277 = vadd.f32 %v2031, %v2237
      %v2278 = vadd.f32 %v2032, %v2242
      %v2279 = vadd.f32 %v2033, %v2245
      %2280 = vst [vmem:[#allocation4] sm:$0xff] %v2248
      %2281 = vst [vmem:[#allocation4 + $0x8] sm:$0xff] %v2249
      %2282 = vst [vmem:[#allocation4 + $0x10] sm:$0xff] %v2250
      %2283 = vst [vmem:[#allocation4 + $0x18] sm:$0xff] %v2251
      %2284 = vst [vmem:[#allocation4 + $0x20] sm:$0xff] %v2252
      %2285 = vst [vmem:[#allocation4 + $0x28] sm:$0xff] %v2253
      %2286 = vst [vmem:[#allocation4 + $0x30] sm:$0xff] %v2254
      %2287 = vst [vmem:[#allocation4 + $0x38] sm:$0xff] %v2255
      %2288 = vst [vmem:[#allocation4 + $0x40] sm:$0xff] %v2256
      %2289 = vst [vmem:[#allocation4 + $0x48] sm:$0xff] %v2257
      %2290 = vst [vmem:[#allocation4 + $0x50] sm:$0xff] %v2258
      %2291 = vst [vmem:[#allocation4 + $0x58] sm:$0xff] %v2259
      %2292 = vst [vmem:[#allocation4 + $0x60] sm:$0xff] %v2260
      %2293 = vst [vmem:[#allocation4 + $0x68] sm:$0xff] %v2261
      %2294 = vst [vmem:[#allocation4 + $0x70] sm:$0xff] %v2262
      %2295 = vst [vmem:[#allocation4 + $0x78] sm:$0xff] %v2263
      %2296 = vst [vmem:[#allocation4 + $0x80] sm:$0xff] %v2264
      %2297 = vst [vmem:[#allocation4 + $0x88] sm:$0xff] %v2265
      %2298 = vst [vmem:[#allocation4 + $0x90] sm:$0xff] %v2266
      %2299 = vst [vmem:[#allocation4 + $0x98] sm:$0xff] %v2267
      %2300 = vst [vmem:[#allocation4 + $0xa0] sm:$0xff] %v2268
      %2301 = vst [vmem:[#allocation4 + $0xa8] sm:$0xff] %v2269
      %2302 = vst [vmem:[#allocation4 + $0xb0] sm:$0xff] %v2270
      %2303 = vst [vmem:[#allocation4 + $0xb8] sm:$0xff] %v2271
      %2304 = vst [vmem:[#allocation4 + $0xc0] sm:$0xff] %v2272
      %2305 = vst [vmem:[#allocation4 + $0xc8] sm:$0xff] %v2273
      %2306 = vst [vmem:[#allocation4 + $0xd0] sm:$0xff] %v2274
      %2307 = vst [vmem:[#allocation4 + $0xd8] sm:$0xff] %v2275
      %2308 = vst [vmem:[#allocation4 + $0xe0] sm:$0xff] %v2276
      %2309 = vst [vmem:[#allocation4 + $0xe8] sm:$0xff] %v2277
      %2310 = vst [vmem:[#allocation4 + $0xf0] sm:$0xff] %v2278
      %2311 = vst [vmem:[#allocation4 + $0xf8] sm:$0xff] %v2279
      %v2312 = vld [vmem:[%s489 + $0x9] sm:$0xff]
      %v2313 = vld [vmem:[%s489 + $0x11] sm:$0xff]
      %v2314 = vld [vmem:[%s489 + $0x29] sm:$0xff]
      %v2315 = vld [vmem:[%s489 + $0x31] sm:$0xff]
      %v2316 = vld [vmem:[%s489 + $0x49] sm:$0xff]
      %v2317 = vld [vmem:[%s489 + $0x51] sm:$0xff]
      %v2318 = vld [vmem:[%s489 + $0x69] sm:$0xff]
      %v2319 = vld [vmem:[%s489 + $0x71] sm:$0xff]
      %v2320 = vld [vmem:[%s489 + $0x89] sm:$0xff]
      %v2321 = vld [vmem:[%s489 + $0x91] sm:$0xff]
      %v2322 = vld [vmem:[%s489 + $0xa9] sm:$0xff]
      %v2323 = vld [vmem:[%s489 + $0xb1] sm:$0xff]
      %v2324 = vld [vmem:[%s489 + $0xc9] sm:$0xff]
      %v2325 = vld [vmem:[%s489 + $0xd1] sm:$0xff]
      %v2326 = vld [vmem:[%s489 + $0xe9] sm:$0xff]
      %v2327 = vld [vmem:[%s489 + $0xf1] sm:$0xff]
      %v2328 = vld [vmem:[%s489 + $0x109] sm:$0xff]
      %v2329 = vld [vmem:[%s489 + $0x111] sm:$0xff]
      %v2330 = vld [vmem:[%s489 + $0x129] sm:$0xff]
      %v2331 = vld [vmem:[%s489 + $0x131] sm:$0xff]
      %v2332 = vld [vmem:[%s489 + $0x149] sm:$0xff]
      %v2333 = vld [vmem:[%s489 + $0x151] sm:$0xff]
      %v2334 = vld [vmem:[%s489 + $0x169] sm:$0xff]
      %v2335 = vld [vmem:[%s489 + $0x171] sm:$0xff]
      %v2336 = vld [vmem:[%s489 + $0x189] sm:$0xff]
      %v2337 = vld [vmem:[%s489 + $0x191] sm:$0xff]
      %v2338 = vld [vmem:[%s489 + $0x1a9] sm:$0xff]
      %v2339 = vld [vmem:[%s489 + $0x1b1] sm:$0xff]
      %v2340 = vld [vmem:[%s489 + $0x1c9] sm:$0xff]
      %v2341 = vld [vmem:[%s489 + $0x1d1] sm:$0xff]
      %v2342 = vld [vmem:[%s489 + $0x1e9] sm:$0xff]
      %v2343 = vld [vmem:[%s489 + $0x1f1] sm:$0xff]
      %v2344 = vpack.c.bf16 %v2313, %v2312
      %v2345 = vpack.c.bf16 %v2315, %v2314
      %v2346 = vpack.c.bf16 %v2317, %v2316
      %v2347 = vpack.c.bf16 %v2319, %v2318
      %v2348 = vpack.c.bf16 %v2321, %v2320
      %v2349 = vpack.c.bf16 %v2323, %v2322
      %v2350 = vpack.c.bf16 %v2325, %v2324
      %v2351 = vpack.c.bf16 %v2327, %v2326
      %v2352 = vpack.c.bf16 %v2329, %v2328
      %v2353 = vpack.c.bf16 %v2331, %v2330
      %v2354 = vpack.c.bf16 %v2333, %v2332
      %v2355 = vpack.c.bf16 %v2335, %v2334
      %v2356 = vpack.c.bf16 %v2337, %v2336
      %v2357 = vpack.c.bf16 %v2339, %v2338
      %v2358 = vpack.c.bf16 %v2341, %v2340
      %v2359 = vpack.c.bf16 %v2343, %v2342
      %v2360 = vld [vmem:[#allocation4] sm:$0xff]
      %v2361 = vld [vmem:[#allocation4 + $0x8] sm:$0xff]
      %v2362 = vld [vmem:[#allocation4 + $0x10] sm:$0xff]
      %v2363 = vld [vmem:[#allocation4 + $0x18] sm:$0xff]
      %v2364 = vld [vmem:[#allocation4 + $0x20] sm:$0xff]
      %v2365 = vld [vmem:[#allocation4 + $0x28] sm:$0xff]
      %v2366 = vld [vmem:[#allocation4 + $0x30] sm:$0xff]
      %v2367 = vld [vmem:[#allocation4 + $0x38] sm:$0xff]
      %v2368 = vld [vmem:[#allocation4 + $0x40] sm:$0xff]
      %v2369 = vld [vmem:[#allocation4 + $0x48] sm:$0xff]
      %v2370 = vld [vmem:[#allocation4 + $0x50] sm:$0xff]
      %v2371 = vld [vmem:[#allocation4 + $0x58] sm:$0xff]
      %v2372 = vld [vmem:[#allocation4 + $0x60] sm:$0xff]
      %v2373 = vld [vmem:[#allocation4 + $0x68] sm:$0xff]
      %v2374 = vld [vmem:[#allocation4 + $0x70] sm:$0xff]
      %v2375 = vld [vmem:[#allocation4 + $0x78] sm:$0xff]
      %v2376 = vld [vmem:[#allocation4 + $0x80] sm:$0xff]
      %v2377 = vld [vmem:[#allocation4 + $0x88] sm:$0xff]
      %v2378 = vld [vmem:[#allocation4 + $0x90] sm:$0xff]
      %v2379 = vld [vmem:[#allocation4 + $0x98] sm:$0xff]
      %v2380 = vld [vmem:[#allocation4 + $0xa0] sm:$0xff]
      %v2381 = vld [vmem:[#allocation4 + $0xa8] sm:$0xff]
      %v2382 = vld [vmem:[#allocation4 + $0xb0] sm:$0xff]
      %v2383 = vld [vmem:[#allocation4 + $0xb8] sm:$0xff]
      %v2384 = vld [vmem:[#allocation4 + $0xc0] sm:$0xff]
      %v2385 = vld [vmem:[#allocation4 + $0xc8] sm:$0xff]
      %v2386 = vld [vmem:[#allocation4 + $0xd0] sm:$0xff]
      %v2387 = vld [vmem:[#allocation4 + $0xd8] sm:$0xff]
      %v2388 = vld [vmem:[#allocation4 + $0xe0] sm:$0xff]
      %v2389 = vld [vmem:[#allocation4 + $0xe8] sm:$0xff]
      %v2390 = vld [vmem:[#allocation4 + $0xf0] sm:$0xff]
      %v2391 = vld [vmem:[#allocation4 + $0xf8] sm:$0xff]
      %s2392 = scalar_lea.vmem %s1, 10
      %v2393 = vld [vmem:[%s2392] sm:$0x3]
      %v2395 = vsel %vm280, %v2344, 0
      %v2398 = vsel %vm280, %v2345, 0
      %v2401 = vsel %vm280, %v2346, 0
      %v2404 = vsel %vm280, %v2347, 0
      %v2407 = vsel %vm280, %v2348, 0
      %v2410 = vsel %vm280, %v2349, 0
      %v2413 = vsel %vm280, %v2350, 0
      %v2416 = vsel %vm280, %v2351, 0
      %v2419 = vsel %vm280, %v2352, 0
      %v2422 = vsel %vm280, %v2353, 0
      %v2425 = vsel %vm280, %v2354, 0
      %v2428 = vsel %vm280, %v2355, 0
      %v2431 = vsel %vm280, %v2356, 0
      %v2434 = vsel %vm280, %v2357, 0
      %v2437 = vsel %vm280, %v2358, 0
      %v2440 = vsel %vm280, %v2359, 0
      %v2443 = vsel %vm651, %v2393, 0
      %2445 = vmatprep.subr.bf16.mxu0 0
      %2446 = vmatpush1.bf16.msra.mxu0 %v2443
      %2447 = vmatprep.subr.bf16.mxu0 0
      %2448 = vmatpush1.bf16.msra.mxu0 0
      %2449 = vmatprep.subr.bf16.mxu0 0
      %2450 = vmatpush1.bf16.msra.mxu0 0
      %2451 = vmatprep.subr.bf16.mxu0 0
      %2452 = vmatpush1.bf16.msra.mxu0 0
      %2453 = vmatprep.subr.bf16.mxu0 0
      %2454 = vmatpush1.bf16.msra.mxu0 0
      %2455 = vmatprep.subr.bf16.mxu0 0
      %2456 = vmatpush1.bf16.msra.mxu0 0
      %2457 = vmatprep.subr.bf16.mxu0 0
      %2458 = vmatpush1.bf16.msra.mxu0 0
      %2459 = vmatprep.subr.bf16.mxu0 0
      %2460 = vmatpush1.bf16.msra.mxu0 0
      %2461 = vmatprep.subr.bf16.mxu0 0
      %2462 = vmatpush1.bf16.msra.mxu0 0
      %2463 = vmatprep.subr.bf16.mxu0 0
      %2464 = vmatpush1.bf16.msra.mxu0 0
      %2465 = vmatprep.subr.bf16.mxu0 0
      %2466 = vmatpush1.bf16.msra.mxu0 0
      %2467 = vmatprep.subr.bf16.mxu0 0
      %2468 = vmatpush1.bf16.msra.mxu0 0
      %2469 = vmatprep.subr.bf16.mxu0 0
      %2470 = vmatpush1.bf16.msra.mxu0 0
      %2471 = vmatprep.subr.bf16.mxu0 0
      %2472 = vmatpush1.bf16.msra.mxu0 0
      %2473 = vmatprep.subr.bf16.mxu0 0
      %2474 = vmatpush1.bf16.msra.mxu0 0
      %2475 = vmatprep.subr.bf16.mxu0 0
      %2476 = vmatpush1.bf16.msra.mxu0 0
      %2477 = vmatprep.mubr.bf16.mxu0 0
      %2478 = vmatmul.mubr.bf16.gmra.mrb[0].mxu0 %v2395
      %v2479 = vpop.f32.mrb[0].mxu0
      %v2480 = vadd.f32 0.0, %v2479
      %v2481 = vpop.f32.mrb[0].mxu0
      %v2482 = vpop.f32.mrb[0].mxu0
      %v2483 = vadd.f32 0.0, %v2482
      %v2484 = vpop.f32.mrb[0].mxu0
      %2485 = vmatprep.mubr.bf16.mxu0 0
      %2486 = vmatmul.mubr.bf16.gmra.mrb[0].mxu0 %v2398
      %v2487 = vpop.f32.mrb[0].mxu0
      %v2488 = vadd.f32 0.0, %v2487
      %v2489 = vpop.f32.mrb[0].mxu0
      %v2490 = vpop.f32.mrb[0].mxu0
      %v2491 = vadd.f32 0.0, %v2490
      %v2492 = vpop.f32.mrb[0].mxu0
      %2493 = vmatprep.mubr.bf16.mxu0 0
      %2494 = vmatmul.mubr.bf16.gmra.mrb[0].mxu0 %v2401
      %v2495 = vpop.f32.mrb[0].mxu0
      %v2496 = vadd.f32 0.0, %v2495
      %v2497 = vpop.f32.mrb[0].mxu0
      %v2498 = vpop.f32.mrb[0].mxu0
      %v2499 = vadd.f32 0.0, %v2498
      %v2500 = vpop.f32.mrb[0].mxu0
      %2501 = vmatprep.mubr.bf16.mxu0 0
      %2502 = vmatmul.mubr.bf16.gmra.mrb[0].mxu0 %v2404
      %v2503 = vpop.f32.mrb[0].mxu0
      %v2504 = vadd.f32 0.0, %v2503
      %v2505 = vpop.f32.mrb[0].mxu0
      %v2506 = vpop.f32.mrb[0].mxu0
      %v2507 = vadd.f32 0.0, %v2506
      %v2508 = vpop.f32.mrb[0].mxu0
      %2509 = vmatprep.mubr.bf16.mxu0 0
      %2510 = vmatmul.mubr.bf16.gmra.mrb[0].mxu0 %v2407
      %v2511 = vpop.f32.mrb[0].mxu0
      %v2512 = vadd.f32 0.0, %v2511
      %v2513 = vpop.f32.mrb[0].mxu0
      %v2514 = vpop.f32.mrb[0].mxu0
      %v2515 = vadd.f32 0.0, %v2514
      %v2516 = vpop.f32.mrb[0].mxu0
      %2517 = vmatprep.mubr.bf16.mxu0 0
      %2518 = vmatmul.mubr.bf16.gmra.mrb[0].mxu0 %v2410
      %v2519 = vpop.f32.mrb[0].mxu0
      %v2520 = vadd.f32 0.0, %v2519
      %v2521 = vpop.f32.mrb[0].mxu0
      %v2522 = vpop.f32.mrb[0].mxu0
      %v2523 = vadd.f32 0.0, %v2522
      %v2524 = vpop.f32.mrb[0].mxu0
      %2525 = vmatprep.mubr.bf16.mxu0 0
      %2526 = vmatmul.mubr.bf16.gmra.mrb[0].mxu0 %v2413
      %v2527 = vpop.f32.mrb[0].mxu0
      %v2528 = vadd.f32 0.0, %v2527
      %v2529 = vpop.f32.mrb[0].mxu0
      %v2530 = vpop.f32.mrb[0].mxu0
      %v2531 = vadd.f32 0.0, %v2530
      %v2532 = vpop.f32.mrb[0].mxu0
      %2533 = vmatprep.mubr.bf16.mxu0 0
      %2534 = vmatmul.mubr.bf16.gmra.mrb[0].mxu0 %v2416
      %v2535 = vpop.f32.mrb[0].mxu0
      %v2536 = vadd.f32 0.0, %v2535
      %v2537 = vpop.f32.mrb[0].mxu0
      %v2538 = vpop.f32.mrb[0].mxu0
      %v2539 = vadd.f32 0.0, %v2538
      %v2540 = vpop.f32.mrb[0].mxu0
      %2541 = vmatprep.mubr.bf16.mxu0 0
      %2542 = vmatmul.mubr.bf16.gmra.mrb[0].mxu0 %v2419
      %v2543 = vpop.f32.mrb[0].mxu0
      %v2544 = vadd.f32 0.0, %v2543
      %v2545 = vpop.f32.mrb[0].mxu0
      %v2546 = vpop.f32.mrb[0].mxu0
      %v2547 = vadd.f32 0.0, %v2546
      %v2548 = vpop.f32.mrb[0].mxu0
      %2549 = vmatprep.mubr.bf16.mxu0 0
      %2550 = vmatmul.mubr.bf16.gmra.mrb[0].mxu0 %v2422
      %v2551 = vpop.f32.mrb[0].mxu0
      %v2552 = vadd.f32 0.0, %v2551
      %v2553 = vpop.f32.mrb[0].mxu0
      %v2554 = vpop.f32.mrb[0].mxu0
      %v2555 = vadd.f32 0.0, %v2554
      %v2556 = vpop.f32.mrb[0].mxu0
      %2557 = vmatprep.mubr.bf16.mxu0 0
      %2558 = vmatmul.mubr.bf16.gmra.mrb[0].mxu0 %v2425
      %v2559 = vpop.f32.mrb[0].mxu0
      %v2560 = vadd.f32 0.0, %v2559
      %v2561 = vpop.f32.mrb[0].mxu0
      %v2562 = vpop.f32.mrb[0].mxu0
      %v2563 = vadd.f32 0.0, %v2562
      %v2564 = vpop.f32.mrb[0].mxu0
      %2565 = vmatprep.mubr.bf16.mxu0 0
      %2566 = vmatmul.mubr.bf16.gmra.mrb[0].mxu0 %v2428
      %v2567 = vpop.f32.mrb[0].mxu0
      %v2568 = vadd.f32 0.0, %v2567
      %v2569 = vpop.f32.mrb[0].mxu0
      %v2570 = vpop.f32.mrb[0].mxu0
      %v2571 = vadd.f32 0.0, %v2570
      %v2572 = vpop.f32.mrb[0].mxu0
      %2573 = vmatprep.mubr.bf16.mxu0 0
      %2574 = vmatmul.mubr.bf16.gmra.mrb[0].mxu0 %v2431
      %v2575 = vpop.f32.mrb[0].mxu0
      %v2576 = vadd.f32 0.0, %v2575
      %v2577 = vpop.f32.mrb[0].mxu0
      %v2578 = vpop.f32.mrb[0].mxu0
      %v2579 = vadd.f32 0.0, %v2578
      %v2580 = vpop.f32.mrb[0].mxu0
      %2581 = vmatprep.mubr.bf16.mxu0 0
      %2582 = vmatmul.mubr.bf16.gmra.mrb[0].mxu0 %v2434
      %v2583 = vpop.f32.mrb[0].mxu0
      %v2584 = vadd.f32 0.0, %v2583
      %v2585 = vpop.f32.mrb[0].mxu0
      %v2586 = vpop.f32.mrb[0].mxu0
      %v2587 = vadd.f32 0.0, %v2586
      %v2588 = vpop.f32.mrb[0].mxu0
      %2589 = vmatprep.mubr.bf16.mxu0 0
      %2590 = vmatmul.mubr.bf16.gmra.mrb[0].mxu0 %v2437
      %v2591 = vpop.f32.mrb[0].mxu0
      %v2592 = vadd.f32 0.0, %v2591
      %v2593 = vpop.f32.mrb[0].mxu0
      %v2594 = vpop.f32.mrb[0].mxu0
      %v2595 = vadd.f32 0.0, %v2594
      %v2596 = vpop.f32.mrb[0].mxu0
      %2597 = vmatprep.mubr.bf16.mxu0 0
      %2598 = vmatmul.mubr.bf16.gmra.mrb[0].mxu0 %v2440
      %v2599 = vpop.f32.mrb[0].mxu0
      %v2600 = vadd.f32 0.0, %v2599
      %v2601 = vpop.f32.mrb[0].mxu0
      %v2602 = vpop.f32.mrb[0].mxu0
      %v2603 = vadd.f32 0.0, %v2602
      %v2604 = vpop.f32.mrb[0].mxu0
      %2605 = vdwg.mxu0
      %v2606 = vadd.f32 %v2360, %v2480
      %v2607 = vadd.f32 %v2361, %v2483
      %v2608 = vadd.f32 %v2362, %v2488
      %v2609 = vadd.f32 %v2363, %v2491
      %v2610 = vadd.f32 %v2364, %v2496
      %v2611 = vadd.f32 %v2365, %v2499
      %v2612 = vadd.f32 %v2366, %v2504
      %v2613 = vadd.f32 %v2367, %v2507
      %v2614 = vadd.f32 %v2368, %v2512
      %v2615 = vadd.f32 %v2369, %v2515
      %v2616 = vadd.f32 %v2370, %v2520
      %v2617 = vadd.f32 %v2371, %v2523
      %v2618 = vadd.f32 %v2372, %v2528
      %v2619 = vadd.f32 %v2373, %v2531
      %v2620 = vadd.f32 %v2374, %v2536
      %v2621 = vadd.f32 %v2375, %v2539
      %v2622 = vadd.f32 %v2376, %v2544
      %v2623 = vadd.f32 %v2377, %v2547
      %v2624 = vadd.f32 %v2378, %v2552
      %v2625 = vadd.f32 %v2379, %v2555
      %v2626 = vadd.f32 %v2380, %v2560
      %v2627 = vadd.f32 %v2381, %v2563
      %v2628 = vadd.f32 %v2382, %v2568
      %v2629 = vadd.f32 %v2383, %v2571
      %v2630 = vadd.f32 %v2384, %v2576
      %v2631 = vadd.f32 %v2385, %v2579
      %v2632 = vadd.f32 %v2386, %v2584
      %v2633 = vadd.f32 %v2387, %v2587
      %v2634 = vadd.f32 %v2388, %v2592
      %v2635 = vadd.f32 %v2389, %v2595
      %v2636 = vadd.f32 %v2390, %v2600
      %v2637 = vadd.f32 %v2391, %v2603
      %2638 = vst [vmem:[#allocation4] sm:$0xff] %v2606
      %2639 = vst [vmem:[#allocation4 + $0x8] sm:$0xff] %v2607
      %2640 = vst [vmem:[#allocation4 + $0x10] sm:$0xff] %v2608
      %2641 = vst [vmem:[#allocation4 + $0x18] sm:$0xff] %v2609
      %2642 = vst [vmem:[#allocation4 + $0x20] sm:$0xff] %v2610
      %2643 = vst [vmem:[#allocation4 + $0x28] sm:$0xff] %v2611
      %2644 = vst [vmem:[#allocation4 + $0x30] sm:$0xff] %v2612
      %2645 = vst [vmem:[#allocation4 + $0x38] sm:$0xff] %v2613
      %2646 = vst [vmem:[#allocation4 + $0x40] sm:$0xff] %v2614
      %2647 = vst [vmem:[#allocation4 + $0x48] sm:$0xff] %v2615
      %2648 = vst [vmem:[#allocation4 + $0x50] sm:$0xff] %v2616
      %2649 = vst [vmem:[#allocation4 + $0x58] sm:$0xff] %v2617
      %2650 = vst [vmem:[#allocation4 + $0x60] sm:$0xff] %v2618
      %2651 = vst [vmem:[#allocation4 + $0x68] sm:$0xff] %v2619
      %2652 = vst [vmem:[#allocation4 + $0x70] sm:$0xff] %v2620
      %2653 = vst [vmem:[#allocation4 + $0x78] sm:$0xff] %v2621
      %2654 = vst [vmem:[#allocation4 + $0x80] sm:$0xff] %v2622
      %2655 = vst [vmem:[#allocation4 + $0x88] sm:$0xff] %v2623
      %2656 = vst [vmem:[#allocation4 + $0x90] sm:$0xff] %v2624
      %2657 = vst [vmem:[#allocation4 + $0x98] sm:$0xff] %v2625
      %2658 = vst [vmem:[#allocation4 + $0xa0] sm:$0xff] %v2626
      %2659 = vst [vmem:[#allocation4 + $0xa8] sm:$0xff] %v2627
      %2660 = vst [vmem:[#allocation4 + $0xb0] sm:$0xff] %v2628
      %2661 = vst [vmem:[#allocation4 + $0xb8] sm:$0xff] %v2629
      %2662 = vst [vmem:[#allocation4 + $0xc0] sm:$0xff] %v2630
      %2663 = vst [vmem:[#allocation4 + $0xc8] sm:$0xff] %v2631
      %2664 = vst [vmem:[#allocation4 + $0xd0] sm:$0xff] %v2632
      %2665 = vst [vmem:[#allocation4 + $0xd8] sm:$0xff] %v2633
      %2666 = vst [vmem:[#allocation4 + $0xe0] sm:$0xff] %v2634
      %2667 = vst [vmem:[#allocation4 + $0xe8] sm:$0xff] %v2635
      %2668 = vst [vmem:[#allocation4 + $0xf0] sm:$0xff] %v2636
      %2669 = vst [vmem:[#allocation4 + $0xf8] sm:$0xff] %v2637
      %s2670 = scalar_lea.vmem [#allocation2], 64
      %v2671 = vld [vmem:[%s2670 + $0x7] sm:$0xff]
      %v2672 = vld [vmem:[%s2670 + $0xf] sm:$0xff]
      %v2673 = vld [vmem:[%s2670 + $0x27] sm:$0xff]
      %v2674 = vld [vmem:[%s2670 + $0x2f] sm:$0xff]
      %v2675 = vld [vmem:[%s2670 + $0x47] sm:$0xff]
      %v2676 = vld [vmem:[%s2670 + $0x4f] sm:$0xff]
      %v2677 = vld [vmem:[%s2670 + $0x67] sm:$0xff]
      %v2678 = vld [vmem:[%s2670 + $0x6f] sm:$0xff]
      %v2679 = vld [vmem:[%s2670 + $0x87] sm:$0xff]
      %v2680 = vld [vmem:[%s2670 + $0x8f] sm:$0xff]
      %v2681 = vld [vmem:[%s2670 + $0xa7] sm:$0xff]
      %v2682 = vld [vmem:[%s2670 + $0xaf] sm:$0xff]
      %v2683 = vld [vmem:[%s2670 + $0xc7] sm:$0xff]
      %v2684 = vld [vmem:[%s2670 + $0xcf] sm:$0xff]
      %v2685 = vld [vmem:[%s2670 + $0xe7] sm:$0xff]
      %v2686 = vld [vmem:[%s2670 + $0xef] sm:$0xff]
      %v2687 = vld [vmem:[%s2670 + $0x107] sm:$0xff]
      %v2688 = vld [vmem:[%s2670 + $0x10f] sm:$0xff]
      %v2689 = vld [vmem:[%s2670 + $0x127] sm:$0xff]
      %v2690 = vld [vmem:[%s2670 + $0x12f] sm:$0xff]
      %v2691 = vld [vmem:[%s2670 + $0x147] sm:$0xff]
      %v2692 = vld [vmem:[%s2670 + $0x14f] sm:$0xff]
      %v2693 = vld [vmem:[%s2670 + $0x167] sm:$0xff]
      %v2694 = vld [vmem:[%s2670 + $0x16f] sm:$0xff]
      %v2695 = vld [vmem:[%s2670 + $0x187] sm:$0xff]
      %v2696 = vld [vmem:[%s2670 + $0x18f] sm:$0xff]
      %v2697 = vld [vmem:[%s2670 + $0x1a7] sm:$0xff]
      %v2698 = vld [vmem:[%s2670 + $0x1af] sm:$0xff]
      %v2699 = vld [vmem:[%s2670 + $0x1c7] sm:$0xff]
      %v2700 = vld [vmem:[%s2670 + $0x1cf] sm:$0xff]
      %v2701 = vld [vmem:[%s2670 + $0x1e7] sm:$0xff]
      %v2702 = vld [vmem:[%s2670 + $0x1ef] sm:$0xff]
      %v2703 = vpack.c.bf16 %v2672, %v2671
      %v2704 = vpack.c.bf16 %v2674, %v2673
      %v2705 = vpack.c.bf16 %v2676, %v2675
      %v2706 = vpack.c.bf16 %v2678, %v2677
      %v2707 = vpack.c.bf16 %v2680, %v2679
      %v2708 = vpack.c.bf16 %v2682, %v2681
      %v2709 = vpack.c.bf16 %v2684, %v2683
      %v2710 = vpack.c.bf16 %v2686, %v2685
      %v2711 = vpack.c.bf16 %v2688, %v2687
      %v2712 = vpack.c.bf16 %v2690, %v2689
      %v2713 = vpack.c.bf16 %v2692, %v2691
      %v2714 = vpack.c.bf16 %v2694, %v2693
      %v2715 = vpack.c.bf16 %v2696, %v2695
      %v2716 = vpack.c.bf16 %v2698, %v2697
      %v2717 = vpack.c.bf16 %v2700, %v2699
      %v2718 = vpack.c.bf16 %v2702, %v2701
      %v2719 = vld [vmem:[#allocation4] sm:$0xff]
      %v2720 = vld [vmem:[#allocation4 + $0x8] sm:$0xff]
      %v2721 = vld [vmem:[#allocation4 + $0x10] sm:$0xff]
      %v2722 = vld [vmem:[#allocation4 + $0x18] sm:$0xff]
      %v2723 = vld [vmem:[#allocation4 + $0x20] sm:$0xff]
      %v2724 = vld [vmem:[#allocation4 + $0x28] sm:$0xff]
      %v2725 = vld [vmem:[#allocation4 + $0x30] sm:$0xff]
      %v2726 = vld [vmem:[#allocation4 + $0x38] sm:$0xff]
      %v2727 = vld [vmem:[#allocation4 + $0x40] sm:$0xff]
      %v2728 = vld [vmem:[#allocation4 + $0x48] sm:$0xff]
      %v2729 = vld [vmem:[#allocation4 + $0x50] sm:$0xff]
      %v2730 = vld [vmem:[#allocation4 + $0x58] sm:$0xff]
      %v2731 = vld [vmem:[#allocation4 + $0x60] sm:$0xff]
      %v2732 = vld [vmem:[#allocation4 + $0x68] sm:$0xff]
      %v2733 = vld [vmem:[#allocation4 + $0x70] sm:$0xff]
      %v2734 = vld [vmem:[#allocation4 + $0x78] sm:$0xff]
      %v2735 = vld [vmem:[#allocation4 + $0x80] sm:$0xff]
      %v2736 = vld [vmem:[#allocation4 + $0x88] sm:$0xff]
      %v2737 = vld [vmem:[#allocation4 + $0x90] sm:$0xff]
      %v2738 = vld [vmem:[#allocation4 + $0x98] sm:$0xff]
      %v2739 = vld [vmem:[#allocation4 + $0xa0] sm:$0xff]
      %v2740 = vld [vmem:[#allocation4 + $0xa8] sm:$0xff]
      %v2741 = vld [vmem:[#allocation4 + $0xb0] sm:$0xff]
      %v2742 = vld [vmem:[#allocation4 + $0xb8] sm:$0xff]
      %v2743 = vld [vmem:[#allocation4 + $0xc0] sm:$0xff]
      %v2744 = vld [vmem:[#allocation4 + $0xc8] sm:$0xff]
      %v2745 = vld [vmem:[#allocation4 + $0xd0] sm:$0xff]
      %v2746 = vld [vmem:[#allocation4 + $0xd8] sm:$0xff]
      %v2747 = vld [vmem:[#allocation4 + $0xe0] sm:$0xff]
      %v2748 = vld [vmem:[#allocation4 + $0xe8] sm:$0xff]
      %v2749 = vld [vmem:[#allocation4 + $0xf0] sm:$0xff]
      %v2750 = vld [vmem:[#allocation4 + $0xf8] sm:$0xff]
      %s2751 = scalar_lea.vmem %s1, 12
      %v2752 = vld [vmem:[%s2751] sm:$0x3]
      %v2754 = vsel %vm280, %v2703, 0
      %v2757 = vsel %vm280, %v2704, 0
      %v2760 = vsel %vm280, %v2705, 0
      %v2763 = vsel %vm280, %v2706, 0
      %v2766 = vsel %vm280, %v2707, 0
      %v2769 = vsel %vm280, %v2708, 0
      %v2772 = vsel %vm280, %v2709, 0
      %v2775 = vsel %vm280, %v2710, 0
      %v2778 = vsel %vm280, %v2711, 0
      %v2781 = vsel %vm280, %v2712, 0
      %v2784 = vsel %vm280, %v2713, 0
      %v2787 = vsel %vm280, %v2714, 0
      %v2790 = vsel %vm280, %v2715, 0
      %v2793 = vsel %vm280, %v2716, 0
      %v2796 = vsel %vm280, %v2717, 0
      %v2799 = vsel %vm280, %v2718, 0
      %v2802 = vsel %vm651, %v2752, 0
      %2804 = vmatprep.subr.bf16.mxu0 0
      %2805 = vmatpush1.bf16.msra.mxu0 %v2802
      %2806 = vmatprep.subr.bf16.mxu0 0
      %2807 = vmatpush1.bf16.msra.mxu0 0
      %2808 = vmatprep.subr.bf16.mxu0 0
      %2809 = vmatpush1.bf16.msra.mxu0 0
      %2810 = vmatprep.subr.bf16.mxu0 0
      %2811 = vmatpush1.bf16.msra.mxu0 0
      %2812 = vmatprep.subr.bf16.mxu0 0
      %2813 = vmatpush1.bf16.msra.mxu0 0
      %2814 = vmatprep.subr.bf16.mxu0 0
      %2815 = vmatpush1.bf16.msra.mxu0 0
      %2816 = vmatprep.subr.bf16.mxu0 0
      %2817 = vmatpush1.bf16.msra.mxu0 0
      %2818 = vmatprep.subr.bf16.mxu0 0
      %2819 = vmatpush1.bf16.msra.mxu0 0
      %2820 = vmatprep.subr.bf16.mxu0 0
      %2821 = vmatpush1.bf16.msra.mxu0 0
      %2822 = vmatprep.subr.bf16.mxu0 0
      %2823 = vmatpush1.bf16.msra.mxu0 0
      %2824 = vmatprep.subr.bf16.mxu0 0
      %2825 = vmatpush1.bf16.msra.mxu0 0
      %2826 = vmatprep.subr.bf16.mxu0 0
      %2827 = vmatpush1.bf16.msra.mxu0 0
      %2828 = vmatprep.subr.bf16.mxu0 0
      %2829 = vmatpush1.bf16.msra.mxu0 0
      %2830 = vmatprep.subr.bf16.mxu0 0
      %2831 = vmatpush1.bf16.msra.mxu0 0
      %2832 = vmatprep.subr.bf16.mxu0 0
      %2833 = vmatpush1.bf16.msra.mxu0 0
      %2834 = vmatprep.subr.bf16.mxu0 0
      %2835 = vmatpush1.bf16.msra.mxu0 0
      %2836 = vmatprep.mubr.bf16.mxu0 0
      %2837 = vmatmul.mubr.bf16.gmra.mrb[0].mxu0 %v2754
      %v2838 = vpop.f32.mrb[0].mxu0
      %v2839 = vadd.f32 0.0, %v2838
      %v2840 = vpop.f32.mrb[0].mxu0
      %v2841 = vpop.f32.mrb[0].mxu0
      %v2842 = vadd.f32 0.0, %v2841
      %v2843 = vpop.f32.mrb[0].mxu0
      %2844 = vmatprep.mubr.bf16.mxu0 0
      %2845 = vmatmul.mubr.bf16.gmra.mrb[0].mxu0 %v2757
      %v2846 = vpop.f32.mrb[0].mxu0
      %v2847 = vadd.f32 0.0, %v2846
      %v2848 = vpop.f32.mrb[0].mxu0
      %v2849 = vpop.f32.mrb[0].mxu0
      %v2850 = vadd.f32 0.0, %v2849
      %v2851 = vpop.f32.mrb[0].mxu0
      %2852 = vmatprep.mubr.bf16.mxu0 0
      %2853 = vmatmul.mubr.bf16.gmra.mrb[0].mxu0 %v2760
      %v2854 = vpop.f32.mrb[0].mxu0
      %v2855 = vadd.f32 0.0, %v2854
      %v2856 = vpop.f32.mrb[0].mxu0
      %v2857 = vpop.f32.mrb[0].mxu0
      %v2858 = vadd.f32 0.0, %v2857
      %v2859 = vpop.f32.mrb[0].mxu0
      %2860 = vmatprep.mubr.bf16.mxu0 0
      %2861 = vmatmul.mubr.bf16.gmra.mrb[0].mxu0 %v2763
      %v2862 = vpop.f32.mrb[0].mxu0
      %v2863 = vadd.f32 0.0, %v2862
      %v2864 = vpop.f32.mrb[0].mxu0
      %v2865 = vpop.f32.mrb[0].mxu0
      %v2866 = vadd.f32 0.0, %v2865
      %v2867 = vpop.f32.mrb[0].mxu0
      %2868 = vmatprep.mubr.bf16.mxu0 0
      %2869 = vmatmul.mubr.bf16.gmra.mrb[0].mxu0 %v2766
      %v2870 = vpop.f32.mrb[0].mxu0
      %v2871 = vadd.f32 0.0, %v2870
      %v2872 = vpop.f32.mrb[0].mxu0
      %v2873 = vpop.f32.mrb[0].mxu0
      %v2874 = vadd.f32 0.0, %v2873
      %v2875 = vpop.f32.mrb[0].mxu0
      %2876 = vmatprep.mubr.bf16.mxu0 0
      %2877 = vmatmul.mubr.bf16.gmra.mrb[0].mxu0 %v2769
      %v2878 = vpop.f32.mrb[0].mxu0
      %v2879 = vadd.f32 0.0, %v2878
      %v2880 = vpop.f32.mrb[0].mxu0
      %v2881 = vpop.f32.mrb[0].mxu0
      %v2882 = vadd.f32 0.0, %v2881
      %v2883 = vpop.f32.mrb[0].mxu0
      %2884 = vmatprep.mubr.bf16.mxu0 0
      %2885 = vmatmul.mubr.bf16.gmra.mrb[0].mxu0 %v2772
      %v2886 = vpop.f32.mrb[0].mxu0
      %v2887 = vadd.f32 0.0, %v2886
      %v2888 = vpop.f32.mrb[0].mxu0
      %v2889 = vpop.f32.mrb[0].mxu0
      %v2890 = vadd.f32 0.0, %v2889
      %v2891 = vpop.f32.mrb[0].mxu0
      %2892 = vmatprep.mubr.bf16.mxu0 0
      %2893 = vmatmul.mubr.bf16.gmra.mrb[0].mxu0 %v2775
      %v2894 = vpop.f32.mrb[0].mxu0
      %v2895 = vadd.f32 0.0, %v2894
      %v2896 = vpop.f32.mrb[0].mxu0
      %v2897 = vpop.f32.mrb[0].mxu0
      %v2898 = vadd.f32 0.0, %v2897
      %v2899 = vpop.f32.mrb[0].mxu0
      %2900 = vmatprep.mubr.bf16.mxu0 0
      %2901 = vmatmul.mubr.bf16.gmra.mrb[0].mxu0 %v2778
      %v2902 = vpop.f32.mrb[0].mxu0
      %v2903 = vadd.f32 0.0, %v2902
      %v2904 = vpop.f32.mrb[0].mxu0
      %v2905 = vpop.f32.mrb[0].mxu0
      %v2906 = vadd.f32 0.0, %v2905
      %v2907 = vpop.f32.mrb[0].mxu0
      %2908 = vmatprep.mubr.bf16.mxu0 0
      %2909 = vmatmul.mubr.bf16.gmra.mrb[0].mxu0 %v2781
      %v2910 = vpop.f32.mrb[0].mxu0
      %v2911 = vadd.f32 0.0, %v2910
      %v2912 = vpop.f32.mrb[0].mxu0
      %v2913 = vpop.f32.mrb[0].mxu0
      %v2914 = vadd.f32 0.0, %v2913
      %v2915 = vpop.f32.mrb[0].mxu0
      %2916 = vmatprep.mubr.bf16.mxu0 0
      %2917 = vmatmul.mubr.bf16.gmra.mrb[0].mxu0 %v2784
      %v2918 = vpop.f32.mrb[0].mxu0
      %v2919 = vadd.f32 0.0, %v2918
      %v2920 = vpop.f32.mrb[0].mxu0
      %v2921 = vpop.f32.mrb[0].mxu0
      %v2922 = vadd.f32 0.0, %v2921
      %v2923 = vpop.f32.mrb[0].mxu0
      %2924 = vmatprep.mubr.bf16.mxu0 0
      %2925 = vmatmul.mubr.bf16.gmra.mrb[0].mxu0 %v2787
      %v2926 = vpop.f32.mrb[0].mxu0
      %v2927 = vadd.f32 0.0, %v2926
      %v2928 = vpop.f32.mrb[0].mxu0
      %v2929 = vpop.f32.mrb[0].mxu0
      %v2930 = vadd.f32 0.0, %v2929
      %v2931 = vpop.f32.mrb[0].mxu0
      %2932 = vmatprep.mubr.bf16.mxu0 0
      %2933 = vmatmul.mubr.bf16.gmra.mrb[0].mxu0 %v2790
      %v2934 = vpop.f32.mrb[0].mxu0
      %v2935 = vadd.f32 0.0, %v2934
      %v2936 = vpop.f32.mrb[0].mxu0
      %v2937 = vpop.f32.mrb[0].mxu0
      %v2938 = vadd.f32 0.0, %v2937
      %v2939 = vpop.f32.mrb[0].mxu0
      %2940 = vmatprep.mubr.bf16.mxu0 0
      %2941 = vmatmul.mubr.bf16.gmra.mrb[0].mxu0 %v2793
      %v2942 = vpop.f32.mrb[0].mxu0
      %v2943 = vadd.f32 0.0, %v2942
      %v2944 = vpop.f32.mrb[0].mxu0
      %v2945 = vpop.f32.mrb[0].mxu0
      %v2946 = vadd.f32 0.0, %v2945
      %v2947 = vpop.f32.mrb[0].mxu0
      %2948 = vmatprep.mubr.bf16.mxu0 0
      %2949 = vmatmul.mubr.bf16.gmra.mrb[0].mxu0 %v2796
      %v2950 = vpop.f32.mrb[0].mxu0
      %v2951 = vadd.f32 0.0, %v2950
      %v2952 = vpop.f32.mrb[0].mxu0
      %v2953 = vpop.f32.mrb[0].mxu0
      %v2954 = vadd.f32 0.0, %v2953
      %v2955 = vpop.f32.mrb[0].mxu0
      %2956 = vmatprep.mubr.bf16.mxu0 0
      %2957 = vmatmul.mubr.bf16.gmra.mrb[0].mxu0 %v2799
      %v2958 = vpop.f32.mrb[0].mxu0
      %v2959 = vadd.f32 0.0, %v2958
      %v2960 = vpop.f32.mrb[0].mxu0
      %v2961 = vpop.f32.mrb[0].mxu0
      %v2962 = vadd.f32 0.0, %v2961
      %v2963 = vpop.f32.mrb[0].mxu0
      %2964 = vdwg.mxu0
      %v2965 = vadd.f32 %v2719, %v2839
      %v2966 = vadd.f32 %v2720, %v2842
      %v2967 = vadd.f32 %v2721, %v2847
      %v2968 = vadd.f32 %v2722, %v2850
      %v2969 = vadd.f32 %v2723, %v2855
      %v2970 = vadd.f32 %v2724, %v2858
      %v2971 = vadd.f32 %v2725, %v2863
      %v2972 = vadd.f32 %v2726, %v2866
      %v2973 = vadd.f32 %v2727, %v2871
      %v2974 = vadd.f32 %v2728, %v2874
      %v2975 = vadd.f32 %v2729, %v2879
      %v2976 = vadd.f32 %v2730, %v2882
      %v2977 = vadd.f32 %v2731, %v2887
      %v2978 = vadd.f32 %v2732, %v2890
      %v2979 = vadd.f32 %v2733, %v2895
      %v2980 = vadd.f32 %v2734, %v2898
      %v2981 = vadd.f32 %v2735, %v2903
      %v2982 = vadd.f32 %v2736, %v2906
      %v2983 = vadd.f32 %v2737, %v2911
      %v2984 = vadd.f32 %v2738, %v2914
      %v2985 = vadd.f32 %v2739, %v2919
      %v2986 = vadd.f32 %v2740, %v2922
      %v2987 = vadd.f32 %v2741, %v2927
      %v2988 = vadd.f32 %v2742, %v2930
      %v2989 = vadd.f32 %v2743, %v2935
      %v2990 = vadd.f32 %v2744, %v2938
      %v2991 = vadd.f32 %v2745, %v2943
      %v2992 = vadd.f32 %v2746, %v2946
      %v2993 = vadd.f32 %v2747, %v2951
      %v2994 = vadd.f32 %v2748, %v2954
      %v2995 = vadd.f32 %v2749, %v2959
      %v2996 = vadd.f32 %v2750, %v2962
      %2997 = vst [vmem:[#allocation4] sm:$0xff] %v2965
      %2998 = vst [vmem:[#allocation4 + $0x8] sm:$0xff] %v2966
      %2999 = vst [vmem:[#allocation4 + $0x10] sm:$0xff] %v2967
      %3000 = vst [vmem:[#allocation4 + $0x18] sm:$0xff] %v2968
      %3001 = vst [vmem:[#allocation4 + $0x20] sm:$0xff] %v2969
      %3002 = vst [vmem:[#allocation4 + $0x28] sm:$0xff] %v2970
      %3003 = vst [vmem:[#allocation4 + $0x30] sm:$0xff] %v2971
      %3004 = vst [vmem:[#allocation4 + $0x38] sm:$0xff] %v2972
      %3005 = vst [vmem:[#allocation4 + $0x40] sm:$0xff] %v2973
      %3006 = vst [vmem:[#allocation4 + $0x48] sm:$0xff] %v2974
      %3007 = vst [vmem:[#allocation4 + $0x50] sm:$0xff] %v2975
      %3008 = vst [vmem:[#allocation4 + $0x58] sm:$0xff] %v2976
      %3009 = vst [vmem:[#allocation4 + $0x60] sm:$0xff] %v2977
      %3010 = vst [vmem:[#allocation4 + $0x68] sm:$0xff] %v2978
      %3011 = vst [vmem:[#allocation4 + $0x70] sm:$0xff] %v2979
      %3012 = vst [vmem:[#allocation4 + $0x78] sm:$0xff] %v2980
      %3013 = vst [vmem:[#allocation4 + $0x80] sm:$0xff] %v2981
      %3014 = vst [vmem:[#allocation4 + $0x88] sm:$0xff] %v2982
      %3015 = vst [vmem:[#allocation4 + $0x90] sm:$0xff] %v2983
      %3016 = vst [vmem:[#allocation4 + $0x98] sm:$0xff] %v2984
      %3017 = vst [vmem:[#allocation4 + $0xa0] sm:$0xff] %v2985
      %3018 = vst [vmem:[#allocation4 + $0xa8] sm:$0xff] %v2986
      %3019 = vst [vmem:[#allocation4 + $0xb0] sm:$0xff] %v2987
      %3020 = vst [vmem:[#allocation4 + $0xb8] sm:$0xff] %v2988
      %3021 = vst [vmem:[#allocation4 + $0xc0] sm:$0xff] %v2989
      %3022 = vst [vmem:[#allocation4 + $0xc8] sm:$0xff] %v2990
      %3023 = vst [vmem:[#allocation4 + $0xd0] sm:$0xff] %v2991
      %3024 = vst [vmem:[#allocation4 + $0xd8] sm:$0xff] %v2992
      %3025 = vst [vmem:[#allocation4 + $0xe0] sm:$0xff] %v2993
      %3026 = vst [vmem:[#allocation4 + $0xe8] sm:$0xff] %v2994
      %3027 = vst [vmem:[#allocation4 + $0xf0] sm:$0xff] %v2995
      %3028 = vst [vmem:[#allocation4 + $0xf8] sm:$0xff] %v2996
      %v3029 = vld [vmem:[%s2670 + $0x8] sm:$0xff]
      %v3030 = vld [vmem:[%s2670 + $0x10] sm:$0xff]
      %v3031 = vld [vmem:[%s2670 + $0x28] sm:$0xff]
      %v3032 = vld [vmem:[%s2670 + $0x30] sm:$0xff]
      %v3033 = vld [vmem:[%s2670 + $0x48] sm:$0xff]
      %v3034 = vld [vmem:[%s2670 + $0x50] sm:$0xff]
      %v3035 = vld [vmem:[%s2670 + $0x68] sm:$0xff]
      %v3036 = vld [vmem:[%s2670 + $0x70] sm:$0xff]
      %v3037 = vld [vmem:[%s2670 + $0x88] sm:$0xff]
      %v3038 = vld [vmem:[%s2670 + $0x90] sm:$0xff]
      %v3039 = vld [vmem:[%s2670 + $0xa8] sm:$0xff]
      %v3040 = vld [vmem:[%s2670 + $0xb0] sm:$0xff]
      %v3041 = vld [vmem:[%s2670 + $0xc8] sm:$0xff]
      %v3042 = vld [vmem:[%s2670 + $0xd0] sm:$0xff]
      %v3043 = vld [vmem:[%s2670 + $0xe8] sm:$0xff]
      %v3044 = vld [vmem:[%s2670 + $0xf0] sm:$0xff]
      %v3045 = vld [vmem:[%s2670 + $0x108] sm:$0xff]
      %v3046 = vld [vmem:[%s2670 + $0x110] sm:$0xff]
      %v3047 = vld [vmem:[%s2670 + $0x128] sm:$0xff]
      %v3048 = vld [vmem:[%s2670 + $0x130] sm:$0xff]
      %v3049 = vld [vmem:[%s2670 + $0x148] sm:$0xff]
      %v3050 = vld [vmem:[%s2670 + $0x150] sm:$0xff]
      %v3051 = vld [vmem:[%s2670 + $0x168] sm:$0xff]
      %v3052 = vld [vmem:[%s2670 + $0x170] sm:$0xff]
      %v3053 = vld [vmem:[%s2670 + $0x188] sm:$0xff]
      %v3054 = vld [vmem:[%s2670 + $0x190] sm:$0xff]
      %v3055 = vld [vmem:[%s2670 + $0x1a8] sm:$0xff]
      %v3056 = vld [vmem:[%s2670 + $0x1b0] sm:$0xff]
      %v3057 = vld [vmem:[%s2670 + $0x1c8] sm:$0xff]
      %v3058 = vld [vmem:[%s2670 + $0x1d0] sm:$0xff]
      %v3059 = vld [vmem:[%s2670 + $0x1e8] sm:$0xff]
      %v3060 = vld [vmem:[%s2670 + $0x1f0] sm:$0xff]
      %v3061 = vpack.c.bf16 %v3030, %v3029
      %v3062 = vpack.c.bf16 %v3032, %v3031
      %v3063 = vpack.c.bf16 %v3034, %v3033
      %v3064 = vpack.c.bf16 %v3036, %v3035
      %v3065 = vpack.c.bf16 %v3038, %v3037
      %v3066 = vpack.c.bf16 %v3040, %v3039
      %v3067 = vpack.c.bf16 %v3042, %v3041
      %v3068 = vpack.c.bf16 %v3044, %v3043
      %v3069 = vpack.c.bf16 %v3046, %v3045
      %v3070 = vpack.c.bf16 %v3048, %v3047
      %v3071 = vpack.c.bf16 %v3050, %v3049
      %v3072 = vpack.c.bf16 %v3052, %v3051
      %v3073 = vpack.c.bf16 %v3054, %v3053
      %v3074 = vpack.c.bf16 %v3056, %v3055
      %v3075 = vpack.c.bf16 %v3058, %v3057
      %v3076 = vpack.c.bf16 %v3060, %v3059
      %v3077 = vld [vmem:[#allocation4] sm:$0xff]
      %v3078 = vld [vmem:[#allocation4 + $0x8] sm:$0xff]
      %v3079 = vld [vmem:[#allocation4 + $0x10] sm:$0xff]
      %v3080 = vld [vmem:[#allocation4 + $0x18] sm:$0xff]
      %v3081 = vld [vmem:[#allocation4 + $0x20] sm:$0xff]
      %v3082 = vld [vmem:[#allocation4 + $0x28] sm:$0xff]
      %v3083 = vld [vmem:[#allocation4 + $0x30] sm:$0xff]
      %v3084 = vld [vmem:[#allocation4 + $0x38] sm:$0xff]
      %v3085 = vld [vmem:[#allocation4 + $0x40] sm:$0xff]
      %v3086 = vld [vmem:[#allocation4 + $0x48] sm:$0xff]
      %v3087 = vld [vmem:[#allocation4 + $0x50] sm:$0xff]
      %v3088 = vld [vmem:[#allocation4 + $0x58] sm:$0xff]
      %v3089 = vld [vmem:[#allocation4 + $0x60] sm:$0xff]
      %v3090 = vld [vmem:[#allocation4 + $0x68] sm:$0xff]
      %v3091 = vld [vmem:[#allocation4 + $0x70] sm:$0xff]
      %v3092 = vld [vmem:[#allocation4 + $0x78] sm:$0xff]
      %v3093 = vld [vmem:[#allocation4 + $0x80] sm:$0xff]
      %v3094 = vld [vmem:[#allocation4 + $0x88] sm:$0xff]
      %v3095 = vld [vmem:[#allocation4 + $0x90] sm:$0xff]
      %v3096 = vld [vmem:[#allocation4 + $0x98] sm:$0xff]
      %v3097 = vld [vmem:[#allocation4 + $0xa0] sm:$0xff]
      %v3098 = vld [vmem:[#allocation4 + $0xa8] sm:$0xff]
      %v3099 = vld [vmem:[#allocation4 + $0xb0] sm:$0xff]
      %v3100 = vld [vmem:[#allocation4 + $0xb8] sm:$0xff]
      %v3101 = vld [vmem:[#allocation4 + $0xc0] sm:$0xff]
      %v3102 = vld [vmem:[#allocation4 + $0xc8] sm:$0xff]
      %v3103 = vld [vmem:[#allocation4 + $0xd0] sm:$0xff]
      %v3104 = vld [vmem:[#allocation4 + $0xd8] sm:$0xff]
      %v3105 = vld [vmem:[#allocation4 + $0xe0] sm:$0xff]
      %v3106 = vld [vmem:[#allocation4 + $0xe8] sm:$0xff]
      %v3107 = vld [vmem:[#allocation4 + $0xf0] sm:$0xff]
      %v3108 = vld [vmem:[#allocation4 + $0xf8] sm:$0xff]
      %s3109 = scalar_lea.vmem %s1, 14
      %v3110 = vld [vmem:[%s3109] sm:$0x3]
      %v3112 = vsel %vm280, %v3061, 0
      %v3115 = vsel %vm280, %v3062, 0
      %v3118 = vsel %vm280, %v3063, 0
      %v3121 = vsel %vm280, %v3064, 0
      %v3124 = vsel %vm280, %v3065, 0
      %v3127 = vsel %vm280, %v3066, 0
      %v3130 = vsel %vm280, %v3067, 0
      %v3133 = vsel %vm280, %v3068, 0
      %v3136 = vsel %vm280, %v3069, 0
      %v3139 = vsel %vm280, %v3070, 0
      %v3142 = vsel %vm280, %v3071, 0
      %v3145 = vsel %vm280, %v3072, 0
      %v3148 = vsel %vm280, %v3073, 0
      %v3151 = vsel %vm280, %v3074, 0
      %v3154 = vsel %vm280, %v3075, 0
      %v3157 = vsel %vm280, %v3076, 0
      %v3160 = vsel %vm651, %v3110, 0
      %3162 = vmatprep.subr.bf16.mxu0 0
      %3163 = vmatpush1.bf16.msra.mxu0 %v3160
      %3164 = vmatprep.subr.bf16.mxu0 0
      %3165 = vmatpush1.bf16.msra.mxu0 0
      %3166 = vmatprep.subr.bf16.mxu0 0
      %3167 = vmatpush1.bf16.msra.mxu0 0
      %3168 = vmatprep.subr.bf16.mxu0 0
      %3169 = vmatpush1.bf16.msra.mxu0 0
      %3170 = vmatprep.subr.bf16.mxu0 0
      %3171 = vmatpush1.bf16.msra.mxu0 0
      %3172 = vmatprep.subr.bf16.mxu0 0
      %3173 = vmatpush1.bf16.msra.mxu0 0
      %3174 = vmatprep.subr.bf16.mxu0 0
      %3175 = vmatpush1.bf16.msra.mxu0 0
      %3176 = vmatprep.subr.bf16.mxu0 0
      %3177 = vmatpush1.bf16.msra.mxu0 0
      %3178 = vmatprep.subr.bf16.mxu0 0
      %3179 = vmatpush1.bf16.msra.mxu0 0
      %3180 = vmatprep.subr.bf16.mxu0 0
      %3181 = vmatpush1.bf16.msra.mxu0 0
      %3182 = vmatprep.subr.bf16.mxu0 0
      %3183 = vmatpush1.bf16.msra.mxu0 0
      %3184 = vmatprep.subr.bf16.mxu0 0
      %3185 = vmatpush1.bf16.msra.mxu0 0
      %3186 = vmatprep.subr.bf16.mxu0 0
      %3187 = vmatpush1.bf16.msra.mxu0 0
      %3188 = vmatprep.subr.bf16.mxu0 0
      %3189 = vmatpush1.bf16.msra.mxu0 0
      %3190 = vmatprep.subr.bf16.mxu0 0
      %3191 = vmatpush1.bf16.msra.mxu0 0
      %3192 = vmatprep.subr.bf16.mxu0 0
      %3193 = vmatpush1.bf16.msra.mxu0 0
      %3194 = vmatprep.mubr.bf16.mxu0 0
      %3195 = vmatmul.mubr.bf16.gmra.mrb[0].mxu0 %v3112
      %v3196 = vpop.f32.mrb[0].mxu0
      %v3197 = vadd.f32 0.0, %v3196
      %v3198 = vpop.f32.mrb[0].mxu0
      %v3199 = vpop.f32.mrb[0].mxu0
      %v3200 = vadd.f32 0.0, %v3199
      %v3201 = vpop.f32.mrb[0].mxu0
      %3202 = vmatprep.mubr.bf16.mxu0 0
      %3203 = vmatmul.mubr.bf16.gmra.mrb[0].mxu0 %v3115
      %v3204 = vpop.f32.mrb[0].mxu0
      %v3205 = vadd.f32 0.0, %v3204
      %v3206 = vpop.f32.mrb[0].mxu0
      %v3207 = vpop.f32.mrb[0].mxu0
      %v3208 = vadd.f32 0.0, %v3207
      %v3209 = vpop.f32.mrb[0].mxu0
      %3210 = vmatprep.mubr.bf16.mxu0 0
      %3211 = vmatmul.mubr.bf16.gmra.mrb[0].mxu0 %v3118
      %v3212 = vpop.f32.mrb[0].mxu0
      %v3213 = vadd.f32 0.0, %v3212
      %v3214 = vpop.f32.mrb[0].mxu0
      %v3215 = vpop.f32.mrb[0].mxu0
      %v3216 = vadd.f32 0.0, %v3215
      %v3217 = vpop.f32.mrb[0].mxu0
      %3218 = vmatprep.mubr.bf16.mxu0 0
      %3219 = vmatmul.mubr.bf16.gmra.mrb[0].mxu0 %v3121
      %v3220 = vpop.f32.mrb[0].mxu0
      %v3221 = vadd.f32 0.0, %v3220
      %v3222 = vpop.f32.mrb[0].mxu0
      %v3223 = vpop.f32.mrb[0].mxu0
      %v3224 = vadd.f32 0.0, %v3223
      %v3225 = vpop.f32.mrb[0].mxu0
      %3226 = vmatprep.mubr.bf16.mxu0 0
      %3227 = vmatmul.mubr.bf16.gmra.mrb[0].mxu0 %v3124
      %v3228 = vpop.f32.mrb[0].mxu0
      %v3229 = vadd.f32 0.0, %v3228
      %v3230 = vpop.f32.mrb[0].mxu0
      %v3231 = vpop.f32.mrb[0].mxu0
      %v3232 = vadd.f32 0.0, %v3231
      %v3233 = vpop.f32.mrb[0].mxu0
      %3234 = vmatprep.mubr.bf16.mxu0 0
      %3235 = vmatmul.mubr.bf16.gmra.mrb[0].mxu0 %v3127
      %v3236 = vpop.f32.mrb[0].mxu0
      %v3237 = vadd.f32 0.0, %v3236
      %v3238 = vpop.f32.mrb[0].mxu0
      %v3239 = vpop.f32.mrb[0].mxu0
      %v3240 = vadd.f32 0.0, %v3239
      %v3241 = vpop.f32.mrb[0].mxu0
      %3242 = vmatprep.mubr.bf16.mxu0 0
      %3243 = vmatmul.mubr.bf16.gmra.mrb[0].mxu0 %v3130
      %v3244 = vpop.f32.mrb[0].mxu0
      %v3245 = vadd.f32 0.0, %v3244
      %v3246 = vpop.f32.mrb[0].mxu0
      %v3247 = vpop.f32.mrb[0].mxu0
      %v3248 = vadd.f32 0.0, %v3247
      %v3249 = vpop.f32.mrb[0].mxu0
      %3250 = vmatprep.mubr.bf16.mxu0 0
      %3251 = vmatmul.mubr.bf16.gmra.mrb[0].mxu0 %v3133
      %v3252 = vpop.f32.mrb[0].mxu0
      %v3253 = vadd.f32 0.0, %v3252
      %v3254 = vpop.f32.mrb[0].mxu0
      %v3255 = vpop.f32.mrb[0].mxu0
      %v3256 = vadd.f32 0.0, %v3255
      %v3257 = vpop.f32.mrb[0].mxu0
      %3258 = vmatprep.mubr.bf16.mxu0 0
      %3259 = vmatmul.mubr.bf16.gmra.mrb[0].mxu0 %v3136
      %v3260 = vpop.f32.mrb[0].mxu0
      %v3261 = vadd.f32 0.0, %v3260
      %v3262 = vpop.f32.mrb[0].mxu0
      %v3263 = vpop.f32.mrb[0].mxu0
      %v3264 = vadd.f32 0.0, %v3263
      %v3265 = vpop.f32.mrb[0].mxu0
      %3266 = vmatprep.mubr.bf16.mxu0 0
      %3267 = vmatmul.mubr.bf16.gmra.mrb[0].mxu0 %v3139
      %v3268 = vpop.f32.mrb[0].mxu0
      %v3269 = vadd.f32 0.0, %v3268
      %v3270 = vpop.f32.mrb[0].mxu0
      %v3271 = vpop.f32.mrb[0].mxu0
      %v3272 = vadd.f32 0.0, %v3271
      %v3273 = vpop.f32.mrb[0].mxu0
      %3274 = vmatprep.mubr.bf16.mxu0 0
      %3275 = vmatmul.mubr.bf16.gmra.mrb[0].mxu0 %v3142
      %v3276 = vpop.f32.mrb[0].mxu0
      %v3277 = vadd.f32 0.0, %v3276
      %v3278 = vpop.f32.mrb[0].mxu0
      %v3279 = vpop.f32.mrb[0].mxu0
      %v3280 = vadd.f32 0.0, %v3279
      %v3281 = vpop.f32.mrb[0].mxu0
      %3282 = vmatprep.mubr.bf16.mxu0 0
      %3283 = vmatmul.mubr.bf16.gmra.mrb[0].mxu0 %v3145
      %v3284 = vpop.f32.mrb[0].mxu0
      %v3285 = vadd.f32 0.0, %v3284
      %v3286 = vpop.f32.mrb[0].mxu0
      %v3287 = vpop.f32.mrb[0].mxu0
      %v3288 = vadd.f32 0.0, %v3287
      %v3289 = vpop.f32.mrb[0].mxu0
      %3290 = vmatprep.mubr.bf16.mxu0 0
      %3291 = vmatmul.mubr.bf16.gmra.mrb[0].mxu0 %v3148
      %v3292 = vpop.f32.mrb[0].mxu0
      %v3293 = vadd.f32 0.0, %v3292
      %v3294 = vpop.f32.mrb[0].mxu0
      %v3295 = vpop.f32.mrb[0].mxu0
      %v3296 = vadd.f32 0.0, %v3295
      %v3297 = vpop.f32.mrb[0].mxu0
      %3298 = vmatprep.mubr.bf16.mxu0 0
      %3299 = vmatmul.mubr.bf16.gmra.mrb[0].mxu0 %v3151
      %v3300 = vpop.f32.mrb[0].mxu0
      %v3301 = vadd.f32 0.0, %v3300
      %v3302 = vpop.f32.mrb[0].mxu0
      %v3303 = vpop.f32.mrb[0].mxu0
      %v3304 = vadd.f32 0.0, %v3303
      %v3305 = vpop.f32.mrb[0].mxu0
      %3306 = vmatprep.mubr.bf16.mxu0 0
      %3307 = vmatmul.mubr.bf16.gmra.mrb[0].mxu0 %v3154
      %v3308 = vpop.f32.mrb[0].mxu0
      %v3309 = vadd.f32 0.0, %v3308
      %v3310 = vpop.f32.mrb[0].mxu0
      %v3311 = vpop.f32.mrb[0].mxu0
      %v3312 = vadd.f32 0.0, %v3311
      %v3313 = vpop.f32.mrb[0].mxu0
      %3314 = vmatprep.mubr.bf16.mxu0 0
      %3315 = vmatmul.mubr.bf16.gmra.mrb[0].mxu0 %v3157
      %v3316 = vpop.f32.mrb[0].mxu0
      %v3317 = vadd.f32 0.0, %v3316
      %v3318 = vpop.f32.mrb[0].mxu0
      %v3319 = vpop.f32.mrb[0].mxu0
      %v3320 = vadd.f32 0.0, %v3319
      %v3321 = vpop.f32.mrb[0].mxu0
      %3322 = vdwg.mxu0
      %v3323 = vadd.f32 %v3077, %v3197
      %v3324 = vadd.f32 %v3078, %v3200
      %v3325 = vadd.f32 %v3079, %v3205
      %v3326 = vadd.f32 %v3080, %v3208
      %v3327 = vadd.f32 %v3081, %v3213
      %v3328 = vadd.f32 %v3082, %v3216
      %v3329 = vadd.f32 %v3083, %v3221
      %v3330 = vadd.f32 %v3084, %v3224
      %v3331 = vadd.f32 %v3085, %v3229
      %v3332 = vadd.f32 %v3086, %v3232
      %v3333 = vadd.f32 %v3087, %v3237
      %v3334 = vadd.f32 %v3088, %v3240
      %v3335 = vadd.f32 %v3089, %v3245
      %v3336 = vadd.f32 %v3090, %v3248
      %v3337 = vadd.f32 %v3091, %v3253
      %v3338 = vadd.f32 %v3092, %v3256
      %v3339 = vadd.f32 %v3093, %v3261
      %v3340 = vadd.f32 %v3094, %v3264
      %v3341 = vadd.f32 %v3095, %v3269
      %v3342 = vadd.f32 %v3096, %v3272
      %v3343 = vadd.f32 %v3097, %v3277
      %v3344 = vadd.f32 %v3098, %v3280
      %v3345 = vadd.f32 %v3099, %v3285
      %v3346 = vadd.f32 %v3100, %v3288
      %v3347 = vadd.f32 %v3101, %v3293
      %v3348 = vadd.f32 %v3102, %v3296
      %v3349 = vadd.f32 %v3103, %v3301
      %v3350 = vadd.f32 %v3104, %v3304
      %v3351 = vadd.f32 %v3105, %v3309
      %v3352 = vadd.f32 %v3106, %v3312
      %v3353 = vadd.f32 %v3107, %v3317
      %v3354 = vadd.f32 %v3108, %v3320
      %3355 = vst [vmem:[#allocation4] sm:$0xff] %v3323
      %3356 = vst [vmem:[#allocation4 + $0x8] sm:$0xff] %v3324
      %3357 = vst [vmem:[#allocation4 + $0x10] sm:$0xff] %v3325
      %3358 = vst [vmem:[#allocation4 + $0x18] sm:$0xff] %v3326
      %3359 = vst [vmem:[#allocation4 + $0x20] sm:$0xff] %v3327
      %3360 = vst [vmem:[#allocation4 + $0x28] sm:$0xff] %v3328
      %3361 = vst [vmem:[#allocation4 + $0x30] sm:$0xff] %v3329
      %3362 = vst [vmem:[#allocation4 + $0x38] sm:$0xff] %v3330
      %3363 = vst [vmem:[#allocation4 + $0x40] sm:$0xff] %v3331
      %3364 = vst [vmem:[#allocation4 + $0x48] sm:$0xff] %v3332
      %3365 = vst [vmem:[#allocation4 + $0x50] sm:$0xff] %v3333
      %3366 = vst [vmem:[#allocation4 + $0x58] sm:$0xff] %v3334
      %3367 = vst [vmem:[#allocation4 + $0x60] sm:$0xff] %v3335
      %3368 = vst [vmem:[#allocation4 + $0x68] sm:$0xff] %v3336
      %3369 = vst [vmem:[#allocation4 + $0x70] sm:$0xff] %v3337
      %3370 = vst [vmem:[#allocation4 + $0x78] sm:$0xff] %v3338
      %3371 = vst [vmem:[#allocation4 + $0x80] sm:$0xff] %v3339
      %3372 = vst [vmem:[#allocation4 + $0x88] sm:$0xff] %v3340
      %3373 = vst [vmem:[#allocation4 + $0x90] sm:$0xff] %v3341
      %3374 = vst [vmem:[#allocation4 + $0x98] sm:$0xff] %v3342
      %3375 = vst [vmem:[#allocation4 + $0xa0] sm:$0xff] %v3343
      %3376 = vst [vmem:[#allocation4 + $0xa8] sm:$0xff] %v3344
      %3377 = vst [vmem:[#allocation4 + $0xb0] sm:$0xff] %v3345
      %3378 = vst [vmem:[#allocation4 + $0xb8] sm:$0xff] %v3346
      %3379 = vst [vmem:[#allocation4 + $0xc0] sm:$0xff] %v3347
      %3380 = vst [vmem:[#allocation4 + $0xc8] sm:$0xff] %v3348
      %3381 = vst [vmem:[#allocation4 + $0xd0] sm:$0xff] %v3349
      %3382 = vst [vmem:[#allocation4 + $0xd8] sm:$0xff] %v3350
      %3383 = vst [vmem:[#allocation4 + $0xe0] sm:$0xff] %v3351
      %3384 = vst [vmem:[#allocation4 + $0xe8] sm:$0xff] %v3352
      %3385 = vst [vmem:[#allocation4 + $0xf0] sm:$0xff] %v3353
      %3386 = vst [vmem:[#allocation4 + $0xf8] sm:$0xff] %v3354
      %v3387 = vld [vmem:[%s2670 + $0x9] sm:$0xff]
      %v3388 = vld [vmem:[%s2670 + $0x11] sm:$0xff]
      %v3389 = vld [vmem:[%s2670 + $0x29] sm:$0xff]
      %v3390 = vld [vmem:[%s2670 + $0x31] sm:$0xff]
      %v3391 = vld [vmem:[%s2670 + $0x49] sm:$0xff]
      %v3392 = vld [vmem:[%s2670 + $0x51] sm:$0xff]
      %v3393 = vld [vmem:[%s2670 + $0x69] sm:$0xff]
      %v3394 = vld [vmem:[%s2670 + $0x71] sm:$0xff]
      %v3395 = vld [vmem:[%s2670 + $0x89] sm:$0xff]
      %v3396 = vld [vmem:[%s2670 + $0x91] sm:$0xff]
      %v3397 = vld [vmem:[%s2670 + $0xa9] sm:$0xff]
      %v3398 = vld [vmem:[%s2670 + $0xb1] sm:$0xff]
      %v3399 = vld [vmem:[%s2670 + $0xc9] sm:$0xff]
      %v3400 = vld [vmem:[%s2670 + $0xd1] sm:$0xff]
      %v3401 = vld [vmem:[%s2670 + $0xe9] sm:$0xff]
      %v3402 = vld [vmem:[%s2670 + $0xf1] sm:$0xff]
      %v3403 = vld [vmem:[%s2670 + $0x109] sm:$0xff]
      %v3404 = vld [vmem:[%s2670 + $0x111] sm:$0xff]
      %v3405 = vld [vmem:[%s2670 + $0x129] sm:$0xff]
      %v3406 = vld [vmem:[%s2670 + $0x131] sm:$0xff]
      %v3407 = vld [vmem:[%s2670 + $0x149] sm:$0xff]
      %v3408 = vld [vmem:[%s2670 + $0x151] sm:$0xff]
      %v3409 = vld [vmem:[%s2670 + $0x169] sm:$0xff]
      %v3410 = vld [vmem:[%s2670 + $0x171] sm:$0xff]
      %v3411 = vld [vmem:[%s2670 + $0x189] sm:$0xff]
      %v3412 = vld [vmem:[%s2670 + $0x191] sm:$0xff]
      %v3413 = vld [vmem:[%s2670 + $0x1a9] sm:$0xff]
      %v3414 = vld [vmem:[%s2670 + $0x1b1] sm:$0xff]
      %v3415 = vld [vmem:[%s2670 + $0x1c9] sm:$0xff]
      %v3416 = vld [vmem:[%s2670 + $0x1d1] sm:$0xff]
      %v3417 = vld [vmem:[%s2670 + $0x1e9] sm:$0xff]
      %v3418 = vld [vmem:[%s2670 + $0x1f1] sm:$0xff]
      %v3419 = vpack.c.bf16 %v3388, %v3387
      %v3420 = vpack.c.bf16 %v3390, %v3389
      %v3421 = vpack.c.bf16 %v3392, %v3391
      %v3422 = vpack.c.bf16 %v3394, %v3393
      %v3423 = vpack.c.bf16 %v3396, %v3395
      %v3424 = vpack.c.bf16 %v3398, %v3397
      %v3425 = vpack.c.bf16 %v3400, %v3399
      %v3426 = vpack.c.bf16 %v3402, %v3401
      %v3427 = vpack.c.bf16 %v3404, %v3403
      %v3428 = vpack.c.bf16 %v3406, %v3405
      %v3429 = vpack.c.bf16 %v3408, %v3407
      %v3430 = vpack.c.bf16 %v3410, %v3409
      %v3431 = vpack.c.bf16 %v3412, %v3411
      %v3432 = vpack.c.bf16 %v3414, %v3413
      %v3433 = vpack.c.bf16 %v3416, %v3415
      %v3434 = vpack.c.bf16 %v3418, %v3417
      %v3435 = vld [vmem:[#allocation4] sm:$0xff]
      %v3436 = vld [vmem:[#allocation4 + $0x8] sm:$0xff]
      %v3437 = vld [vmem:[#allocation4 + $0x10] sm:$0xff]
      %v3438 = vld [vmem:[#allocation4 + $0x18] sm:$0xff]
      %v3439 = vld [vmem:[#allocation4 + $0x20] sm:$0xff]
      %v3440 = vld [vmem:[#allocation4 + $0x28] sm:$0xff]
      %v3441 = vld [vmem:[#allocation4 + $0x30] sm:$0xff]
      %v3442 = vld [vmem:[#allocation4 + $0x38] sm:$0xff]
      %v3443 = vld [vmem:[#allocation4 + $0x40] sm:$0xff]
      %v3444 = vld [vmem:[#allocation4 + $0x48] sm:$0xff]
      %v3445 = vld [vmem:[#allocation4 + $0x50] sm:$0xff]
      %v3446 = vld [vmem:[#allocation4 + $0x58] sm:$0xff]
      %v3447 = vld [vmem:[#allocation4 + $0x60] sm:$0xff]
      %v3448 = vld [vmem:[#allocation4 + $0x68] sm:$0xff]
      %v3449 = vld [vmem:[#allocation4 + $0x70] sm:$0xff]
      %v3450 = vld [vmem:[#allocation4 + $0x78] sm:$0xff]
      %v3451 = vld [vmem:[#allocation4 + $0x80] sm:$0xff]
      %v3452 = vld [vmem:[#allocation4 + $0x88] sm:$0xff]
      %v3453 = vld [vmem:[#allocation4 + $0x90] sm:$0xff]
      %v3454 = vld [vmem:[#allocation4 + $0x98] sm:$0xff]
      %v3455 = vld [vmem:[#allocation4 + $0xa0] sm:$0xff]
      %v3456 = vld [vmem:[#allocation4 + $0xa8] sm:$0xff]
      %v3457 = vld [vmem:[#allocation4 + $0xb0] sm:$0xff]
      %v3458 = vld [vmem:[#allocation4 + $0xb8] sm:$0xff]
      %v3459 = vld [vmem:[#allocation4 + $0xc0] sm:$0xff]
      %v3460 = vld [vmem:[#allocation4 + $0xc8] sm:$0xff]
      %v3461 = vld [vmem:[#allocation4 + $0xd0] sm:$0xff]
      %v3462 = vld [vmem:[#allocation4 + $0xd8] sm:$0xff]
      %v3463 = vld [vmem:[#allocation4 + $0xe0] sm:$0xff]
      %v3464 = vld [vmem:[#allocation4 + $0xe8] sm:$0xff]
      %v3465 = vld [vmem:[#allocation4 + $0xf0] sm:$0xff]
      %v3466 = vld [vmem:[#allocation4 + $0xf8] sm:$0xff]
      %s3467 = scalar_lea.vmem %s1, 16
      %v3468 = vld [vmem:[%s3467] sm:$0x3]
      %v3470 = vsel %vm280, %v3419, 0
      %v3473 = vsel %vm280, %v3420, 0
      %v3476 = vsel %vm280, %v3421, 0
      %v3479 = vsel %vm280, %v3422, 0
      %v3482 = vsel %vm280, %v3423, 0
      %v3485 = vsel %vm280, %v3424, 0
      %v3488 = vsel %vm280, %v3425, 0
      %v3491 = vsel %vm280, %v3426, 0
      %v3494 = vsel %vm280, %v3427, 0
      %v3497 = vsel %vm280, %v3428, 0
      %v3500 = vsel %vm280, %v3429, 0
      %v3503 = vsel %vm280, %v3430, 0
      %v3506 = vsel %vm280, %v3431, 0
      %v3509 = vsel %vm280, %v3432, 0
      %v3512 = vsel %vm280, %v3433, 0
      %v3515 = vsel %vm280, %v3434, 0
      %v3518 = vsel %vm651, %v3468, 0
      %3520 = vmatprep.subr.bf16.mxu0 0
      %3521 = vmatpush1.bf16.msra.mxu0 %v3518
      %3522 = vmatprep.subr.bf16.mxu0 0
      %3523 = vmatpush1.bf16.msra.mxu0 0
      %3524 = vmatprep.subr.bf16.mxu0 0
      %3525 = vmatpush1.bf16.msra.mxu0 0
      %3526 = vmatprep.subr.bf16.mxu0 0
      %3527 = vmatpush1.bf16.msra.mxu0 0
      %3528 = vmatprep.subr.bf16.mxu0 0
      %3529 = vmatpush1.bf16.msra.mxu0 0
      %3530 = vmatprep.subr.bf16.mxu0 0
      %3531 = vmatpush1.bf16.msra.mxu0 0
      %3532 = vmatprep.subr.bf16.mxu0 0
      %3533 = vmatpush1.bf16.msra.mxu0 0
      %3534 = vmatprep.subr.bf16.mxu0 0
      %3535 = vmatpush1.bf16.msra.mxu0 0
      %3536 = vmatprep.subr.bf16.mxu0 0
      %3537 = vmatpush1.bf16.msra.mxu0 0
      %3538 = vmatprep.subr.bf16.mxu0 0
      %3539 = vmatpush1.bf16.msra.mxu0 0
      %3540 = vmatprep.subr.bf16.mxu0 0
      %3541 = vmatpush1.bf16.msra.mxu0 0
      %3542 = vmatprep.subr.bf16.mxu0 0
      %3543 = vmatpush1.bf16.msra.mxu0 0
      %3544 = vmatprep.subr.bf16.mxu0 0
      %3545 = vmatpush1.bf16.msra.mxu0 0
      %3546 = vmatprep.subr.bf16.mxu0 0
      %3547 = vmatpush1.bf16.msra.mxu0 0
      %3548 = vmatprep.subr.bf16.mxu0 0
      %3549 = vmatpush1.bf16.msra.mxu0 0
      %3550 = vmatprep.subr.bf16.mxu0 0
      %3551 = vmatpush1.bf16.msra.mxu0 0
      %3552 = vmatprep.mubr.bf16.mxu0 0
      %3553 = vmatmul.mubr.bf16.gmra.mrb[0].mxu0 %v3470
      %v3554 = vpop.f32.mrb[0].mxu0
      %v3555 = vadd.f32 0.0, %v3554
      %v3556 = vpop.f32.mrb[0].mxu0
      %v3557 = vpop.f32.mrb[0].mxu0
      %v3558 = vadd.f32 0.0, %v3557
      %v3559 = vpop.f32.mrb[0].mxu0
      %3560 = vmatprep.mubr.bf16.mxu0 0
      %3561 = vmatmul.mubr.bf16.gmra.mrb[0].mxu0 %v3473
      %v3562 = vpop.f32.mrb[0].mxu0
      %v3563 = vadd.f32 0.0, %v3562
      %v3564 = vpop.f32.mrb[0].mxu0
      %v3565 = vpop.f32.mrb[0].mxu0
      %v3566 = vadd.f32 0.0, %v3565
      %v3567 = vpop.f32.mrb[0].mxu0
      %3568 = vmatprep.mubr.bf16.mxu0 0
      %3569 = vmatmul.mubr.bf16.gmra.mrb[0].mxu0 %v3476
      %v3570 = vpop.f32.mrb[0].mxu0
      %v3571 = vadd.f32 0.0, %v3570
      %v3572 = vpop.f32.mrb[0].mxu0
      %v3573 = vpop.f32.mrb[0].mxu0
      %v3574 = vadd.f32 0.0, %v3573
      %v3575 = vpop.f32.mrb[0].mxu0
      %3576 = vmatprep.mubr.bf16.mxu0 0
      %3577 = vmatmul.mubr.bf16.gmra.mrb[0].mxu0 %v3479
      %v3578 = vpop.f32.mrb[0].mxu0
      %v3579 = vadd.f32 0.0, %v3578
      %v3580 = vpop.f32.mrb[0].mxu0
      %v3581 = vpop.f32.mrb[0].mxu0
      %v3582 = vadd.f32 0.0, %v3581
      %v3583 = vpop.f32.mrb[0].mxu0
      %3584 = vmatprep.mubr.bf16.mxu0 0
      %3585 = vmatmul.mubr.bf16.gmra.mrb[0].mxu0 %v3482
      %v3586 = vpop.f32.mrb[0].mxu0
      %v3587 = vadd.f32 0.0, %v3586
      %v3588 = vpop.f32.mrb[0].mxu0
      %v3589 = vpop.f32.mrb[0].mxu0
      %v3590 = vadd.f32 0.0, %v3589
      %v3591 = vpop.f32.mrb[0].mxu0
      %3592 = vmatprep.mubr.bf16.mxu0 0
      %3593 = vmatmul.mubr.bf16.gmra.mrb[0].mxu0 %v3485
      %v3594 = vpop.f32.mrb[0].mxu0
      %v3595 = vadd.f32 0.0, %v3594
      %v3596 = vpop.f32.mrb[0].mxu0
      %v3597 = vpop.f32.mrb[0].mxu0
      %v3598 = vadd.f32 0.0, %v3597
      %v3599 = vpop.f32.mrb[0].mxu0
      %3600 = vmatprep.mubr.bf16.mxu0 0
      %3601 = vmatmul.mubr.bf16.gmra.mrb[0].mxu0 %v3488
      %v3602 = vpop.f32.mrb[0].mxu0
      %v3603 = vadd.f32 0.0, %v3602
      %v3604 = vpop.f32.mrb[0].mxu0
      %v3605 = vpop.f32.mrb[0].mxu0
      %v3606 = vadd.f32 0.0, %v3605
      %v3607 = vpop.f32.mrb[0].mxu0
      %3608 = vmatprep.mubr.bf16.mxu0 0
      %3609 = vmatmul.mubr.bf16.gmra.mrb[0].mxu0 %v3491
      %v3610 = vpop.f32.mrb[0].mxu0
      %v3611 = vadd.f32 0.0, %v3610
      %v3612 = vpop.f32.mrb[0].mxu0
      %v3613 = vpop.f32.mrb[0].mxu0
      %v3614 = vadd.f32 0.0, %v3613
      %v3615 = vpop.f32.mrb[0].mxu0
      %3616 = vmatprep.mubr.bf16.mxu0 0
      %3617 = vmatmul.mubr.bf16.gmra.mrb[0].mxu0 %v3494
      %v3618 = vpop.f32.mrb[0].mxu0
      %v3619 = vadd.f32 0.0, %v3618
      %v3620 = vpop.f32.mrb[0].mxu0
      %v3621 = vpop.f32.mrb[0].mxu0
      %v3622 = vadd.f32 0.0, %v3621
      %v3623 = vpop.f32.mrb[0].mxu0
      %3624 = vmatprep.mubr.bf16.mxu0 0
      %3625 = vmatmul.mubr.bf16.gmra.mrb[0].mxu0 %v3497
      %v3626 = vpop.f32.mrb[0].mxu0
      %v3627 = vadd.f32 0.0, %v3626
      %v3628 = vpop.f32.mrb[0].mxu0
      %v3629 = vpop.f32.mrb[0].mxu0
      %v3630 = vadd.f32 0.0, %v3629
      %v3631 = vpop.f32.mrb[0].mxu0
      %3632 = vmatprep.mubr.bf16.mxu0 0
      %3633 = vmatmul.mubr.bf16.gmra.mrb[0].mxu0 %v3500
      %v3634 = vpop.f32.mrb[0].mxu0
      %v3635 = vadd.f32 0.0, %v3634
      %v3636 = vpop.f32.mrb[0].mxu0
      %v3637 = vpop.f32.mrb[0].mxu0
      %v3638 = vadd.f32 0.0, %v3637
      %v3639 = vpop.f32.mrb[0].mxu0
      %3640 = vmatprep.mubr.bf16.mxu0 0
      %3641 = vmatmul.mubr.bf16.gmra.mrb[0].mxu0 %v3503
      %v3642 = vpop.f32.mrb[0].mxu0
      %v3643 = vadd.f32 0.0, %v3642
      %v3644 = vpop.f32.mrb[0].mxu0
      %v3645 = vpop.f32.mrb[0].mxu0
      %v3646 = vadd.f32 0.0, %v3645
      %v3647 = vpop.f32.mrb[0].mxu0
      %3648 = vmatprep.mubr.bf16.mxu0 0
      %3649 = vmatmul.mubr.bf16.gmra.mrb[0].mxu0 %v3506
      %v3650 = vpop.f32.mrb[0].mxu0
      %v3651 = vadd.f32 0.0, %v3650
      %v3652 = vpop.f32.mrb[0].mxu0
      %v3653 = vpop.f32.mrb[0].mxu0
      %v3654 = vadd.f32 0.0, %v3653
      %v3655 = vpop.f32.mrb[0].mxu0
      %3656 = vmatprep.mubr.bf16.mxu0 0
      %3657 = vmatmul.mubr.bf16.gmra.mrb[0].mxu0 %v3509
      %v3658 = vpop.f32.mrb[0].mxu0
      %v3659 = vadd.f32 0.0, %v3658
      %v3660 = vpop.f32.mrb[0].mxu0
      %v3661 = vpop.f32.mrb[0].mxu0
      %v3662 = vadd.f32 0.0, %v3661
      %v3663 = vpop.f32.mrb[0].mxu0
      %3664 = vmatprep.mubr.bf16.mxu0 0
      %3665 = vmatmul.mubr.bf16.gmra.mrb[0].mxu0 %v3512
      %v3666 = vpop.f32.mrb[0].mxu0
      %v3667 = vadd.f32 0.0, %v3666
      %v3668 = vpop.f32.mrb[0].mxu0
      %v3669 = vpop.f32.mrb[0].mxu0
      %v3670 = vadd.f32 0.0, %v3669
      %v3671 = vpop.f32.mrb[0].mxu0
      %3672 = vmatprep.mubr.bf16.mxu0 0
      %3673 = vmatmul.mubr.bf16.gmra.mrb[0].mxu0 %v3515
      %v3674 = vpop.f32.mrb[0].mxu0
      %v3675 = vadd.f32 0.0, %v3674
      %v3676 = vpop.f32.mrb[0].mxu0
      %v3677 = vpop.f32.mrb[0].mxu0
      %v3678 = vadd.f32 0.0, %v3677
      %v3679 = vpop.f32.mrb[0].mxu0
      %3680 = vdwg.mxu0
      %v3681 = vadd.f32 %v3435, %v3555
      %v3682 = vadd.f32 %v3436, %v3558
      %v3683 = vadd.f32 %v3437, %v3563
      %v3684 = vadd.f32 %v3438, %v3566
      %v3685 = vadd.f32 %v3439, %v3571
      %v3686 = vadd.f32 %v3440, %v3574
      %v3687 = vadd.f32 %v3441, %v3579
      %v3688 = vadd.f32 %v3442, %v3582
      %v3689 = vadd.f32 %v3443, %v3587
      %v3690 = vadd.f32 %v3444, %v3590
      %v3691 = vadd.f32 %v3445, %v3595
      %v3692 = vadd.f32 %v3446, %v3598
      %v3693 = vadd.f32 %v3447, %v3603
      %v3694 = vadd.f32 %v3448, %v3606
      %v3695 = vadd.f32 %v3449, %v3611
      %v3696 = vadd.f32 %v3450, %v3614
      %v3697 = vadd.f32 %v3451, %v3619
      %v3698 = vadd.f32 %v3452, %v3622
      %v3699 = vadd.f32 %v3453, %v3627
      %v3700 = vadd.f32 %v3454, %v3630
      %v3701 = vadd.f32 %v3455, %v3635
      %v3702 = vadd.f32 %v3456, %v3638
      %v3703 = vadd.f32 %v3457, %v3643
      %v3704 = vadd.f32 %v3458, %v3646
      %v3705 = vadd.f32 %v3459, %v3651
      %v3706 = vadd.f32 %v3460, %v3654
      %v3707 = vadd.f32 %v3461, %v3659
      %v3708 = vadd.f32 %v3462, %v3662
      %v3709 = vadd.f32 %v3463, %v3667
      %v3710 = vadd.f32 %v3464, %v3670
      %v3711 = vadd.f32 %v3465, %v3675
      %v3712 = vadd.f32 %v3466, %v3678
      %3713 = vst [vmem:[#allocation4] sm:$0xff] %v3681
      %3714 = vst [vmem:[#allocation4 + $0x8] sm:$0xff] %v3682
      %3715 = vst [vmem:[#allocation4 + $0x10] sm:$0xff] %v3683
      %3716 = vst [vmem:[#allocation4 + $0x18] sm:$0xff] %v3684
      %3717 = vst [vmem:[#allocation4 + $0x20] sm:$0xff] %v3685
      %3718 = vst [vmem:[#allocation4 + $0x28] sm:$0xff] %v3686
      %3719 = vst [vmem:[#allocation4 + $0x30] sm:$0xff] %v3687
      %3720 = vst [vmem:[#allocation4 + $0x38] sm:$0xff] %v3688
      %3721 = vst [vmem:[#allocation4 + $0x40] sm:$0xff] %v3689
      %3722 = vst [vmem:[#allocation4 + $0x48] sm:$0xff] %v3690
      %3723 = vst [vmem:[#allocation4 + $0x50] sm:$0xff] %v3691
      %3724 = vst [vmem:[#allocation4 + $0x58] sm:$0xff] %v3692
      %3725 = vst [vmem:[#allocation4 + $0x60] sm:$0xff] %v3693
      %3726 = vst [vmem:[#allocation4 + $0x68] sm:$0xff] %v3694
      %3727 = vst [vmem:[#allocation4 + $0x70] sm:$0xff] %v3695
      %3728 = vst [vmem:[#allocation4 + $0x78] sm:$0xff] %v3696
      %3729 = vst [vmem:[#allocation4 + $0x80] sm:$0xff] %v3697
      %3730 = vst [vmem:[#allocation4 + $0x88] sm:$0xff] %v3698
      %3731 = vst [vmem:[#allocation4 + $0x90] sm:$0xff] %v3699
      %3732 = vst [vmem:[#allocation4 + $0x98] sm:$0xff] %v3700
      %3733 = vst [vmem:[#allocation4 + $0xa0] sm:$0xff] %v3701
      %3734 = vst [vmem:[#allocation4 + $0xa8] sm:$0xff] %v3702
      %3735 = vst [vmem:[#allocation4 + $0xb0] sm:$0xff] %v3703
      %3736 = vst [vmem:[#allocation4 + $0xb8] sm:$0xff] %v3704
      %3737 = vst [vmem:[#allocation4 + $0xc0] sm:$0xff] %v3705
      %3738 = vst [vmem:[#allocation4 + $0xc8] sm:$0xff] %v3706
      %3739 = vst [vmem:[#allocation4 + $0xd0] sm:$0xff] %v3707
      %3740 = vst [vmem:[#allocation4 + $0xd8] sm:$0xff] %v3708
      %3741 = vst [vmem:[#allocation4 + $0xe0] sm:$0xff] %v3709
      %3742 = vst [vmem:[#allocation4 + $0xe8] sm:$0xff] %v3710
      %3743 = vst [vmem:[#allocation4 + $0xf0] sm:$0xff] %v3711
      %3744 = vst [vmem:[#allocation4 + $0xf8] sm:$0xff] %v3712
      %v3745 = vld [vmem:[#allocation4] sm:$0xff]
      %v3746 = vld [vmem:[#allocation4 + $0x8] sm:$0xff]
      %v3747 = vld [vmem:[#allocation4 + $0x10] sm:$0xff]
      %v3748 = vld [vmem:[#allocation4 + $0x18] sm:$0xff]
      %v3749 = vld [vmem:[#allocation4 + $0x20] sm:$0xff]
      %v3750 = vld [vmem:[#allocation4 + $0x28] sm:$0xff]
      %v3751 = vld [vmem:[#allocation4 + $0x30] sm:$0xff]
      %v3752 = vld [vmem:[#allocation4 + $0x38] sm:$0xff]
      %v3753 = vld [vmem:[#allocation4 + $0x40] sm:$0xff]
      %v3754 = vld [vmem:[#allocation4 + $0x48] sm:$0xff]
      %v3755 = vld [vmem:[#allocation4 + $0x50] sm:$0xff]
      %v3756 = vld [vmem:[#allocation4 + $0x58] sm:$0xff]
      %v3757 = vld [vmem:[#allocation4 + $0x60] sm:$0xff]
      %v3758 = vld [vmem:[#allocation4 + $0x68] sm:$0xff]
      %v3759 = vld [vmem:[#allocation4 + $0x70] sm:$0xff]
      %v3760 = vld [vmem:[#allocation4 + $0x78] sm:$0xff]
      %v3761 = vld [vmem:[#allocation4 + $0x80] sm:$0xff]
      %v3762 = vld [vmem:[#allocation4 + $0x88] sm:$0xff]
      %v3763 = vld [vmem:[#allocation4 + $0x90] sm:$0xff]
      %v3764 = vld [vmem:[#allocation4 + $0x98] sm:$0xff]
      %v3765 = vld [vmem:[#allocation4 + $0xa0] sm:$0xff]
      %v3766 = vld [vmem:[#allocation4 + $0xa8] sm:$0xff]
      %v3767 = vld [vmem:[#allocation4 + $0xb0] sm:$0xff]
      %v3768 = vld [vmem:[#allocation4 + $0xb8] sm:$0xff]
      %v3769 = vld [vmem:[#allocation4 + $0xc0] sm:$0xff]
      %v3770 = vld [vmem:[#allocation4 + $0xc8] sm:$0xff]
      %v3771 = vld [vmem:[#allocation4 + $0xd0] sm:$0xff]
      %v3772 = vld [vmem:[#allocation4 + $0xd8] sm:$0xff]
      %v3773 = vld [vmem:[#allocation4 + $0xe0] sm:$0xff]
      %v3774 = vld [vmem:[#allocation4 + $0xe8] sm:$0xff]
      %v3775 = vld [vmem:[#allocation4 + $0xf0] sm:$0xff]
      %v3776 = vld [vmem:[#allocation4 + $0xf8] sm:$0xff]
      %v3777 = vld [vmem:[%s2] sm:$0x1]
      %v3779 = vlaneseq
      %v3780 = vshrl.u32 %v3779, 7
      %v3781 = vsub.s32 0, %v3780
      %v3782 = vrot.slane %v3777, %v3781
      %v3784 = vmul.f32 %v3745, %v3782
      %v3785 = vmul.f32 %v3746, %v3782
      %v3786 = vmul.f32 %v3747, %v3782
      %v3787 = vmul.f32 %v3748, %v3782
      %v3788 = vmul.f32 %v3749, %v3782
      %v3789 = vmul.f32 %v3750, %v3782
      %v3790 = vmul.f32 %v3751, %v3782
      %v3791 = vmul.f32 %v3752, %v3782
      %v3792 = vmul.f32 %v3753, %v3782
      %v3793 = vmul.f32 %v3754, %v3782
      %v3794 = vmul.f32 %v3755, %v3782
      %v3795 = vmul.f32 %v3756, %v3782
      %v3796 = vmul.f32 %v3757, %v3782
      %v3797 = vmul.f32 %v3758, %v3782
      %v3798 = vmul.f32 %v3759, %v3782
      %v3799 = vmul.f32 %v3760, %v3782
      %v3800 = vmul.f32 %v3761, %v3782
      %v3801 = vmul.f32 %v3762, %v3782
      %v3802 = vmul.f32 %v3763, %v3782
      %v3803 = vmul.f32 %v3764, %v3782
      %v3804 = vmul.f32 %v3765, %v3782
      %v3805 = vmul.f32 %v3766, %v3782
      %v3806 = vmul.f32 %v3767, %v3782
      %v3807 = vmul.f32 %v3768, %v3782
      %v3808 = vmul.f32 %v3769, %v3782
      %v3809 = vmul.f32 %v3770, %v3782
      %v3810 = vmul.f32 %v3771, %v3782
      %v3811 = vmul.f32 %v3772, %v3782
      %v3812 = vmul.f32 %v3773, %v3782
      %v3813 = vmul.f32 %v3774, %v3782
      %v3814 = vmul.f32 %v3775, %v3782
      %v3815 = vmul.f32 %v3776, %v3782
      %v3816 = vld [vmem:[%s3] sm:$0x1]
      %v3818 = vlaneseq
      %v3819 = vshrl.u32 %v3818, 7
      %v3820 = vsub.s32 0, %v3819
      %v3821 = vrot.slane %v3816, %v3820
      %v3823 = vadd.f32 %v3784, %v3821
      %v3824 = vadd.f32 %v3785, %v3821
      %v3825 = vadd.f32 %v3786, %v3821
      %v3826 = vadd.f32 %v3787, %v3821
      %v3827 = vadd.f32 %v3788, %v3821
      %v3828 = vadd.f32 %v3789, %v3821
      %v3829 = vadd.f32 %v3790, %v3821
      %v3830 = vadd.f32 %v3791, %v3821
      %v3831 = vadd.f32 %v3792, %v3821
      %v3832 = vadd.f32 %v3793, %v3821
      %v3833 = vadd.f32 %v3794, %v3821
      %v3834 = vadd.f32 %v3795, %v3821
      %v3835 = vadd.f32 %v3796, %v3821
      %v3836 = vadd.f32 %v3797, %v3821
      %v3837 = vadd.f32 %v3798, %v3821
      %v3838 = vadd.f32 %v3799, %v3821
      %v3839 = vadd.f32 %v3800, %v3821
      %v3840 = vadd.f32 %v3801, %v3821
      %v3841 = vadd.f32 %v3802, %v3821
      %v3842 = vadd.f32 %v3803, %v3821
      %v3843 = vadd.f32 %v3804, %v3821
      %v3844 = vadd.f32 %v3805, %v3821
      %v3845 = vadd.f32 %v3806, %v3821
      %v3846 = vadd.f32 %v3807, %v3821
      %v3847 = vadd.f32 %v3808, %v3821
      %v3848 = vadd.f32 %v3809, %v3821
      %v3849 = vadd.f32 %v3810, %v3821
      %v3850 = vadd.f32 %v3811, %v3821
      %v3851 = vadd.f32 %v3812, %v3821
      %v3852 = vadd.f32 %v3813, %v3821
      %v3853 = vadd.f32 %v3814, %v3821
      %v3854 = vadd.f32 %v3815, %v3821
      %v3855 = vmax.f32 %v3823, 0.0
      %v3856 = vmax.f32 %v3824, 0.0
      %v3857 = vmax.f32 %v3825, 0.0
      %v3858 = vmax.f32 %v3826, 0.0
      %v3859 = vmax.f32 %v3827, 0.0
      %v3860 = vmax.f32 %v3828, 0.0
      %v3861 = vmax.f32 %v3829, 0.0
      %v3862 = vmax.f32 %v3830, 0.0
      %v3863 = vmax.f32 %v3831, 0.0
      %v3864 = vmax.f32 %v3832, 0.0
      %v3865 = vmax.f32 %v3833, 0.0
      %v3866 = vmax.f32 %v3834, 0.0
      %v3867 = vmax.f32 %v3835, 0.0
      %v3868 = vmax.f32 %v3836, 0.0
      %v3869 = vmax.f32 %v3837, 0.0
      %v3870 = vmax.f32 %v3838, 0.0
      %v3871 = vmax.f32 %v3839, 0.0
      %v3872 = vmax.f32 %v3840, 0.0
      %v3873 = vmax.f32 %v3841, 0.0
      %v3874 = vmax.f32 %v3842, 0.0
      %v3875 = vmax.f32 %v3843, 0.0
      %v3876 = vmax.f32 %v3844, 0.0
      %v3877 = vmax.f32 %v3845, 0.0
      %v3878 = vmax.f32 %v3846, 0.0
      %v3879 = vmax.f32 %v3847, 0.0
      %v3880 = vmax.f32 %v3848, 0.0
      %v3881 = vmax.f32 %v3849, 0.0
      %v3882 = vmax.f32 %v3850, 0.0
      %v3883 = vmax.f32 %v3851, 0.0
      %v3884 = vmax.f32 %v3852, 0.0
      %v3885 = vmax.f32 %v3853, 0.0
      %v3886 = vmax.f32 %v3854, 0.0
      %s3887 = scalar_lea.vmem [#allocation3], 32
      %3888 = vst [vmem:[%s3887 + $0x8] sm:$0xff] %v3855
      %3889 = vst [vmem:[%s3887 + $0x10] sm:$0xff] %v3856
      %3890 = vst [vmem:[%s3887 + $0x28] sm:$0xff] %v3857
      %3891 = vst [vmem:[%s3887 + $0x30] sm:$0xff] %v3858
      %3892 = vst [vmem:[%s3887 + $0x48] sm:$0xff] %v3859
      %3893 = vst [vmem:[%s3887 + $0x50] sm:$0xff] %v3860
      %3894 = vst [vmem:[%s3887 + $0x68] sm:$0xff] %v3861
      %3895 = vst [vmem:[%s3887 + $0x70] sm:$0xff] %v3862
      %3896 = vst [vmem:[%s3887 + $0x88] sm:$0xff] %v3863
      %3897 = vst [vmem:[%s3887 + $0x90] sm:$0xff] %v3864
      %3898 = vst [vmem:[%s3887 + $0xa8] sm:$0xff] %v3865
      %3899 = vst [vmem:[%s3887 + $0xb0] sm:$0xff] %v3866
      %3900 = vst [vmem:[%s3887 + $0xc8] sm:$0xff] %v3867
      %3901 = vst [vmem:[%s3887 + $0xd0] sm:$0xff] %v3868
      %3902 = vst [vmem:[%s3887 + $0xe8] sm:$0xff] %v3869
      %3903 = vst [vmem:[%s3887 + $0xf0] sm:$0xff] %v3870
      %3904 = vst [vmem:[%s3887 + $0x108] sm:$0xff] %v3871
      %3905 = vst [vmem:[%s3887 + $0x110] sm:$0xff] %v3872
      %3906 = vst [vmem:[%s3887 + $0x128] sm:$0xff] %v3873
      %3907 = vst [vmem:[%s3887 + $0x130] sm:$0xff] %v3874
      %3908 = vst [vmem:[%s3887 + $0x148] sm:$0xff] %v3875
      %3909 = vst [vmem:[%s3887 + $0x150] sm:$0xff] %v3876
      %3910 = vst [vmem:[%s3887 + $0x168] sm:$0xff] %v3877
      %3911 = vst [vmem:[%s3887 + $0x170] sm:$0xff] %v3878
      %3912 = vst [vmem:[%s3887 + $0x188] sm:$0xff] %v3879
      %3913 = vst [vmem:[%s3887 + $0x190] sm:$0xff] %v3880
      %3914 = vst [vmem:[%s3887 + $0x1a8] sm:$0xff] %v3881
      %3915 = vst [vmem:[%s3887 + $0x1b0] sm:$0xff] %v3882
      %3916 = vst [vmem:[%s3887 + $0x1c8] sm:$0xff] %v3883
      %3917 = vst [vmem:[%s3887 + $0x1d0] sm:$0xff] %v3884
      %3918 = vst [vmem:[%s3887 + $0x1e8] sm:$0xff] %v3885
      %3919 = vst [vmem:[%s3887 + $0x1f0] sm:$0xff] %v3886
      %v3920 = vld [vmem:[#allocation3 + $0x7] sm:$0xff]
      %v3921 = vld [vmem:[#allocation3 + $0xf] sm:$0xff]
      %v3922 = vld [vmem:[#allocation3 + $0x27] sm:$0xff]
      %v3923 = vld [vmem:[#allocation3 + $0x2f] sm:$0xff]
      %v3924 = vld [vmem:[#allocation3 + $0x47] sm:$0xff]
      %v3925 = vld [vmem:[#allocation3 + $0x4f] sm:$0xff]
      %v3926 = vld [vmem:[#allocation3 + $0x67] sm:$0xff]
      %v3927 = vld [vmem:[#allocation3 + $0x6f] sm:$0xff]
      %v3928 = vld [vmem:[#allocation3 + $0x87] sm:$0xff]
      %v3929 = vld [vmem:[#allocation3 + $0x8f] sm:$0xff]
      %v3930 = vld [vmem:[#allocation3 + $0xa7] sm:$0xff]
      %v3931 = vld [vmem:[#allocation3 + $0xaf] sm:$0xff]
      %v3932 = vld [vmem:[#allocation3 + $0xc7] sm:$0xff]
      %v3933 = vld [vmem:[#allocation3 + $0xcf] sm:$0xff]
      %v3934 = vld [vmem:[#allocation3 + $0xe7] sm:$0xff]
      %v3935 = vld [vmem:[#allocation3 + $0xef] sm:$0xff]
      %v3936 = vld [vmem:[#allocation3 + $0x107] sm:$0xff]
      %v3937 = vld [vmem:[#allocation3 + $0x10f] sm:$0xff]
      %v3938 = vld [vmem:[#allocation3 + $0x127] sm:$0xff]
      %v3939 = vld [vmem:[#allocation3 + $0x12f] sm:$0xff]
      %v3940 = vld [vmem:[#allocation3 + $0x147] sm:$0xff]
      %v3941 = vld [vmem:[#allocation3 + $0x14f] sm:$0xff]
      %v3942 = vld [vmem:[#allocation3 + $0x167] sm:$0xff]
      %v3943 = vld [vmem:[#allocation3 + $0x16f] sm:$0xff]
      %v3944 = vld [vmem:[#allocation3 + $0x187] sm:$0xff]
      %v3945 = vld [vmem:[#allocation3 + $0x18f] sm:$0xff]
      %v3946 = vld [vmem:[#allocation3 + $0x1a7] sm:$0xff]
      %v3947 = vld [vmem:[#allocation3 + $0x1af] sm:$0xff]
      %v3948 = vld [vmem:[#allocation3 + $0x1c7] sm:$0xff]
      %v3949 = vld [vmem:[#allocation3 + $0x1cf] sm:$0xff]
      %v3950 = vld [vmem:[#allocation3 + $0x1e7] sm:$0xff]
      %v3951 = vld [vmem:[#allocation3 + $0x1ef] sm:$0xff]
      %v3952 = vpack.c.bf16 %v3921, %v3920
      %v3953 = vpack.c.bf16 %v3923, %v3922
      %v3954 = vpack.c.bf16 %v3925, %v3924
      %v3955 = vpack.c.bf16 %v3927, %v3926
      %v3956 = vpack.c.bf16 %v3929, %v3928
      %v3957 = vpack.c.bf16 %v3931, %v3930
      %v3958 = vpack.c.bf16 %v3933, %v3932
      %v3959 = vpack.c.bf16 %v3935, %v3934
      %v3960 = vpack.c.bf16 %v3937, %v3936
      %v3961 = vpack.c.bf16 %v3939, %v3938
      %v3962 = vpack.c.bf16 %v3941, %v3940
      %v3963 = vpack.c.bf16 %v3943, %v3942
      %v3964 = vpack.c.bf16 %v3945, %v3944
      %v3965 = vpack.c.bf16 %v3947, %v3946
      %v3966 = vpack.c.bf16 %v3949, %v3948
      %v3967 = vpack.c.bf16 %v3951, %v3950
      %3968 = vst [vmem:[#allocation5] sm:$0xff] %v3952
      %3969 = vst [vmem:[#allocation5 + $0x48] sm:$0xff] %v3953
      %3970 = vst [vmem:[#allocation5 + $0x90] sm:$0xff] %v3954
      %3971 = vst [vmem:[#allocation5 + $0xd8] sm:$0xff] %v3955
      %3972 = vst [vmem:[#allocation5 + $0x120] sm:$0xff] %v3956
      %3973 = vst [vmem:[#allocation5 + $0x168] sm:$0xff] %v3957
      %3974 = vst [vmem:[#allocation5 + $0x1b0] sm:$0xff] %v3958
      %3975 = vst [vmem:[#allocation5 + $0x1f8] sm:$0xff] %v3959
      %3976 = vst [vmem:[#allocation5 + $0x240] sm:$0xff] %v3960
      %3977 = vst [vmem:[#allocation5 + $0x288] sm:$0xff] %v3961
      %3978 = vst [vmem:[#allocation5 + $0x2d0] sm:$0xff] %v3962
      %3979 = vst [vmem:[#allocation5 + $0x318] sm:$0xff] %v3963
      %3980 = vst [vmem:[#allocation5 + $0x360] sm:$0xff] %v3964
      %3981 = vst [vmem:[#allocation5 + $0x3a8] sm:$0xff] %v3965
      %3982 = vst [vmem:[#allocation5 + $0x3f0] sm:$0xff] %v3966
      %3983 = vst [vmem:[#allocation5 + $0x438] sm:$0xff] %v3967
      %v3984 = vld [vmem:[#allocation3 + $0x8] sm:$0xff]
      %v3985 = vld [vmem:[#allocation3 + $0x10] sm:$0xff]
      %v3986 = vld [vmem:[#allocation3 + $0x28] sm:$0xff]
      %v3987 = vld [vmem:[#allocation3 + $0x30] sm:$0xff]
      %v3988 = vld [vmem:[#allocation3 + $0x48] sm:$0xff]
      %v3989 = vld [vmem:[#allocation3 + $0x50] sm:$0xff]
      %v3990 = vld [vmem:[#allocation3 + $0x68] sm:$0xff]
      %v3991 = vld [vmem:[#allocation3 + $0x70] sm:$0xff]
      %v3992 = vld [vmem:[#allocation3 + $0x88] sm:$0xff]
      %v3993 = vld [vmem:[#allocation3 + $0x90] sm:$0xff]
      %v3994 = vld [vmem:[#allocation3 + $0xa8] sm:$0xff]
      %v3995 = vld [vmem:[#allocation3 + $0xb0] sm:$0xff]
      %v3996 = vld [vmem:[#allocation3 + $0xc8] sm:$0xff]
      %v3997 = vld [vmem:[#allocation3 + $0xd0] sm:$0xff]
      %v3998 = vld [vmem:[#allocation3 + $0xe8] sm:$0xff]
      %v3999 = vld [vmem:[#allocation3 + $0xf0] sm:$0xff]
      %v4000 = vld [vmem:[#allocation3 + $0x108] sm:$0xff]
      %v4001 = vld [vmem:[#allocation3 + $0x110] sm:$0xff]
      %v4002 = vld [vmem:[#allocation3 + $0x128] sm:$0xff]
      %v4003 = vld [vmem:[#allocation3 + $0x130] sm:$0xff]
      %v4004 = vld [vmem:[#allocation3 + $0x148] sm:$0xff]
      %v4005 = vld [vmem:[#allocation3 + $0x150] sm:$0xff]
      %v4006 = vld [vmem:[#allocation3 + $0x168] sm:$0xff]
      %v4007 = vld [vmem:[#allocation3 + $0x170] sm:$0xff]
      %v4008 = vld [vmem:[#allocation3 + $0x188] sm:$0xff]
      %v4009 = vld [vmem:[#allocation3 + $0x190] sm:$0xff]
      %v4010 = vld [vmem:[#allocation3 + $0x1a8] sm:$0xff]
      %v4011 = vld [vmem:[#allocation3 + $0x1b0] sm:$0xff]
      %v4012 = vld [vmem:[#allocation3 + $0x1c8] sm:$0xff]
      %v4013 = vld [vmem:[#allocation3 + $0x1d0] sm:$0xff]
      %v4014 = vld [vmem:[#allocation3 + $0x1e8] sm:$0xff]
      %v4015 = vld [vmem:[#allocation3 + $0x1f0] sm:$0xff]
      %v4016 = vpack.c.bf16 %v3985, %v3984
      %v4017 = vpack.c.bf16 %v3987, %v3986
      %v4018 = vpack.c.bf16 %v3989, %v3988
      %v4019 = vpack.c.bf16 %v3991, %v3990
      %v4020 = vpack.c.bf16 %v3993, %v3992
      %v4021 = vpack.c.bf16 %v3995, %v3994
      %v4022 = vpack.c.bf16 %v3997, %v3996
      %v4023 = vpack.c.bf16 %v3999, %v3998
      %v4024 = vpack.c.bf16 %v4001, %v4000
      %v4025 = vpack.c.bf16 %v4003, %v4002
      %v4026 = vpack.c.bf16 %v4005, %v4004
      %v4027 = vpack.c.bf16 %v4007, %v4006
      %v4028 = vpack.c.bf16 %v4009, %v4008
      %v4029 = vpack.c.bf16 %v4011, %v4010
      %v4030 = vpack.c.bf16 %v4013, %v4012
      %v4031 = vpack.c.bf16 %v4015, %v4014
      %4032 = vst [vmem:[#allocation5 + $0x8] sm:$0xff] %v4016
      %4033 = vst [vmem:[#allocation5 + $0x50] sm:$0xff] %v4017
      %4034 = vst [vmem:[#allocation5 + $0x98] sm:$0xff] %v4018
      %4035 = vst [vmem:[#allocation5 + $0xe0] sm:$0xff] %v4019
      %4036 = vst [vmem:[#allocation5 + $0x128] sm:$0xff] %v4020
      %4037 = vst [vmem:[#allocation5 + $0x170] sm:$0xff] %v4021
      %4038 = vst [vmem:[#allocation5 + $0x1b8] sm:$0xff] %v4022
      %4039 = vst [vmem:[#allocation5 + $0x200] sm:$0xff] %v4023
      %4040 = vst [vmem:[#allocation5 + $0x248] sm:$0xff] %v4024
      %4041 = vst [vmem:[#allocation5 + $0x290] sm:$0xff] %v4025
      %4042 = vst [vmem:[#allocation5 + $0x2d8] sm:$0xff] %v4026
      %4043 = vst [vmem:[#allocation5 + $0x320] sm:$0xff] %v4027
      %4044 = vst [vmem:[#allocation5 + $0x368] sm:$0xff] %v4028
      %4045 = vst [vmem:[#allocation5 + $0x3b0] sm:$0xff] %v4029
      %4046 = vst [vmem:[#allocation5 + $0x3f8] sm:$0xff] %v4030
      %4047 = vst [vmem:[#allocation5 + $0x440] sm:$0xff] %v4031
      %v4048 = vld [vmem:[#allocation3 + $0x9] sm:$0xff]
      %v4049 = vld [vmem:[#allocation3 + $0x11] sm:$0xff]
      %v4050 = vld [vmem:[#allocation3 + $0x29] sm:$0xff]
      %v4051 = vld [vmem:[#allocation3 + $0x31] sm:$0xff]
      %v4052 = vld [vmem:[#allocation3 + $0x49] sm:$0xff]
      %v4053 = vld [vmem:[#allocation3 + $0x51] sm:$0xff]
      %v4054 = vld [vmem:[#allocation3 + $0x69] sm:$0xff]
      %v4055 = vld [vmem:[#allocation3 + $0x71] sm:$0xff]
      %v4056 = vld [vmem:[#allocation3 + $0x89] sm:$0xff]
      %v4057 = vld [vmem:[#allocation3 + $0x91] sm:$0xff]
      %v4058 = vld [vmem:[#allocation3 + $0xa9] sm:$0xff]
      %v4059 = vld [vmem:[#allocation3 + $0xb1] sm:$0xff]
      %v4060 = vld [vmem:[#allocation3 + $0xc9] sm:$0xff]
      %v4061 = vld [vmem:[#allocation3 + $0xd1] sm:$0xff]
      %v4062 = vld [vmem:[#allocation3 + $0xe9] sm:$0xff]
      %v4063 = vld [vmem:[#allocation3 + $0xf1] sm:$0xff]
      %v4064 = vld [vmem:[#allocation3 + $0x109] sm:$0xff]
      %v4065 = vld [vmem:[#allocation3 + $0x111] sm:$0xff]
      %v4066 = vld [vmem:[#allocation3 + $0x129] sm:$0xff]
      %v4067 = vld [vmem:[#allocation3 + $0x131] sm:$0xff]
      %v4068 = vld [vmem:[#allocation3 + $0x149] sm:$0xff]
      %v4069 = vld [vmem:[#allocation3 + $0x151] sm:$0xff]
      %v4070 = vld [vmem:[#allocation3 + $0x169] sm:$0xff]
      %v4071 = vld [vmem:[#allocation3 + $0x171] sm:$0xff]
      %v4072 = vld [vmem:[#allocation3 + $0x189] sm:$0xff]
      %v4073 = vld [vmem:[#allocation3 + $0x191] sm:$0xff]
      %v4074 = vld [vmem:[#allocation3 + $0x1a9] sm:$0xff]
      %v4075 = vld [vmem:[#allocation3 + $0x1b1] sm:$0xff]
      %v4076 = vld [vmem:[#allocation3 + $0x1c9] sm:$0xff]
      %v4077 = vld [vmem:[#allocation3 + $0x1d1] sm:$0xff]
      %v4078 = vld [vmem:[#allocation3 + $0x1e9] sm:$0xff]
      %v4079 = vld [vmem:[#allocation3 + $0x1f1] sm:$0xff]
      %v4080 = vpack.c.bf16 %v4049, %v4048
      %v4081 = vpack.c.bf16 %v4051, %v4050
      %v4082 = vpack.c.bf16 %v4053, %v4052
      %v4083 = vpack.c.bf16 %v4055, %v4054
      %v4084 = vpack.c.bf16 %v4057, %v4056
      %v4085 = vpack.c.bf16 %v4059, %v4058
      %v4086 = vpack.c.bf16 %v4061, %v4060
      %v4087 = vpack.c.bf16 %v4063, %v4062
      %v4088 = vpack.c.bf16 %v4065, %v4064
      %v4089 = vpack.c.bf16 %v4067, %v4066
      %v4090 = vpack.c.bf16 %v4069, %v4068
      %v4091 = vpack.c.bf16 %v4071, %v4070
      %v4092 = vpack.c.bf16 %v4073, %v4072
      %v4093 = vpack.c.bf16 %v4075, %v4074
      %v4094 = vpack.c.bf16 %v4077, %v4076
      %v4095 = vpack.c.bf16 %v4079, %v4078
      %4096 = vst [vmem:[#allocation5 + $0x10] sm:$0xff] %v4080
      %4097 = vst [vmem:[#allocation5 + $0x58] sm:$0xff] %v4081
      %4098 = vst [vmem:[#allocation5 + $0xa0] sm:$0xff] %v4082
      %4099 = vst [vmem:[#allocation5 + $0xe8] sm:$0xff] %v4083
      %4100 = vst [vmem:[#allocation5 + $0x130] sm:$0xff] %v4084
      %4101 = vst [vmem:[#allocation5 + $0x178] sm:$0xff] %v4085
      %4102 = vst [vmem:[#allocation5 + $0x1c0] sm:$0xff] %v4086
      %4103 = vst [vmem:[#allocation5 + $0x208] sm:$0xff] %v4087
      %4104 = vst [vmem:[#allocation5 + $0x250] sm:$0xff] %v4088
      %4105 = vst [vmem:[#allocation5 + $0x298] sm:$0xff] %v4089
      %4106 = vst [vmem:[#allocation5 + $0x2e0] sm:$0xff] %v4090
      %4107 = vst [vmem:[#allocation5 + $0x328] sm:$0xff] %v4091
      %4108 = vst [vmem:[#allocation5 + $0x370] sm:$0xff] %v4092
      %4109 = vst [vmem:[#allocation5 + $0x3b8] sm:$0xff] %v4093
      %4110 = vst [vmem:[#allocation5 + $0x400] sm:$0xff] %v4094
      %4111 = vst [vmem:[#allocation5 + $0x448] sm:$0xff] %v4095
      %v4112 = vld [vmem:[%s3887 + $0x7] sm:$0xff]
      %v4113 = vld [vmem:[%s3887 + $0xf] sm:$0xff]
      %v4114 = vld [vmem:[%s3887 + $0x27] sm:$0xff]
      %v4115 = vld [vmem:[%s3887 + $0x2f] sm:$0xff]
      %v4116 = vld [vmem:[%s3887 + $0x47] sm:$0xff]
      %v4117 = vld [vmem:[%s3887 + $0x4f] sm:$0xff]
      %v4118 = vld [vmem:[%s3887 + $0x67] sm:$0xff]
      %v4119 = vld [vmem:[%s3887 + $0x6f] sm:$0xff]
      %v4120 = vld [vmem:[%s3887 + $0x87] sm:$0xff]
      %v4121 = vld [vmem:[%s3887 + $0x8f] sm:$0xff]
      %v4122 = vld [vmem:[%s3887 + $0xa7] sm:$0xff]
      %v4123 = vld [vmem:[%s3887 + $0xaf] sm:$0xff]
      %v4124 = vld [vmem:[%s3887 + $0xc7] sm:$0xff]
      %v4125 = vld [vmem:[%s3887 + $0xcf] sm:$0xff]
      %v4126 = vld [vmem:[%s3887 + $0xe7] sm:$0xff]
      %v4127 = vld [vmem:[%s3887 + $0xef] sm:$0xff]
      %v4128 = vld [vmem:[%s3887 + $0x107] sm:$0xff]
      %v4129 = vld [vmem:[%s3887 + $0x10f] sm:$0xff]
      %v4130 = vld [vmem:[%s3887 + $0x127] sm:$0xff]
      %v4131 = vld [vmem:[%s3887 + $0x12f] sm:$0xff]
      %v4132 = vld [vmem:[%s3887 + $0x147] sm:$0xff]
      %v4133 = vld [vmem:[%s3887 + $0x14f] sm:$0xff]
      %v4134 = vld [vmem:[%s3887 + $0x167] sm:$0xff]
      %v4135 = vld [vmem:[%s3887 + $0x16f] sm:$0xff]
      %v4136 = vld [vmem:[%s3887 + $0x187] sm:$0xff]
      %v4137 = vld [vmem:[%s3887 + $0x18f] sm:$0xff]
      %v4138 = vld [vmem:[%s3887 + $0x1a7] sm:$0xff]
      %v4139 = vld [vmem:[%s3887 + $0x1af] sm:$0xff]
      %v4140 = vld [vmem:[%s3887 + $0x1c7] sm:$0xff]
      %v4141 = vld [vmem:[%s3887 + $0x1cf] sm:$0xff]
      %v4142 = vld [vmem:[%s3887 + $0x1e7] sm:$0xff]
      %v4143 = vld [vmem:[%s3887 + $0x1ef] sm:$0xff]
      %v4144 = vpack.c.bf16 %v4113, %v4112
      %v4145 = vpack.c.bf16 %v4115, %v4114
      %v4146 = vpack.c.bf16 %v4117, %v4116
      %v4147 = vpack.c.bf16 %v4119, %v4118
      %v4148 = vpack.c.bf16 %v4121, %v4120
      %v4149 = vpack.c.bf16 %v4123, %v4122
      %v4150 = vpack.c.bf16 %v4125, %v4124
      %v4151 = vpack.c.bf16 %v4127, %v4126
      %v4152 = vpack.c.bf16 %v4129, %v4128
      %v4153 = vpack.c.bf16 %v4131, %v4130
      %v4154 = vpack.c.bf16 %v4133, %v4132
      %v4155 = vpack.c.bf16 %v4135, %v4134
      %v4156 = vpack.c.bf16 %v4137, %v4136
      %v4157 = vpack.c.bf16 %v4139, %v4138
      %v4158 = vpack.c.bf16 %v4141, %v4140
      %v4159 = vpack.c.bf16 %v4143, %v4142
      %4160 = vst [vmem:[#allocation5 + $0x18] sm:$0xff] %v4144
      %4161 = vst [vmem:[#allocation5 + $0x60] sm:$0xff] %v4145
      %4162 = vst [vmem:[#allocation5 + $0xa8] sm:$0xff] %v4146
      %4163 = vst [vmem:[#allocation5 + $0xf0] sm:$0xff] %v4147
      %4164 = vst [vmem:[#allocation5 + $0x138] sm:$0xff] %v4148
      %4165 = vst [vmem:[#allocation5 + $0x180] sm:$0xff] %v4149
      %4166 = vst [vmem:[#allocation5 + $0x1c8] sm:$0xff] %v4150
      %4167 = vst [vmem:[#allocation5 + $0x210] sm:$0xff] %v4151
      %4168 = vst [vmem:[#allocation5 + $0x258] sm:$0xff] %v4152
      %4169 = vst [vmem:[#allocation5 + $0x2a0] sm:$0xff] %v4153
      %4170 = vst [vmem:[#allocation5 + $0x2e8] sm:$0xff] %v4154
      %4171 = vst [vmem:[#allocation5 + $0x330] sm:$0xff] %v4155
      %4172 = vst [vmem:[#allocation5 + $0x378] sm:$0xff] %v4156
      %4173 = vst [vmem:[#allocation5 + $0x3c0] sm:$0xff] %v4157
      %4174 = vst [vmem:[#allocation5 + $0x408] sm:$0xff] %v4158
      %4175 = vst [vmem:[#allocation5 + $0x450] sm:$0xff] %v4159
      %v4176 = vld [vmem:[%s3887 + $0x8] sm:$0xff]
      %v4177 = vld [vmem:[%s3887 + $0x10] sm:$0xff]
      %v4178 = vld [vmem:[%s3887 + $0x28] sm:$0xff]
      %v4179 = vld [vmem:[%s3887 + $0x30] sm:$0xff]
      %v4180 = vld [vmem:[%s3887 + $0x48] sm:$0xff]
      %v4181 = vld [vmem:[%s3887 + $0x50] sm:$0xff]
      %v4182 = vld [vmem:[%s3887 + $0x68] sm:$0xff]
      %v4183 = vld [vmem:[%s3887 + $0x70] sm:$0xff]
      %v4184 = vld [vmem:[%s3887 + $0x88] sm:$0xff]
      %v4185 = vld [vmem:[%s3887 + $0x90] sm:$0xff]
      %v4186 = vld [vmem:[%s3887 + $0xa8] sm:$0xff]
      %v4187 = vld [vmem:[%s3887 + $0xb0] sm:$0xff]
      %v4188 = vld [vmem:[%s3887 + $0xc8] sm:$0xff]
      %v4189 = vld [vmem:[%s3887 + $0xd0] sm:$0xff]
      %v4190 = vld [vmem:[%s3887 + $0xe8] sm:$0xff]
      %v4191 = vld [vmem:[%s3887 + $0xf0] sm:$0xff]
      %v4192 = vld [vmem:[%s3887 + $0x108] sm:$0xff]
      %v4193 = vld [vmem:[%s3887 + $0x110] sm:$0xff]
      %v4194 = vld [vmem:[%s3887 + $0x128] sm:$0xff]
      %v4195 = vld [vmem:[%s3887 + $0x130] sm:$0xff]
      %v4196 = vld [vmem:[%s3887 + $0x148] sm:$0xff]
      %v4197 = vld [vmem:[%s3887 + $0x150] sm:$0xff]
      %v4198 = vld [vmem:[%s3887 + $0x168] sm:$0xff]
      %v4199 = vld [vmem:[%s3887 + $0x170] sm:$0xff]
      %v4200 = vld [vmem:[%s3887 + $0x188] sm:$0xff]
      %v4201 = vld [vmem:[%s3887 + $0x190] sm:$0xff]
      %v4202 = vld [vmem:[%s3887 + $0x1a8] sm:$0xff]
      %v4203 = vld [vmem:[%s3887 + $0x1b0] sm:$0xff]
      %v4204 = vld [vmem:[%s3887 + $0x1c8] sm:$0xff]
      %v4205 = vld [vmem:[%s3887 + $0x1d0] sm:$0xff]
      %v4206 = vld [vmem:[%s3887 + $0x1e8] sm:$0xff]
      %v4207 = vld [vmem:[%s3887 + $0x1f0] sm:$0xff]
      %v4208 = vpack.c.bf16 %v4177, %v4176
      %v4209 = vpack.c.bf16 %v4179, %v4178
      %v4210 = vpack.c.bf16 %v4181, %v4180
      %v4211 = vpack.c.bf16 %v4183, %v4182
      %v4212 = vpack.c.bf16 %v4185, %v4184
      %v4213 = vpack.c.bf16 %v4187, %v4186
      %v4214 = vpack.c.bf16 %v4189, %v4188
      %v4215 = vpack.c.bf16 %v4191, %v4190
      %v4216 = vpack.c.bf16 %v4193, %v4192
      %v4217 = vpack.c.bf16 %v4195, %v4194
      %v4218 = vpack.c.bf16 %v4197, %v4196
      %v4219 = vpack.c.bf16 %v4199, %v4198
      %v4220 = vpack.c.bf16 %v4201, %v4200
      %v4221 = vpack.c.bf16 %v4203, %v4202
      %v4222 = vpack.c.bf16 %v4205, %v4204
      %v4223 = vpack.c.bf16 %v4207, %v4206
      %4224 = vst [vmem:[#allocation5 + $0x20] sm:$0xff] %v4208
      %4225 = vst [vmem:[#allocation5 + $0x68] sm:$0xff] %v4209
      %4226 = vst [vmem:[#allocation5 + $0xb0] sm:$0xff] %v4210
      %4227 = vst [vmem:[#allocation5 + $0xf8] sm:$0xff] %v4211
      %4228 = vst [vmem:[#allocation5 + $0x140] sm:$0xff] %v4212
      %4229 = vst [vmem:[#allocation5 + $0x188] sm:$0xff] %v4213
      %4230 = vst [vmem:[#allocation5 + $0x1d0] sm:$0xff] %v4214
      %4231 = vst [vmem:[#allocation5 + $0x218] sm:$0xff] %v4215
      %4232 = vst [vmem:[#allocation5 + $0x260] sm:$0xff] %v4216
      %4233 = vst [vmem:[#allocation5 + $0x2a8] sm:$0xff] %v4217
      %4234 = vst [vmem:[#allocation5 + $0x2f0] sm:$0xff] %v4218
      %4235 = vst [vmem:[#allocation5 + $0x338] sm:$0xff] %v4219
      %4236 = vst [vmem:[#allocation5 + $0x380] sm:$0xff] %v4220
      %4237 = vst [vmem:[#allocation5 + $0x3c8] sm:$0xff] %v4221
      %4238 = vst [vmem:[#allocation5 + $0x410] sm:$0xff] %v4222
      %4239 = vst [vmem:[#allocation5 + $0x458] sm:$0xff] %v4223
      %v4240 = vld [vmem:[%s3887 + $0x9] sm:$0xff]
      %v4241 = vld [vmem:[%s3887 + $0x11] sm:$0xff]
      %v4242 = vld [vmem:[%s3887 + $0x29] sm:$0xff]
      %v4243 = vld [vmem:[%s3887 + $0x31] sm:$0xff]
      %v4244 = vld [vmem:[%s3887 + $0x49] sm:$0xff]
      %v4245 = vld [vmem:[%s3887 + $0x51] sm:$0xff]
      %v4246 = vld [vmem:[%s3887 + $0x69] sm:$0xff]
      %v4247 = vld [vmem:[%s3887 + $0x71] sm:$0xff]
      %v4248 = vld [vmem:[%s3887 + $0x89] sm:$0xff]
      %v4249 = vld [vmem:[%s3887 + $0x91] sm:$0xff]
      %v4250 = vld [vmem:[%s3887 + $0xa9] sm:$0xff]
      %v4251 = vld [vmem:[%s3887 + $0xb1] sm:$0xff]
      %v4252 = vld [vmem:[%s3887 + $0xc9] sm:$0xff]
      %v4253 = vld [vmem:[%s3887 + $0xd1] sm:$0xff]
      %v4254 = vld [vmem:[%s3887 + $0xe9] sm:$0xff]
      %v4255 = vld [vmem:[%s3887 + $0xf1] sm:$0xff]
      %v4256 = vld [vmem:[%s3887 + $0x109] sm:$0xff]
      %v4257 = vld [vmem:[%s3887 + $0x111] sm:$0xff]
      %v4258 = vld [vmem:[%s3887 + $0x129] sm:$0xff]
      %v4259 = vld [vmem:[%s3887 + $0x131] sm:$0xff]
      %v4260 = vld [vmem:[%s3887 + $0x149] sm:$0xff]
      %v4261 = vld [vmem:[%s3887 + $0x151] sm:$0xff]
      %v4262 = vld [vmem:[%s3887 + $0x169] sm:$0xff]
      %v4263 = vld [vmem:[%s3887 + $0x171] sm:$0xff]
      %v4264 = vld [vmem:[%s3887 + $0x189] sm:$0xff]
      %v4265 = vld [vmem:[%s3887 + $0x191] sm:$0xff]
      %v4266 = vld [vmem:[%s3887 + $0x1a9] sm:$0xff]
      %v4267 = vld [vmem:[%s3887 + $0x1b1] sm:$0xff]
      %v4268 = vld [vmem:[%s3887 + $0x1c9] sm:$0xff]
      %v4269 = vld [vmem:[%s3887 + $0x1d1] sm:$0xff]
      %v4270 = vld [vmem:[%s3887 + $0x1e9] sm:$0xff]
      %v4271 = vld [vmem:[%s3887 + $0x1f1] sm:$0xff]
      %v4272 = vpack.c.bf16 %v4241, %v4240
      %v4273 = vpack.c.bf16 %v4243, %v4242
      %v4274 = vpack.c.bf16 %v4245, %v4244
      %v4275 = vpack.c.bf16 %v4247, %v4246
      %v4276 = vpack.c.bf16 %v4249, %v4248
      %v4277 = vpack.c.bf16 %v4251, %v4250
      %v4278 = vpack.c.bf16 %v4253, %v4252
      %v4279 = vpack.c.bf16 %v4255, %v4254
      %v4280 = vpack.c.bf16 %v4257, %v4256
      %v4281 = vpack.c.bf16 %v4259, %v4258
      %v4282 = vpack.c.bf16 %v4261, %v4260
      %v4283 = vpack.c.bf16 %v4263, %v4262
      %v4284 = vpack.c.bf16 %v4265, %v4264
      %v4285 = vpack.c.bf16 %v4267, %v4266
      %v4286 = vpack.c.bf16 %v4269, %v4268
      %v4287 = vpack.c.bf16 %v4271, %v4270
      %4288 = vst [vmem:[#allocation5 + $0x28] sm:$0xff] %v4272
      %4289 = vst [vmem:[#allocation5 + $0x70] sm:$0xff] %v4273
      %4290 = vst [vmem:[#allocation5 + $0xb8] sm:$0xff] %v4274
      %4291 = vst [vmem:[#allocation5 + $0x100] sm:$0xff] %v4275
      %4292 = vst [vmem:[#allocation5 + $0x148] sm:$0xff] %v4276
      %4293 = vst [vmem:[#allocation5 + $0x190] sm:$0xff] %v4277
      %4294 = vst [vmem:[#allocation5 + $0x1d8] sm:$0xff] %v4278
      %4295 = vst [vmem:[#allocation5 + $0x220] sm:$0xff] %v4279
      %4296 = vst [vmem:[#allocation5 + $0x268] sm:$0xff] %v4280
      %4297 = vst [vmem:[#allocation5 + $0x2b0] sm:$0xff] %v4281
      %4298 = vst [vmem:[#allocation5 + $0x2f8] sm:$0xff] %v4282
      %4299 = vst [vmem:[#allocation5 + $0x340] sm:$0xff] %v4283
      %4300 = vst [vmem:[#allocation5 + $0x388] sm:$0xff] %v4284
      %4301 = vst [vmem:[#allocation5 + $0x3d0] sm:$0xff] %v4285
      %4302 = vst [vmem:[#allocation5 + $0x418] sm:$0xff] %v4286
      %4303 = vst [vmem:[#allocation5 + $0x460] sm:$0xff] %v4287
      %s4304 = scalar_lea.vmem [#allocation3], 64
      %v4305 = vld [vmem:[%s4304 + $0x7] sm:$0xff]
      %v4306 = vld [vmem:[%s4304 + $0xf] sm:$0xff]
      %v4307 = vld [vmem:[%s4304 + $0x27] sm:$0xff]
      %v4308 = vld [vmem:[%s4304 + $0x2f] sm:$0xff]
      %v4309 = vld [vmem:[%s4304 + $0x47] sm:$0xff]
      %v4310 = vld [vmem:[%s4304 + $0x4f] sm:$0xff]
      %v4311 = vld [vmem:[%s4304 + $0x67] sm:$0xff]
      %v4312 = vld [vmem:[%s4304 + $0x6f] sm:$0xff]
      %v4313 = vld [vmem:[%s4304 + $0x87] sm:$0xff]
      %v4314 = vld [vmem:[%s4304 + $0x8f] sm:$0xff]
      %v4315 = vld [vmem:[%s4304 + $0xa7] sm:$0xff]
      %v4316 = vld [vmem:[%s4304 + $0xaf] sm:$0xff]
      %v4317 = vld [vmem:[%s4304 + $0xc7] sm:$0xff]
      %v4318 = vld [vmem:[%s4304 + $0xcf] sm:$0xff]
      %v4319 = vld [vmem:[%s4304 + $0xe7] sm:$0xff]
      %v4320 = vld [vmem:[%s4304 + $0xef] sm:$0xff]
      %v4321 = vld [vmem:[%s4304 + $0x107] sm:$0xff]
      %v4322 = vld [vmem:[%s4304 + $0x10f] sm:$0xff]
      %v4323 = vld [vmem:[%s4304 + $0x127] sm:$0xff]
      %v4324 = vld [vmem:[%s4304 + $0x12f] sm:$0xff]
      %v4325 = vld [vmem:[%s4304 + $0x147] sm:$0xff]
      %v4326 = vld [vmem:[%s4304 + $0x14f] sm:$0xff]
      %v4327 = vld [vmem:[%s4304 + $0x167] sm:$0xff]
      %v4328 = vld [vmem:[%s4304 + $0x16f] sm:$0xff]
      %v4329 = vld [vmem:[%s4304 + $0x187] sm:$0xff]
      %v4330 = vld [vmem:[%s4304 + $0x18f] sm:$0xff]
      %v4331 = vld [vmem:[%s4304 + $0x1a7] sm:$0xff]
      %v4332 = vld [vmem:[%s4304 + $0x1af] sm:$0xff]
      %v4333 = vld [vmem:[%s4304 + $0x1c7] sm:$0xff]
      %v4334 = vld [vmem:[%s4304 + $0x1cf] sm:$0xff]
      %v4335 = vld [vmem:[%s4304 + $0x1e7] sm:$0xff]
      %v4336 = vld [vmem:[%s4304 + $0x1ef] sm:$0xff]
      %v4337 = vpack.c.bf16 %v4306, %v4305
      %v4338 = vpack.c.bf16 %v4308, %v4307
      %v4339 = vpack.c.bf16 %v4310, %v4309
      %v4340 = vpack.c.bf16 %v4312, %v4311
      %v4341 = vpack.c.bf16 %v4314, %v4313
      %v4342 = vpack.c.bf16 %v4316, %v4315
      %v4343 = vpack.c.bf16 %v4318, %v4317
      %v4344 = vpack.c.bf16 %v4320, %v4319
      %v4345 = vpack.c.bf16 %v4322, %v4321
      %v4346 = vpack.c.bf16 %v4324, %v4323
      %v4347 = vpack.c.bf16 %v4326, %v4325
      %v4348 = vpack.c.bf16 %v4328, %v4327
      %v4349 = vpack.c.bf16 %v4330, %v4329
      %v4350 = vpack.c.bf16 %v4332, %v4331
      %v4351 = vpack.c.bf16 %v4334, %v4333
      %v4352 = vpack.c.bf16 %v4336, %v4335
      %4353 = vst [vmem:[#allocation5 + $0x30] sm:$0xff] %v4337
      %4354 = vst [vmem:[#allocation5 + $0x78] sm:$0xff] %v4338
      %4355 = vst [vmem:[#allocation5 + $0xc0] sm:$0xff] %v4339
      %4356 = vst [vmem:[#allocation5 + $0x108] sm:$0xff] %v4340
      %4357 = vst [vmem:[#allocation5 + $0x150] sm:$0xff] %v4341
      %4358 = vst [vmem:[#allocation5 + $0x198] sm:$0xff] %v4342
      %4359 = vst [vmem:[#allocation5 + $0x1e0] sm:$0xff] %v4343
      %4360 = vst [vmem:[#allocation5 + $0x228] sm:$0xff] %v4344
      %4361 = vst [vmem:[#allocation5 + $0x270] sm:$0xff] %v4345
      %4362 = vst [vmem:[#allocation5 + $0x2b8] sm:$0xff] %v4346
      %4363 = vst [vmem:[#allocation5 + $0x300] sm:$0xff] %v4347
      %4364 = vst [vmem:[#allocation5 + $0x348] sm:$0xff] %v4348
      %4365 = vst [vmem:[#allocation5 + $0x390] sm:$0xff] %v4349
      %4366 = vst [vmem:[#allocation5 + $0x3d8] sm:$0xff] %v4350
      %4367 = vst [vmem:[#allocation5 + $0x420] sm:$0xff] %v4351
      %4368 = vst [vmem:[#allocation5 + $0x468] sm:$0xff] %v4352
      %v4369 = vld [vmem:[%s4304 + $0x8] sm:$0xff]
      %v4370 = vld [vmem:[%s4304 + $0x10] sm:$0xff]
      %v4371 = vld [vmem:[%s4304 + $0x28] sm:$0xff]
      %v4372 = vld [vmem:[%s4304 + $0x30] sm:$0xff]
      %v4373 = vld [vmem:[%s4304 + $0x48] sm:$0xff]
      %v4374 = vld [vmem:[%s4304 + $0x50] sm:$0xff]
      %v4375 = vld [vmem:[%s4304 + $0x68] sm:$0xff]
      %v4376 = vld [vmem:[%s4304 + $0x70] sm:$0xff]
      %v4377 = vld [vmem:[%s4304 + $0x88] sm:$0xff]
      %v4378 = vld [vmem:[%s4304 + $0x90] sm:$0xff]
      %v4379 = vld [vmem:[%s4304 + $0xa8] sm:$0xff]
      %v4380 = vld [vmem:[%s4304 + $0xb0] sm:$0xff]
      %v4381 = vld [vmem:[%s4304 + $0xc8] sm:$0xff]
      %v4382 = vld [vmem:[%s4304 + $0xd0] sm:$0xff]
      %v4383 = vld [vmem:[%s4304 + $0xe8] sm:$0xff]
      %v4384 = vld [vmem:[%s4304 + $0xf0] sm:$0xff]
      %v4385 = vld [vmem:[%s4304 + $0x108] sm:$0xff]
      %v4386 = vld [vmem:[%s4304 + $0x110] sm:$0xff]
      %v4387 = vld [vmem:[%s4304 + $0x128] sm:$0xff]
      %v4388 = vld [vmem:[%s4304 + $0x130] sm:$0xff]
      %v4389 = vld [vmem:[%s4304 + $0x148] sm:$0xff]
      %v4390 = vld [vmem:[%s4304 + $0x150] sm:$0xff]
      %v4391 = vld [vmem:[%s4304 + $0x168] sm:$0xff]
      %v4392 = vld [vmem:[%s4304 + $0x170] sm:$0xff]
      %v4393 = vld [vmem:[%s4304 + $0x188] sm:$0xff]
      %v4394 = vld [vmem:[%s4304 + $0x190] sm:$0xff]
      %v4395 = vld [vmem:[%s4304 + $0x1a8] sm:$0xff]
      %v4396 = vld [vmem:[%s4304 + $0x1b0] sm:$0xff]
      %v4397 = vld [vmem:[%s4304 + $0x1c8] sm:$0xff]
      %v4398 = vld [vmem:[%s4304 + $0x1d0] sm:$0xff]
      %v4399 = vld [vmem:[%s4304 + $0x1e8] sm:$0xff]
      %v4400 = vld [vmem:[%s4304 + $0x1f0] sm:$0xff]
      %v4401 = vpack.c.bf16 %v4370, %v4369
      %v4402 = vpack.c.bf16 %v4372, %v4371
      %v4403 = vpack.c.bf16 %v4374, %v4373
      %v4404 = vpack.c.bf16 %v4376, %v4375
      %v4405 = vpack.c.bf16 %v4378, %v4377
      %v4406 = vpack.c.bf16 %v4380, %v4379
      %v4407 = vpack.c.bf16 %v4382, %v4381
      %v4408 = vpack.c.bf16 %v4384, %v4383
      %v4409 = vpack.c.bf16 %v4386, %v4385
      %v4410 = vpack.c.bf16 %v4388, %v4387
      %v4411 = vpack.c.bf16 %v4390, %v4389
      %v4412 = vpack.c.bf16 %v4392, %v4391
      %v4413 = vpack.c.bf16 %v4394, %v4393
      %v4414 = vpack.c.bf16 %v4396, %v4395
      %v4415 = vpack.c.bf16 %v4398, %v4397
      %v4416 = vpack.c.bf16 %v4400, %v4399
      %4417 = vst [vmem:[#allocation5 + $0x38] sm:$0xff] %v4401
      %4418 = vst [vmem:[#allocation5 + $0x80] sm:$0xff] %v4402
      %4419 = vst [vmem:[#allocation5 + $0xc8] sm:$0xff] %v4403
      %4420 = vst [vmem:[#allocation5 + $0x110] sm:$0xff] %v4404
      %4421 = vst [vmem:[#allocation5 + $0x158] sm:$0xff] %v4405
      %4422 = vst [vmem:[#allocation5 + $0x1a0] sm:$0xff] %v4406
      %4423 = vst [vmem:[#allocation5 + $0x1e8] sm:$0xff] %v4407
      %4424 = vst [vmem:[#allocation5 + $0x230] sm:$0xff] %v4408
      %4425 = vst [vmem:[#allocation5 + $0x278] sm:$0xff] %v4409
      %4426 = vst [vmem:[#allocation5 + $0x2c0] sm:$0xff] %v4410
      %4427 = vst [vmem:[#allocation5 + $0x308] sm:$0xff] %v4411
      %4428 = vst [vmem:[#allocation5 + $0x350] sm:$0xff] %v4412
      %4429 = vst [vmem:[#allocation5 + $0x398] sm:$0xff] %v4413
      %4430 = vst [vmem:[#allocation5 + $0x3e0] sm:$0xff] %v4414
      %4431 = vst [vmem:[#allocation5 + $0x428] sm:$0xff] %v4415
      %4432 = vst [vmem:[#allocation5 + $0x470] sm:$0xff] %v4416
      %v4433 = vld [vmem:[%s4304 + $0x9] sm:$0xff]
      %v4434 = vld [vmem:[%s4304 + $0x11] sm:$0xff]
      %v4435 = vld [vmem:[%s4304 + $0x29] sm:$0xff]
      %v4436 = vld [vmem:[%s4304 + $0x31] sm:$0xff]
      %v4437 = vld [vmem:[%s4304 + $0x49] sm:$0xff]
      %v4438 = vld [vmem:[%s4304 + $0x51] sm:$0xff]
      %v4439 = vld [vmem:[%s4304 + $0x69] sm:$0xff]
      %v4440 = vld [vmem:[%s4304 + $0x71] sm:$0xff]
      %v4441 = vld [vmem:[%s4304 + $0x89] sm:$0xff]
      %v4442 = vld [vmem:[%s4304 + $0x91] sm:$0xff]
      %v4443 = vld [vmem:[%s4304 + $0xa9] sm:$0xff]
      %v4444 = vld [vmem:[%s4304 + $0xb1] sm:$0xff]
      %v4445 = vld [vmem:[%s4304 + $0xc9] sm:$0xff]
      %v4446 = vld [vmem:[%s4304 + $0xd1] sm:$0xff]
      %v4447 = vld [vmem:[%s4304 + $0xe9] sm:$0xff]
      %v4448 = vld [vmem:[%s4304 + $0xf1] sm:$0xff]
      %v4449 = vld [vmem:[%s4304 + $0x109] sm:$0xff]
      %v4450 = vld [vmem:[%s4304 + $0x111] sm:$0xff]
      %v4451 = vld [vmem:[%s4304 + $0x129] sm:$0xff]
      %v4452 = vld [vmem:[%s4304 + $0x131] sm:$0xff]
      %v4453 = vld [vmem:[%s4304 + $0x149] sm:$0xff]
      %v4454 = vld [vmem:[%s4304 + $0x151] sm:$0xff]
      %v4455 = vld [vmem:[%s4304 + $0x169] sm:$0xff]
      %v4456 = vld [vmem:[%s4304 + $0x171] sm:$0xff]
      %v4457 = vld [vmem:[%s4304 + $0x189] sm:$0xff]
      %v4458 = vld [vmem:[%s4304 + $0x191] sm:$0xff]
      %v4459 = vld [vmem:[%s4304 + $0x1a9] sm:$0xff]
      %v4460 = vld [vmem:[%s4304 + $0x1b1] sm:$0xff]
      %v4461 = vld [vmem:[%s4304 + $0x1c9] sm:$0xff]
      %v4462 = vld [vmem:[%s4304 + $0x1d1] sm:$0xff]
      %v4463 = vld [vmem:[%s4304 + $0x1e9] sm:$0xff]
      %v4464 = vld [vmem:[%s4304 + $0x1f1] sm:$0xff]
      %v4465 = vpack.c.bf16 %v4434, %v4433
      %v4466 = vpack.c.bf16 %v4436, %v4435
      %v4467 = vpack.c.bf16 %v4438, %v4437
      %v4468 = vpack.c.bf16 %v4440, %v4439
      %v4469 = vpack.c.bf16 %v4442, %v4441
      %v4470 = vpack.c.bf16 %v4444, %v4443
      %v4471 = vpack.c.bf16 %v4446, %v4445
      %v4472 = vpack.c.bf16 %v4448, %v4447
      %v4473 = vpack.c.bf16 %v4450, %v4449
      %v4474 = vpack.c.bf16 %v4452, %v4451
      %v4475 = vpack.c.bf16 %v4454, %v4453
      %v4476 = vpack.c.bf16 %v4456, %v4455
      %v4477 = vpack.c.bf16 %v4458, %v4457
      %v4478 = vpack.c.bf16 %v4460, %v4459
      %v4479 = vpack.c.bf16 %v4462, %v4461
      %v4480 = vpack.c.bf16 %v4464, %v4463
      %4481 = vst [vmem:[#allocation5 + $0x40] sm:$0xff] %v4465
      %4482 = vst [vmem:[#allocation5 + $0x88] sm:$0xff] %v4466
      %4483 = vst [vmem:[#allocation5 + $0xd0] sm:$0xff] %v4467
      %4484 = vst [vmem:[#allocation5 + $0x118] sm:$0xff] %v4468
      %4485 = vst [vmem:[#allocation5 + $0x160] sm:$0xff] %v4469
      %4486 = vst [vmem:[#allocation5 + $0x1a8] sm:$0xff] %v4470
      %4487 = vst [vmem:[#allocation5 + $0x1f0] sm:$0xff] %v4471
      %4488 = vst [vmem:[#allocation5 + $0x238] sm:$0xff] %v4472
      %4489 = vst [vmem:[#allocation5 + $0x280] sm:$0xff] %v4473
      %4490 = vst [vmem:[#allocation5 + $0x2c8] sm:$0xff] %v4474
      %4491 = vst [vmem:[#allocation5 + $0x310] sm:$0xff] %v4475
      %4492 = vst [vmem:[#allocation5 + $0x358] sm:$0xff] %v4476
      %4493 = vst [vmem:[#allocation5 + $0x3a0] sm:$0xff] %v4477
      %4494 = vst [vmem:[#allocation5 + $0x3e8] sm:$0xff] %v4478
      %4495 = vst [vmem:[#allocation5 + $0x430] sm:$0xff] %v4479
      %4496 = vst [vmem:[#allocation5 + $0x478] sm:$0xff] %v4480
      %v4497 = vld [vmem:[%s4] sm:$0xff]
      %v4498 = vld [vmem:[%s4 + $0x8] sm:$0xff]
      %v4499 = vld [vmem:[%s4 + $0x10] sm:$0xff]
      %v4500 = vld [vmem:[%s4 + $0x18] sm:$0xff]
      %v4501 = vld [vmem:[%s4 + $0x20] sm:$0xf]
      %v4502 = vld [vmem:[%s4 + $0x24] sm:$0xff]
      %v4503 = vld [vmem:[%s4 + $0x2c] sm:$0xff]
      %v4504 = vld [vmem:[%s4 + $0x34] sm:$0xff]
      %v4505 = vld [vmem:[%s4 + $0x3c] sm:$0xff]
      %v4506 = vld [vmem:[%s4 + $0x44] sm:$0xf]
      %v4507 = vld [vmem:[%s4 + $0x48] sm:$0xff]
      %v4508 = vld [vmem:[%s4 + $0x50] sm:$0xff]
      %v4509 = vld [vmem:[%s4 + $0x58] sm:$0xff]
      %v4510 = vld [vmem:[%s4 + $0x60] sm:$0xff]
      %v4511 = vld [vmem:[%s4 + $0x68] sm:$0xf]
      %v4512 = vld [vmem:[%s4 + $0x6c] sm:$0xff]
      %v4513 = vld [vmem:[%s4 + $0x74] sm:$0xff]
      %v4514 = vld [vmem:[%s4 + $0x7c] sm:$0xff]
      %v4515 = vld [vmem:[%s4 + $0x84] sm:$0xff]
      %v4516 = vld [vmem:[%s4 + $0x8c] sm:$0xf]
      %v4517 = vld [vmem:[%s4 + $0x90] sm:$0xff]
      %v4518 = vld [vmem:[%s4 + $0x98] sm:$0xff]
      %v4519 = vld [vmem:[%s4 + $0xa0] sm:$0xff]
      %v4520 = vld [vmem:[%s4 + $0xa8] sm:$0xff]
      %v4521 = vld [vmem:[%s4 + $0xb0] sm:$0xf]
      %v4522 = vld [vmem:[%s4 + $0xb4] sm:$0xff]
      %v4523 = vld [vmem:[%s4 + $0xbc] sm:$0xff]
      %v4524 = vld [vmem:[%s4 + $0xc4] sm:$0xff]
      %v4525 = vld [vmem:[%s4 + $0xcc] sm:$0xff]
      %v4526 = vld [vmem:[%s4 + $0xd4] sm:$0xf]
      %v4527 = vld [vmem:[%s4 + $0xd8] sm:$0xff]
      %v4528 = vld [vmem:[%s4 + $0xe0] sm:$0xff]
      %v4529 = vld [vmem:[%s4 + $0xe8] sm:$0xff]
      %v4530 = vld [vmem:[%s4 + $0xf0] sm:$0xff]
      %v4531 = vld [vmem:[%s4 + $0xf8] sm:$0xf]
      %v4532 = vld [vmem:[%s4 + $0xfc] sm:$0xff]
      %v4533 = vld [vmem:[%s4 + $0x104] sm:$0xff]
      %v4534 = vld [vmem:[%s4 + $0x10c] sm:$0xff]
      %v4535 = vld [vmem:[%s4 + $0x114] sm:$0xff]
      %v4536 = vld [vmem:[%s4 + $0x11c] sm:$0xf]
      %v4537 = vld [vmem:[%s4 + $0x120] sm:$0xff]
      %v4538 = vld [vmem:[%s4 + $0x128] sm:$0xff]
      %v4539 = vld [vmem:[%s4 + $0x130] sm:$0xff]
      %v4540 = vld [vmem:[%s4 + $0x138] sm:$0xff]
      %v4541 = vld [vmem:[%s4 + $0x140] sm:$0xf]
      %v4542 = vld [vmem:[%s4 + $0x144] sm:$0xff]
      %v4543 = vld [vmem:[%s4 + $0x14c] sm:$0xff]
      %v4544 = vld [vmem:[%s4 + $0x154] sm:$0xff]
      %v4545 = vld [vmem:[%s4 + $0x15c] sm:$0xff]
      %v4546 = vld [vmem:[%s4 + $0x164] sm:$0xf]
      %v4547 = vld [vmem:[%s4 + $0x168] sm:$0xff]
      %v4548 = vld [vmem:[%s4 + $0x170] sm:$0xff]
      %v4549 = vld [vmem:[%s4 + $0x178] sm:$0xff]
      %v4550 = vld [vmem:[%s4 + $0x180] sm:$0xff]
      %v4551 = vld [vmem:[%s4 + $0x188] sm:$0xf]
      %v4552 = vld [vmem:[%s4 + $0x18c] sm:$0xff]
      %v4553 = vld [vmem:[%s4 + $0x194] sm:$0xff]
      %v4554 = vld [vmem:[%s4 + $0x19c] sm:$0xff]
      %v4555 = vld [vmem:[%s4 + $0x1a4] sm:$0xff]
      %v4556 = vld [vmem:[%s4 + $0x1ac] sm:$0xf]
      %v4557 = vld [vmem:[%s4 + $0x1b0] sm:$0xff]
      %v4558 = vld [vmem:[%s4 + $0x1b8] sm:$0xff]
      %v4559 = vld [vmem:[%s4 + $0x1c0] sm:$0xff]
      %v4560 = vld [vmem:[%s4 + $0x1c8] sm:$0xff]
      %v4561 = vld [vmem:[%s4 + $0x1d0] sm:$0xf]
      %v4562 = vld [vmem:[%s4 + $0x1d4] sm:$0xff]
      %v4563 = vld [vmem:[%s4 + $0x1dc] sm:$0xff]
      %v4564 = vld [vmem:[%s4 + $0x1e4] sm:$0xff]
      %v4565 = vld [vmem:[%s4 + $0x1ec] sm:$0xff]
      %v4566 = vld [vmem:[%s4 + $0x1f4] sm:$0xf]
      %v4567 = vld [vmem:[%s4 + $0x1f8] sm:$0xff]
      %v4568 = vld [vmem:[%s4 + $0x200] sm:$0xff]
      %v4569 = vld [vmem:[%s4 + $0x208] sm:$0xff]
      %v4570 = vld [vmem:[%s4 + $0x210] sm:$0xff]
      %v4571 = vld [vmem:[%s4 + $0x218] sm:$0xf]
      %v4572 = vld [vmem:[%s4 + $0x21c] sm:$0xff]
      %v4573 = vld [vmem:[%s4 + $0x224] sm:$0xff]
      %v4574 = vld [vmem:[%s4 + $0x22c] sm:$0xff]
      %v4575 = vld [vmem:[%s4 + $0x234] sm:$0xff]
      %v4576 = vld [vmem:[%s4 + $0x23c] sm:$0xf]
      %v4577 = vld [vmem:[#allocation5] sm:$0xff]
      %v4578 = vld [vmem:[#allocation5 + $0x8] sm:$0xff]
      %v4579 = vld [vmem:[#allocation5 + $0x10] sm:$0xff]
      %v4580 = vld [vmem:[#allocation5 + $0x18] sm:$0xff]
      %v4581 = vld [vmem:[#allocation5 + $0x20] sm:$0xff]
      %v4582 = vld [vmem:[#allocation5 + $0x28] sm:$0xff]
      %v4583 = vld [vmem:[#allocation5 + $0x30] sm:$0xff]
      %v4584 = vld [vmem:[#allocation5 + $0x38] sm:$0xff]
      %v4585 = vld [vmem:[#allocation5 + $0x40] sm:$0xff]
      %v4586 = vld [vmem:[#allocation5 + $0x48] sm:$0xff]
      %v4587 = vld [vmem:[#allocation5 + $0x50] sm:$0xff]
      %v4588 = vld [vmem:[#allocation5 + $0x58] sm:$0xff]
      %v4589 = vld [vmem:[#allocation5 + $0x60] sm:$0xff]
      %v4590 = vld [vmem:[#allocation5 + $0x68] sm:$0xff]
      %v4591 = vld [vmem:[#allocation5 + $0x70] sm:$0xff]
      %v4592 = vld [vmem:[#allocation5 + $0x78] sm:$0xff]
      %v4593 = vld [vmem:[#allocation5 + $0x80] sm:$0xff]
      %v4594 = vld [vmem:[#allocation5 + $0x88] sm:$0xff]
      %v4595 = vld [vmem:[#allocation5 + $0x90] sm:$0xff]
      %v4596 = vld [vmem:[#allocation5 + $0x98] sm:$0xff]
      %v4597 = vld [vmem:[#allocation5 + $0xa0] sm:$0xff]
      %v4598 = vld [vmem:[#allocation5 + $0xa8] sm:$0xff]
      %v4599 = vld [vmem:[#allocation5 + $0xb0] sm:$0xff]
      %v4600 = vld [vmem:[#allocation5 + $0xb8] sm:$0xff]
      %v4601 = vld [vmem:[#allocation5 + $0xc0] sm:$0xff]
      %v4602 = vld [vmem:[#allocation5 + $0xc8] sm:$0xff]
      %v4603 = vld [vmem:[#allocation5 + $0xd0] sm:$0xff]
      %v4604 = vld [vmem:[#allocation5 + $0xd8] sm:$0xff]
      %v4605 = vld [vmem:[#allocation5 + $0xe0] sm:$0xff]
      %v4606 = vld [vmem:[#allocation5 + $0xe8] sm:$0xff]
      %v4607 = vld [vmem:[#allocation5 + $0xf0] sm:$0xff]
      %v4608 = vld [vmem:[#allocation5 + $0xf8] sm:$0xff]
      %v4609 = vld [vmem:[#allocation5 + $0x100] sm:$0xff]
      %v4610 = vld [vmem:[#allocation5 + $0x108] sm:$0xff]
      %v4611 = vld [vmem:[#allocation5 + $0x110] sm:$0xff]
      %v4612 = vld [vmem:[#allocation5 + $0x118] sm:$0xff]
      %v4613 = vld [vmem:[#allocation5 + $0x120] sm:$0xff]
      %v4614 = vld [vmem:[#allocation5 + $0x128] sm:$0xff]
      %v4615 = vld [vmem:[#allocation5 + $0x130] sm:$0xff]
      %v4616 = vld [vmem:[#allocation5 + $0x138] sm:$0xff]
      %v4617 = vld [vmem:[#allocation5 + $0x140] sm:$0xff]
      %v4618 = vld [vmem:[#allocation5 + $0x148] sm:$0xff]
      %v4619 = vld [vmem:[#allocation5 + $0x150] sm:$0xff]
      %v4620 = vld [vmem:[#allocation5 + $0x158] sm:$0xff]
      %v4621 = vld [vmem:[#allocation5 + $0x160] sm:$0xff]
      %v4622 = vld [vmem:[#allocation5 + $0x168] sm:$0xff]
      %v4623 = vld [vmem:[#allocation5 + $0x170] sm:$0xff]
      %v4624 = vld [vmem:[#allocation5 + $0x178] sm:$0xff]
      %v4625 = vld [vmem:[#allocation5 + $0x180] sm:$0xff]
      %v4626 = vld [vmem:[#allocation5 + $0x188] sm:$0xff]
      %v4627 = vld [vmem:[#allocation5 + $0x190] sm:$0xff]
      %v4628 = vld [vmem:[#allocation5 + $0x198] sm:$0xff]
      %v4629 = vld [vmem:[#allocation5 + $0x1a0] sm:$0xff]
      %v4630 = vld [vmem:[#allocation5 + $0x1a8] sm:$0xff]
      %v4631 = vld [vmem:[#allocation5 + $0x1b0] sm:$0xff]
      %v4632 = vld [vmem:[#allocation5 + $0x1b8] sm:$0xff]
      %v4633 = vld [vmem:[#allocation5 + $0x1c0] sm:$0xff]
      %v4634 = vld [vmem:[#allocation5 + $0x1c8] sm:$0xff]
      %v4635 = vld [vmem:[#allocation5 + $0x1d0] sm:$0xff]
      %v4636 = vld [vmem:[#allocation5 + $0x1d8] sm:$0xff]
      %v4637 = vld [vmem:[#allocation5 + $0x1e0] sm:$0xff]
      %v4638 = vld [vmem:[#allocation5 + $0x1e8] sm:$0xff]
      %v4639 = vld [vmem:[#allocation5 + $0x1f0] sm:$0xff]
      %v4640 = vld [vmem:[#allocation5 + $0x1f8] sm:$0xff]
      %v4641 = vld [vmem:[#allocation5 + $0x200] sm:$0xff]
      %v4642 = vld [vmem:[#allocation5 + $0x208] sm:$0xff]
      %v4643 = vld [vmem:[#allocation5 + $0x210] sm:$0xff]
      %v4644 = vld [vmem:[#allocation5 + $0x218] sm:$0xff]
      %v4645 = vld [vmem:[#allocation5 + $0x220] sm:$0xff]
      %v4646 = vld [vmem:[#allocation5 + $0x228] sm:$0xff]
      %v4647 = vld [vmem:[#allocation5 + $0x230] sm:$0xff]
      %v4648 = vld [vmem:[#allocation5 + $0x238] sm:$0xff]
      %v4649 = vld [vmem:[#allocation5 + $0x240] sm:$0xff]
      %v4650 = vld [vmem:[#allocation5 + $0x248] sm:$0xff]
      %v4651 = vld [vmem:[#allocation5 + $0x250] sm:$0xff]
      %v4652 = vld [vmem:[#allocation5 + $0x258] sm:$0xff]
      %v4653 = vld [vmem:[#allocation5 + $0x260] sm:$0xff]
      %v4654 = vld [vmem:[#allocation5 + $0x268] sm:$0xff]
      %v4655 = vld [vmem:[#allocation5 + $0x270] sm:$0xff]
      %v4656 = vld [vmem:[#allocation5 + $0x278] sm:$0xff]
      %v4657 = vld [vmem:[#allocation5 + $0x280] sm:$0xff]
      %v4658 = vld [vmem:[#allocation5 + $0x288] sm:$0xff]
      %v4659 = vld [vmem:[#allocation5 + $0x290] sm:$0xff]
      %v4660 = vld [vmem:[#allocation5 + $0x298] sm:$0xff]
      %v4661 = vld [vmem:[#allocation5 + $0x2a0] sm:$0xff]
      %v4662 = vld [vmem:[#allocation5 + $0x2a8] sm:$0xff]
      %v4663 = vld [vmem:[#allocation5 + $0x2b0] sm:$0xff]
      %v4664 = vld [vmem:[#allocation5 + $0x2b8] sm:$0xff]
      %v4665 = vld [vmem:[#allocation5 + $0x2c0] sm:$0xff]
      %v4666 = vld [vmem:[#allocation5 + $0x2c8] sm:$0xff]
      %v4667 = vld [vmem:[#allocation5 + $0x2d0] sm:$0xff]
      %v4668 = vld [vmem:[#allocation5 + $0x2d8] sm:$0xff]
      %v4669 = vld [vmem:[#allocation5 + $0x2e0] sm:$0xff]
      %v4670 = vld [vmem:[#allocation5 + $0x2e8] sm:$0xff]
      %v4671 = vld [vmem:[#allocation5 + $0x2f0] sm:$0xff]
      %v4672 = vld [vmem:[#allocation5 + $0x2f8] sm:$0xff]
      %v4673 = vld [vmem:[#allocation5 + $0x300] sm:$0xff]
      %v4674 = vld [vmem:[#allocation5 + $0x308] sm:$0xff]
      %v4675 = vld [vmem:[#allocation5 + $0x310] sm:$0xff]
      %v4676 = vld [vmem:[#allocation5 + $0x318] sm:$0xff]
      %v4677 = vld [vmem:[#allocation5 + $0x320] sm:$0xff]
      %v4678 = vld [vmem:[#allocation5 + $0x328] sm:$0xff]
      %v4679 = vld [vmem:[#allocation5 + $0x330] sm:$0xff]
      %v4680 = vld [vmem:[#allocation5 + $0x338] sm:$0xff]
      %v4681 = vld [vmem:[#allocation5 + $0x340] sm:$0xff]
      %v4682 = vld [vmem:[#allocation5 + $0x348] sm:$0xff]
      %v4683 = vld [vmem:[#allocation5 + $0x350] sm:$0xff]
      %v4684 = vld [vmem:[#allocation5 + $0x358] sm:$0xff]
      %v4685 = vld [vmem:[#allocation5 + $0x360] sm:$0xff]
      %v4686 = vld [vmem:[#allocation5 + $0x368] sm:$0xff]
      %v4687 = vld [vmem:[#allocation5 + $0x370] sm:$0xff]
      %v4688 = vld [vmem:[#allocation5 + $0x378] sm:$0xff]
      %v4689 = vld [vmem:[#allocation5 + $0x380] sm:$0xff]
      %v4690 = vld [vmem:[#allocation5 + $0x388] sm:$0xff]
      %v4691 = vld [vmem:[#allocation5 + $0x390] sm:$0xff]
      %v4692 = vld [vmem:[#allocation5 + $0x398] sm:$0xff]
      %v4693 = vld [vmem:[#allocation5 + $0x3a0] sm:$0xff]
      %v4694 = vld [vmem:[#allocation5 + $0x3a8] sm:$0xff]
      %v4695 = vld [vmem:[#allocation5 + $0x3b0] sm:$0xff]
      %v4696 = vld [vmem:[#allocation5 + $0x3b8] sm:$0xff]
      %v4697 = vld [vmem:[#allocation5 + $0x3c0] sm:$0xff]
      %v4698 = vld [vmem:[#allocation5 + $0x3c8] sm:$0xff]
      %v4699 = vld [vmem:[#allocation5 + $0x3d0] sm:$0xff]
      %v4700 = vld [vmem:[#allocation5 + $0x3d8] sm:$0xff]
      %v4701 = vld [vmem:[#allocation5 + $0x3e0] sm:$0xff]
      %v4702 = vld [vmem:[#allocation5 + $0x3e8] sm:$0xff]
      %v4703 = vld [vmem:[#allocation5 + $0x3f0] sm:$0xff]
      %v4704 = vld [vmem:[#allocation5 + $0x3f8] sm:$0xff]
      %v4705 = vld [vmem:[#allocation5 + $0x400] sm:$0xff]
      %v4706 = vld [vmem:[#allocation5 + $0x408] sm:$0xff]
      %v4707 = vld [vmem:[#allocation5 + $0x410] sm:$0xff]
      %v4708 = vld [vmem:[#allocation5 + $0x418] sm:$0xff]
      %v4709 = vld [vmem:[#allocation5 + $0x420] sm:$0xff]
      %v4710 = vld [vmem:[#allocation5 + $0x428] sm:$0xff]
      %v4711 = vld [vmem:[#allocation5 + $0x430] sm:$0xff]
      %v4712 = vld [vmem:[#allocation5 + $0x438] sm:$0xff]
      %v4713 = vld [vmem:[#allocation5 + $0x440] sm:$0xff]
      %v4714 = vld [vmem:[#allocation5 + $0x448] sm:$0xff]
      %v4715 = vld [vmem:[#allocation5 + $0x450] sm:$0xff]
      %v4716 = vld [vmem:[#allocation5 + $0x458] sm:$0xff]
      %v4717 = vld [vmem:[#allocation5 + $0x460] sm:$0xff]
      %v4718 = vld [vmem:[#allocation5 + $0x468] sm:$0xff]
      %v4719 = vld [vmem:[#allocation5 + $0x470] sm:$0xff]
      %v4720 = vld [vmem:[#allocation5 + $0x478] sm:$0xff]
      %v4801 = vunpack.c.l.b16 %v4497
      %v4802 = vunpack.c.h.b16 %v4497
      %v4803 = vunpack.c.l.b16 %v4498
      %v4804 = vunpack.c.h.b16 %v4498
      %v4805 = vunpack.c.l.b16 %v4499
      %v4806 = vunpack.c.h.b16 %v4499
      %v4807 = vunpack.c.l.b16 %v4500
      %v4808 = vunpack.c.h.b16 %v4500
      %v4809 = vunpack.c.l.b16 %v4501
      %v4810 = vunpack.c.l.b16 %v4502
      %v4811 = vunpack.c.h.b16 %v4502
      %v4812 = vunpack.c.l.b16 %v4503
      %v4813 = vunpack.c.h.b16 %v4503
      %v4814 = vunpack.c.l.b16 %v4504
      %v4815 = vunpack.c.h.b16 %v4504
      %v4816 = vunpack.c.l.b16 %v4505
      %v4817 = vunpack.c.h.b16 %v4505
      %v4818 = vunpack.c.l.b16 %v4506
      %v4819 = vunpack.c.l.b16 %v4507
      %v4820 = vunpack.c.h.b16 %v4507
      %v4821 = vunpack.c.l.b16 %v4508
      %v4822 = vunpack.c.h.b16 %v4508
      %v4823 = vunpack.c.l.b16 %v4509
      %v4824 = vunpack.c.h.b16 %v4509
      %v4825 = vunpack.c.l.b16 %v4510
      %v4826 = vunpack.c.h.b16 %v4510
      %v4827 = vunpack.c.l.b16 %v4511
      %v4828 = vunpack.c.l.b16 %v4512
      %v4829 = vunpack.c.h.b16 %v4512
      %v4830 = vunpack.c.l.b16 %v4513
      %v4831 = vunpack.c.h.b16 %v4513
      %v4832 = vunpack.c.l.b16 %v4514
      %v4833 = vunpack.c.h.b16 %v4514
      %v4834 = vunpack.c.l.b16 %v4515
      %v4835 = vunpack.c.h.b16 %v4515
      %v4836 = vunpack.c.l.b16 %v4516
      %v4837 = vunpack.c.l.b16 %v4517
      %v4838 = vunpack.c.h.b16 %v4517
      %v4839 = vunpack.c.l.b16 %v4518
      %v4840 = vunpack.c.h.b16 %v4518
      %v4841 = vunpack.c.l.b16 %v4519
      %v4842 = vunpack.c.h.b16 %v4519
      %v4843 = vunpack.c.l.b16 %v4520
      %v4844 = vunpack.c.h.b16 %v4520
      %v4845 = vunpack.c.l.b16 %v4521
      %v4846 = vunpack.c.l.b16 %v4522
      %v4847 = vunpack.c.h.b16 %v4522
      %v4848 = vunpack.c.l.b16 %v4523
      %v4849 = vunpack.c.h.b16 %v4523
      %v4850 = vunpack.c.l.b16 %v4524
      %v4851 = vunpack.c.h.b16 %v4524
      %v4852 = vunpack.c.l.b16 %v4525
      %v4853 = vunpack.c.h.b16 %v4525
      %v4854 = vunpack.c.l.b16 %v4526
      %v4855 = vunpack.c.l.b16 %v4527
      %v4856 = vunpack.c.h.b16 %v4527
      %v4857 = vunpack.c.l.b16 %v4528
      %v4858 = vunpack.c.h.b16 %v4528
      %v4859 = vunpack.c.l.b16 %v4529
      %v4860 = vunpack.c.h.b16 %v4529
      %v4861 = vunpack.c.l.b16 %v4530
      %v4862 = vunpack.c.h.b16 %v4530
      %v4863 = vunpack.c.l.b16 %v4531
      %v4864 = vunpack.c.l.b16 %v4532
      %v4865 = vunpack.c.h.b16 %v4532
      %v4866 = vunpack.c.l.b16 %v4533
      %v4867 = vunpack.c.h.b16 %v4533
      %v4868 = vunpack.c.l.b16 %v4534
      %v4869 = vunpack.c.h.b16 %v4534
      %v4870 = vunpack.c.l.b16 %v4535
      %v4871 = vunpack.c.h.b16 %v4535
      %v4872 = vunpack.c.l.b16 %v4536
      %v4873 = vunpack.c.l.b16 %v4537
      %v4874 = vunpack.c.h.b16 %v4537
      %v4875 = vunpack.c.l.b16 %v4538
      %v4876 = vunpack.c.h.b16 %v4538
      %v4877 = vunpack.c.l.b16 %v4539
      %v4878 = vunpack.c.h.b16 %v4539
      %v4879 = vunpack.c.l.b16 %v4540
      %v4880 = vunpack.c.h.b16 %v4540
      %v4881 = vunpack.c.l.b16 %v4541
      %v4882 = vunpack.c.l.b16 %v4542
      %v4883 = vunpack.c.h.b16 %v4542
      %v4884 = vunpack.c.l.b16 %v4543
      %v4885 = vunpack.c.h.b16 %v4543
      %v4886 = vunpack.c.l.b16 %v4544
      %v4887 = vunpack.c.h.b16 %v4544
      %v4888 = vunpack.c.l.b16 %v4545
      %v4889 = vunpack.c.h.b16 %v4545
      %v4890 = vunpack.c.l.b16 %v4546
      %v4891 = vunpack.c.l.b16 %v4547
      %v4892 = vunpack.c.h.b16 %v4547
      %v4893 = vunpack.c.l.b16 %v4548
      %v4894 = vunpack.c.h.b16 %v4548
      %v4895 = vunpack.c.l.b16 %v4549
      %v4896 = vunpack.c.h.b16 %v4549
      %v4897 = vunpack.c.l.b16 %v4550
      %v4898 = vunpack.c.h.b16 %v4550
      %v4899 = vunpack.c.l.b16 %v4551
      %v4900 = vunpack.c.l.b16 %v4552
      %v4901 = vunpack.c.h.b16 %v4552
      %v4902 = vunpack.c.l.b16 %v4553
      %v4903 = vunpack.c.h.b16 %v4553
      %v4904 = vunpack.c.l.b16 %v4554
      %v4905 = vunpack.c.h.b16 %v4554
      %v4906 = vunpack.c.l.b16 %v4555
      %v4907 = vunpack.c.h.b16 %v4555
      %v4908 = vunpack.c.l.b16 %v4556
      %v4909 = vunpack.c.l.b16 %v4557
      %v4910 = vunpack.c.h.b16 %v4557
      %v4911 = vunpack.c.l.b16 %v4558
      %v4912 = vunpack.c.h.b16 %v4558
      %v4913 = vunpack.c.l.b16 %v4559
      %v4914 = vunpack.c.h.b16 %v4559
      %v4915 = vunpack.c.l.b16 %v4560
      %v4916 = vunpack.c.h.b16 %v4560
      %v4917 = vunpack.c.l.b16 %v4561
      %v4918 = vunpack.c.l.b16 %v4562
      %v4919 = vunpack.c.h.b16 %v4562
      %v4920 = vunpack.c.l.b16 %v4563
      %v4921 = vunpack.c.h.b16 %v4563
      %v4922 = vunpack.c.l.b16 %v4564
      %v4923 = vunpack.c.h.b16 %v4564
      %v4924 = vunpack.c.l.b16 %v4565
      %v4925 = vunpack.c.h.b16 %v4565
      %v4926 = vunpack.c.l.b16 %v4566
      %v4927 = vunpack.c.l.b16 %v4567
      %v4928 = vunpack.c.h.b16 %v4567
      %v4929 = vunpack.c.l.b16 %v4568
      %v4930 = vunpack.c.h.b16 %v4568
      %v4931 = vunpack.c.l.b16 %v4569
      %v4932 = vunpack.c.h.b16 %v4569
      %v4933 = vunpack.c.l.b16 %v4570
      %v4934 = vunpack.c.h.b16 %v4570
      %v4935 = vunpack.c.l.b16 %v4571
      %v4936 = vunpack.c.l.b16 %v4572
      %v4937 = vunpack.c.h.b16 %v4572
      %v4938 = vunpack.c.l.b16 %v4573
      %v4939 = vunpack.c.h.b16 %v4573
      %v4940 = vunpack.c.l.b16 %v4574
      %v4941 = vunpack.c.h.b16 %v4574
      %v4942 = vunpack.c.l.b16 %v4575
      %v4943 = vunpack.c.h.b16 %v4575
      %v4944 = vunpack.c.l.b16 %v4576
      %v4945 = vpack.c.b16 %v4810, %v4801
      %v4946 = vpack.c.b16 %v4811, %v4802
      %v4947 = vpack.c.b16 %v4812, %v4803
      %v4948 = vpack.c.b16 %v4813, %v4804
      %v4949 = vpack.c.b16 %v4814, %v4805
      %v4950 = vpack.c.b16 %v4815, %v4806
      %v4951 = vpack.c.b16 %v4816, %v4807
      %v4952 = vpack.c.b16 %v4817, %v4808
      %v4953 = vpack.c.b16 %v4818, %v4809
      %v4954 = vpack.c.b16 %v4828, %v4819
      %v4955 = vpack.c.b16 %v4829, %v4820
      %v4956 = vpack.c.b16 %v4830, %v4821
      %v4957 = vpack.c.b16 %v4831, %v4822
      %v4958 = vpack.c.b16 %v4832, %v4823
      %v4959 = vpack.c.b16 %v4833, %v4824
      %v4960 = vpack.c.b16 %v4834, %v4825
      %v4961 = vpack.c.b16 %v4835, %v4826
      %v4962 = vpack.c.b16 %v4836, %v4827
      %v4963 = vpack.c.b16 %v4846, %v4837
      %v4964 = vpack.c.b16 %v4847, %v4838
      %v4965 = vpack.c.b16 %v4848, %v4839
      %v4966 = vpack.c.b16 %v4849, %v4840
      %v4967 = vpack.c.b16 %v4850, %v4841
      %v4968 = vpack.c.b16 %v4851, %v4842
      %v4969 = vpack.c.b16 %v4852, %v4843
      %v4970 = vpack.c.b16 %v4853, %v4844
      %v4971 = vpack.c.b16 %v4854, %v4845
      %v4972 = vpack.c.b16 %v4864, %v4855
      %v4973 = vpack.c.b16 %v4865, %v4856
      %v4974 = vpack.c.b16 %v4866, %v4857
      %v4975 = vpack.c.b16 %v4867, %v4858
      %v4976 = vpack.c.b16 %v4868, %v4859
      %v4977 = vpack.c.b16 %v4869, %v4860
      %v4978 = vpack.c.b16 %v4870, %v4861
      %v4979 = vpack.c.b16 %v4871, %v4862
      %v4980 = vpack.c.b16 %v4872, %v4863
      %v4981 = vpack.c.b16 %v4882, %v4873
      %v4982 = vpack.c.b16 %v4883, %v4874
      %v4983 = vpack.c.b16 %v4884, %v4875
      %v4984 = vpack.c.b16 %v4885, %v4876
      %v4985 = vpack.c.b16 %v4886, %v4877
      %v4986 = vpack.c.b16 %v4887, %v4878
      %v4987 = vpack.c.b16 %v4888, %v4879
      %v4988 = vpack.c.b16 %v4889, %v4880
      %v4989 = vpack.c.b16 %v4890, %v4881
      %v4990 = vpack.c.b16 %v4900, %v4891
      %v4991 = vpack.c.b16 %v4901, %v4892
      %v4992 = vpack.c.b16 %v4902, %v4893
      %v4993 = vpack.c.b16 %v4903, %v4894
      %v4994 = vpack.c.b16 %v4904, %v4895
      %v4995 = vpack.c.b16 %v4905, %v4896
      %v4996 = vpack.c.b16 %v4906, %v4897
      %v4997 = vpack.c.b16 %v4907, %v4898
      %v4998 = vpack.c.b16 %v4908, %v4899
      %v4999 = vpack.c.b16 %v4918, %v4909
      %v5000 = vpack.c.b16 %v4919, %v4910
      %v5001 = vpack.c.b16 %v4920, %v4911
      %v5002 = vpack.c.b16 %v4921, %v4912
      %v5003 = vpack.c.b16 %v4922, %v4913
      %v5004 = vpack.c.b16 %v4923, %v4914
      %v5005 = vpack.c.b16 %v4924, %v4915
      %v5006 = vpack.c.b16 %v4925, %v4916
      %v5007 = vpack.c.b16 %v4926, %v4917
      %v5008 = vpack.c.b16 %v4936, %v4927
      %v5009 = vpack.c.b16 %v4937, %v4928
      %v5010 = vpack.c.b16 %v4938, %v4929
      %v5011 = vpack.c.b16 %v4939, %v4930
      %v5012 = vpack.c.b16 %v4940, %v4931
      %v5013 = vpack.c.b16 %v4941, %v4932
      %v5014 = vpack.c.b16 %v4942, %v4933
      %v5015 = vpack.c.b16 %v4943, %v4934
      %v5016 = vpack.c.b16 %v4944, %v4935
      %5089 = vmatprep.subr.bf16.mxu0 %v4578
      %5090 = vmatpush1.bf16.xpose.msra.mxu0 %v4577
      %5091 = vmatprep.subr.bf16.mxu0 %v4587
      %5092 = vmatpush1.bf16.xpose.msra.mxu0 %v4586
      %5093 = vmatprep.subr.bf16.mxu0 %v4596
      %5094 = vmatpush1.bf16.xpose.msra.mxu0 %v4595
      %5095 = vmatprep.subr.bf16.mxu0 %v4605
      %5096 = vmatpush1.bf16.xpose.msra.mxu0 %v4604
      %5097 = vmatprep.subr.bf16.mxu0 %v4614
      %5098 = vmatpush1.bf16.xpose.msra.mxu0 %v4613
      %5099 = vmatprep.subr.bf16.mxu0 %v4623
      %5100 = vmatpush1.bf16.xpose.msra.mxu0 %v4622
      %5101 = vmatprep.subr.bf16.mxu0 %v4632
      %5102 = vmatpush1.bf16.xpose.msra.mxu0 %v4631
      %5103 = vmatprep.subr.bf16.mxu0 %v4641
      %5104 = vmatpush1.bf16.xpose.msra.mxu0 %v4640
      %5105 = vmatprep.subr.bf16.mxu0 %v4650
      %5106 = vmatpush1.bf16.xpose.msra.mxu0 %v4649
      %5107 = vmatprep.subr.bf16.mxu0 %v4659
      %5108 = vmatpush1.bf16.xpose.msra.mxu0 %v4658
      %5109 = vmatprep.subr.bf16.mxu0 %v4668
      %5110 = vmatpush1.bf16.xpose.msra.mxu0 %v4667
      %5111 = vmatprep.subr.bf16.mxu0 %v4677
      %5112 = vmatpush1.bf16.xpose.msra.mxu0 %v4676
      %5113 = vmatprep.subr.bf16.mxu0 %v4686
      %5114 = vmatpush1.bf16.xpose.msra.mxu0 %v4685
      %5115 = vmatprep.subr.bf16.mxu0 %v4695
      %5116 = vmatpush1.bf16.xpose.msra.mxu0 %v4694
      %5117 = vmatprep.subr.bf16.mxu0 %v4704
      %5118 = vmatpush1.bf16.xpose.msra.mxu0 %v4703
      %5119 = vmatprep.subr.bf16.mxu0 %v4713
      %5120 = vmatpush1.bf16.xpose.msra.mxu0 %v4712
      %5121 = vmatprep.mubr.bf16.mxu0 %v4946
      %5122 = vmatmul.mubr.bf16.gmra.mrb[0].mxu0 %v4945
      %v5123 = vpop.f32.mrb[0].mxu0
      %v5124 = vadd.f32 0.0, %v5123
      %v5125 = vpop.f32.mrb[0].mxu0
      %v5126 = vadd.f32 0.0, %v5125
      %v5127 = vpop.f32.mrb[0].mxu0
      %v5128 = vpop.f32.mrb[0].mxu0
      %5129 = vmatprep.mubr.bf16.mxu0 %v4955
      %5130 = vmatmul.mubr.bf16.gmra.mrb[0].mxu0 %v4954
      %v5131 = vpop.f32.mrb[0].mxu0
      %v5132 = vpop.f32.mrb[0].mxu0
      %v5133 = vpop.f32.mrb[0].mxu0
      %v5134 = vpop.f32.mrb[0].mxu0
      %5135 = vmatprep.mubr.bf16.mxu0 %v4964
      %5136 = vmatmul.mubr.bf16.gmra.mrb[0].mxu0 %v4963
      %v5137 = vpop.f32.mrb[0].mxu0
      %v5138 = vpop.f32.mrb[0].mxu0
      %v5139 = vpop.f32.mrb[0].mxu0
      %v5140 = vpop.f32.mrb[0].mxu0
      %5141 = vmatprep.mubr.bf16.mxu0 %v4973
      %5142 = vmatmul.mubr.bf16.gmra.mrb[0].mxu0 %v4972
      %v5143 = vpop.f32.mrb[0].mxu0
      %v5144 = vpop.f32.mrb[0].mxu0
      %v5145 = vpop.f32.mrb[0].mxu0
      %v5146 = vpop.f32.mrb[0].mxu0
      %5147 = vmatprep.mubr.bf16.mxu0 %v4982
      %5148 = vmatmul.mubr.bf16.gmra.mrb[0].mxu0 %v4981
      %v5149 = vpop.f32.mrb[0].mxu0
      %v5150 = vpop.f32.mrb[0].mxu0
      %v5151 = vpop.f32.mrb[0].mxu0
      %v5152 = vpop.f32.mrb[0].mxu0
      %5153 = vmatprep.mubr.bf16.mxu0 %v4991
      %5154 = vmatmul.mubr.bf16.gmra.mrb[0].mxu0 %v4990
      %v5155 = vpop.f32.mrb[0].mxu0
      %v5156 = vpop.f32.mrb[0].mxu0
      %v5157 = vpop.f32.mrb[0].mxu0
      %v5158 = vpop.f32.mrb[0].mxu0
      %5159 = vmatprep.mubr.bf16.mxu0 %v5000
      %5160 = vmatmul.mubr.bf16.gmra.mrb[0].mxu0 %v4999
      %v5161 = vpop.f32.mrb[0].mxu0
      %v5162 = vpop.f32.mrb[0].mxu0
      %v5163 = vpop.f32.mrb[0].mxu0
      %v5164 = vpop.f32.mrb[0].mxu0
      %5165 = vmatprep.mubr.bf16.mxu0 %v5009
      %5166 = vmatmul.mubr.bf16.gmra.mrb[0].mxu0 %v5008
      %v5167 = vpop.f32.mrb[0].mxu0
      %v5168 = vpop.f32.mrb[0].mxu0
      %v5169 = vpop.f32.mrb[0].mxu0
      %v5170 = vpop.f32.mrb[0].mxu0
      %5171 = vdwg.mxu0
      %5172 = vmatprep.subr.bf16.mxu0 %v4580
      %5173 = vmatpush1.bf16.xpose.msra.mxu0 %v4579
      %5174 = vmatprep.subr.bf16.mxu0 %v4589
      %5175 = vmatpush1.bf16.xpose.msra.mxu0 %v4588
      %5176 = vmatprep.subr.bf16.mxu0 %v4598
      %5177 = vmatpush1.bf16.xpose.msra.mxu0 %v4597
      %5178 = vmatprep.subr.bf16.mxu0 %v4607
      %5179 = vmatpush1.bf16.xpose.msra.mxu0 %v4606
      %5180 = vmatprep.subr.bf16.mxu0 %v4616
      %5181 = vmatpush1.bf16.xpose.msra.mxu0 %v4615
      %5182 = vmatprep.subr.bf16.mxu0 %v4625
      %5183 = vmatpush1.bf16.xpose.msra.mxu0 %v4624
      %5184 = vmatprep.subr.bf16.mxu0 %v4634
      %5185 = vmatpush1.bf16.xpose.msra.mxu0 %v4633
      %5186 = vmatprep.subr.bf16.mxu0 %v4643
      %5187 = vmatpush1.bf16.xpose.msra.mxu0 %v4642
      %5188 = vmatprep.subr.bf16.mxu0 %v4652
      %5189 = vmatpush1.bf16.xpose.msra.mxu0 %v4651
      %5190 = vmatprep.subr.bf16.mxu0 %v4661
      %5191 = vmatpush1.bf16.xpose.msra.mxu0 %v4660
      %5192 = vmatprep.subr.bf16.mxu0 %v4670
      %5193 = vmatpush1.bf16.xpose.msra.mxu0 %v4669
      %5194 = vmatprep.subr.bf16.mxu0 %v4679
      %5195 = vmatpush1.bf16.xpose.msra.mxu0 %v4678
      %5196 = vmatprep.subr.bf16.mxu0 %v4688
      %5197 = vmatpush1.bf16.xpose.msra.mxu0 %v4687
      %5198 = vmatprep.subr.bf16.mxu0 %v4697
      %5199 = vmatpush1.bf16.xpose.msra.mxu0 %v4696
      %5200 = vmatprep.subr.bf16.mxu0 %v4706
      %5201 = vmatpush1.bf16.xpose.msra.mxu0 %v4705
      %5202 = vmatprep.subr.bf16.mxu0 %v4715
      %5203 = vmatpush1.bf16.xpose.msra.mxu0 %v4714
      %5204 = vmatprep.mubr.bf16.mxu0 %v4948
      %5205 = vmatmul.mubr.bf16.gmra.mrb[0].mxu0 %v4947
      %v5206 = vpop.f32.mrb[0].mxu0
      %v5207 = vadd.f32 %v5124, %v5206
      %v5208 = vpop.f32.mrb[0].mxu0
      %v5209 = vadd.f32 %v5126, %v5208
      %v5210 = vpop.f32.mrb[0].mxu0
      %v5211 = vpop.f32.mrb[0].mxu0
      %5212 = vmatprep.mubr.bf16.mxu0 %v4957
      %5213 = vmatmul.mubr.bf16.gmra.mrb[0].mxu0 %v4956
      %v5214 = vpop.f32.mrb[0].mxu0
      %v5215 = vpop.f32.mrb[0].mxu0
      %v5216 = vpop.f32.mrb[0].mxu0
      %v5217 = vpop.f32.mrb[0].mxu0
      %5218 = vmatprep.mubr.bf16.mxu0 %v4966
      %5219 = vmatmul.mubr.bf16.gmra.mrb[0].mxu0 %v4965
      %v5220 = vpop.f32.mrb[0].mxu0
      %v5221 = vpop.f32.mrb[0].mxu0
      %v5222 = vpop.f32.mrb[0].mxu0
      %v5223 = vpop.f32.mrb[0].mxu0
      %5224 = vmatprep.mubr.bf16.mxu0 %v4975
      %5225 = vmatmul.mubr.bf16.gmra.mrb[0].mxu0 %v4974
      %v5226 = vpop.f32.mrb[0].mxu0
      %v5227 = vpop.f32.mrb[0].mxu0
      %v5228 = vpop.f32.mrb[0].mxu0
      %v5229 = vpop.f32.mrb[0].mxu0
      %5230 = vmatprep.mubr.bf16.mxu0 %v4984
      %5231 = vmatmul.mubr.bf16.gmra.mrb[0].mxu0 %v4983
      %v5232 = vpop.f32.mrb[0].mxu0
      %v5233 = vpop.f32.mrb[0].mxu0
      %v5234 = vpop.f32.mrb[0].mxu0
      %v5235 = vpop.f32.mrb[0].mxu0
      %5236 = vmatprep.mubr.bf16.mxu0 %v4993
      %5237 = vmatmul.mubr.bf16.gmra.mrb[0].mxu0 %v4992
      %v5238 = vpop.f32.mrb[0].mxu0
      %v5239 = vpop.f32.mrb[0].mxu0
      %v5240 = vpop.f32.mrb[0].mxu0
      %v5241 = vpop.f32.mrb[0].mxu0
      %5242 = vmatprep.mubr.bf16.mxu0 %v5002
      %5243 = vmatmul.mubr.bf16.gmra.mrb[0].mxu0 %v5001
      %v5244 = vpop.f32.mrb[0].mxu0
      %v5245 = vpop.f32.mrb[0].mxu0
      %v5246 = vpop.f32.mrb[0].mxu0
      %v5247 = vpop.f32.mrb[0].mxu0
      %5248 = vmatprep.mubr.bf16.mxu0 %v5011
      %5249 = vmatmul.mubr.bf16.gmra.mrb[0].mxu0 %v5010
      %v5250 = vpop.f32.mrb[0].mxu0
      %v5251 = vpop.f32.mrb[0].mxu0
      %v5252 = vpop.f32.mrb[0].mxu0
      %v5253 = vpop.f32.mrb[0].mxu0
      %5254 = vdwg.mxu0
      %5255 = vmatprep.subr.bf16.mxu0 %v4582
      %5256 = vmatpush1.bf16.xpose.msra.mxu0 %v4581
      %5257 = vmatprep.subr.bf16.mxu0 %v4591
      %5258 = vmatpush1.bf16.xpose.msra.mxu0 %v4590
      %5259 = vmatprep.subr.bf16.mxu0 %v4600
      %5260 = vmatpush1.bf16.xpose.msra.mxu0 %v4599
      %5261 = vmatprep.subr.bf16.mxu0 %v4609
      %5262 = vmatpush1.bf16.xpose.msra.mxu0 %v4608
      %5263 = vmatprep.subr.bf16.mxu0 %v4618
      %5264 = vmatpush1.bf16.xpose.msra.mxu0 %v4617
      %5265 = vmatprep.subr.bf16.mxu0 %v4627
      %5266 = vmatpush1.bf16.xpose.msra.mxu0 %v4626
      %5267 = vmatprep.subr.bf16.mxu0 %v4636
      %5268 = vmatpush1.bf16.xpose.msra.mxu0 %v4635
      %5269 = vmatprep.subr.bf16.mxu0 %v4645
      %5270 = vmatpush1.bf16.xpose.msra.mxu0 %v4644
      %5271 = vmatprep.subr.bf16.mxu0 %v4654
      %5272 = vmatpush1.bf16.xpose.msra.mxu0 %v4653
      %5273 = vmatprep.subr.bf16.mxu0 %v4663
      %5274 = vmatpush1.bf16.xpose.msra.mxu0 %v4662
      %5275 = vmatprep.subr.bf16.mxu0 %v4672
      %5276 = vmatpush1.bf16.xpose.msra.mxu0 %v4671
      %5277 = vmatprep.subr.bf16.mxu0 %v4681
      %5278 = vmatpush1.bf16.xpose.msra.mxu0 %v4680
      %5279 = vmatprep.subr.bf16.mxu0 %v4690
      %5280 = vmatpush1.bf16.xpose.msra.mxu0 %v4689
      %5281 = vmatprep.subr.bf16.mxu0 %v4699
      %5282 = vmatpush1.bf16.xpose.msra.mxu0 %v4698
      %5283 = vmatprep.subr.bf16.mxu0 %v4708
      %5284 = vmatpush1.bf16.xpose.msra.mxu0 %v4707
      %5285 = vmatprep.subr.bf16.mxu0 %v4717
      %5286 = vmatpush1.bf16.xpose.msra.mxu0 %v4716
      %5287 = vmatprep.mubr.bf16.mxu0 %v4950
      %5288 = vmatmul.mubr.bf16.gmra.mrb[0].mxu0 %v4949
      %v5289 = vpop.f32.mrb[0].mxu0
      %v5290 = vadd.f32 %v5207, %v5289
      %v5291 = vpop.f32.mrb[0].mxu0
      %v5292 = vadd.f32 %v5209, %v5291
      %v5293 = vpop.f32.mrb[0].mxu0
      %v5294 = vpop.f32.mrb[0].mxu0
      %5295 = vmatprep.mubr.bf16.mxu0 %v4959
      %5296 = vmatmul.mubr.bf16.gmra.mrb[0].mxu0 %v4958
      %v5297 = vpop.f32.mrb[0].mxu0
      %v5298 = vpop.f32.mrb[0].mxu0
      %v5299 = vpop.f32.mrb[0].mxu0
      %v5300 = vpop.f32.mrb[0].mxu0
      %5301 = vmatprep.mubr.bf16.mxu0 %v4968
      %5302 = vmatmul.mubr.bf16.gmra.mrb[0].mxu0 %v4967
      %v5303 = vpop.f32.mrb[0].mxu0
      %v5304 = vpop.f32.mrb[0].mxu0
      %v5305 = vpop.f32.mrb[0].mxu0
      %v5306 = vpop.f32.mrb[0].mxu0
      %5307 = vmatprep.mubr.bf16.mxu0 %v4977
      %5308 = vmatmul.mubr.bf16.gmra.mrb[0].mxu0 %v4976
      %v5309 = vpop.f32.mrb[0].mxu0
      %v5310 = vpop.f32.mrb[0].mxu0
      %v5311 = vpop.f32.mrb[0].mxu0
      %v5312 = vpop.f32.mrb[0].mxu0
      %5313 = vmatprep.mubr.bf16.mxu0 %v4986
      %5314 = vmatmul.mubr.bf16.gmra.mrb[0].mxu0 %v4985
      %v5315 = vpop.f32.mrb[0].mxu0
      %v5316 = vpop.f32.mrb[0].mxu0
      %v5317 = vpop.f32.mrb[0].mxu0
      %v5318 = vpop.f32.mrb[0].mxu0
      %5319 = vmatprep.mubr.bf16.mxu0 %v4995
      %5320 = vmatmul.mubr.bf16.gmra.mrb[0].mxu0 %v4994
      %v5321 = vpop.f32.mrb[0].mxu0
      %v5322 = vpop.f32.mrb[0].mxu0
      %v5323 = vpop.f32.mrb[0].mxu0
      %v5324 = vpop.f32.mrb[0].mxu0
      %5325 = vmatprep.mubr.bf16.mxu0 %v5004
      %5326 = vmatmul.mubr.bf16.gmra.mrb[0].mxu0 %v5003
      %v5327 = vpop.f32.mrb[0].mxu0
      %v5328 = vpop.f32.mrb[0].mxu0
      %v5329 = vpop.f32.mrb[0].mxu0
      %v5330 = vpop.f32.mrb[0].mxu0
      %5331 = vmatprep.mubr.bf16.mxu0 %v5013
      %5332 = vmatmul.mubr.bf16.gmra.mrb[0].mxu0 %v5012
      %v5333 = vpop.f32.mrb[0].mxu0
      %v5334 = vpop.f32.mrb[0].mxu0
      %v5335 = vpop.f32.mrb[0].mxu0
      %v5336 = vpop.f32.mrb[0].mxu0
      %5337 = vdwg.mxu0
      %5338 = vmatprep.subr.bf16.mxu0 %v4584
      %5339 = vmatpush1.bf16.xpose.msra.mxu0 %v4583
      %5340 = vmatprep.subr.bf16.mxu0 %v4593
      %5341 = vmatpush1.bf16.xpose.msra.mxu0 %v4592
      %5342 = vmatprep.subr.bf16.mxu0 %v4602
      %5343 = vmatpush1.bf16.xpose.msra.mxu0 %v4601
      %5344 = vmatprep.subr.bf16.mxu0 %v4611
      %5345 = vmatpush1.bf16.xpose.msra.mxu0 %v4610
      %5346 = vmatprep.subr.bf16.mxu0 %v4620
      %5347 = vmatpush1.bf16.xpose.msra.mxu0 %v4619
      %5348 = vmatprep.subr.bf16.mxu0 %v4629
      %5349 = vmatpush1.bf16.xpose.msra.mxu0 %v4628
      %5350 = vmatprep.subr.bf16.mxu0 %v4638
      %5351 = vmatpush1.bf16.xpose.msra.mxu0 %v4637
      %5352 = vmatprep.subr.bf16.mxu0 %v4647
      %5353 = vmatpush1.bf16.xpose.msra.mxu0 %v4646
      %5354 = vmatprep.subr.bf16.mxu0 %v4656
      %5355 = vmatpush1.bf16.xpose.msra.mxu0 %v4655
      %5356 = vmatprep.subr.bf16.mxu0 %v4665
      %5357 = vmatpush1.bf16.xpose.msra.mxu0 %v4664
      %5358 = vmatprep.subr.bf16.mxu0 %v4674
      %5359 = vmatpush1.bf16.xpose.msra.mxu0 %v4673
      %5360 = vmatprep.subr.bf16.mxu0 %v4683
      %5361 = vmatpush1.bf16.xpose.msra.mxu0 %v4682
      %5362 = vmatprep.subr.bf16.mxu0 %v4692
      %5363 = vmatpush1.bf16.xpose.msra.mxu0 %v4691
      %5364 = vmatprep.subr.bf16.mxu0 %v4701
      %5365 = vmatpush1.bf16.xpose.msra.mxu0 %v4700
      %5366 = vmatprep.subr.bf16.mxu0 %v4710
      %5367 = vmatpush1.bf16.xpose.msra.mxu0 %v4709
      %5368 = vmatprep.subr.bf16.mxu0 %v4719
      %5369 = vmatpush1.bf16.xpose.msra.mxu0 %v4718
      %5370 = vmatprep.mubr.bf16.mxu0 %v4952
      %5371 = vmatmul.mubr.bf16.gmra.mrb[0].mxu0 %v4951
      %v5372 = vpop.f32.mrb[0].mxu0
      %v5373 = vadd.f32 %v5290, %v5372
      %v5374 = vpop.f32.mrb[0].mxu0
      %v5375 = vadd.f32 %v5292, %v5374
      %v5376 = vpop.f32.mrb[0].mxu0
      %v5377 = vpop.f32.mrb[0].mxu0
      %5378 = vmatprep.mubr.bf16.mxu0 %v4961
      %5379 = vmatmul.mubr.bf16.gmra.mrb[0].mxu0 %v4960
      %v5380 = vpop.f32.mrb[0].mxu0
      %v5381 = vpop.f32.mrb[0].mxu0
      %v5382 = vpop.f32.mrb[0].mxu0
      %v5383 = vpop.f32.mrb[0].mxu0
      %5384 = vmatprep.mubr.bf16.mxu0 %v4970
      %5385 = vmatmul.mubr.bf16.gmra.mrb[0].mxu0 %v4969
      %v5386 = vpop.f32.mrb[0].mxu0
      %v5387 = vpop.f32.mrb[0].mxu0
      %v5388 = vpop.f32.mrb[0].mxu0
      %v5389 = vpop.f32.mrb[0].mxu0
      %5390 = vmatprep.mubr.bf16.mxu0 %v4979
      %5391 = vmatmul.mubr.bf16.gmra.mrb[0].mxu0 %v4978
      %v5392 = vpop.f32.mrb[0].mxu0
      %v5393 = vpop.f32.mrb[0].mxu0
      %v5394 = vpop.f32.mrb[0].mxu0
      %v5395 = vpop.f32.mrb[0].mxu0
      %5396 = vmatprep.mubr.bf16.mxu0 %v4988
      %5397 = vmatmul.mubr.bf16.gmra.mrb[0].mxu0 %v4987
      %v5398 = vpop.f32.mrb[0].mxu0
      %v5399 = vpop.f32.mrb[0].mxu0
      %v5400 = vpop.f32.mrb[0].mxu0
      %v5401 = vpop.f32.mrb[0].mxu0
      %5402 = vmatprep.mubr.bf16.mxu0 %v4997
      %5403 = vmatmul.mubr.bf16.gmra.mrb[0].mxu0 %v4996
      %v5404 = vpop.f32.mrb[0].mxu0
      %v5405 = vpop.f32.mrb[0].mxu0
      %v5406 = vpop.f32.mrb[0].mxu0
      %v5407 = vpop.f32.mrb[0].mxu0
      %5408 = vmatprep.mubr.bf16.mxu0 %v5006
      %5409 = vmatmul.mubr.bf16.gmra.mrb[0].mxu0 %v5005
      %v5410 = vpop.f32.mrb[0].mxu0
      %v5411 = vpop.f32.mrb[0].mxu0
      %v5412 = vpop.f32.mrb[0].mxu0
      %v5413 = vpop.f32.mrb[0].mxu0
      %5414 = vmatprep.mubr.bf16.mxu0 %v5015
      %5415 = vmatmul.mubr.bf16.gmra.mrb[0].mxu0 %v5014
      %v5416 = vpop.f32.mrb[0].mxu0
      %v5417 = vpop.f32.mrb[0].mxu0
      %v5418 = vpop.f32.mrb[0].mxu0
      %v5419 = vpop.f32.mrb[0].mxu0
      %5420 = vdwg.mxu0
      %5421 = vmatprep.subr.bf16.mxu0 0
      %5422 = vmatpush1.bf16.xpose.msra.mxu0 %v4585
      %5423 = vmatprep.subr.bf16.mxu0 0
      %5424 = vmatpush1.bf16.xpose.msra.mxu0 %v4594
      %5425 = vmatprep.subr.bf16.mxu0 0
      %5426 = vmatpush1.bf16.xpose.msra.mxu0 %v4603
      %5427 = vmatprep.subr.bf16.mxu0 0
      %5428 = vmatpush1.bf16.xpose.msra.mxu0 %v4612
      %5429 = vmatprep.subr.bf16.mxu0 0
      %5430 = vmatpush1.bf16.xpose.msra.mxu0 %v4621
      %5431 = vmatprep.subr.bf16.mxu0 0
      %5432 = vmatpush1.bf16.xpose.msra.mxu0 %v4630
      %5433 = vmatprep.subr.bf16.mxu0 0
      %5434 = vmatpush1.bf16.xpose.msra.mxu0 %v4639
      %5435 = vmatprep.subr.bf16.mxu0 0
      %5436 = vmatpush1.bf16.xpose.msra.mxu0 %v4648
      %5437 = vmatprep.subr.bf16.mxu0 0
      %5438 = vmatpush1.bf16.xpose.msra.mxu0 %v4657
      %5439 = vmatprep.subr.bf16.mxu0 0
      %5440 = vmatpush1.bf16.xpose.msra.mxu0 %v4666
      %5441 = vmatprep.subr.bf16.mxu0 0
      %5442 = vmatpush1.bf16.xpose.msra.mxu0 %v4675
      %5443 = vmatprep.subr.bf16.mxu0 0
      %5444 = vmatpush1.bf16.xpose.msra.mxu0 %v4684
      %5445 = vmatprep.subr.bf16.mxu0 0
      %5446 = vmatpush1.bf16.xpose.msra.mxu0 %v4693
      %5447 = vmatprep.subr.bf16.mxu0 0
      %5448 = vmatpush1.bf16.xpose.msra.mxu0 %v4702
      %5449 = vmatprep.subr.bf16.mxu0 0
      %5450 = vmatpush1.bf16.xpose.msra.mxu0 %v4711
      %5451 = vmatprep.subr.bf16.mxu0 0
      %5452 = vmatpush1.bf16.xpose.msra.mxu0 %v4720
      %5453 = vmatprep.mubr.bf16.mxu0 0
      %5454 = vmatmul.mubr.bf16.gmra.mrb[0].mxu0 %v4953
      %v5455 = vpop.f32.mrb[0].mxu0
      %v5456 = vadd.f32 %v5373, %v5455
      %v5457 = vpop.f32.mrb[0].mxu0
      %v5458 = vadd.f32 %v5375, %v5457
      %v5459 = vpop.f32.mrb[0].mxu0
      %v5460 = vpop.f32.mrb[0].mxu0
      %5461 = vmatprep.mubr.bf16.mxu0 0
      %5462 = vmatmul.mubr.bf16.gmra.mrb[0].mxu0 %v4962
      %v5463 = vpop.f32.mrb[0].mxu0
      %v5464 = vpop.f32.mrb[0].mxu0
      %v5465 = vpop.f32.mrb[0].mxu0
      %v5466 = vpop.f32.mrb[0].mxu0
      %5467 = vmatprep.mubr.bf16.mxu0 0
      %5468 = vmatmul.mubr.bf16.gmra.mrb[0].mxu0 %v4971
      %v5469 = vpop.f32.mrb[0].mxu0
      %v5470 = vpop.f32.mrb[0].mxu0
      %v5471 = vpop.f32.mrb[0].mxu0
      %v5472 = vpop.f32.mrb[0].mxu0
      %5473 = vmatprep.mubr.bf16.mxu0 0
      %5474 = vmatmul.mubr.bf16.gmra.mrb[0].mxu0 %v4980
      %v5475 = vpop.f32.mrb[0].mxu0
      %v5476 = vpop.f32.mrb[0].mxu0
      %v5477 = vpop.f32.mrb[0].mxu0
      %v5478 = vpop.f32.mrb[0].mxu0
      %5479 = vmatprep.mubr.bf16.mxu0 0
      %5480 = vmatmul.mubr.bf16.gmra.mrb[0].mxu0 %v4989
      %v5481 = vpop.f32.mrb[0].mxu0
      %v5482 = vpop.f32.mrb[0].mxu0
      %v5483 = vpop.f32.mrb[0].mxu0
      %v5484 = vpop.f32.mrb[0].mxu0
      %5485 = vmatprep.mubr.bf16.mxu0 0
      %5486 = vmatmul.mubr.bf16.gmra.mrb[0].mxu0 %v4998
      %v5487 = vpop.f32.mrb[0].mxu0
      %v5488 = vpop.f32.mrb[0].mxu0
      %v5489 = vpop.f32.mrb[0].mxu0
      %v5490 = vpop.f32.mrb[0].mxu0
      %5491 = vmatprep.mubr.bf16.mxu0 0
      %5492 = vmatmul.mubr.bf16.gmra.mrb[0].mxu0 %v5007
      %v5493 = vpop.f32.mrb[0].mxu0
      %v5494 = vpop.f32.mrb[0].mxu0
      %v5495 = vpop.f32.mrb[0].mxu0
      %v5496 = vpop.f32.mrb[0].mxu0
      %5497 = vmatprep.mubr.bf16.mxu0 0
      %5498 = vmatmul.mubr.bf16.gmra.mrb[0].mxu0 %v5016
      %v5499 = vpop.f32.mrb[0].mxu0
      %v5500 = vpop.f32.mrb[0].mxu0
      %v5501 = vpop.f32.mrb[0].mxu0
      %v5502 = vpop.f32.mrb[0].mxu0
      %5503 = vdwg.mxu0
      %v5504 = vld [vmem:[%s5] sm:$0xff]
      %5506 = vset.pattern.permute.xlu0 0
      %5507 = vperm.xlu0 %5506, %v5504
      %v5508 = vpop.permute.xlu0 %5507
      %v5510 = vmul.f32 %v5456, %v5508
      %v5511 = vmul.f32 %v5458, %v5508
      %v5512 = vld [vmem:[%s6] sm:$0xff]
      %5514 = vset.pattern.permute.xlu0 0
      %5515 = vperm.xlu0 %5514, %v5512
      %v5516 = vpop.permute.xlu0 %5515
      %v5518 = vadd.f32 %v5510, %v5516
      %v5519 = vadd.f32 %v5511, %v5516
      %v5520 = vmax.f32 %v5518, 0.0
      %v5521 = vmax.f32 %v5519, 0.0
      %5522 = vst [vmem:[%s278] sm:$0xff] %v5520
      %5523 = vst [vmem:[%s278 + $0x8] sm:$0xff] %v5521
      %p5524 = scmp.lt.s32.totalorder %s18, 1
      %s5525 = scalar_select %p5524, %s18, 1
      %s5526 = smul.addr %s5525, 2
      %s5527 = smul.addr %s5526, 8
      %s5528 = scalar_lea.vmem %s7, %s5527
      // Predicated region
      $region49: #{in_forward.1} parent=47 // pred_check
        %p5529 = pneg %p188
      $region50: #{in_forward.1} parent=47 // pred_check_branch
        %5531 = sbr.rel (%p5529) target = $region52
      $region51: #{in_forward.1} parent=47 // pred_region
        _
      $region52: #{in_forward.1} parent=47 // pred_fallthru
        _
    $region48: #{in_forward.1} parent=5 // pred_fallthru
      _
    %p5532 = scmp.le.s32.totalorder 2, %s13
    // Predicated region
    $region53: #{in_forward.1} parent=5 // pred_check
      %p5533 = pneg %p5532
    $region54: #{in_forward.1} parent=5 // pred_check_branch
      %5535 = sbr.rel (%p5533) target = $region56
    $region55: #{in_forward.1} parent=5 // pred_region
      %s5536 = ssub.s32 %s13, 2
      // Predicated region
      $region57: #{in_forward.1} parent=55 // pred_check
        %p5537 = pneg %p194
      $region58: #{in_forward.1} parent=55 // pred_check_branch
        %5539 = sbr.rel (%p5537) target = $region60
      $region59: #{in_forward.1} parent=55 // pred_region
        %p5540 = scmp.lt.s32.totalorder %s19, 1
        %s5541 = scalar_select %p5540, %s19, 1
        %s5542 = smul.addr %s5541, 2
        %s5543 = smul.addr %s5542, 8
        %s5544 = scalar_lea.vmem %s7, %s5543
      $region60: #{in_forward.1} parent=55 // pred_fallthru
        _
    $region56: #{in_forward.1} parent=5 // pred_fallthru
      _
  $region6: #{in_forward.1} parent=0 // loop_footer
    %s17 = sadd.s32 1, %s13
  $region7: #{in_forward.1} parent=0 // loop_footer_branch
    %12 = sbr.rel target = $region3
  $region8: #{in_forward.1} parent=0 // loop_exit
    _

</llo_original>
